<compile_context>
chip_gen: v5e
topology: v5e:2x2
jax: 0.10.0
libtpu: 0.0.40
codegen_flags: <defaults>
</compile_context>

<pallas_src>
import numpy as np
import jax
import jax.numpy as jnp
from jax import lax
from jax.experimental import pallas as pl
from jax.experimental.pallas import tpu as pltpu


# --------------------------------------------------------------------------- #
# Trace-time constants / boundary glue
# --------------------------------------------------------------------------- #
def _pool_select_matrix(N, H, W, pad_next):
    """0/1 matrix: picks the 2x2-pool anchor rows out of the `maxed` conv rows
    (flat padded layout of an N x H x W grid) and scatters them into the next
    layer's zero-padded flat layout (or a dense (N*Hp*Wp, :) map if pad_next is
    False).  Built once at trace time with numpy; exact in bf16 (only 0/1)."""
    Hp, Wp = H // 2, W // 2
    Lp = (H + 2) * (W + 2)
    Rm = N * Lp - 3 * (W + 3)
    if pad_next:
        Lpn = (Hp + 2) * (Wp + 2)
        sel = np.zeros((N * Lpn, Rm), np.float32)
        dst = lambda n, i, j: n * Lpn + (i + 1) * (Wp + 2) + (j + 1)
    else:
        sel = np.zeros((N * Hp * Wp, Rm), np.float32)
        dst = lambda n, i, j: n * Hp * Wp + i * Wp + j
    for n in range(N):
        for i in range(Hp):
            for j in range(Wp):
                src = n * Lp + (2 * i + 1) * (W + 2) + (2 * j + 1) - (W + 3)
                sel[dst(n, i, j), src] = 1.0
    return sel


def _prepare_operands(params, x_nchw):
    """Boundary glue: layer-1 im2col of the tiny input, weight reshape/pad/cast
    to bf16, and the constant pool-select matrices."""
    N, C, H, W = x_nchw.shape
    assert (C, H, W) == (4, 16, 16), "kernel specialized to (N,4,16,16) inputs"

    # Layer-1 im2col (done in XLA on the ~8 KB input so that every in-kernel
    # lane concat is 128-aligned).  Rows follow the flat padded layout.
    xh = jnp.transpose(x_nchw, (0, 2, 3, 1)).astype(jnp.bfloat16)        # NHWC
    Lp = (H + 2) * (W + 2)
    S1 = N * Lp - 2 * (W + 3)
    xf = jnp.pad(xh, ((0, 0), (1, 1), (1, 1), (0, 0))).reshape(N * Lp, C)
    p1 = jnp.concatenate(
        [xf[dy * (W + 2) + dx: dy * (W + 2) + dx + S1, :]
         for dy in range(3) for dx in range(3)], axis=-1)                # (S1, 36)

    # Weights in (9*Cin, Cout) matmul form, bf16.  Layer-1 Cout padded 64->128
    # (and layer-2 Cin rows accordingly, with zeros) for 128-aligned concats.
    w1 = jnp.pad(params["w1"].reshape(9 * 4, 64), ((0, 0), (0, 64))).astype(jnp.bfloat16)
    b1 = jnp.pad(params["b1"], (0, 64)).reshape(1, 128).astype(jnp.float32)
    w2 = jnp.pad(params["w2"], ((0, 0), (0, 0), (0, 64), (0, 0))
                 ).reshape(9 * 128, 128).astype(jnp.bfloat16)
    b2 = params["b2"].reshape(1, 128).astype(jnp.float32)
    w3 = params["w3"].reshape(9 * 128, 256).astype(jnp.bfloat16)
    b3 = params["b3"].reshape(1, 256).astype(jnp.float32)
    w4 = params["w4"].reshape(9 * 256, 512).astype(jnp.bfloat16)
    b4 = params["b4"].reshape(1, 512).astype(jnp.float32)
    w5 = params["w5"].astype(jnp.bfloat16)
    b5 = params["b5"].reshape(1, 4).astype(jnp.float32)

    s1 = jnp.asarray(_pool_select_matrix(N, 16, 16, pad_next=True), jnp.bfloat16)
    s2 = jnp.asarray(_pool_select_matrix(N, 8, 8, pad_next=True), jnp.bfloat16)
    s3 = jnp.asarray(_pool_select_matrix(N, 4, 4, pad_next=True), jnp.bfloat16)
    s4 = jnp.asarray(_pool_select_matrix(N, 2, 2, pad_next=False), jnp.bfloat16)

    return (p1, w1, b1, s1, w2, b2, s2, w3, b3, s3, w4, b4, s4, w5, b5)


# --------------------------------------------------------------------------- #
# The single fused Pallas kernel
# --------------------------------------------------------------------------- #
def _nn_downscale_kernel(p1_ref, w1_ref, b1_ref, s1_ref,
                         w2_ref, b2_ref, s2_ref,
                         w3_ref, b3_ref, s3_ref,
                         w4_ref, b4_ref, s4_ref,
                         w5_ref, b5_ref, o_ref):
    """Whole NNDownscale forward on VMEM-resident operands."""

    def conv_relu_pool(patches, w_ref, b_ref, sel_ref, W):
        # patches: (S, 9*Cin) bf16; one row per position of the zero-padded
        # (H+2)x(W+2) grid of every sample (flattened; border/garbage rows are
        # never picked by the select matrix).
        # Single MXU matmul for the conv (batch + space + pool offsets in M).
        conv = jnp.dot(patches, w_ref[...], preferred_element_type=jnp.float32)
        Rm = conv.shape[0] - (W + 3)
        # 2x2 maxpool == elementwise max of 4 row-shifted views (0, 1, W+2, W+3).
        m = jnp.maximum(jnp.maximum(conv[0:Rm], conv[1:Rm + 1]),
                        jnp.maximum(conv[W + 2:Rm + W + 2],
                                    conv[W + 3:Rm + W + 3]))
        a = jnp.maximum(m + b_ref[...], 0.0)                 # bias + ReLU (f32)
        # Gather pooled anchors and scatter into the next layer's zero-padded
        # flat layout via a constant 0/1 matrix (exact row selection on MXU).
        return jnp.dot(sel_ref[...], a.astype(jnp.bfloat16),
                       preferred_element_type=jnp.float32)

    def im2col(xflat, W):
        # xflat: (N*(H+2)*(W+2), C) f32 flat zero-padded activation.
        # Each 3x3 tap is a unit-stride row shift; concat along 128-aligned lanes.
        S = xflat.shape[0] - 2 * (W + 3)
        taps = [xflat[dy * (W + 2) + dx: dy * (W + 2) + dx + S, :]
                for dy in range(3) for dx in range(3)]
        return jnp.concatenate(taps, axis=-1).astype(jnp.bfloat16)

    x2 = conv_relu_pool(p1_ref[...], w1_ref, b1_ref, s1_ref, W=16)    # (N*100, 128)
    x3 = conv_relu_pool(im2col(x2, 8), w2_ref, b2_ref, s2_ref, W=8)   # (N*36, 128)
    x4 = conv_relu_pool(im2col(x3, 4), w3_ref, b3_ref, s3_ref, W=4)   # (N*16, 256)
    x5 = conv_relu_pool(im2col(x4, 2), w4_ref, b4_ref, s4_ref, W=2)   # (N, 512)

    # Final 1x1 conv on the 1x1 spatial map == dense matmul, then sigmoid.
    y = jnp.dot(x5.astype(jnp.bfloat16), w5_ref[...],
                preferred_element_type=jnp.float32) + b5_ref[...]
    o_ref[...] = pl.reciprocal(1.0 + jnp.exp(-y), approx=True)


@jax.jit
def nn_downscale_forward(params, x_nchw):
    """Matches NNDownscale.forward: NCHW in -> NCHW out (N, 4, 1, 1)."""
    N = x_nchw.shape[0]
    ops = _prepare_operands(params, x_nchw)
    out = pl.pallas_call(
        _nn_downscale_kernel,
        out_shape=jax.ShapeDtypeStruct((N, 4), jnp.float32),
        in_specs=[pl.BlockSpec(memory_space=pltpu.MemorySpace.VMEM)] * len(ops),
        out_specs=pl.BlockSpec(memory_space=pltpu.MemorySpace.VMEM),
    )(*ops)
    return out.reshape(N, 1, 1, 4).transpose(0, 3, 1, 2)


# --------------------------------------------------------------------------- #
# Parameters + pure-JAX reference
# --------------------------------------------------------------------------- #
def init_params(key):
    """Deterministic synthetic init.  Conv weights in HWIO (torch OIHW transposed)."""
    chans = [(4, 64), (64, 128), (128, 256), (256, 512)]
    keys = jax.random.split(key, 10)
    params = {}
    for i, (ci, co) in enumerate(chans):
        scale = (2.0 / (9 * ci)) ** 0.5
        params[f"w{i+1}"] = scale * jax.random.normal(keys[2 * i], (3, 3, ci, co), jnp.float32)
        params[f"b{i+1}"] = 0.01 * jax.random.normal(keys[2 * i + 1], (co,), jnp.float32)
    params["w5"] = (1.0 / 512.0) ** 0.5 * jax.random.normal(keys[8], (512, 4), jnp.float32)
    params["b5"] = 0.01 * jax.random.normal(keys[9], (4,), jnp.float32)
    return params


def reference_forward(params, x_nchw):
    """Pure-JAX f32 reference (conv + relu + maxpool x4, 1x1 conv + sigmoid)."""
    x = jnp.transpose(x_nchw, (0, 2, 3, 1))
    for i in range(1, 5):
        x = lax.conv_general_dilated(
            x, params[f"w{i}"], (1, 1), "SAME",
            dimension_numbers=("NHWC", "HWIO", "NHWC"))
        x = jnp.maximum(x + params[f"b{i}"], 0.0)
        x = lax.reduce_window(x, -jnp.inf, lax.max, (1, 2, 2, 1), (1, 2, 2, 1), "VALID")
    x = x.reshape(x.shape[0], -1)
    y = jax.nn.sigmoid(x @ params["w5"] + params["b5"])
    return y.reshape(-1, 1, 1, 4).transpose(0, 3, 1, 2)


if __name__ == "__main__":
    key = jax.random.PRNGKey(0)
    pkey, xkey = jax.random.split(key)
    params = init_params(pkey)
    x = jax.random.normal(xkey, (2, 4, 16, 16), jnp.float32)  # NCHW, like PyTorch

    out = jax.block_until_ready(nn_downscale_forward(params, x))
    ref = jax.block_until_ready(reference_forward(params, x))

    assert out.shape == (2, 4, 1, 1), out.shape
    err = float(jnp.max(jnp.abs(out - ref)))
    # bf16 weights/activations with f32 accumulation vs. the pure-f32 reference.
    assert err < 3e-2, err
    print("KERNEL_OK")
</pallas_src>

<mosaic_0001>
module attributes {stable_mosaic.version = 11 : i64} {
  func.func @_nn_downscale_kernel(%arg0: memref<610x36xbf16, #tpu.memory_space<vmem>>, %arg1: memref<36x128xbf16, #tpu.memory_space<vmem>>, %arg2: memref<1x128xf32, #tpu.memory_space<vmem>>, %arg3: memref<200x591xbf16, #tpu.memory_space<vmem>>, %arg4: memref<1152x128xbf16, #tpu.memory_space<vmem>>, %arg5: memref<1x128xf32, #tpu.memory_space<vmem>>, %arg6: memref<72x167xbf16, #tpu.memory_space<vmem>>, %arg7: memref<1152x256xbf16, #tpu.memory_space<vmem>>, %arg8: memref<1x256xf32, #tpu.memory_space<vmem>>, %arg9: memref<32x51xbf16, #tpu.memory_space<vmem>>, %arg10: memref<2304x512xbf16, #tpu.memory_space<vmem>>, %arg11: memref<1x512xf32, #tpu.memory_space<vmem>>, %arg12: memref<2x17xbf16, #tpu.memory_space<vmem>>, %arg13: memref<512x4xbf16, #tpu.memory_space<vmem>>, %arg14: memref<1x4xf32, #tpu.memory_space<vmem>>, %arg15: memref<2x4xf32, #tpu.memory_space<vmem>>) attributes {dimension_semantics = [], scalar_prefetch = 0 : i64, scratch_operands = 0 : i64, tpu.core_type = #tpu.core_type<tc>} {
    %c0 = arith.constant 0 : index
    %c0_0 = arith.constant 0 : index
    %0 = vector.load %arg0[%c0, %c0_0] : memref<610x36xbf16, #tpu.memory_space<vmem>>, vector<610x36xbf16>
    %c0_1 = arith.constant 0 : index
    %c0_2 = arith.constant 0 : index
    %1 = vector.load %arg1[%c0_1, %c0_2] : memref<36x128xbf16, #tpu.memory_space<vmem>>, vector<36x128xbf16>
    %cst = arith.constant dense<0.000000e+00> : vector<610x128xf32>
    %2 = tpu.matmul %0, %1, %cst {dimension_numbers = #tpu.dot_dimension_numbers<[1], [0], [0], [1], [0, 0, 1, 1], [], []>} : vector<610x36xbf16>, vector<36x128xbf16>, vector<610x128xf32> -> vector<610x128xf32>
    %3 = vector.extract_strided_slice %2 {offsets = [0, 0], sizes = [591, 128], strides = [1, 1]} : vector<610x128xf32> to vector<591x128xf32>
    %4 = vector.extract_strided_slice %2 {offsets = [1, 0], sizes = [591, 128], strides = [1, 1]} : vector<610x128xf32> to vector<591x128xf32>
    %5 = arith.maximumf %3, %4 : vector<591x128xf32>
    %6 = vector.extract_strided_slice %2 {offsets = [18, 0], sizes = [591, 128], strides = [1, 1]} : vector<610x128xf32> to vector<591x128xf32>
    %7 = vector.extract_strided_slice %2 {offsets = [19, 0], sizes = [591, 128], strides = [1, 1]} : vector<610x128xf32> to vector<591x128xf32>
    %8 = arith.maximumf %6, %7 : vector<591x128xf32>
    %9 = arith.maximumf %5, %8 : vector<591x128xf32>
    %c0_3 = arith.constant 0 : index
    %c0_4 = arith.constant 0 : index
    %10 = vector.load %arg2[%c0_3, %c0_4] : memref<1x128xf32, #tpu.memory_space<vmem>>, vector<1x128xf32>
    %11 = vector.broadcast %10 : vector<1x128xf32> to vector<591x128xf32>
    %12 = arith.addf %9, %11 : vector<591x128xf32>
    %cst_5 = arith.constant 0.000000e+00 : f32
    %13 = vector.broadcast %cst_5 : f32 to vector<591x128xf32>
    %14 = arith.maximumf %12, %13 : vector<591x128xf32>
    %c0_6 = arith.constant 0 : index
    %c0_7 = arith.constant 0 : index
    %15 = vector.load %arg3[%c0_6, %c0_7] : memref<200x591xbf16, #tpu.memory_space<vmem>>, vector<200x591xbf16>
    %16 = arith.truncf %14 : vector<591x128xf32> to vector<591x128xbf16>
    %cst_8 = arith.constant dense<0.000000e+00> : vector<200x128xf32>
    %17 = tpu.matmul %15, %16, %cst_8 {dimension_numbers = #tpu.dot_dimension_numbers<[1], [0], [0], [1], [0, 0, 1, 1], [], []>} : vector<200x591xbf16>, vector<591x128xbf16>, vector<200x128xf32> -> vector<200x128xf32>
    %18 = vector.extract_strided_slice %17 {offsets = [0, 0], sizes = [178, 128], strides = [1, 1]} : vector<200x128xf32> to vector<178x128xf32>
    %19 = vector.extract_strided_slice %17 {offsets = [1, 0], sizes = [178, 128], strides = [1, 1]} : vector<200x128xf32> to vector<178x128xf32>
    %20 = vector.extract_strided_slice %17 {offsets = [2, 0], sizes = [178, 128], strides = [1, 1]} : vector<200x128xf32> to vector<178x128xf32>
    %21 = vector.extract_strided_slice %17 {offsets = [10, 0], sizes = [178, 128], strides = [1, 1]} : vector<200x128xf32> to vector<178x128xf32>
    %22 = vector.extract_strided_slice %17 {offsets = [11, 0], sizes = [178, 128], strides = [1, 1]} : vector<200x128xf32> to vector<178x128xf32>
    %23 = vector.extract_strided_slice %17 {offsets = [12, 0], sizes = [178, 128], strides = [1, 1]} : vector<200x128xf32> to vector<178x128xf32>
    %24 = vector.extract_strided_slice %17 {offsets = [20, 0], sizes = [178, 128], strides = [1, 1]} : vector<200x128xf32> to vector<178x128xf32>
    %25 = vector.extract_strided_slice %17 {offsets = [21, 0], sizes = [178, 128], strides = [1, 1]} : vector<200x128xf32> to vector<178x128xf32>
    %26 = vector.extract_strided_slice %17 {offsets = [22, 0], sizes = [178, 128], strides = [1, 1]} : vector<200x128xf32> to vector<178x128xf32>
    %27 = tpu.concatenate %18, %19, %20, %21, %22, %23, %24, %25, %26 in 1 : vector<178x128xf32>, vector<178x128xf32>, vector<178x128xf32>, vector<178x128xf32>, vector<178x128xf32>, vector<178x128xf32>, vector<178x128xf32>, vector<178x128xf32>, vector<178x128xf32> -> vector<178x1152xf32>
    %28 = arith.truncf %27 : vector<178x1152xf32> to vector<178x1152xbf16>
    %c0_9 = arith.constant 0 : index
    %c0_10 = arith.constant 0 : index
    %29 = vector.load %arg4[%c0_9, %c0_10] : memref<1152x128xbf16, #tpu.memory_space<vmem>>, vector<1152x128xbf16>
    %cst_11 = arith.constant dense<0.000000e+00> : vector<178x128xf32>
    %30 = tpu.matmul %28, %29, %cst_11 {dimension_numbers = #tpu.dot_dimension_numbers<[1], [0], [0], [1], [0, 0, 1, 1], [], []>} : vector<178x1152xbf16>, vector<1152x128xbf16>, vector<178x128xf32> -> vector<178x128xf32>
    %31 = vector.extract_strided_slice %30 {offsets = [0, 0], sizes = [167, 128], strides = [1, 1]} : vector<178x128xf32> to vector<167x128xf32>
    %32 = vector.extract_strided_slice %30 {offsets = [1, 0], sizes = [167, 128], strides = [1, 1]} : vector<178x128xf32> to vector<167x128xf32>
    %33 = arith.maximumf %31, %32 : vector<167x128xf32>
    %34 = vector.extract_strided_slice %30 {offsets = [10, 0], sizes = [167, 128], strides = [1, 1]} : vector<178x128xf32> to vector<167x128xf32>
    %35 = vector.extract_strided_slice %30 {offsets = [11, 0], sizes = [167, 128], strides = [1, 1]} : vector<178x128xf32> to vector<167x128xf32>
    %36 = arith.maximumf %34, %35 : vector<167x128xf32>
    %37 = arith.maximumf %33, %36 : vector<167x128xf32>
    %c0_12 = arith.constant 0 : index
    %c0_13 = arith.constant 0 : index
    %38 = vector.load %arg5[%c0_12, %c0_13] : memref<1x128xf32, #tpu.memory_space<vmem>>, vector<1x128xf32>
    %39 = vector.broadcast %38 : vector<1x128xf32> to vector<167x128xf32>
    %40 = arith.addf %37, %39 : vector<167x128xf32>
    %cst_14 = arith.constant 0.000000e+00 : f32
    %41 = vector.broadcast %cst_14 : f32 to vector<167x128xf32>
    %42 = arith.maximumf %40, %41 : vector<167x128xf32>
    %c0_15 = arith.constant 0 : index
    %c0_16 = arith.constant 0 : index
    %43 = vector.load %arg6[%c0_15, %c0_16] : memref<72x167xbf16, #tpu.memory_space<vmem>>, vector<72x167xbf16>
    %44 = arith.truncf %42 : vector<167x128xf32> to vector<167x128xbf16>
    %cst_17 = arith.constant dense<0.000000e+00> : vector<72x128xf32>
    %45 = tpu.matmul %43, %44, %cst_17 {dimension_numbers = #tpu.dot_dimension_numbers<[1], [0], [0], [1], [0, 0, 1, 1], [], []>} : vector<72x167xbf16>, vector<167x128xbf16>, vector<72x128xf32> -> vector<72x128xf32>
    %46 = vector.extract_strided_slice %45 {offsets = [0, 0], sizes = [58, 128], strides = [1, 1]} : vector<72x128xf32> to vector<58x128xf32>
    %47 = vector.extract_strided_slice %45 {offsets = [1, 0], sizes = [58, 128], strides = [1, 1]} : vector<72x128xf32> to vector<58x128xf32>
    %48 = vector.extract_strided_slice %45 {offsets = [2, 0], sizes = [58, 128], strides = [1, 1]} : vector<72x128xf32> to vector<58x128xf32>
    %49 = vector.extract_strided_slice %45 {offsets = [6, 0], sizes = [58, 128], strides = [1, 1]} : vector<72x128xf32> to vector<58x128xf32>
    %50 = vector.extract_strided_slice %45 {offsets = [7, 0], sizes = [58, 128], strides = [1, 1]} : vector<72x128xf32> to vector<58x128xf32>
    %51 = vector.extract_strided_slice %45 {offsets = [8, 0], sizes = [58, 128], strides = [1, 1]} : vector<72x128xf32> to vector<58x128xf32>
    %52 = vector.extract_strided_slice %45 {offsets = [12, 0], sizes = [58, 128], strides = [1, 1]} : vector<72x128xf32> to vector<58x128xf32>
    %53 = vector.extract_strided_slice %45 {offsets = [13, 0], sizes = [58, 128], strides = [1, 1]} : vector<72x128xf32> to vector<58x128xf32>
    %54 = vector.extract_strided_slice %45 {offsets = [14, 0], sizes = [58, 128], strides = [1, 1]} : vector<72x128xf32> to vector<58x128xf32>
    %55 = tpu.concatenate %46, %47, %48, %49, %50, %51, %52, %53, %54 in 1 : vector<58x128xf32>, vector<58x128xf32>, vector<58x128xf32>, vector<58x128xf32>, vector<58x128xf32>, vector<58x128xf32>, vector<58x128xf32>, vector<58x128xf32>, vector<58x128xf32> -> vector<58x1152xf32>
    %56 = arith.truncf %55 : vector<58x1152xf32> to vector<58x1152xbf16>
    %c0_18 = arith.constant 0 : index
    %c0_19 = arith.constant 0 : index
    %57 = vector.load %arg7[%c0_18, %c0_19] : memref<1152x256xbf16, #tpu.memory_space<vmem>>, vector<1152x256xbf16>
    %cst_20 = arith.constant dense<0.000000e+00> : vector<58x256xf32>
    %58 = tpu.matmul %56, %57, %cst_20 {dimension_numbers = #tpu.dot_dimension_numbers<[1], [0], [0], [1], [0, 0, 1, 1], [], []>} : vector<58x1152xbf16>, vector<1152x256xbf16>, vector<58x256xf32> -> vector<58x256xf32>
    %59 = vector.extract_strided_slice %58 {offsets = [0, 0], sizes = [51, 256], strides = [1, 1]} : vector<58x256xf32> to vector<51x256xf32>
    %60 = vector.extract_strided_slice %58 {offsets = [1, 0], sizes = [51, 256], strides = [1, 1]} : vector<58x256xf32> to vector<51x256xf32>
    %61 = arith.maximumf %59, %60 : vector<51x256xf32>
    %62 = vector.extract_strided_slice %58 {offsets = [6, 0], sizes = [51, 256], strides = [1, 1]} : vector<58x256xf32> to vector<51x256xf32>
    %63 = vector.extract_strided_slice %58 {offsets = [7, 0], sizes = [51, 256], strides = [1, 1]} : vector<58x256xf32> to vector<51x256xf32>
    %64 = arith.maximumf %62, %63 : vector<51x256xf32>
    %65 = arith.maximumf %61, %64 : vector<51x256xf32>
    %c0_21 = arith.constant 0 : index
    %c0_22 = arith.constant 0 : index
    %66 = vector.load %arg8[%c0_21, %c0_22] : memref<1x256xf32, #tpu.memory_space<vmem>>, vector<1x256xf32>
    %67 = vector.broadcast %66 : vector<1x256xf32> to vector<51x256xf32>
    %68 = arith.addf %65, %67 : vector<51x256xf32>
    %cst_23 = arith.constant 0.000000e+00 : f32
    %69 = vector.broadcast %cst_23 : f32 to vector<51x256xf32>
    %70 = arith.maximumf %68, %69 : vector<51x256xf32>
    %c0_24 = arith.constant 0 : index
    %c0_25 = arith.constant 0 : index
    %71 = vector.load %arg9[%c0_24, %c0_25] : memref<32x51xbf16, #tpu.memory_space<vmem>>, vector<32x51xbf16>
    %72 = arith.truncf %70 : vector<51x256xf32> to vector<51x256xbf16>
    %cst_26 = arith.constant dense<0.000000e+00> : vector<32x256xf32>
    %73 = tpu.matmul %71, %72, %cst_26 {dimension_numbers = #tpu.dot_dimension_numbers<[1], [0], [0], [1], [0, 0, 1, 1], [], []>} : vector<32x51xbf16>, vector<51x256xbf16>, vector<32x256xf32> -> vector<32x256xf32>
    %74 = vector.extract_strided_slice %73 {offsets = [0, 0], sizes = [22, 256], strides = [1, 1]} : vector<32x256xf32> to vector<22x256xf32>
    %75 = vector.extract_strided_slice %73 {offsets = [1, 0], sizes = [22, 256], strides = [1, 1]} : vector<32x256xf32> to vector<22x256xf32>
    %76 = vector.extract_strided_slice %73 {offsets = [2, 0], sizes = [22, 256], strides = [1, 1]} : vector<32x256xf32> to vector<22x256xf32>
    %77 = vector.extract_strided_slice %73 {offsets = [4, 0], sizes = [22, 256], strides = [1, 1]} : vector<32x256xf32> to vector<22x256xf32>
    %78 = vector.extract_strided_slice %73 {offsets = [5, 0], sizes = [22, 256], strides = [1, 1]} : vector<32x256xf32> to vector<22x256xf32>
    %79 = vector.extract_strided_slice %73 {offsets = [6, 0], sizes = [22, 256], strides = [1, 1]} : vector<32x256xf32> to vector<22x256xf32>
    %80 = vector.extract_strided_slice %73 {offsets = [8, 0], sizes = [22, 256], strides = [1, 1]} : vector<32x256xf32> to vector<22x256xf32>
    %81 = vector.extract_strided_slice %73 {offsets = [9, 0], sizes = [22, 256], strides = [1, 1]} : vector<32x256xf32> to vector<22x256xf32>
    %82 = vector.extract_strided_slice %73 {offsets = [10, 0], sizes = [22, 256], strides = [1, 1]} : vector<32x256xf32> to vector<22x256xf32>
    %83 = tpu.concatenate %74, %75, %76, %77, %78, %79, %80, %81, %82 in 1 : vector<22x256xf32>, vector<22x256xf32>, vector<22x256xf32>, vector<22x256xf32>, vector<22x256xf32>, vector<22x256xf32>, vector<22x256xf32>, vector<22x256xf32>, vector<22x256xf32> -> vector<22x2304xf32>
    %84 = arith.truncf %83 : vector<22x2304xf32> to vector<22x2304xbf16>
    %c0_27 = arith.constant 0 : index
    %c0_28 = arith.constant 0 : index
    %85 = vector.load %arg10[%c0_27, %c0_28] : memref<2304x512xbf16, #tpu.memory_space<vmem>>, vector<2304x512xbf16>
    %cst_29 = arith.constant dense<0.000000e+00> : vector<22x512xf32>
    %86 = tpu.matmul %84, %85, %cst_29 {dimension_numbers = #tpu.dot_dimension_numbers<[1], [0], [0], [1], [0, 0, 1, 1], [], []>} : vector<22x2304xbf16>, vector<2304x512xbf16>, vector<22x512xf32> -> vector<22x512xf32>
    %87 = vector.extract_strided_slice %86 {offsets = [0, 0], sizes = [17, 512], strides = [1, 1]} : vector<22x512xf32> to vector<17x512xf32>
    %88 = vector.extract_strided_slice %86 {offsets = [1, 0], sizes = [17, 512], strides = [1, 1]} : vector<22x512xf32> to vector<17x512xf32>
    %89 = arith.maximumf %87, %88 : vector<17x512xf32>
    %90 = vector.extract_strided_slice %86 {offsets = [4, 0], sizes = [17, 512], strides = [1, 1]} : vector<22x512xf32> to vector<17x512xf32>
    %91 = vector.extract_strided_slice %86 {offsets = [5, 0], sizes = [17, 512], strides = [1, 1]} : vector<22x512xf32> to vector<17x512xf32>
    %92 = arith.maximumf %90, %91 : vector<17x512xf32>
    %93 = arith.maximumf %89, %92 : vector<17x512xf32>
    %c0_30 = arith.constant 0 : index
    %c0_31 = arith.constant 0 : index
    %94 = vector.load %arg11[%c0_30, %c0_31] : memref<1x512xf32, #tpu.memory_space<vmem>>, vector<1x512xf32>
    %95 = vector.broadcast %94 : vector<1x512xf32> to vector<17x512xf32>
    %96 = arith.addf %93, %95 : vector<17x512xf32>
    %cst_32 = arith.constant 0.000000e+00 : f32
    %97 = vector.broadcast %cst_32 : f32 to vector<17x512xf32>
    %98 = arith.maximumf %96, %97 : vector<17x512xf32>
    %c0_33 = arith.constant 0 : index
    %c0_34 = arith.constant 0 : index
    %99 = vector.load %arg12[%c0_33, %c0_34] : memref<2x17xbf16, #tpu.memory_space<vmem>>, vector<2x17xbf16>
    %100 = arith.truncf %98 : vector<17x512xf32> to vector<17x512xbf16>
    %cst_35 = arith.constant dense<0.000000e+00> : vector<2x512xf32>
    %101 = tpu.matmul %99, %100, %cst_35 {dimension_numbers = #tpu.dot_dimension_numbers<[1], [0], [0], [1], [0, 0, 1, 1], [], []>} : vector<2x17xbf16>, vector<17x512xbf16>, vector<2x512xf32> -> vector<2x512xf32>
    %102 = arith.truncf %101 : vector<2x512xf32> to vector<2x512xbf16>
    %c0_36 = arith.constant 0 : index
    %c0_37 = arith.constant 0 : index
    %103 = vector.load %arg13[%c0_36, %c0_37] : memref<512x4xbf16, #tpu.memory_space<vmem>>, vector<512x4xbf16>
    %cst_38 = arith.constant dense<0.000000e+00> : vector<2x4xf32>
    %104 = tpu.matmul %102, %103, %cst_38 {dimension_numbers = #tpu.dot_dimension_numbers<[1], [0], [0], [1], [0, 0, 1, 1], [], []>} : vector<2x512xbf16>, vector<512x4xbf16>, vector<2x4xf32> -> vector<2x4xf32>
    %c0_39 = arith.constant 0 : index
    %c0_40 = arith.constant 0 : index
    %105 = vector.load %arg14[%c0_39, %c0_40] : memref<1x4xf32, #tpu.memory_space<vmem>>, vector<1x4xf32>
    %106 = vector.broadcast %105 : vector<1x4xf32> to vector<2x4xf32>
    %107 = arith.addf %104, %106 : vector<2x4xf32>
    %cst_41 = arith.constant 0.000000e+00 : f32
    %108 = vector.broadcast %cst_41 : f32 to vector<2x4xf32>
    %109 = arith.subf %108, %107 : vector<2x4xf32>
    %110 = math.exp %109 : vector<2x4xf32>
    %cst_42 = arith.constant 1.000000e+00 : f32
    %111 = vector.broadcast %cst_42 : f32 to vector<2x4xf32>
    %112 = arith.addf %111, %110 : vector<2x4xf32>
    %113 = tpu.reciprocal %112 {approx = true} : vector<2x4xf32> -> vector<2x4xf32>
    %c0_43 = arith.constant 0 : index
    %c0_44 = arith.constant 0 : index
    %114 = vector.load %arg15[%c0_43, %c0_44] : memref<2x4xf32, #tpu.memory_space<vmem>>, vector<2x4xf32>
    tpu.vector_store %arg15[%c0_43, %c0_44], %113 {strides = array<i32>} : memref<2x4xf32, #tpu.memory_space<vmem>>, vector<2x4xf32>,
    return
  }
}

</mosaic_0001>

<llo_original>
// kernel: nn_downscale_forward.1
$region0: #{nn_downscale_forward.1}
  #allocation0 [shape = 'u32[]', space=smem, size = 0x4, offset = 0x4, fixed_abs, tag = 'smem constant byte address 0x4 - core index']
  #allocation1 [shape = 'u32[72,128]{1,0:T(1,128)}', space=vmem, size = 0x9000, scoped, tag = 'internal scratch']
  %s0 = inlined_call_operand.vmem [shape: bf16[610,36], index: 0, kind: input, shape index: {}]
  %s1 = inlined_call_operand.vmem [shape: bf16[36,128], index: 1, kind: input, shape index: {}]
  %s2 = inlined_call_operand.vmem [shape: f32[1,128], index: 2, kind: input, shape index: {}]
  %s3 = inlined_call_operand.vmem [shape: bf16[200,591], index: 3, kind: input, shape index: {}]
  %s4 = inlined_call_operand.vmem [shape: bf16[1152,128], index: 4, kind: input, shape index: {}]
  %s5 = inlined_call_operand.vmem [shape: f32[1,128], index: 5, kind: input, shape index: {}]
  %s6 = inlined_call_operand.vmem [shape: bf16[72,167], index: 6, kind: input, shape index: {}]
  %s7 = inlined_call_operand.vmem [shape: bf16[1152,256], index: 7, kind: input, shape index: {}]
  %s8 = inlined_call_operand.vmem [shape: f32[1,256], index: 8, kind: input, shape index: {}]
  %s9 = inlined_call_operand.vmem [shape: bf16[32,51], index: 9, kind: input, shape index: {}]
  %s10 = inlined_call_operand.vmem [shape: bf16[2304,512], index: 10, kind: input, shape index: {}]
  %s11 = inlined_call_operand.vmem [shape: f32[1,512], index: 11, kind: input, shape index: {}]
  %s12 = inlined_call_operand.vmem [shape: bf16[2,17], index: 12, kind: input, shape index: {}]
  %s13 = inlined_call_operand.vmem [shape: bf16[512,4], index: 13, kind: input, shape index: {}]
  %s14 = inlined_call_operand.vmem [shape: f32[1,4], index: 14, kind: input, shape index: {}]
  %s15 = inlined_call_operand.hbm [shape: f32[2,4], index: 15, kind: output, shape index: {}]
  %s16 = sld [smem:[#allocation0]]
  $region70: #{nn_downscale_forward.1} parent=0
    _
  %s18 = ssub.s32 1, %s16
  %s19 = scalar_select 0, %s18, %s16
  $region1: #{nn_downscale_forward.1} parent=0
    #allocation2 [shape = 'u8[1024]{0}', space=vmem, size = 0x400, scoped, tag = 'output window, operand 0, single buffered']
    #allocation3 [shape = 's32[1]{0}', space=sflag, size = 0x4, scoped, tag = 'scoped memory for nn_downscale_forward.1']
    %20 = vsyncpa [#allocation3], 0
    // Predicated region
    $region2: #{nn_downscale_forward.1} parent=1 // pred_check
      _
    $region3: #{nn_downscale_forward.1} parent=1 // pred_check_branch
      %22 = sbr.rel (0) target = $region5
    $region4: #{nn_downscale_forward.1} parent=1 // pred_region
      _
    $region5: #{nn_downscale_forward.1} parent=1 // pred_fallthru
      _
    // Predicated region
    $region6: #{nn_downscale_forward.1} parent=1 // pred_check
      _
    $region7: #{nn_downscale_forward.1} parent=1 // pred_check_branch
      %24 = sbr.rel (0) target = $region9
    $region8: #{nn_downscale_forward.1} parent=1 // pred_region
      _
    $region9: #{nn_downscale_forward.1} parent=1 // pred_fallthru
      _
    // Predicated region
    $region10: #{nn_downscale_forward.1} parent=1 // pred_check
      _
    $region11: #{nn_downscale_forward.1} parent=1 // pred_check_branch
      %26 = sbr.rel (0) target = $region13
    $region12: #{nn_downscale_forward.1} parent=1 // pred_region
      _
    $region13: #{nn_downscale_forward.1} parent=1 // pred_fallthru
      _
    // Predicated region
    $region14: #{nn_downscale_forward.1} parent=1 // pred_check
      _
    $region15: #{nn_downscale_forward.1} parent=1 // pred_check_branch
      %28 = sbr.rel (0) target = $region17
    $region16: #{nn_downscale_forward.1} parent=1 // pred_region
      _
    $region17: #{nn_downscale_forward.1} parent=1 // pred_fallthru
      _
    // Predicated region
    $region18: #{nn_downscale_forward.1} parent=1 // pred_check
      _
    $region19: #{nn_downscale_forward.1} parent=1 // pred_check_branch
      %30 = sbr.rel (0) target = $region21
    $region20: #{nn_downscale_forward.1} parent=1 // pred_region
      _
    $region21: #{nn_downscale_forward.1} parent=1 // pred_fallthru
      _
    // Predicated region
    $region22: #{nn_downscale_forward.1} parent=1 // pred_check
      _
    $region23: #{nn_downscale_forward.1} parent=1 // pred_check_branch
      %32 = sbr.rel (0) target = $region25
    $region24: #{nn_downscale_forward.1} parent=1 // pred_region
      _
    $region25: #{nn_downscale_forward.1} parent=1 // pred_fallthru
      _
    // Predicated region
    $region26: #{nn_downscale_forward.1} parent=1 // pred_check
      _
    $region27: #{nn_downscale_forward.1} parent=1 // pred_check_branch
      %34 = sbr.rel (0) target = $region29
    $region28: #{nn_downscale_forward.1} parent=1 // pred_region
      _
    $region29: #{nn_downscale_forward.1} parent=1 // pred_fallthru
      _
    // Predicated region
    $region30: #{nn_downscale_forward.1} parent=1 // pred_check
      _
    $region31: #{nn_downscale_forward.1} parent=1 // pred_check_branch
      %36 = sbr.rel (0) target = $region33
    $region32: #{nn_downscale_forward.1} parent=1 // pred_region
      _
    $region33: #{nn_downscale_forward.1} parent=1 // pred_fallthru
      _
    // Predicated region
    $region34: #{nn_downscale_forward.1} parent=1 // pred_check
      _
    $region35: #{nn_downscale_forward.1} parent=1 // pred_check_branch
      %38 = sbr.rel (0) target = $region37
    $region36: #{nn_downscale_forward.1} parent=1 // pred_region
      _
    $region37: #{nn_downscale_forward.1} parent=1 // pred_fallthru
      _
    // Predicated region
    $region38: #{nn_downscale_forward.1} parent=1 // pred_check
      _
    $region39: #{nn_downscale_forward.1} parent=1 // pred_check_branch
      %40 = sbr.rel (0) target = $region41
    $region40: #{nn_downscale_forward.1} parent=1 // pred_region
      _
    $region41: #{nn_downscale_forward.1} parent=1 // pred_fallthru
      _
    // Predicated region
    $region42: #{nn_downscale_forward.1} parent=1 // pred_check
      _
    $region43: #{nn_downscale_forward.1} parent=1 // pred_check_branch
      %42 = sbr.rel (0) target = $region45
    $region44: #{nn_downscale_forward.1} parent=1 // pred_region
      _
    $region45: #{nn_downscale_forward.1} parent=1 // pred_fallthru
      _
    // Predicated region
    $region46: #{nn_downscale_forward.1} parent=1 // pred_check
      _
    $region47: #{nn_downscale_forward.1} parent=1 // pred_check_branch
      %44 = sbr.rel (0) target = $region49
    $region48: #{nn_downscale_forward.1} parent=1 // pred_region
      _
    $region49: #{nn_downscale_forward.1} parent=1 // pred_fallthru
      _
    // Predicated region
    $region50: #{nn_downscale_forward.1} parent=1 // pred_check
      _
    $region51: #{nn_downscale_forward.1} parent=1 // pred_check_branch
      %46 = sbr.rel (0) target = $region53
    $region52: #{nn_downscale_forward.1} parent=1 // pred_region
      _
    $region53: #{nn_downscale_forward.1} parent=1 // pred_fallthru
      _
    // Predicated region
    $region54: #{nn_downscale_forward.1} parent=1 // pred_check
      _
    $region55: #{nn_downscale_forward.1} parent=1 // pred_check_branch
      %48 = sbr.rel (0) target = $region57
    $region56: #{nn_downscale_forward.1} parent=1 // pred_region
      _
    $region57: #{nn_downscale_forward.1} parent=1 // pred_fallthru
      _
    // Predicated region
    $region58: #{nn_downscale_forward.1} parent=1 // pred_check
      _
    $region59: #{nn_downscale_forward.1} parent=1 // pred_check_branch
      %50 = sbr.rel (0) target = $region61
    $region60: #{nn_downscale_forward.1} parent=1 // pred_region
      _
    $region61: #{nn_downscale_forward.1} parent=1 // pred_fallthru
      _
    %v52 = vld [vmem:[%s0] sm:$0xf]
    %v53 = vld [vmem:[%s0 + $0x4] sm:$0xf]
    %v54 = vld [vmem:[%s0 + $0x8] sm:$0xf]
    %v55 = vld [vmem:[%s0 + $0xc] sm:$0xf]
    %v56 = vld [vmem:[%s0 + $0x10] sm:$0xf]
    %v57 = vld [vmem:[%s0 + $0x14] sm:$0xf]
    %v58 = vld [vmem:[%s0 + $0x18] sm:$0xf]
    %v59 = vld [vmem:[%s0 + $0x1c] sm:$0xf]
    %v60 = vld [vmem:[%s0 + $0x20] sm:$0xf]
    %v61 = vld [vmem:[%s0 + $0x24] sm:$0xf]
    %v62 = vld [vmem:[%s0 + $0x28] sm:$0xf]
    %v63 = vld [vmem:[%s0 + $0x2c] sm:$0xf]
    %v64 = vld [vmem:[%s0 + $0x30] sm:$0xf]
    %v65 = vld [vmem:[%s0 + $0x34] sm:$0xf]
    %v66 = vld [vmem:[%s0 + $0x38] sm:$0xf]
    %v67 = vld [vmem:[%s0 + $0x3c] sm:$0xf]
    %v68 = vld [vmem:[%s0 + $0x40] sm:$0xf]
    %v69 = vld [vmem:[%s0 + $0x44] sm:$0xf]
    %v70 = vld [vmem:[%s0 + $0x48] sm:$0xf]
    %v71 = vld [vmem:[%s0 + $0x4c] sm:$0xf]
    %v72 = vld [vmem:[%s0 + $0x50] sm:$0xf]
    %v73 = vld [vmem:[%s0 + $0x54] sm:$0xf]
    %v74 = vld [vmem:[%s0 + $0x58] sm:$0xf]
    %v75 = vld [vmem:[%s0 + $0x5c] sm:$0xf]
    %v76 = vld [vmem:[%s0 + $0x60] sm:$0xf]
    %v77 = vld [vmem:[%s0 + $0x64] sm:$0xf]
    %v78 = vld [vmem:[%s0 + $0x68] sm:$0xf]
    %v79 = vld [vmem:[%s0 + $0x6c] sm:$0xf]
    %v80 = vld [vmem:[%s0 + $0x70] sm:$0xf]
    %v81 = vld [vmem:[%s0 + $0x74] sm:$0xf]
    %v82 = vld [vmem:[%s0 + $0x78] sm:$0xf]
    %v83 = vld [vmem:[%s0 + $0x7c] sm:$0xf]
    %v84 = vld [vmem:[%s0 + $0x80] sm:$0xf]
    %v85 = vld [vmem:[%s0 + $0x84] sm:$0xf]
    %v86 = vld [vmem:[%s0 + $0x88] sm:$0xf]
    %v87 = vld [vmem:[%s0 + $0x8c] sm:$0xf]
    %v88 = vld [vmem:[%s0 + $0x90] sm:$0xf]
    %v89 = vld [vmem:[%s0 + $0x94] sm:$0xf]
    %v90 = vld [vmem:[%s0 + $0x98] sm:$0xf]
    %v91 = vld [vmem:[%s0 + $0x9c] sm:$0xf]
    %v92 = vld [vmem:[%s0 + $0xa0] sm:$0xf]
    %v93 = vld [vmem:[%s0 + $0xa4] sm:$0xf]
    %v94 = vld [vmem:[%s0 + $0xa8] sm:$0xf]
    %v95 = vld [vmem:[%s0 + $0xac] sm:$0xf]
    %v96 = vld [vmem:[%s0 + $0xb0] sm:$0xf]
    %v97 = vld [vmem:[%s0 + $0xb4] sm:$0xf]
    %v98 = vld [vmem:[%s0 + $0xb8] sm:$0xf]
    %v99 = vld [vmem:[%s0 + $0xbc] sm:$0xf]
    %v100 = vld [vmem:[%s0 + $0xc0] sm:$0xf]
    %v101 = vld [vmem:[%s0 + $0xc4] sm:$0xf]
    %v102 = vld [vmem:[%s0 + $0xc8] sm:$0xf]
    %v103 = vld [vmem:[%s0 + $0xcc] sm:$0xf]
    %v104 = vld [vmem:[%s0 + $0xd0] sm:$0xf]
    %v105 = vld [vmem:[%s0 + $0xd4] sm:$0xf]
    %v106 = vld [vmem:[%s0 + $0xd8] sm:$0xf]
    %v107 = vld [vmem:[%s0 + $0xdc] sm:$0xf]
    %v108 = vld [vmem:[%s0 + $0xe0] sm:$0xf]
    %v109 = vld [vmem:[%s0 + $0xe4] sm:$0xf]
    %v110 = vld [vmem:[%s0 + $0xe8] sm:$0xf]
    %v111 = vld [vmem:[%s0 + $0xec] sm:$0xf]
    %v112 = vld [vmem:[%s0 + $0xf0] sm:$0xf]
    %v113 = vld [vmem:[%s0 + $0xf4] sm:$0xf]
    %v114 = vld [vmem:[%s0 + $0xf8] sm:$0xf]
    %v115 = vld [vmem:[%s0 + $0xfc] sm:$0xf]
    %v116 = vld [vmem:[%s0 + $0x100] sm:$0xf]
    %v117 = vld [vmem:[%s0 + $0x104] sm:$0xf]
    %v118 = vld [vmem:[%s0 + $0x108] sm:$0xf]
    %v119 = vld [vmem:[%s0 + $0x10c] sm:$0xf]
    %v120 = vld [vmem:[%s0 + $0x110] sm:$0xf]
    %v121 = vld [vmem:[%s0 + $0x114] sm:$0xf]
    %v122 = vld [vmem:[%s0 + $0x118] sm:$0xf]
    %v123 = vld [vmem:[%s0 + $0x11c] sm:$0xf]
    %v124 = vld [vmem:[%s0 + $0x120] sm:$0xf]
    %v125 = vld [vmem:[%s0 + $0x124] sm:$0xf]
    %v126 = vld [vmem:[%s0 + $0x128] sm:$0xf]
    %v127 = vld [vmem:[%s0 + $0x12c] sm:$0xf]
    %v128 = vld [vmem:[%s0 + $0x130] sm:$0x1]
    %v129 = vld [vmem:[%s1] sm:$0xf]
    %v130 = vld [vmem:[%s1 + $0x4] sm:$0xf]
    %v131 = vld [vmem:[%s1 + $0x8] sm:$0xf]
    %v132 = vld [vmem:[%s1 + $0xc] sm:$0xf]
    %v133 = vld [vmem:[%s1 + $0x10] sm:$0x3]
    %v211 = vunpack.c.l.b16 %v52
    %v212 = vunpack.c.l.b16 %v53
    %v213 = vunpack.c.l.b16 %v54
    %v214 = vunpack.c.l.b16 %v55
    %v215 = vunpack.c.l.b16 %v56
    %v216 = vunpack.c.l.b16 %v57
    %v217 = vunpack.c.l.b16 %v58
    %v218 = vunpack.c.l.b16 %v59
    %v219 = vunpack.c.l.b16 %v60
    %v220 = vunpack.c.l.b16 %v61
    %v221 = vunpack.c.l.b16 %v62
    %v222 = vunpack.c.l.b16 %v63
    %v223 = vunpack.c.l.b16 %v64
    %v224 = vunpack.c.l.b16 %v65
    %v225 = vunpack.c.l.b16 %v66
    %v226 = vunpack.c.l.b16 %v67
    %v227 = vunpack.c.l.b16 %v68
    %v228 = vunpack.c.l.b16 %v69
    %v229 = vunpack.c.l.b16 %v70
    %v230 = vunpack.c.l.b16 %v71
    %v231 = vunpack.c.l.b16 %v72
    %v232 = vunpack.c.l.b16 %v73
    %v233 = vunpack.c.l.b16 %v74
    %v234 = vunpack.c.l.b16 %v75
    %v235 = vunpack.c.l.b16 %v76
    %v236 = vunpack.c.l.b16 %v77
    %v237 = vunpack.c.l.b16 %v78
    %v238 = vunpack.c.l.b16 %v79
    %v239 = vunpack.c.l.b16 %v80
    %v240 = vunpack.c.l.b16 %v81
    %v241 = vunpack.c.l.b16 %v82
    %v242 = vunpack.c.l.b16 %v83
    %v243 = vunpack.c.l.b16 %v84
    %v244 = vunpack.c.l.b16 %v85
    %v245 = vunpack.c.l.b16 %v86
    %v246 = vunpack.c.l.b16 %v87
    %v247 = vunpack.c.l.b16 %v88
    %v248 = vunpack.c.l.b16 %v89
    %v249 = vunpack.c.l.b16 %v90
    %v250 = vunpack.c.l.b16 %v91
    %v251 = vunpack.c.l.b16 %v92
    %v252 = vunpack.c.l.b16 %v93
    %v253 = vunpack.c.l.b16 %v94
    %v254 = vunpack.c.l.b16 %v95
    %v255 = vunpack.c.l.b16 %v96
    %v256 = vunpack.c.l.b16 %v97
    %v257 = vunpack.c.l.b16 %v98
    %v258 = vunpack.c.l.b16 %v99
    %v259 = vunpack.c.l.b16 %v100
    %v260 = vunpack.c.l.b16 %v101
    %v261 = vunpack.c.l.b16 %v102
    %v262 = vunpack.c.l.b16 %v103
    %v263 = vunpack.c.l.b16 %v104
    %v264 = vunpack.c.l.b16 %v105
    %v265 = vunpack.c.l.b16 %v106
    %v266 = vunpack.c.l.b16 %v107
    %v267 = vunpack.c.l.b16 %v108
    %v268 = vunpack.c.l.b16 %v109
    %v269 = vunpack.c.l.b16 %v110
    %v270 = vunpack.c.l.b16 %v111
    %v271 = vunpack.c.l.b16 %v112
    %v272 = vunpack.c.l.b16 %v113
    %v273 = vunpack.c.l.b16 %v114
    %v274 = vunpack.c.l.b16 %v115
    %v275 = vunpack.c.l.b16 %v116
    %v276 = vunpack.c.l.b16 %v117
    %v277 = vunpack.c.l.b16 %v118
    %v278 = vunpack.c.l.b16 %v119
    %v279 = vunpack.c.l.b16 %v120
    %v280 = vunpack.c.l.b16 %v121
    %v281 = vunpack.c.l.b16 %v122
    %v282 = vunpack.c.l.b16 %v123
    %v283 = vunpack.c.l.b16 %v124
    %v284 = vunpack.c.l.b16 %v125
    %v285 = vunpack.c.l.b16 %v126
    %v286 = vunpack.c.l.b16 %v127
    %v287 = vunpack.c.l.b16 %v128
    %v288 = vpack.c.b16 %v212, %v211
    %v289 = vpack.c.b16 %v214, %v213
    %v290 = vpack.c.b16 %v216, %v215
    %v291 = vpack.c.b16 %v218, %v217
    %v292 = vpack.c.b16 %v220, %v219
    %v293 = vpack.c.b16 %v222, %v221
    %v294 = vpack.c.b16 %v224, %v223
    %v295 = vpack.c.b16 %v226, %v225
    %v296 = vpack.c.b16 %v228, %v227
    %v297 = vpack.c.b16 %v230, %v229
    %v298 = vpack.c.b16 %v232, %v231
    %v299 = vpack.c.b16 %v234, %v233
    %v300 = vpack.c.b16 %v236, %v235
    %v301 = vpack.c.b16 %v238, %v237
    %v302 = vpack.c.b16 %v240, %v239
    %v303 = vpack.c.b16 %v242, %v241
    %v304 = vpack.c.b16 %v244, %v243
    %v305 = vpack.c.b16 %v246, %v245
    %v306 = vpack.c.b16 %v248, %v247
    %v307 = vpack.c.b16 %v250, %v249
    %v308 = vpack.c.b16 %v252, %v251
    %v309 = vpack.c.b16 %v254, %v253
    %v310 = vpack.c.b16 %v256, %v255
    %v311 = vpack.c.b16 %v258, %v257
    %v312 = vpack.c.b16 %v260, %v259
    %v313 = vpack.c.b16 %v262, %v261
    %v314 = vpack.c.b16 %v264, %v263
    %v315 = vpack.c.b16 %v266, %v265
    %v316 = vpack.c.b16 %v268, %v267
    %v317 = vpack.c.b16 %v270, %v269
    %v318 = vpack.c.b16 %v272, %v271
    %v319 = vpack.c.b16 %v274, %v273
    %v320 = vpack.c.b16 %v276, %v275
    %v321 = vpack.c.b16 %v278, %v277
    %v322 = vpack.c.b16 %v280, %v279
    %v323 = vpack.c.b16 %v282, %v281
    %v324 = vpack.c.b16 %v284, %v283
    %v325 = vpack.c.b16 %v286, %v285
    %v326 = vpack.c.b16 %v287, %v287
    %v332 = vunpack.c.l.b16 %v129
    %v333 = vunpack.c.l.b16 %v130
    %v334 = vunpack.c.l.b16 %v131
    %v335 = vunpack.c.l.b16 %v132
    %v336 = vunpack.c.l.b16 %v133
    %v337 = vpack.c.b16 %v333, %v332
    %v338 = vpack.c.b16 %v335, %v334
    %v339 = vpack.c.b16 %v336, %v336
    %vm342 = vcmask 293888
    %v344 = vsel %vm342, %v288, 0
    %v347 = vsel %vm342, %v289, 0
    %v350 = vsel %vm342, %v290, 0
    %v353 = vsel %vm342, %v291, 0
    %v356 = vsel %vm342, %v292, 0
    %v359 = vsel %vm342, %v293, 0
    %v362 = vsel %vm342, %v294, 0
    %v365 = vsel %vm342, %v295, 0
    %v368 = vsel %vm342, %v296, 0
    %v371 = vsel %vm342, %v297, 0
    %v374 = vsel %vm342, %v298, 0
    %v377 = vsel %vm342, %v299, 0
    %v380 = vsel %vm342, %v300, 0
    %v383 = vsel %vm342, %v301, 0
    %v386 = vsel %vm342, %v302, 0
    %v389 = vsel %vm342, %v303, 0
    %v392 = vsel %vm342, %v304, 0
    %v395 = vsel %vm342, %v305, 0
    %v398 = vsel %vm342, %v306, 0
    %v401 = vsel %vm342, %v307, 0
    %v404 = vsel %vm342, %v308, 0
    %v407 = vsel %vm342, %v309, 0
    %v410 = vsel %vm342, %v310, 0
    %v413 = vsel %vm342, %v311, 0
    %v416 = vsel %vm342, %v312, 0
    %v419 = vsel %vm342, %v313, 0
    %v422 = vsel %vm342, %v314, 0
    %v425 = vsel %vm342, %v315, 0
    %v428 = vsel %vm342, %v316, 0
    %v431 = vsel %vm342, %v317, 0
    %v434 = vsel %vm342, %v318, 0
    %v437 = vsel %vm342, %v319, 0
    %v440 = vsel %vm342, %v320, 0
    %v443 = vsel %vm342, %v321, 0
    %v446 = vsel %vm342, %v322, 0
    %v449 = vsel %vm342, %v323, 0
    %v452 = vsel %vm342, %v324, 0
    %v455 = vsel %vm342, %v325, 0
    %v458 = vsel %vm342, %v326, 0
    %vm460 = vcmask 1041408
    %v462 = vsel %vm460, %v339, 0
    %464 = vmatpush.bf16.msra.mxu0 0
    %465 = vmatpush.bf16.msra.mxu0 0
    %466 = vmatpush.bf16.msra.mxu0 0
    %467 = vmatpush.bf16.msra.mxu0 0
    %468 = vmatpush.bf16.msra.mxu0 0
    %469 = vmatpush.bf16.msra.mxu0 %v462
    %470 = vmatpush.bf16.msra.mxu0 %v338
    %471 = vmatpush.bf16.msra.mxu0 %v337
    %472 = vmatmul.bf16.gmra.mxu0 %v344
    %v473 = vpop.f32.mrf.mxu0
    %v474 = vadd.f32 0.0, %v473
    %v475 = vpop.f32.mrf.mxu0
    %v476 = vadd.f32 0.0, %v475
    %477 = vmatmul.bf16.gmra.mxu0 %v347
    %v478 = vpop.f32.mrf.mxu0
    %v479 = vadd.f32 0.0, %v478
    %v480 = vpop.f32.mrf.mxu0
    %v481 = vadd.f32 0.0, %v480
    %482 = vmatmul.bf16.gmra.mxu0 %v350
    %v483 = vpop.f32.mrf.mxu0
    %v484 = vadd.f32 0.0, %v483
    %v485 = vpop.f32.mrf.mxu0
    %v486 = vadd.f32 0.0, %v485
    %487 = vmatmul.bf16.gmra.mxu0 %v353
    %v488 = vpop.f32.mrf.mxu0
    %v489 = vadd.f32 0.0, %v488
    %v490 = vpop.f32.mrf.mxu0
    %v491 = vadd.f32 0.0, %v490
    %492 = vmatmul.bf16.gmra.mxu0 %v356
    %v493 = vpop.f32.mrf.mxu0
    %v494 = vadd.f32 0.0, %v493
    %v495 = vpop.f32.mrf.mxu0
    %v496 = vadd.f32 0.0, %v495
    %497 = vmatmul.bf16.gmra.mxu0 %v359
    %v498 = vpop.f32.mrf.mxu0
    %v499 = vadd.f32 0.0, %v498
    %v500 = vpop.f32.mrf.mxu0
    %v501 = vadd.f32 0.0, %v500
    %502 = vmatmul.bf16.gmra.mxu0 %v362
    %v503 = vpop.f32.mrf.mxu0
    %v504 = vadd.f32 0.0, %v503
    %v505 = vpop.f32.mrf.mxu0
    %v506 = vadd.f32 0.0, %v505
    %507 = vmatmul.bf16.gmra.mxu0 %v365
    %v508 = vpop.f32.mrf.mxu0
    %v509 = vadd.f32 0.0, %v508
    %v510 = vpop.f32.mrf.mxu0
    %v511 = vadd.f32 0.0, %v510
    %512 = vmatmul.bf16.gmra.mxu0 %v368
    %v513 = vpop.f32.mrf.mxu0
    %v514 = vadd.f32 0.0, %v513
    %v515 = vpop.f32.mrf.mxu0
    %v516 = vadd.f32 0.0, %v515
    %517 = vmatmul.bf16.gmra.mxu0 %v371
    %v518 = vpop.f32.mrf.mxu0
    %v519 = vadd.f32 0.0, %v518
    %v520 = vpop.f32.mrf.mxu0
    %v521 = vadd.f32 0.0, %v520
    %522 = vmatmul.bf16.gmra.mxu0 %v374
    %v523 = vpop.f32.mrf.mxu0
    %v524 = vadd.f32 0.0, %v523
    %v525 = vpop.f32.mrf.mxu0
    %v526 = vadd.f32 0.0, %v525
    %527 = vmatmul.bf16.gmra.mxu0 %v377
    %v528 = vpop.f32.mrf.mxu0
    %v529 = vadd.f32 0.0, %v528
    %v530 = vpop.f32.mrf.mxu0
    %v531 = vadd.f32 0.0, %v530
    %532 = vmatmul.bf16.gmra.mxu0 %v380
    %v533 = vpop.f32.mrf.mxu0
    %v534 = vadd.f32 0.0, %v533
    %v535 = vpop.f32.mrf.mxu0
    %v536 = vadd.f32 0.0, %v535
    %537 = vmatmul.bf16.gmra.mxu0 %v383
    %v538 = vpop.f32.mrf.mxu0
    %v539 = vadd.f32 0.0, %v538
    %v540 = vpop.f32.mrf.mxu0
    %v541 = vadd.f32 0.0, %v540
    %542 = vmatmul.bf16.gmra.mxu0 %v386
    %v543 = vpop.f32.mrf.mxu0
    %v544 = vadd.f32 0.0, %v543
    %v545 = vpop.f32.mrf.mxu0
    %v546 = vadd.f32 0.0, %v545
    %547 = vmatmul.bf16.gmra.mxu0 %v389
    %v548 = vpop.f32.mrf.mxu0
    %v549 = vadd.f32 0.0, %v548
    %v550 = vpop.f32.mrf.mxu0
    %v551 = vadd.f32 0.0, %v550
    %552 = vmatmul.bf16.gmra.mxu0 %v392
    %v553 = vpop.f32.mrf.mxu0
    %v554 = vadd.f32 0.0, %v553
    %v555 = vpop.f32.mrf.mxu0
    %v556 = vadd.f32 0.0, %v555
    %557 = vmatmul.bf16.gmra.mxu0 %v395
    %v558 = vpop.f32.mrf.mxu0
    %v559 = vadd.f32 0.0, %v558
    %v560 = vpop.f32.mrf.mxu0
    %v561 = vadd.f32 0.0, %v560
    %562 = vmatmul.bf16.gmra.mxu0 %v398
    %v563 = vpop.f32.mrf.mxu0
    %v564 = vadd.f32 0.0, %v563
    %v565 = vpop.f32.mrf.mxu0
    %v566 = vadd.f32 0.0, %v565
    %567 = vmatmul.bf16.gmra.mxu0 %v401
    %v568 = vpop.f32.mrf.mxu0
    %v569 = vadd.f32 0.0, %v568
    %v570 = vpop.f32.mrf.mxu0
    %v571 = vadd.f32 0.0, %v570
    %572 = vmatmul.bf16.gmra.mxu0 %v404
    %v573 = vpop.f32.mrf.mxu0
    %v574 = vadd.f32 0.0, %v573
    %v575 = vpop.f32.mrf.mxu0
    %v576 = vadd.f32 0.0, %v575
    %577 = vmatmul.bf16.gmra.mxu0 %v407
    %v578 = vpop.f32.mrf.mxu0
    %v579 = vadd.f32 0.0, %v578
    %v580 = vpop.f32.mrf.mxu0
    %v581 = vadd.f32 0.0, %v580
    %582 = vmatmul.bf16.gmra.mxu0 %v410
    %v583 = vpop.f32.mrf.mxu0
    %v584 = vadd.f32 0.0, %v583
    %v585 = vpop.f32.mrf.mxu0
    %v586 = vadd.f32 0.0, %v585
    %587 = vmatmul.bf16.gmra.mxu0 %v413
    %v588 = vpop.f32.mrf.mxu0
    %v589 = vadd.f32 0.0, %v588
    %v590 = vpop.f32.mrf.mxu0
    %v591 = vadd.f32 0.0, %v590
    %592 = vmatmul.bf16.gmra.mxu0 %v416
    %v593 = vpop.f32.mrf.mxu0
    %v594 = vadd.f32 0.0, %v593
    %v595 = vpop.f32.mrf.mxu0
    %v596 = vadd.f32 0.0, %v595
    %597 = vmatmul.bf16.gmra.mxu0 %v419
    %v598 = vpop.f32.mrf.mxu0
    %v599 = vadd.f32 0.0, %v598
    %v600 = vpop.f32.mrf.mxu0
    %v601 = vadd.f32 0.0, %v600
    %602 = vmatmul.bf16.gmra.mxu0 %v422
    %v603 = vpop.f32.mrf.mxu0
    %v604 = vadd.f32 0.0, %v603
    %v605 = vpop.f32.mrf.mxu0
    %v606 = vadd.f32 0.0, %v605
    %607 = vmatmul.bf16.gmra.mxu0 %v425
    %v608 = vpop.f32.mrf.mxu0
    %v609 = vadd.f32 0.0, %v608
    %v610 = vpop.f32.mrf.mxu0
    %v611 = vadd.f32 0.0, %v610
    %612 = vmatmul.bf16.gmra.mxu0 %v428
    %v613 = vpop.f32.mrf.mxu0
    %v614 = vadd.f32 0.0, %v613
    %v615 = vpop.f32.mrf.mxu0
    %v616 = vadd.f32 0.0, %v615
    %617 = vmatmul.bf16.gmra.mxu0 %v431
    %v618 = vpop.f32.mrf.mxu0
    %v619 = vadd.f32 0.0, %v618
    %v620 = vpop.f32.mrf.mxu0
    %v621 = vadd.f32 0.0, %v620
    %622 = vmatmul.bf16.gmra.mxu0 %v434
    %v623 = vpop.f32.mrf.mxu0
    %v624 = vadd.f32 0.0, %v623
    %v625 = vpop.f32.mrf.mxu0
    %v626 = vadd.f32 0.0, %v625
    %627 = vmatmul.bf16.gmra.mxu0 %v437
    %v628 = vpop.f32.mrf.mxu0
    %v629 = vadd.f32 0.0, %v628
    %v630 = vpop.f32.mrf.mxu0
    %v631 = vadd.f32 0.0, %v630
    %632 = vmatmul.bf16.gmra.mxu0 %v440
    %v633 = vpop.f32.mrf.mxu0
    %v634 = vadd.f32 0.0, %v633
    %v635 = vpop.f32.mrf.mxu0
    %v636 = vadd.f32 0.0, %v635
    %637 = vmatmul.bf16.gmra.mxu0 %v443
    %v638 = vpop.f32.mrf.mxu0
    %v639 = vadd.f32 0.0, %v638
    %v640 = vpop.f32.mrf.mxu0
    %v641 = vadd.f32 0.0, %v640
    %642 = vmatmul.bf16.gmra.mxu0 %v446
    %v643 = vpop.f32.mrf.mxu0
    %v644 = vadd.f32 0.0, %v643
    %v645 = vpop.f32.mrf.mxu0
    %v646 = vadd.f32 0.0, %v645
    %647 = vmatmul.bf16.gmra.mxu0 %v449
    %v648 = vpop.f32.mrf.mxu0
    %v649 = vadd.f32 0.0, %v648
    %v650 = vpop.f32.mrf.mxu0
    %v651 = vadd.f32 0.0, %v650
    %652 = vmatmul.bf16.gmra.mxu0 %v452
    %v653 = vpop.f32.mrf.mxu0
    %v654 = vadd.f32 0.0, %v653
    %v655 = vpop.f32.mrf.mxu0
    %v656 = vadd.f32 0.0, %v655
    %657 = vmatmul.bf16.gmra.mxu0 %v455
    %v658 = vpop.f32.mrf.mxu0
    %v659 = vadd.f32 0.0, %v658
    %v660 = vpop.f32.mrf.mxu0
    %v661 = vadd.f32 0.0, %v660
    %662 = vmatmul.bf16.gmra.mxu0 %v458
    %v663 = vpop.f32.mrf.mxu0
    %v664 = vadd.f32 0.0, %v663
    %v665 = vpop.f32.mrf.mxu0
    %666 = vdwg.mxu0
    %vm741 = vcmask 1046528
    %v742 = vrot.slane %v474, 1
    %v743 = vrot.slane %v476, 1
    %v744 = vsel %vm741, %v742, %v743
    %v745 = vrot.slane %v479, 1
    %v746 = vsel %vm741, %v743, %v745
    %v747 = vrot.slane %v481, 1
    %v748 = vsel %vm741, %v745, %v747
    %v749 = vrot.slane %v484, 1
    %v750 = vsel %vm741, %v747, %v749
    %v751 = vrot.slane %v486, 1
    %v752 = vsel %vm741, %v749, %v751
    %v753 = vrot.slane %v489, 1
    %v754 = vsel %vm741, %v751, %v753
    %v755 = vrot.slane %v491, 1
    %v756 = vsel %vm741, %v753, %v755
    %v757 = vrot.slane %v494, 1
    %v758 = vsel %vm741, %v755, %v757
    %v759 = vrot.slane %v496, 1
    %v760 = vsel %vm741, %v757, %v759
    %v761 = vrot.slane %v499, 1
    %v762 = vsel %vm741, %v759, %v761
    %v763 = vrot.slane %v501, 1
    %v764 = vsel %vm741, %v761, %v763
    %v765 = vrot.slane %v504, 1
    %v766 = vsel %vm741, %v763, %v765
    %v767 = vrot.slane %v506, 1
    %v768 = vsel %vm741, %v765, %v767
    %v769 = vrot.slane %v509, 1
    %v770 = vsel %vm741, %v767, %v769
    %v771 = vrot.slane %v511, 1
    %v772 = vsel %vm741, %v769, %v771
    %v773 = vrot.slane %v514, 1
    %v774 = vsel %vm741, %v771, %v773
    %v775 = vrot.slane %v516, 1
    %v776 = vsel %vm741, %v773, %v775
    %v777 = vrot.slane %v519, 1
    %v778 = vsel %vm741, %v775, %v777
    %v779 = vrot.slane %v521, 1
    %v780 = vsel %vm741, %v777, %v779
    %v781 = vrot.slane %v524, 1
    %v782 = vsel %vm741, %v779, %v781
    %v783 = vrot.slane %v526, 1
    %v784 = vsel %vm741, %v781, %v783
    %v785 = vrot.slane %v529, 1
    %v786 = vsel %vm741, %v783, %v785
    %v787 = vrot.slane %v531, 1
    %v788 = vsel %vm741, %v785, %v787
    %v789 = vrot.slane %v534, 1
    %v790 = vsel %vm741, %v787, %v789
    %v791 = vrot.slane %v536, 1
    %v792 = vsel %vm741, %v789, %v791
    %v793 = vrot.slane %v539, 1
    %v794 = vsel %vm741, %v791, %v793
    %v795 = vrot.slane %v541, 1
    %v796 = vsel %vm741, %v793, %v795
    %v797 = vrot.slane %v544, 1
    %v798 = vsel %vm741, %v795, %v797
    %v799 = vrot.slane %v546, 1
    %v800 = vsel %vm741, %v797, %v799
    %v801 = vrot.slane %v549, 1
    %v802 = vsel %vm741, %v799, %v801
    %v803 = vrot.slane %v551, 1
    %v804 = vsel %vm741, %v801, %v803
    %v805 = vrot.slane %v554, 1
    %v806 = vsel %vm741, %v803, %v805
    %v807 = vrot.slane %v556, 1
    %v808 = vsel %vm741, %v805, %v807
    %v809 = vrot.slane %v559, 1
    %v810 = vsel %vm741, %v807, %v809
    %v811 = vrot.slane %v561, 1
    %v812 = vsel %vm741, %v809, %v811
    %v813 = vrot.slane %v564, 1
    %v814 = vsel %vm741, %v811, %v813
    %v815 = vrot.slane %v566, 1
    %v816 = vsel %vm741, %v813, %v815
    %v817 = vrot.slane %v569, 1
    %v818 = vsel %vm741, %v815, %v817
    %v819 = vrot.slane %v571, 1
    %v820 = vsel %vm741, %v817, %v819
    %v821 = vrot.slane %v574, 1
    %v822 = vsel %vm741, %v819, %v821
    %v823 = vrot.slane %v576, 1
    %v824 = vsel %vm741, %v821, %v823
    %v825 = vrot.slane %v579, 1
    %v826 = vsel %vm741, %v823, %v825
    %v827 = vrot.slane %v581, 1
    %v828 = vsel %vm741, %v825, %v827
    %v829 = vrot.slane %v584, 1
    %v830 = vsel %vm741, %v827, %v829
    %v831 = vrot.slane %v586, 1
    %v832 = vsel %vm741, %v829, %v831
    %v833 = vrot.slane %v589, 1
    %v834 = vsel %vm741, %v831, %v833
    %v835 = vrot.slane %v591, 1
    %v836 = vsel %vm741, %v833, %v835
    %v837 = vrot.slane %v594, 1
    %v838 = vsel %vm741, %v835, %v837
    %v839 = vrot.slane %v596, 1
    %v840 = vsel %vm741, %v837, %v839
    %v841 = vrot.slane %v599, 1
    %v842 = vsel %vm741, %v839, %v841
    %v843 = vrot.slane %v601, 1
    %v844 = vsel %vm741, %v841, %v843
    %v845 = vrot.slane %v604, 1
    %v846 = vsel %vm741, %v843, %v845
    %v847 = vrot.slane %v606, 1
    %v848 = vsel %vm741, %v845, %v847
    %v849 = vrot.slane %v609, 1
    %v850 = vsel %vm741, %v847, %v849
    %v851 = vrot.slane %v611, 1
    %v852 = vsel %vm741, %v849, %v851
    %v853 = vrot.slane %v614, 1
    %v854 = vsel %vm741, %v851, %v853
    %v855 = vrot.slane %v616, 1
    %v856 = vsel %vm741, %v853, %v855
    %v857 = vrot.slane %v619, 1
    %v858 = vsel %vm741, %v855, %v857
    %v859 = vrot.slane %v621, 1
    %v860 = vsel %vm741, %v857, %v859
    %v861 = vrot.slane %v624, 1
    %v862 = vsel %vm741, %v859, %v861
    %v863 = vrot.slane %v626, 1
    %v864 = vsel %vm741, %v861, %v863
    %v865 = vrot.slane %v629, 1
    %v866 = vsel %vm741, %v863, %v865
    %v867 = vrot.slane %v631, 1
    %v868 = vsel %vm741, %v865, %v867
    %v869 = vrot.slane %v634, 1
    %v870 = vsel %vm741, %v867, %v869
    %v871 = vrot.slane %v636, 1
    %v872 = vsel %vm741, %v869, %v871
    %v873 = vrot.slane %v639, 1
    %v874 = vsel %vm741, %v871, %v873
    %v875 = vrot.slane %v641, 1
    %v876 = vsel %vm741, %v873, %v875
    %v877 = vrot.slane %v644, 1
    %v878 = vsel %vm741, %v875, %v877
    %v879 = vrot.slane %v646, 1
    %v880 = vsel %vm741, %v877, %v879
    %v881 = vrot.slane %v649, 1
    %v882 = vsel %vm741, %v879, %v881
    %v883 = vrot.slane %v651, 1
    %v884 = vsel %vm741, %v881, %v883
    %v885 = vrot.slane %v654, 1
    %v886 = vsel %vm741, %v883, %v885
    %v887 = vrot.slane %v656, 1
    %v888 = vsel %vm741, %v885, %v887
    %v963 = vmax.f32 %v474, %v744
    %v964 = vmax.f32 %v476, %v746
    %v965 = vmax.f32 %v479, %v748
    %v966 = vmax.f32 %v481, %v750
    %v967 = vmax.f32 %v484, %v752
    %v968 = vmax.f32 %v486, %v754
    %v969 = vmax.f32 %v489, %v756
    %v970 = vmax.f32 %v491, %v758
    %v971 = vmax.f32 %v494, %v760
    %v972 = vmax.f32 %v496, %v762
    %v973 = vmax.f32 %v499, %v764
    %v974 = vmax.f32 %v501, %v766
    %v975 = vmax.f32 %v504, %v768
    %v976 = vmax.f32 %v506, %v770
    %v977 = vmax.f32 %v509, %v772
    %v978 = vmax.f32 %v511, %v774
    %v979 = vmax.f32 %v514, %v776
    %v980 = vmax.f32 %v516, %v778
    %v981 = vmax.f32 %v519, %v780
    %v982 = vmax.f32 %v521, %v782
    %v983 = vmax.f32 %v524, %v784
    %v984 = vmax.f32 %v526, %v786
    %v985 = vmax.f32 %v529, %v788
    %v986 = vmax.f32 %v531, %v790
    %v987 = vmax.f32 %v534, %v792
    %v988 = vmax.f32 %v536, %v794
    %v989 = vmax.f32 %v539, %v796
    %v990 = vmax.f32 %v541, %v798
    %v991 = vmax.f32 %v544, %v800
    %v992 = vmax.f32 %v546, %v802
    %v993 = vmax.f32 %v549, %v804
    %v994 = vmax.f32 %v551, %v806
    %v995 = vmax.f32 %v554, %v808
    %v996 = vmax.f32 %v556, %v810
    %v997 = vmax.f32 %v559, %v812
    %v998 = vmax.f32 %v561, %v814
    %v999 = vmax.f32 %v564, %v816
    %v1000 = vmax.f32 %v566, %v818
    %v1001 = vmax.f32 %v569, %v820
    %v1002 = vmax.f32 %v571, %v822
    %v1003 = vmax.f32 %v574, %v824
    %v1004 = vmax.f32 %v576, %v826
    %v1005 = vmax.f32 %v579, %v828
    %v1006 = vmax.f32 %v581, %v830
    %v1007 = vmax.f32 %v584, %v832
    %v1008 = vmax.f32 %v586, %v834
    %v1009 = vmax.f32 %v589, %v836
    %v1010 = vmax.f32 %v591, %v838
    %v1011 = vmax.f32 %v594, %v840
    %v1012 = vmax.f32 %v596, %v842
    %v1013 = vmax.f32 %v599, %v844
    %v1014 = vmax.f32 %v601, %v846
    %v1015 = vmax.f32 %v604, %v848
    %v1016 = vmax.f32 %v606, %v850
    %v1017 = vmax.f32 %v609, %v852
    %v1018 = vmax.f32 %v611, %v854
    %v1019 = vmax.f32 %v614, %v856
    %v1020 = vmax.f32 %v616, %v858
    %v1021 = vmax.f32 %v619, %v860
    %v1022 = vmax.f32 %v621, %v862
    %v1023 = vmax.f32 %v624, %v864
    %v1024 = vmax.f32 %v626, %v866
    %v1025 = vmax.f32 %v629, %v868
    %v1026 = vmax.f32 %v631, %v870
    %v1027 = vmax.f32 %v634, %v872
    %v1028 = vmax.f32 %v636, %v874
    %v1029 = vmax.f32 %v639, %v876
    %v1030 = vmax.f32 %v641, %v878
    %v1031 = vmax.f32 %v644, %v880
    %v1032 = vmax.f32 %v646, %v882
    %v1033 = vmax.f32 %v649, %v884
    %v1034 = vmax.f32 %v651, %v886
    %v1035 = vmax.f32 %v654, %v888
    %v1036 = vmax.f32 %v656, %v887
    %v1040 = vrot.slane %v659, 1
    %v1041 = vsel %vm741, %v887, %v1040
    %v1042 = vrot.slane %v661, 1
    %v1043 = vsel %vm741, %v1040, %v1042
    %v1044 = vrot.slane %v664, 1
    %v1045 = vsel %vm741, %v1042, %v1044
    %v1050 = vmax.f32 %v656, %v1041
    %v1051 = vmax.f32 %v659, %v1043
    %v1052 = vmax.f32 %v661, %v1045
    %v1053 = vmax.f32 %v664, %v1044
    %vm1129 = vcmask 1045504
    %v1130 = vrot.slane %v965, 2
    %v1131 = vrot.slane %v966, 2
    %v1132 = vsel %vm1129, %v1130, %v1131
    %v1133 = vrot.slane %v967, 2
    %v1134 = vsel %vm1129, %v1131, %v1133
    %v1135 = vrot.slane %v968, 2
    %v1136 = vsel %vm1129, %v1133, %v1135
    %v1137 = vrot.slane %v969, 2
    %v1138 = vsel %vm1129, %v1135, %v1137
    %v1139 = vrot.slane %v970, 2
    %v1140 = vsel %vm1129, %v1137, %v1139
    %v1141 = vrot.slane %v971, 2
    %v1142 = vsel %vm1129, %v1139, %v1141
    %v1143 = vrot.slane %v972, 2
    %v1144 = vsel %vm1129, %v1141, %v1143
    %v1145 = vrot.slane %v973, 2
    %v1146 = vsel %vm1129, %v1143, %v1145
    %v1147 = vrot.slane %v974, 2
    %v1148 = vsel %vm1129, %v1145, %v1147
    %v1149 = vrot.slane %v975, 2
    %v1150 = vsel %vm1129, %v1147, %v1149
    %v1151 = vrot.slane %v976, 2
    %v1152 = vsel %vm1129, %v1149, %v1151
    %v1153 = vrot.slane %v977, 2
    %v1154 = vsel %vm1129, %v1151, %v1153
    %v1155 = vrot.slane %v978, 2
    %v1156 = vsel %vm1129, %v1153, %v1155
    %v1157 = vrot.slane %v979, 2
    %v1158 = vsel %vm1129, %v1155, %v1157
    %v1159 = vrot.slane %v980, 2
    %v1160 = vsel %vm1129, %v1157, %v1159
    %v1161 = vrot.slane %v981, 2
    %v1162 = vsel %vm1129, %v1159, %v1161
    %v1163 = vrot.slane %v982, 2
    %v1164 = vsel %vm1129, %v1161, %v1163
    %v1165 = vrot.slane %v983, 2
    %v1166 = vsel %vm1129, %v1163, %v1165
    %v1167 = vrot.slane %v984, 2
    %v1168 = vsel %vm1129, %v1165, %v1167
    %v1169 = vrot.slane %v985, 2
    %v1170 = vsel %vm1129, %v1167, %v1169
    %v1171 = vrot.slane %v986, 2
    %v1172 = vsel %vm1129, %v1169, %v1171
    %v1173 = vrot.slane %v987, 2
    %v1174 = vsel %vm1129, %v1171, %v1173
    %v1175 = vrot.slane %v988, 2
    %v1176 = vsel %vm1129, %v1173, %v1175
    %v1177 = vrot.slane %v989, 2
    %v1178 = vsel %vm1129, %v1175, %v1177
    %v1179 = vrot.slane %v990, 2
    %v1180 = vsel %vm1129, %v1177, %v1179
    %v1181 = vrot.slane %v991, 2
    %v1182 = vsel %vm1129, %v1179, %v1181
    %v1183 = vrot.slane %v992, 2
    %v1184 = vsel %vm1129, %v1181, %v1183
    %v1185 = vrot.slane %v993, 2
    %v1186 = vsel %vm1129, %v1183, %v1185
    %v1187 = vrot.slane %v994, 2
    %v1188 = vsel %vm1129, %v1185, %v1187
    %v1189 = vrot.slane %v995, 2
    %v1190 = vsel %vm1129, %v1187, %v1189
    %v1191 = vrot.slane %v996, 2
    %v1192 = vsel %vm1129, %v1189, %v1191
    %v1193 = vrot.slane %v997, 2
    %v1194 = vsel %vm1129, %v1191, %v1193
    %v1195 = vrot.slane %v998, 2
    %v1196 = vsel %vm1129, %v1193, %v1195
    %v1197 = vrot.slane %v999, 2
    %v1198 = vsel %vm1129, %v1195, %v1197
    %v1199 = vrot.slane %v1000, 2
    %v1200 = vsel %vm1129, %v1197, %v1199
    %v1201 = vrot.slane %v1001, 2
    %v1202 = vsel %vm1129, %v1199, %v1201
    %v1203 = vrot.slane %v1002, 2
    %v1204 = vsel %vm1129, %v1201, %v1203
    %v1205 = vrot.slane %v1003, 2
    %v1206 = vsel %vm1129, %v1203, %v1205
    %v1207 = vrot.slane %v1004, 2
    %v1208 = vsel %vm1129, %v1205, %v1207
    %v1209 = vrot.slane %v1005, 2
    %v1210 = vsel %vm1129, %v1207, %v1209
    %v1211 = vrot.slane %v1006, 2
    %v1212 = vsel %vm1129, %v1209, %v1211
    %v1213 = vrot.slane %v1007, 2
    %v1214 = vsel %vm1129, %v1211, %v1213
    %v1215 = vrot.slane %v1008, 2
    %v1216 = vsel %vm1129, %v1213, %v1215
    %v1217 = vrot.slane %v1009, 2
    %v1218 = vsel %vm1129, %v1215, %v1217
    %v1219 = vrot.slane %v1010, 2
    %v1220 = vsel %vm1129, %v1217, %v1219
    %v1221 = vrot.slane %v1011, 2
    %v1222 = vsel %vm1129, %v1219, %v1221
    %v1223 = vrot.slane %v1012, 2
    %v1224 = vsel %vm1129, %v1221, %v1223
    %v1225 = vrot.slane %v1013, 2
    %v1226 = vsel %vm1129, %v1223, %v1225
    %v1227 = vrot.slane %v1014, 2
    %v1228 = vsel %vm1129, %v1225, %v1227
    %v1229 = vrot.slane %v1015, 2
    %v1230 = vsel %vm1129, %v1227, %v1229
    %v1231 = vrot.slane %v1016, 2
    %v1232 = vsel %vm1129, %v1229, %v1231
    %v1233 = vrot.slane %v1017, 2
    %v1234 = vsel %vm1129, %v1231, %v1233
    %v1235 = vrot.slane %v1018, 2
    %v1236 = vsel %vm1129, %v1233, %v1235
    %v1237 = vrot.slane %v1019, 2
    %v1238 = vsel %vm1129, %v1235, %v1237
    %v1239 = vrot.slane %v1020, 2
    %v1240 = vsel %vm1129, %v1237, %v1239
    %v1241 = vrot.slane %v1021, 2
    %v1242 = vsel %vm1129, %v1239, %v1241
    %v1243 = vrot.slane %v1022, 2
    %v1244 = vsel %vm1129, %v1241, %v1243
    %v1245 = vrot.slane %v1023, 2
    %v1246 = vsel %vm1129, %v1243, %v1245
    %v1247 = vrot.slane %v1024, 2
    %v1248 = vsel %vm1129, %v1245, %v1247
    %v1249 = vrot.slane %v1025, 2
    %v1250 = vsel %vm1129, %v1247, %v1249
    %v1251 = vrot.slane %v1026, 2
    %v1252 = vsel %vm1129, %v1249, %v1251
    %v1253 = vrot.slane %v1027, 2
    %v1254 = vsel %vm1129, %v1251, %v1253
    %v1255 = vrot.slane %v1028, 2
    %v1256 = vsel %vm1129, %v1253, %v1255
    %v1257 = vrot.slane %v1029, 2
    %v1258 = vsel %vm1129, %v1255, %v1257
    %v1259 = vrot.slane %v1030, 2
    %v1260 = vsel %vm1129, %v1257, %v1259
    %v1261 = vrot.slane %v1031, 2
    %v1262 = vsel %vm1129, %v1259, %v1261
    %v1263 = vrot.slane %v1032, 2
    %v1264 = vsel %vm1129, %v1261, %v1263
    %v1265 = vrot.slane %v1033, 2
    %v1266 = vsel %vm1129, %v1263, %v1265
    %v1267 = vrot.slane %v1034, 2
    %v1268 = vsel %vm1129, %v1265, %v1267
    %v1269 = vrot.slane %v1035, 2
    %v1270 = vsel %vm1129, %v1267, %v1269
    %v1271 = vrot.slane %v1050, 2
    %v1272 = vsel %vm1129, %v1269, %v1271
    %v1273 = vrot.slane %v1051, 2
    %v1274 = vsel %vm1129, %v1271, %v1273
    %v1275 = vrot.slane %v1052, 2
    %v1276 = vsel %vm1129, %v1273, %v1275
    %v1277 = vrot.slane %v1053, 2
    %v1278 = vsel %vm1129, %v1275, %v1277
    %v1353 = vmax.f32 %v963, %v1132
    %v1354 = vmax.f32 %v964, %v1134
    %v1355 = vmax.f32 %v965, %v1136
    %v1356 = vmax.f32 %v966, %v1138
    %v1357 = vmax.f32 %v967, %v1140
    %v1358 = vmax.f32 %v968, %v1142
    %v1359 = vmax.f32 %v969, %v1144
    %v1360 = vmax.f32 %v970, %v1146
    %v1361 = vmax.f32 %v971, %v1148
    %v1362 = vmax.f32 %v972, %v1150
    %v1363 = vmax.f32 %v973, %v1152
    %v1364 = vmax.f32 %v974, %v1154
    %v1365 = vmax.f32 %v975, %v1156
    %v1366 = vmax.f32 %v976, %v1158
    %v1367 = vmax.f32 %v977, %v1160
    %v1368 = vmax.f32 %v978, %v1162
    %v1369 = vmax.f32 %v979, %v1164
    %v1370 = vmax.f32 %v980, %v1166
    %v1371 = vmax.f32 %v981, %v1168
    %v1372 = vmax.f32 %v982, %v1170
    %v1373 = vmax.f32 %v983, %v1172
    %v1374 = vmax.f32 %v984, %v1174
    %v1375 = vmax.f32 %v985, %v1176
    %v1376 = vmax.f32 %v986, %v1178
    %v1377 = vmax.f32 %v987, %v1180
    %v1378 = vmax.f32 %v988, %v1182
    %v1379 = vmax.f32 %v989, %v1184
    %v1380 = vmax.f32 %v990, %v1186
    %v1381 = vmax.f32 %v991, %v1188
    %v1382 = vmax.f32 %v992, %v1190
    %v1383 = vmax.f32 %v993, %v1192
    %v1384 = vmax.f32 %v994, %v1194
    %v1385 = vmax.f32 %v995, %v1196
    %v1386 = vmax.f32 %v996, %v1198
    %v1387 = vmax.f32 %v997, %v1200
    %v1388 = vmax.f32 %v998, %v1202
    %v1389 = vmax.f32 %v999, %v1204
    %v1390 = vmax.f32 %v1000, %v1206
    %v1391 = vmax.f32 %v1001, %v1208
    %v1392 = vmax.f32 %v1002, %v1210
    %v1393 = vmax.f32 %v1003, %v1212
    %v1394 = vmax.f32 %v1004, %v1214
    %v1395 = vmax.f32 %v1005, %v1216
    %v1396 = vmax.f32 %v1006, %v1218
    %v1397 = vmax.f32 %v1007, %v1220
    %v1398 = vmax.f32 %v1008, %v1222
    %v1399 = vmax.f32 %v1009, %v1224
    %v1400 = vmax.f32 %v1010, %v1226
    %v1401 = vmax.f32 %v1011, %v1228
    %v1402 = vmax.f32 %v1012, %v1230
    %v1403 = vmax.f32 %v1013, %v1232
    %v1404 = vmax.f32 %v1014, %v1234
    %v1405 = vmax.f32 %v1015, %v1236
    %v1406 = vmax.f32 %v1016, %v1238
    %v1407 = vmax.f32 %v1017, %v1240
    %v1408 = vmax.f32 %v1018, %v1242
    %v1409 = vmax.f32 %v1019, %v1244
    %v1410 = vmax.f32 %v1020, %v1246
    %v1411 = vmax.f32 %v1021, %v1248
    %v1412 = vmax.f32 %v1022, %v1250
    %v1413 = vmax.f32 %v1023, %v1252
    %v1414 = vmax.f32 %v1024, %v1254
    %v1415 = vmax.f32 %v1025, %v1256
    %v1416 = vmax.f32 %v1026, %v1258
    %v1417 = vmax.f32 %v1027, %v1260
    %v1418 = vmax.f32 %v1028, %v1262
    %v1419 = vmax.f32 %v1029, %v1264
    %v1420 = vmax.f32 %v1030, %v1266
    %v1421 = vmax.f32 %v1031, %v1268
    %v1422 = vmax.f32 %v1032, %v1270
    %v1423 = vmax.f32 %v1033, %v1272
    %v1424 = vmax.f32 %v1034, %v1274
    %v1425 = vmax.f32 %v1035, %v1276
    %v1426 = vmax.f32 %v1036, %v1278
    %v1427 = vld [vmem:[%s2] sm:$0x1]
    %v1429 = vperm.slane %v1427, 0
    %v1431 = vadd.f32 %v1353, %v1429
    %v1432 = vadd.f32 %v1354, %v1429
    %v1433 = vadd.f32 %v1355, %v1429
    %v1434 = vadd.f32 %v1356, %v1429
    %v1435 = vadd.f32 %v1357, %v1429
    %v1436 = vadd.f32 %v1358, %v1429
    %v1437 = vadd.f32 %v1359, %v1429
    %v1438 = vadd.f32 %v1360, %v1429
    %v1439 = vadd.f32 %v1361, %v1429
    %v1440 = vadd.f32 %v1362, %v1429
    %v1441 = vadd.f32 %v1363, %v1429
    %v1442 = vadd.f32 %v1364, %v1429
    %v1443 = vadd.f32 %v1365, %v1429
    %v1444 = vadd.f32 %v1366, %v1429
    %v1445 = vadd.f32 %v1367, %v1429
    %v1446 = vadd.f32 %v1368, %v1429
    %v1447 = vadd.f32 %v1369, %v1429
    %v1448 = vadd.f32 %v1370, %v1429
    %v1449 = vadd.f32 %v1371, %v1429
    %v1450 = vadd.f32 %v1372, %v1429
    %v1451 = vadd.f32 %v1373, %v1429
    %v1452 = vadd.f32 %v1374, %v1429
    %v1453 = vadd.f32 %v1375, %v1429
    %v1454 = vadd.f32 %v1376, %v1429
    %v1455 = vadd.f32 %v1377, %v1429
    %v1456 = vadd.f32 %v1378, %v1429
    %v1457 = vadd.f32 %v1379, %v1429
    %v1458 = vadd.f32 %v1380, %v1429
    %v1459 = vadd.f32 %v1381, %v1429
    %v1460 = vadd.f32 %v1382, %v1429
    %v1461 = vadd.f32 %v1383, %v1429
    %v1462 = vadd.f32 %v1384, %v1429
    %v1463 = vadd.f32 %v1385, %v1429
    %v1464 = vadd.f32 %v1386, %v1429
    %v1465 = vadd.f32 %v1387, %v1429
    %v1466 = vadd.f32 %v1388, %v1429
    %v1467 = vadd.f32 %v1389, %v1429
    %v1468 = vadd.f32 %v1390, %v1429
    %v1469 = vadd.f32 %v1391, %v1429
    %v1470 = vadd.f32 %v1392, %v1429
    %v1471 = vadd.f32 %v1393, %v1429
    %v1472 = vadd.f32 %v1394, %v1429
    %v1473 = vadd.f32 %v1395, %v1429
    %v1474 = vadd.f32 %v1396, %v1429
    %v1475 = vadd.f32 %v1397, %v1429
    %v1476 = vadd.f32 %v1398, %v1429
    %v1477 = vadd.f32 %v1399, %v1429
    %v1478 = vadd.f32 %v1400, %v1429
    %v1479 = vadd.f32 %v1401, %v1429
    %v1480 = vadd.f32 %v1402, %v1429
    %v1481 = vadd.f32 %v1403, %v1429
    %v1482 = vadd.f32 %v1404, %v1429
    %v1483 = vadd.f32 %v1405, %v1429
    %v1484 = vadd.f32 %v1406, %v1429
    %v1485 = vadd.f32 %v1407, %v1429
    %v1486 = vadd.f32 %v1408, %v1429
    %v1487 = vadd.f32 %v1409, %v1429
    %v1488 = vadd.f32 %v1410, %v1429
    %v1489 = vadd.f32 %v1411, %v1429
    %v1490 = vadd.f32 %v1412, %v1429
    %v1491 = vadd.f32 %v1413, %v1429
    %v1492 = vadd.f32 %v1414, %v1429
    %v1493 = vadd.f32 %v1415, %v1429
    %v1494 = vadd.f32 %v1416, %v1429
    %v1495 = vadd.f32 %v1417, %v1429
    %v1496 = vadd.f32 %v1418, %v1429
    %v1497 = vadd.f32 %v1419, %v1429
    %v1498 = vadd.f32 %v1420, %v1429
    %v1499 = vadd.f32 %v1421, %v1429
    %v1500 = vadd.f32 %v1422, %v1429
    %v1501 = vadd.f32 %v1423, %v1429
    %v1502 = vadd.f32 %v1424, %v1429
    %v1503 = vadd.f32 %v1425, %v1429
    %v1504 = vadd.f32 %v1426, %v1429
    %v1505 = vmax.f32 %v1431, 0.0
    %v1506 = vmax.f32 %v1432, 0.0
    %v1507 = vmax.f32 %v1433, 0.0
    %v1508 = vmax.f32 %v1434, 0.0
    %v1509 = vmax.f32 %v1435, 0.0
    %v1510 = vmax.f32 %v1436, 0.0
    %v1511 = vmax.f32 %v1437, 0.0
    %v1512 = vmax.f32 %v1438, 0.0
    %v1513 = vmax.f32 %v1439, 0.0
    %v1514 = vmax.f32 %v1440, 0.0
    %v1515 = vmax.f32 %v1441, 0.0
    %v1516 = vmax.f32 %v1442, 0.0
    %v1517 = vmax.f32 %v1443, 0.0
    %v1518 = vmax.f32 %v1444, 0.0
    %v1519 = vmax.f32 %v1445, 0.0
    %v1520 = vmax.f32 %v1446, 0.0
    %v1521 = vmax.f32 %v1447, 0.0
    %v1522 = vmax.f32 %v1448, 0.0
    %v1523 = vmax.f32 %v1449, 0.0
    %v1524 = vmax.f32 %v1450, 0.0
    %v1525 = vmax.f32 %v1451, 0.0
    %v1526 = vmax.f32 %v1452, 0.0
    %v1527 = vmax.f32 %v1453, 0.0
    %v1528 = vmax.f32 %v1454, 0.0
    %v1529 = vmax.f32 %v1455, 0.0
    %v1530 = vmax.f32 %v1456, 0.0
    %v1531 = vmax.f32 %v1457, 0.0
    %v1532 = vmax.f32 %v1458, 0.0
    %v1533 = vmax.f32 %v1459, 0.0
    %v1534 = vmax.f32 %v1460, 0.0
    %v1535 = vmax.f32 %v1461, 0.0
    %v1536 = vmax.f32 %v1462, 0.0
    %v1537 = vmax.f32 %v1463, 0.0
    %v1538 = vmax.f32 %v1464, 0.0
    %v1539 = vmax.f32 %v1465, 0.0
    %v1540 = vmax.f32 %v1466, 0.0
    %v1541 = vmax.f32 %v1467, 0.0
    %v1542 = vmax.f32 %v1468, 0.0
    %v1543 = vmax.f32 %v1469, 0.0
    %v1544 = vmax.f32 %v1470, 0.0
    %v1545 = vmax.f32 %v1471, 0.0
    %v1546 = vmax.f32 %v1472, 0.0
    %v1547 = vmax.f32 %v1473, 0.0
    %v1548 = vmax.f32 %v1474, 0.0
    %v1549 = vmax.f32 %v1475, 0.0
    %v1550 = vmax.f32 %v1476, 0.0
    %v1551 = vmax.f32 %v1477, 0.0
    %v1552 = vmax.f32 %v1478, 0.0
    %v1553 = vmax.f32 %v1479, 0.0
    %v1554 = vmax.f32 %v1480, 0.0
    %v1555 = vmax.f32 %v1481, 0.0
    %v1556 = vmax.f32 %v1482, 0.0
    %v1557 = vmax.f32 %v1483, 0.0
    %v1558 = vmax.f32 %v1484, 0.0
    %v1559 = vmax.f32 %v1485, 0.0
    %v1560 = vmax.f32 %v1486, 0.0
    %v1561 = vmax.f32 %v1487, 0.0
    %v1562 = vmax.f32 %v1488, 0.0
    %v1563 = vmax.f32 %v1489, 0.0
    %v1564 = vmax.f32 %v1490, 0.0
    %v1565 = vmax.f32 %v1491, 0.0
    %v1566 = vmax.f32 %v1492, 0.0
    %v1567 = vmax.f32 %v1493, 0.0
    %v1568 = vmax.f32 %v1494, 0.0
    %v1569 = vmax.f32 %v1495, 0.0
    %v1570 = vmax.f32 %v1496, 0.0
    %v1571 = vmax.f32 %v1497, 0.0
    %v1572 = vmax.f32 %v1498, 0.0
    %v1573 = vmax.f32 %v1499, 0.0
    %v1574 = vmax.f32 %v1500, 0.0
    %v1575 = vmax.f32 %v1501, 0.0
    %v1576 = vmax.f32 %v1502, 0.0
    %v1577 = vmax.f32 %v1503, 0.0
    %v1578 = vmax.f32 %v1504, 0.0
    %v1579 = vld [vmem:[%s3] sm:$0xff]
    %v1580 = vld [vmem:[%s3 + $0x8] sm:$0xff]
    %v1581 = vld [vmem:[%s3 + $0x10] sm:$0xf]
    %v1582 = vld [vmem:[%s3 + $0x14] sm:$0xff]
    %v1583 = vld [vmem:[%s3 + $0x1c] sm:$0xff]
    %v1584 = vld [vmem:[%s3 + $0x24] sm:$0xf]
    %v1585 = vld [vmem:[%s3 + $0x28] sm:$0xff]
    %v1586 = vld [vmem:[%s3 + $0x30] sm:$0xff]
    %v1587 = vld [vmem:[%s3 + $0x38] sm:$0xf]
    %v1588 = vld [vmem:[%s3 + $0x3c] sm:$0xff]
    %v1589 = vld [vmem:[%s3 + $0x44] sm:$0xff]
    %v1590 = vld [vmem:[%s3 + $0x4c] sm:$0xf]
    %v1591 = vld [vmem:[%s3 + $0x50] sm:$0xff]
    %v1592 = vld [vmem:[%s3 + $0x58] sm:$0xff]
    %v1593 = vld [vmem:[%s3 + $0x60] sm:$0xf]
    %v1594 = vld [vmem:[%s3 + $0x64] sm:$0xff]
    %v1595 = vld [vmem:[%s3 + $0x6c] sm:$0xff]
    %v1596 = vld [vmem:[%s3 + $0x74] sm:$0xf]
    %v1597 = vld [vmem:[%s3 + $0x78] sm:$0xff]
    %v1598 = vld [vmem:[%s3 + $0x80] sm:$0xff]
    %v1599 = vld [vmem:[%s3 + $0x88] sm:$0xf]
    %v1600 = vld [vmem:[%s3 + $0x8c] sm:$0xff]
    %v1601 = vld [vmem:[%s3 + $0x94] sm:$0xff]
    %v1602 = vld [vmem:[%s3 + $0x9c] sm:$0xf]
    %v1603 = vld [vmem:[%s3 + $0xa0] sm:$0xff]
    %v1604 = vld [vmem:[%s3 + $0xa8] sm:$0xff]
    %v1605 = vld [vmem:[%s3 + $0xb0] sm:$0xf]
    %v1606 = vld [vmem:[%s3 + $0xb4] sm:$0xff]
    %v1607 = vld [vmem:[%s3 + $0xbc] sm:$0xff]
    %v1608 = vld [vmem:[%s3 + $0xc4] sm:$0xf]
    %v1609 = vld [vmem:[%s3 + $0xc8] sm:$0xff]
    %v1610 = vld [vmem:[%s3 + $0xd0] sm:$0xff]
    %v1611 = vld [vmem:[%s3 + $0xd8] sm:$0xf]
    %v1612 = vld [vmem:[%s3 + $0xdc] sm:$0xff]
    %v1613 = vld [vmem:[%s3 + $0xe4] sm:$0xff]
    %v1614 = vld [vmem:[%s3 + $0xec] sm:$0xf]
    %v1615 = vld [vmem:[%s3 + $0xf0] sm:$0xff]
    %v1616 = vld [vmem:[%s3 + $0xf8] sm:$0xff]
    %v1617 = vld [vmem:[%s3 + $0x100] sm:$0xf]
    %v1618 = vld [vmem:[%s3 + $0x104] sm:$0xff]
    %v1619 = vld [vmem:[%s3 + $0x10c] sm:$0xff]
    %v1620 = vld [vmem:[%s3 + $0x114] sm:$0xf]
    %v1621 = vld [vmem:[%s3 + $0x118] sm:$0xff]
    %v1622 = vld [vmem:[%s3 + $0x120] sm:$0xff]
    %v1623 = vld [vmem:[%s3 + $0x128] sm:$0xf]
    %v1624 = vld [vmem:[%s3 + $0x12c] sm:$0xff]
    %v1625 = vld [vmem:[%s3 + $0x134] sm:$0xff]
    %v1626 = vld [vmem:[%s3 + $0x13c] sm:$0xf]
    %v1627 = vld [vmem:[%s3 + $0x140] sm:$0xff]
    %v1628 = vld [vmem:[%s3 + $0x148] sm:$0xff]
    %v1629 = vld [vmem:[%s3 + $0x150] sm:$0xf]
    %v1630 = vld [vmem:[%s3 + $0x154] sm:$0xff]
    %v1631 = vld [vmem:[%s3 + $0x15c] sm:$0xff]
    %v1632 = vld [vmem:[%s3 + $0x164] sm:$0xf]
    %v1633 = vld [vmem:[%s3 + $0x168] sm:$0xff]
    %v1634 = vld [vmem:[%s3 + $0x170] sm:$0xff]
    %v1635 = vld [vmem:[%s3 + $0x178] sm:$0xf]
    %v1636 = vld [vmem:[%s3 + $0x17c] sm:$0xff]
    %v1637 = vld [vmem:[%s3 + $0x184] sm:$0xff]
    %v1638 = vld [vmem:[%s3 + $0x18c] sm:$0xf]
    %v1639 = vld [vmem:[%s3 + $0x190] sm:$0xff]
    %v1640 = vld [vmem:[%s3 + $0x198] sm:$0xff]
    %v1641 = vld [vmem:[%s3 + $0x1a0] sm:$0xf]
    %v1642 = vld [vmem:[%s3 + $0x1a4] sm:$0xff]
    %v1643 = vld [vmem:[%s3 + $0x1ac] sm:$0xff]
    %v1644 = vld [vmem:[%s3 + $0x1b4] sm:$0xf]
    %v1645 = vld [vmem:[%s3 + $0x1b8] sm:$0xff]
    %v1646 = vld [vmem:[%s3 + $0x1c0] sm:$0xff]
    %v1647 = vld [vmem:[%s3 + $0x1c8] sm:$0xf]
    %v1648 = vld [vmem:[%s3 + $0x1cc] sm:$0xff]
    %v1649 = vld [vmem:[%s3 + $0x1d4] sm:$0xff]
    %v1650 = vld [vmem:[%s3 + $0x1dc] sm:$0xf]
    %v1651 = vld [vmem:[%s3 + $0x1e0] sm:$0xff]
    %v1652 = vld [vmem:[%s3 + $0x1e8] sm:$0xff]
    %v1653 = vld [vmem:[%s3 + $0x1f0] sm:$0xf]
    %v1654 = vpack.c.bf16 %v1506, %v1505
    %v1655 = vpack.c.bf16 %v1508, %v1507
    %v1656 = vpack.c.bf16 %v1510, %v1509
    %v1657 = vpack.c.bf16 %v1512, %v1511
    %v1658 = vpack.c.bf16 %v1514, %v1513
    %v1659 = vpack.c.bf16 %v1516, %v1515
    %v1660 = vpack.c.bf16 %v1518, %v1517
    %v1661 = vpack.c.bf16 %v1520, %v1519
    %v1662 = vpack.c.bf16 %v1522, %v1521
    %v1663 = vpack.c.bf16 %v1524, %v1523
    %v1664 = vpack.c.bf16 %v1526, %v1525
    %v1665 = vpack.c.bf16 %v1528, %v1527
    %v1666 = vpack.c.bf16 %v1530, %v1529
    %v1667 = vpack.c.bf16 %v1532, %v1531
    %v1668 = vpack.c.bf16 %v1534, %v1533
    %v1669 = vpack.c.bf16 %v1536, %v1535
    %v1670 = vpack.c.bf16 %v1538, %v1537
    %v1671 = vpack.c.bf16 %v1540, %v1539
    %v1672 = vpack.c.bf16 %v1542, %v1541
    %v1673 = vpack.c.bf16 %v1544, %v1543
    %v1674 = vpack.c.bf16 %v1546, %v1545
    %v1675 = vpack.c.bf16 %v1548, %v1547
    %v1676 = vpack.c.bf16 %v1550, %v1549
    %v1677 = vpack.c.bf16 %v1552, %v1551
    %v1678 = vpack.c.bf16 %v1554, %v1553
    %v1679 = vpack.c.bf16 %v1556, %v1555
    %v1680 = vpack.c.bf16 %v1558, %v1557
    %v1681 = vpack.c.bf16 %v1560, %v1559
    %v1682 = vpack.c.bf16 %v1562, %v1561
    %v1683 = vpack.c.bf16 %v1564, %v1563
    %v1684 = vpack.c.bf16 %v1566, %v1565
    %v1685 = vpack.c.bf16 %v1568, %v1567
    %v1686 = vpack.c.bf16 %v1570, %v1569
    %v1687 = vpack.c.bf16 %v1572, %v1571
    %v1688 = vpack.c.bf16 %v1574, %v1573
    %v1689 = vpack.c.bf16 %v1576, %v1575
    %v1690 = vpack.c.bf16 %v1578, %v1577
    %v1766 = vunpack.c.l.b16 %v1579
    %v1767 = vunpack.c.h.b16 %v1579
    %v1768 = vunpack.c.l.b16 %v1580
    %v1769 = vunpack.c.h.b16 %v1580
    %v1770 = vunpack.c.l.b16 %v1581
    %v1771 = vunpack.c.l.b16 %v1582
    %v1772 = vunpack.c.h.b16 %v1582
    %v1773 = vunpack.c.l.b16 %v1583
    %v1774 = vunpack.c.h.b16 %v1583
    %v1775 = vunpack.c.l.b16 %v1584
    %v1776 = vunpack.c.l.b16 %v1585
    %v1777 = vunpack.c.h.b16 %v1585
    %v1778 = vunpack.c.l.b16 %v1586
    %v1779 = vunpack.c.h.b16 %v1586
    %v1780 = vunpack.c.l.b16 %v1587
    %v1781 = vunpack.c.l.b16 %v1588
    %v1782 = vunpack.c.h.b16 %v1588
    %v1783 = vunpack.c.l.b16 %v1589
    %v1784 = vunpack.c.h.b16 %v1589
    %v1785 = vunpack.c.l.b16 %v1590
    %v1786 = vunpack.c.l.b16 %v1591
    %v1787 = vunpack.c.h.b16 %v1591
    %v1788 = vunpack.c.l.b16 %v1592
    %v1789 = vunpack.c.h.b16 %v1592
    %v1790 = vunpack.c.l.b16 %v1593
    %v1791 = vunpack.c.l.b16 %v1594
    %v1792 = vunpack.c.h.b16 %v1594
    %v1793 = vunpack.c.l.b16 %v1595
    %v1794 = vunpack.c.h.b16 %v1595
    %v1795 = vunpack.c.l.b16 %v1596
    %v1796 = vunpack.c.l.b16 %v1597
    %v1797 = vunpack.c.h.b16 %v1597
    %v1798 = vunpack.c.l.b16 %v1598
    %v1799 = vunpack.c.h.b16 %v1598
    %v1800 = vunpack.c.l.b16 %v1599
    %v1801 = vunpack.c.l.b16 %v1600
    %v1802 = vunpack.c.h.b16 %v1600
    %v1803 = vunpack.c.l.b16 %v1601
    %v1804 = vunpack.c.h.b16 %v1601
    %v1805 = vunpack.c.l.b16 %v1602
    %v1806 = vunpack.c.l.b16 %v1603
    %v1807 = vunpack.c.h.b16 %v1603
    %v1808 = vunpack.c.l.b16 %v1604
    %v1809 = vunpack.c.h.b16 %v1604
    %v1810 = vunpack.c.l.b16 %v1605
    %v1811 = vunpack.c.l.b16 %v1606
    %v1812 = vunpack.c.h.b16 %v1606
    %v1813 = vunpack.c.l.b16 %v1607
    %v1814 = vunpack.c.h.b16 %v1607
    %v1815 = vunpack.c.l.b16 %v1608
    %v1816 = vunpack.c.l.b16 %v1609
    %v1817 = vunpack.c.h.b16 %v1609
    %v1818 = vunpack.c.l.b16 %v1610
    %v1819 = vunpack.c.h.b16 %v1610
    %v1820 = vunpack.c.l.b16 %v1611
    %v1821 = vunpack.c.l.b16 %v1612
    %v1822 = vunpack.c.h.b16 %v1612
    %v1823 = vunpack.c.l.b16 %v1613
    %v1824 = vunpack.c.h.b16 %v1613
    %v1825 = vunpack.c.l.b16 %v1614
    %v1826 = vunpack.c.l.b16 %v1615
    %v1827 = vunpack.c.h.b16 %v1615
    %v1828 = vunpack.c.l.b16 %v1616
    %v1829 = vunpack.c.h.b16 %v1616
    %v1830 = vunpack.c.l.b16 %v1617
    %v1831 = vunpack.c.l.b16 %v1618
    %v1832 = vunpack.c.h.b16 %v1618
    %v1833 = vunpack.c.l.b16 %v1619
    %v1834 = vunpack.c.h.b16 %v1619
    %v1835 = vunpack.c.l.b16 %v1620
    %v1836 = vunpack.c.l.b16 %v1621
    %v1837 = vunpack.c.h.b16 %v1621
    %v1838 = vunpack.c.l.b16 %v1622
    %v1839 = vunpack.c.h.b16 %v1622
    %v1840 = vunpack.c.l.b16 %v1623
    %v1841 = vunpack.c.l.b16 %v1624
    %v1842 = vunpack.c.h.b16 %v1624
    %v1843 = vunpack.c.l.b16 %v1625
    %v1844 = vunpack.c.h.b16 %v1625
    %v1845 = vunpack.c.l.b16 %v1626
    %v1846 = vunpack.c.l.b16 %v1627
    %v1847 = vunpack.c.h.b16 %v1627
    %v1848 = vunpack.c.l.b16 %v1628
    %v1849 = vunpack.c.h.b16 %v1628
    %v1850 = vunpack.c.l.b16 %v1629
    %v1851 = vunpack.c.l.b16 %v1630
    %v1852 = vunpack.c.h.b16 %v1630
    %v1853 = vunpack.c.l.b16 %v1631
    %v1854 = vunpack.c.h.b16 %v1631
    %v1855 = vunpack.c.l.b16 %v1632
    %v1856 = vunpack.c.l.b16 %v1633
    %v1857 = vunpack.c.h.b16 %v1633
    %v1858 = vunpack.c.l.b16 %v1634
    %v1859 = vunpack.c.h.b16 %v1634
    %v1860 = vunpack.c.l.b16 %v1635
    %v1861 = vunpack.c.l.b16 %v1636
    %v1862 = vunpack.c.h.b16 %v1636
    %v1863 = vunpack.c.l.b16 %v1637
    %v1864 = vunpack.c.h.b16 %v1637
    %v1865 = vunpack.c.l.b16 %v1638
    %v1866 = vunpack.c.l.b16 %v1639
    %v1867 = vunpack.c.h.b16 %v1639
    %v1868 = vunpack.c.l.b16 %v1640
    %v1869 = vunpack.c.h.b16 %v1640
    %v1870 = vunpack.c.l.b16 %v1641
    %v1871 = vunpack.c.l.b16 %v1642
    %v1872 = vunpack.c.h.b16 %v1642
    %v1873 = vunpack.c.l.b16 %v1643
    %v1874 = vunpack.c.h.b16 %v1643
    %v1875 = vunpack.c.l.b16 %v1644
    %v1876 = vunpack.c.l.b16 %v1645
    %v1877 = vunpack.c.h.b16 %v1645
    %v1878 = vunpack.c.l.b16 %v1646
    %v1879 = vunpack.c.h.b16 %v1646
    %v1880 = vunpack.c.l.b16 %v1647
    %v1881 = vunpack.c.l.b16 %v1648
    %v1882 = vunpack.c.h.b16 %v1648
    %v1883 = vunpack.c.l.b16 %v1649
    %v1884 = vunpack.c.h.b16 %v1649
    %v1885 = vunpack.c.l.b16 %v1650
    %v1886 = vunpack.c.l.b16 %v1651
    %v1887 = vunpack.c.h.b16 %v1651
    %v1888 = vunpack.c.l.b16 %v1652
    %v1889 = vunpack.c.h.b16 %v1652
    %v1890 = vunpack.c.l.b16 %v1653
    %v1891 = vpack.c.b16 %v1771, %v1766
    %v1892 = vpack.c.b16 %v1772, %v1767
    %v1893 = vpack.c.b16 %v1773, %v1768
    %v1894 = vpack.c.b16 %v1774, %v1769
    %v1895 = vpack.c.b16 %v1775, %v1770
    %v1896 = vpack.c.b16 %v1781, %v1776
    %v1897 = vpack.c.b16 %v1782, %v1777
    %v1898 = vpack.c.b16 %v1783, %v1778
    %v1899 = vpack.c.b16 %v1784, %v1779
    %v1900 = vpack.c.b16 %v1785, %v1780
    %v1901 = vpack.c.b16 %v1791, %v1786
    %v1902 = vpack.c.b16 %v1792, %v1787
    %v1903 = vpack.c.b16 %v1793, %v1788
    %v1904 = vpack.c.b16 %v1794, %v1789
    %v1905 = vpack.c.b16 %v1795, %v1790
    %v1906 = vpack.c.b16 %v1801, %v1796
    %v1907 = vpack.c.b16 %v1802, %v1797
    %v1908 = vpack.c.b16 %v1803, %v1798
    %v1909 = vpack.c.b16 %v1804, %v1799
    %v1910 = vpack.c.b16 %v1805, %v1800
    %v1911 = vpack.c.b16 %v1811, %v1806
    %v1912 = vpack.c.b16 %v1812, %v1807
    %v1913 = vpack.c.b16 %v1813, %v1808
    %v1914 = vpack.c.b16 %v1814, %v1809
    %v1915 = vpack.c.b16 %v1815, %v1810
    %v1916 = vpack.c.b16 %v1821, %v1816
    %v1917 = vpack.c.b16 %v1822, %v1817
    %v1918 = vpack.c.b16 %v1823, %v1818
    %v1919 = vpack.c.b16 %v1824, %v1819
    %v1920 = vpack.c.b16 %v1825, %v1820
    %v1921 = vpack.c.b16 %v1831, %v1826
    %v1922 = vpack.c.b16 %v1832, %v1827
    %v1923 = vpack.c.b16 %v1833, %v1828
    %v1924 = vpack.c.b16 %v1834, %v1829
    %v1925 = vpack.c.b16 %v1835, %v1830
    %v1926 = vpack.c.b16 %v1841, %v1836
    %v1927 = vpack.c.b16 %v1842, %v1837
    %v1928 = vpack.c.b16 %v1843, %v1838
    %v1929 = vpack.c.b16 %v1844, %v1839
    %v1930 = vpack.c.b16 %v1845, %v1840
    %v1931 = vpack.c.b16 %v1851, %v1846
    %v1932 = vpack.c.b16 %v1852, %v1847
    %v1933 = vpack.c.b16 %v1853, %v1848
    %v1934 = vpack.c.b16 %v1854, %v1849
    %v1935 = vpack.c.b16 %v1855, %v1850
    %v1936 = vpack.c.b16 %v1861, %v1856
    %v1937 = vpack.c.b16 %v1862, %v1857
    %v1938 = vpack.c.b16 %v1863, %v1858
    %v1939 = vpack.c.b16 %v1864, %v1859
    %v1940 = vpack.c.b16 %v1865, %v1860
    %v1941 = vpack.c.b16 %v1871, %v1866
    %v1942 = vpack.c.b16 %v1872, %v1867
    %v1943 = vpack.c.b16 %v1873, %v1868
    %v1944 = vpack.c.b16 %v1874, %v1869
    %v1945 = vpack.c.b16 %v1875, %v1870
    %v1946 = vpack.c.b16 %v1881, %v1876
    %v1947 = vpack.c.b16 %v1882, %v1877
    %v1948 = vpack.c.b16 %v1883, %v1878
    %v1949 = vpack.c.b16 %v1884, %v1879
    %v1950 = vpack.c.b16 %v1885, %v1880
    %v1951 = vpack.c.b16 %v1886, %v1886
    %v1952 = vpack.c.b16 %v1887, %v1887
    %v1953 = vpack.c.b16 %v1888, %v1888
    %v1954 = vpack.c.b16 %v1889, %v1889
    %v1955 = vpack.c.b16 %v1890, %v1890
    %vm2008 = vcmask 646144
    %v2010 = vsel %vm2008, %v1895, 0
    %v2013 = vsel %vm2008, %v1900, 0
    %v2016 = vsel %vm2008, %v1905, 0
    %v2019 = vsel %vm2008, %v1910, 0
    %v2022 = vsel %vm2008, %v1915, 0
    %v2025 = vsel %vm2008, %v1920, 0
    %v2028 = vsel %vm2008, %v1925, 0
    %v2031 = vsel %vm2008, %v1930, 0
    %v2034 = vsel %vm2008, %v1935, 0
    %v2037 = vsel %vm2008, %v1940, 0
    %v2040 = vsel %vm2008, %v1945, 0
    %v2043 = vsel %vm2008, %v1950, 0
    %v2046 = vsel %vm2008, %v1955, 0
    %vm2048 = vcmask 1047552
    %v2049 = vsel %vm741, 4294967295, 65535
    %v2050 = vsel %vm2048, %v2049, 0
    %v2052 = vand.u32 %v1690, %v2050
    %2054 = vmatpush.bf16.msra.mxu0 %v1661
    %2055 = vmatpush.bf16.msra.mxu0 %v1660
    %2056 = vmatpush.bf16.msra.mxu0 %v1659
    %2057 = vmatpush.bf16.msra.mxu0 %v1658
    %2058 = vmatpush.bf16.msra.mxu0 %v1657
    %2059 = vmatpush.bf16.msra.mxu0 %v1656
    %2060 = vmatpush.bf16.msra.mxu0 %v1655
    %2061 = vmatpush.bf16.msra.mxu0 %v1654
    %2062 = vmatmul.bf16.gmra.mxu0 %v1891
    %v2063 = vpop.f32.mrf.mxu0
    %v2064 = vadd.f32 0.0, %v2063
    %v2065 = vpop.f32.mrf.mxu0
    %v2066 = vadd.f32 0.0, %v2065
    %2067 = vmatmul.bf16.gmra.mxu0 %v1896
    %v2068 = vpop.f32.mrf.mxu0
    %v2069 = vadd.f32 0.0, %v2068
    %v2070 = vpop.f32.mrf.mxu0
    %v2071 = vadd.f32 0.0, %v2070
    %2072 = vmatmul.bf16.gmra.mxu0 %v1901
    %v2073 = vpop.f32.mrf.mxu0
    %v2074 = vadd.f32 0.0, %v2073
    %v2075 = vpop.f32.mrf.mxu0
    %v2076 = vadd.f32 0.0, %v2075
    %2077 = vmatmul.bf16.gmra.mxu0 %v1906
    %v2078 = vpop.f32.mrf.mxu0
    %v2079 = vadd.f32 0.0, %v2078
    %v2080 = vpop.f32.mrf.mxu0
    %v2081 = vadd.f32 0.0, %v2080
    %2082 = vmatmul.bf16.gmra.mxu0 %v1911
    %v2083 = vpop.f32.mrf.mxu0
    %v2084 = vadd.f32 0.0, %v2083
    %v2085 = vpop.f32.mrf.mxu0
    %v2086 = vadd.f32 0.0, %v2085
    %2087 = vmatmul.bf16.gmra.mxu0 %v1916
    %v2088 = vpop.f32.mrf.mxu0
    %v2089 = vadd.f32 0.0, %v2088
    %v2090 = vpop.f32.mrf.mxu0
    %v2091 = vadd.f32 0.0, %v2090
    %2092 = vmatmul.bf16.gmra.mxu0 %v1921
    %v2093 = vpop.f32.mrf.mxu0
    %v2094 = vadd.f32 0.0, %v2093
    %v2095 = vpop.f32.mrf.mxu0
    %v2096 = vadd.f32 0.0, %v2095
    %2097 = vmatmul.bf16.gmra.mxu0 %v1926
    %v2098 = vpop.f32.mrf.mxu0
    %v2099 = vadd.f32 0.0, %v2098
    %v2100 = vpop.f32.mrf.mxu0
    %v2101 = vadd.f32 0.0, %v2100
    %2102 = vmatmul.bf16.gmra.mxu0 %v1931
    %v2103 = vpop.f32.mrf.mxu0
    %v2104 = vadd.f32 0.0, %v2103
    %v2105 = vpop.f32.mrf.mxu0
    %v2106 = vadd.f32 0.0, %v2105
    %2107 = vmatmul.bf16.gmra.mxu0 %v1936
    %v2108 = vpop.f32.mrf.mxu0
    %v2109 = vadd.f32 0.0, %v2108
    %v2110 = vpop.f32.mrf.mxu0
    %v2111 = vadd.f32 0.0, %v2110
    %2112 = vmatmul.bf16.gmra.mxu0 %v1941
    %v2113 = vpop.f32.mrf.mxu0
    %v2114 = vadd.f32 0.0, %v2113
    %v2115 = vpop.f32.mrf.mxu0
    %v2116 = vadd.f32 0.0, %v2115
    %2117 = vmatmul.bf16.gmra.mxu0 %v1946
    %v2118 = vpop.f32.mrf.mxu0
    %v2119 = vadd.f32 0.0, %v2118
    %v2120 = vpop.f32.mrf.mxu0
    %v2121 = vadd.f32 0.0, %v2120
    %2122 = vmatmul.bf16.gmra.mxu0 %v1951
    %v2123 = vpop.f32.mrf.mxu0
    %v2124 = vadd.f32 0.0, %v2123
    %v2125 = vpop.f32.mrf.mxu0
    %2126 = vdwg.mxu0
    %2127 = vmatpush.bf16.msra.mxu0 %v1669
    %2128 = vmatpush.bf16.msra.mxu0 %v1668
    %2129 = vmatpush.bf16.msra.mxu0 %v1667
    %2130 = vmatpush.bf16.msra.mxu0 %v1666
    %2131 = vmatpush.bf16.msra.mxu0 %v1665
    %2132 = vmatpush.bf16.msra.mxu0 %v1664
    %2133 = vmatpush.bf16.msra.mxu0 %v1663
    %2134 = vmatpush.bf16.msra.mxu0 %v1662
    %2135 = vmatmul.bf16.gmra.mxu0 %v1892
    %v2136 = vpop.f32.mrf.mxu0
    %v2137 = vadd.f32 %v2064, %v2136
    %v2138 = vpop.f32.mrf.mxu0
    %v2139 = vadd.f32 %v2066, %v2138
    %2140 = vmatmul.bf16.gmra.mxu0 %v1897
    %v2141 = vpop.f32.mrf.mxu0
    %v2142 = vadd.f32 %v2069, %v2141
    %v2143 = vpop.f32.mrf.mxu0
    %v2144 = vadd.f32 %v2071, %v2143
    %2145 = vmatmul.bf16.gmra.mxu0 %v1902
    %v2146 = vpop.f32.mrf.mxu0
    %v2147 = vadd.f32 %v2074, %v2146
    %v2148 = vpop.f32.mrf.mxu0
    %v2149 = vadd.f32 %v2076, %v2148
    %2150 = vmatmul.bf16.gmra.mxu0 %v1907
    %v2151 = vpop.f32.mrf.mxu0
    %v2152 = vadd.f32 %v2079, %v2151
    %v2153 = vpop.f32.mrf.mxu0
    %v2154 = vadd.f32 %v2081, %v2153
    %2155 = vmatmul.bf16.gmra.mxu0 %v1912
    %v2156 = vpop.f32.mrf.mxu0
    %v2157 = vadd.f32 %v2084, %v2156
    %v2158 = vpop.f32.mrf.mxu0
    %v2159 = vadd.f32 %v2086, %v2158
    %2160 = vmatmul.bf16.gmra.mxu0 %v1917
    %v2161 = vpop.f32.mrf.mxu0
    %v2162 = vadd.f32 %v2089, %v2161
    %v2163 = vpop.f32.mrf.mxu0
    %v2164 = vadd.f32 %v2091, %v2163
    %2165 = vmatmul.bf16.gmra.mxu0 %v1922
    %v2166 = vpop.f32.mrf.mxu0
    %v2167 = vadd.f32 %v2094, %v2166
    %v2168 = vpop.f32.mrf.mxu0
    %v2169 = vadd.f32 %v2096, %v2168
    %2170 = vmatmul.bf16.gmra.mxu0 %v1927
    %v2171 = vpop.f32.mrf.mxu0
    %v2172 = vadd.f32 %v2099, %v2171
    %v2173 = vpop.f32.mrf.mxu0
    %v2174 = vadd.f32 %v2101, %v2173
    %2175 = vmatmul.bf16.gmra.mxu0 %v1932
    %v2176 = vpop.f32.mrf.mxu0
    %v2177 = vadd.f32 %v2104, %v2176
    %v2178 = vpop.f32.mrf.mxu0
    %v2179 = vadd.f32 %v2106, %v2178
    %2180 = vmatmul.bf16.gmra.mxu0 %v1937
    %v2181 = vpop.f32.mrf.mxu0
    %v2182 = vadd.f32 %v2109, %v2181
    %v2183 = vpop.f32.mrf.mxu0
    %v2184 = vadd.f32 %v2111, %v2183
    %2185 = vmatmul.bf16.gmra.mxu0 %v1942
    %v2186 = vpop.f32.mrf.mxu0
    %v2187 = vadd.f32 %v2114, %v2186
    %v2188 = vpop.f32.mrf.mxu0
    %v2189 = vadd.f32 %v2116, %v2188
    %2190 = vmatmul.bf16.gmra.mxu0 %v1947
    %v2191 = vpop.f32.mrf.mxu0
    %v2192 = vadd.f32 %v2119, %v2191
    %v2193 = vpop.f32.mrf.mxu0
    %v2194 = vadd.f32 %v2121, %v2193
    %2195 = vmatmul.bf16.gmra.mxu0 %v1952
    %v2196 = vpop.f32.mrf.mxu0
    %v2197 = vadd.f32 %v2124, %v2196
    %v2198 = vpop.f32.mrf.mxu0
    %2199 = vdwg.mxu0
    %2200 = vmatpush.bf16.msra.mxu0 %v1677
    %2201 = vmatpush.bf16.msra.mxu0 %v1676
    %2202 = vmatpush.bf16.msra.mxu0 %v1675
    %2203 = vmatpush.bf16.msra.mxu0 %v1674
    %2204 = vmatpush.bf16.msra.mxu0 %v1673
    %2205 = vmatpush.bf16.msra.mxu0 %v1672
    %2206 = vmatpush.bf16.msra.mxu0 %v1671
    %2207 = vmatpush.bf16.msra.mxu0 %v1670
    %2208 = vmatmul.bf16.gmra.mxu0 %v1893
    %v2209 = vpop.f32.mrf.mxu0
    %v2210 = vadd.f32 %v2137, %v2209
    %v2211 = vpop.f32.mrf.mxu0
    %v2212 = vadd.f32 %v2139, %v2211
    %2213 = vmatmul.bf16.gmra.mxu0 %v1898
    %v2214 = vpop.f32.mrf.mxu0
    %v2215 = vadd.f32 %v2142, %v2214
    %v2216 = vpop.f32.mrf.mxu0
    %v2217 = vadd.f32 %v2144, %v2216
    %2218 = vmatmul.bf16.gmra.mxu0 %v1903
    %v2219 = vpop.f32.mrf.mxu0
    %v2220 = vadd.f32 %v2147, %v2219
    %v2221 = vpop.f32.mrf.mxu0
    %v2222 = vadd.f32 %v2149, %v2221
    %2223 = vmatmul.bf16.gmra.mxu0 %v1908
    %v2224 = vpop.f32.mrf.mxu0
    %v2225 = vadd.f32 %v2152, %v2224
    %v2226 = vpop.f32.mrf.mxu0
    %v2227 = vadd.f32 %v2154, %v2226
    %2228 = vmatmul.bf16.gmra.mxu0 %v1913
    %v2229 = vpop.f32.mrf.mxu0
    %v2230 = vadd.f32 %v2157, %v2229
    %v2231 = vpop.f32.mrf.mxu0
    %v2232 = vadd.f32 %v2159, %v2231
    %2233 = vmatmul.bf16.gmra.mxu0 %v1918
    %v2234 = vpop.f32.mrf.mxu0
    %v2235 = vadd.f32 %v2162, %v2234
    %v2236 = vpop.f32.mrf.mxu0
    %v2237 = vadd.f32 %v2164, %v2236
    %2238 = vmatmul.bf16.gmra.mxu0 %v1923
    %v2239 = vpop.f32.mrf.mxu0
    %v2240 = vadd.f32 %v2167, %v2239
    %v2241 = vpop.f32.mrf.mxu0
    %v2242 = vadd.f32 %v2169, %v2241
    %2243 = vmatmul.bf16.gmra.mxu0 %v1928
    %v2244 = vpop.f32.mrf.mxu0
    %v2245 = vadd.f32 %v2172, %v2244
    %v2246 = vpop.f32.mrf.mxu0
    %v2247 = vadd.f32 %v2174, %v2246
    %2248 = vmatmul.bf16.gmra.mxu0 %v1933
    %v2249 = vpop.f32.mrf.mxu0
    %v2250 = vadd.f32 %v2177, %v2249
    %v2251 = vpop.f32.mrf.mxu0
    %v2252 = vadd.f32 %v2179, %v2251
    %2253 = vmatmul.bf16.gmra.mxu0 %v1938
    %v2254 = vpop.f32.mrf.mxu0
    %v2255 = vadd.f32 %v2182, %v2254
    %v2256 = vpop.f32.mrf.mxu0
    %v2257 = vadd.f32 %v2184, %v2256
    %2258 = vmatmul.bf16.gmra.mxu0 %v1943
    %v2259 = vpop.f32.mrf.mxu0
    %v2260 = vadd.f32 %v2187, %v2259
    %v2261 = vpop.f32.mrf.mxu0
    %v2262 = vadd.f32 %v2189, %v2261
    %2263 = vmatmul.bf16.gmra.mxu0 %v1948
    %v2264 = vpop.f32.mrf.mxu0
    %v2265 = vadd.f32 %v2192, %v2264
    %v2266 = vpop.f32.mrf.mxu0
    %v2267 = vadd.f32 %v2194, %v2266
    %2268 = vmatmul.bf16.gmra.mxu0 %v1953
    %v2269 = vpop.f32.mrf.mxu0
    %v2270 = vadd.f32 %v2197, %v2269
    %v2271 = vpop.f32.mrf.mxu0
    %2272 = vdwg.mxu0
    %2273 = vmatpush.bf16.msra.mxu0 %v1685
    %2274 = vmatpush.bf16.msra.mxu0 %v1684
    %2275 = vmatpush.bf16.msra.mxu0 %v1683
    %2276 = vmatpush.bf16.msra.mxu0 %v1682
    %2277 = vmatpush.bf16.msra.mxu0 %v1681
    %2278 = vmatpush.bf16.msra.mxu0 %v1680
    %2279 = vmatpush.bf16.msra.mxu0 %v1679
    %2280 = vmatpush.bf16.msra.mxu0 %v1678
    %2281 = vmatmul.bf16.gmra.mxu0 %v1894
    %v2282 = vpop.f32.mrf.mxu0
    %v2283 = vadd.f32 %v2210, %v2282
    %v2284 = vpop.f32.mrf.mxu0
    %v2285 = vadd.f32 %v2212, %v2284
    %2286 = vmatmul.bf16.gmra.mxu0 %v1899
    %v2287 = vpop.f32.mrf.mxu0
    %v2288 = vadd.f32 %v2215, %v2287
    %v2289 = vpop.f32.mrf.mxu0
    %v2290 = vadd.f32 %v2217, %v2289
    %2291 = vmatmul.bf16.gmra.mxu0 %v1904
    %v2292 = vpop.f32.mrf.mxu0
    %v2293 = vadd.f32 %v2220, %v2292
    %v2294 = vpop.f32.mrf.mxu0
    %v2295 = vadd.f32 %v2222, %v2294
    %2296 = vmatmul.bf16.gmra.mxu0 %v1909
    %v2297 = vpop.f32.mrf.mxu0
    %v2298 = vadd.f32 %v2225, %v2297
    %v2299 = vpop.f32.mrf.mxu0
    %v2300 = vadd.f32 %v2227, %v2299
    %2301 = vmatmul.bf16.gmra.mxu0 %v1914
    %v2302 = vpop.f32.mrf.mxu0
    %v2303 = vadd.f32 %v2230, %v2302
    %v2304 = vpop.f32.mrf.mxu0
    %v2305 = vadd.f32 %v2232, %v2304
    %2306 = vmatmul.bf16.gmra.mxu0 %v1919
    %v2307 = vpop.f32.mrf.mxu0
    %v2308 = vadd.f32 %v2235, %v2307
    %v2309 = vpop.f32.mrf.mxu0
    %v2310 = vadd.f32 %v2237, %v2309
    %2311 = vmatmul.bf16.gmra.mxu0 %v1924
    %v2312 = vpop.f32.mrf.mxu0
    %v2313 = vadd.f32 %v2240, %v2312
    %v2314 = vpop.f32.mrf.mxu0
    %v2315 = vadd.f32 %v2242, %v2314
    %2316 = vmatmul.bf16.gmra.mxu0 %v1929
    %v2317 = vpop.f32.mrf.mxu0
    %v2318 = vadd.f32 %v2245, %v2317
    %v2319 = vpop.f32.mrf.mxu0
    %v2320 = vadd.f32 %v2247, %v2319
    %2321 = vmatmul.bf16.gmra.mxu0 %v1934
    %v2322 = vpop.f32.mrf.mxu0
    %v2323 = vadd.f32 %v2250, %v2322
    %v2324 = vpop.f32.mrf.mxu0
    %v2325 = vadd.f32 %v2252, %v2324
    %2326 = vmatmul.bf16.gmra.mxu0 %v1939
    %v2327 = vpop.f32.mrf.mxu0
    %v2328 = vadd.f32 %v2255, %v2327
    %v2329 = vpop.f32.mrf.mxu0
    %v2330 = vadd.f32 %v2257, %v2329
    %2331 = vmatmul.bf16.gmra.mxu0 %v1944
    %v2332 = vpop.f32.mrf.mxu0
    %v2333 = vadd.f32 %v2260, %v2332
    %v2334 = vpop.f32.mrf.mxu0
    %v2335 = vadd.f32 %v2262, %v2334
    %2336 = vmatmul.bf16.gmra.mxu0 %v1949
    %v2337 = vpop.f32.mrf.mxu0
    %v2338 = vadd.f32 %v2265, %v2337
    %v2339 = vpop.f32.mrf.mxu0
    %v2340 = vadd.f32 %v2267, %v2339
    %2341 = vmatmul.bf16.gmra.mxu0 %v1954
    %v2342 = vpop.f32.mrf.mxu0
    %v2343 = vadd.f32 %v2270, %v2342
    %v2344 = vpop.f32.mrf.mxu0
    %2345 = vdwg.mxu0
    %2346 = vmatpush.bf16.msra.mxu0 0
    %2347 = vmatpush.bf16.msra.mxu0 0
    %2348 = vmatpush.bf16.msra.mxu0 0
    %2349 = vmatpush.bf16.msra.mxu0 %v2052
    %2350 = vmatpush.bf16.msra.mxu0 %v1689
    %2351 = vmatpush.bf16.msra.mxu0 %v1688
    %2352 = vmatpush.bf16.msra.mxu0 %v1687
    %2353 = vmatpush.bf16.msra.mxu0 %v1686
    %2354 = vmatmul.bf16.gmra.mxu0 %v2010
    %v2355 = vpop.f32.mrf.mxu0
    %v2356 = vadd.f32 %v2283, %v2355
    %v2357 = vpop.f32.mrf.mxu0
    %v2358 = vadd.f32 %v2285, %v2357
    %2359 = vmatmul.bf16.gmra.mxu0 %v2013
    %v2360 = vpop.f32.mrf.mxu0
    %v2361 = vadd.f32 %v2288, %v2360
    %v2362 = vpop.f32.mrf.mxu0
    %v2363 = vadd.f32 %v2290, %v2362
    %2364 = vmatmul.bf16.gmra.mxu0 %v2016
    %v2365 = vpop.f32.mrf.mxu0
    %v2366 = vadd.f32 %v2293, %v2365
    %v2367 = vpop.f32.mrf.mxu0
    %v2368 = vadd.f32 %v2295, %v2367
    %2369 = vmatmul.bf16.gmra.mxu0 %v2019
    %v2370 = vpop.f32.mrf.mxu0
    %v2371 = vadd.f32 %v2298, %v2370
    %v2372 = vpop.f32.mrf.mxu0
    %v2373 = vadd.f32 %v2300, %v2372
    %2374 = vmatmul.bf16.gmra.mxu0 %v2022
    %v2375 = vpop.f32.mrf.mxu0
    %v2376 = vadd.f32 %v2303, %v2375
    %v2377 = vpop.f32.mrf.mxu0
    %v2378 = vadd.f32 %v2305, %v2377
    %2379 = vmatmul.bf16.gmra.mxu0 %v2025
    %v2380 = vpop.f32.mrf.mxu0
    %v2381 = vadd.f32 %v2308, %v2380
    %v2382 = vpop.f32.mrf.mxu0
    %v2383 = vadd.f32 %v2310, %v2382
    %2384 = vmatmul.bf16.gmra.mxu0 %v2028
    %v2385 = vpop.f32.mrf.mxu0
    %v2386 = vadd.f32 %v2313, %v2385
    %v2387 = vpop.f32.mrf.mxu0
    %v2388 = vadd.f32 %v2315, %v2387
    %2389 = vmatmul.bf16.gmra.mxu0 %v2031
    %v2390 = vpop.f32.mrf.mxu0
    %v2391 = vadd.f32 %v2318, %v2390
    %v2392 = vpop.f32.mrf.mxu0
    %v2393 = vadd.f32 %v2320, %v2392
    %2394 = vmatmul.bf16.gmra.mxu0 %v2034
    %v2395 = vpop.f32.mrf.mxu0
    %v2396 = vadd.f32 %v2323, %v2395
    %v2397 = vpop.f32.mrf.mxu0
    %v2398 = vadd.f32 %v2325, %v2397
    %2399 = vmatmul.bf16.gmra.mxu0 %v2037
    %v2400 = vpop.f32.mrf.mxu0
    %v2401 = vadd.f32 %v2328, %v2400
    %v2402 = vpop.f32.mrf.mxu0
    %v2403 = vadd.f32 %v2330, %v2402
    %2404 = vmatmul.bf16.gmra.mxu0 %v2040
    %v2405 = vpop.f32.mrf.mxu0
    %v2406 = vadd.f32 %v2333, %v2405
    %v2407 = vpop.f32.mrf.mxu0
    %v2408 = vadd.f32 %v2335, %v2407
    %2409 = vmatmul.bf16.gmra.mxu0 %v2043
    %v2410 = vpop.f32.mrf.mxu0
    %v2411 = vadd.f32 %v2338, %v2410
    %v2412 = vpop.f32.mrf.mxu0
    %v2413 = vadd.f32 %v2340, %v2412
    %2414 = vmatmul.bf16.gmra.mxu0 %v2046
    %v2415 = vpop.f32.mrf.mxu0
    %v2416 = vadd.f32 %v2343, %v2415
    %v2417 = vpop.f32.mrf.mxu0
    %2418 = vdwg.mxu0
    %v2442 = vrot.slane %v2356, 1
    %v2443 = vrot.slane %v2358, 1
    %v2444 = vsel %vm741, %v2442, %v2443
    %v2445 = vrot.slane %v2361, 1
    %v2446 = vsel %vm741, %v2443, %v2445
    %v2447 = vrot.slane %v2363, 1
    %v2448 = vsel %vm741, %v2445, %v2447
    %v2449 = vrot.slane %v2366, 1
    %v2450 = vsel %vm741, %v2447, %v2449
    %v2451 = vrot.slane %v2368, 1
    %v2452 = vsel %vm741, %v2449, %v2451
    %v2453 = vrot.slane %v2371, 1
    %v2454 = vsel %vm741, %v2451, %v2453
    %v2455 = vrot.slane %v2373, 1
    %v2456 = vsel %vm741, %v2453, %v2455
    %v2457 = vrot.slane %v2376, 1
    %v2458 = vsel %vm741, %v2455, %v2457
    %v2459 = vrot.slane %v2378, 1
    %v2460 = vsel %vm741, %v2457, %v2459
    %v2461 = vrot.slane %v2381, 1
    %v2462 = vsel %vm741, %v2459, %v2461
    %v2463 = vrot.slane %v2383, 1
    %v2464 = vsel %vm741, %v2461, %v2463
    %v2465 = vrot.slane %v2386, 1
    %v2466 = vsel %vm741, %v2463, %v2465
    %v2467 = vrot.slane %v2388, 1
    %v2468 = vsel %vm741, %v2465, %v2467
    %v2469 = vrot.slane %v2391, 1
    %v2470 = vsel %vm741, %v2467, %v2469
    %v2471 = vrot.slane %v2393, 1
    %v2472 = vsel %vm741, %v2469, %v2471
    %v2473 = vrot.slane %v2396, 1
    %v2474 = vsel %vm741, %v2471, %v2473
    %v2475 = vrot.slane %v2398, 1
    %v2476 = vsel %vm741, %v2473, %v2475
    %v2477 = vrot.slane %v2401, 1
    %v2478 = vsel %vm741, %v2475, %v2477
    %v2479 = vrot.slane %v2403, 1
    %v2480 = vsel %vm741, %v2477, %v2479
    %v2481 = vrot.slane %v2406, 1
    %v2482 = vsel %vm741, %v2479, %v2481
    %v2483 = vrot.slane %v2408, 1
    %v2484 = vsel %vm741, %v2481, %v2483
    %v2485 = vrot.slane %v2411, 1
    %v2486 = vsel %vm741, %v2483, %v2485
    %v2510 = vrot.slane %v2356, 2
    %v2511 = vrot.slane %v2358, 2
    %v2512 = vsel %vm1129, %v2510, %v2511
    %v2513 = vrot.slane %v2361, 2
    %v2514 = vsel %vm1129, %v2511, %v2513
    %v2515 = vrot.slane %v2363, 2
    %v2516 = vsel %vm1129, %v2513, %v2515
    %v2517 = vrot.slane %v2366, 2
    %v2518 = vsel %vm1129, %v2515, %v2517
    %v2519 = vrot.slane %v2368, 2
    %v2520 = vsel %vm1129, %v2517, %v2519
    %v2521 = vrot.slane %v2371, 2
    %v2522 = vsel %vm1129, %v2519, %v2521
    %v2523 = vrot.slane %v2373, 2
    %v2524 = vsel %vm1129, %v2521, %v2523
    %v2525 = vrot.slane %v2376, 2
    %v2526 = vsel %vm1129, %v2523, %v2525
    %v2527 = vrot.slane %v2378, 2
    %v2528 = vsel %vm1129, %v2525, %v2527
    %v2529 = vrot.slane %v2381, 2
    %v2530 = vsel %vm1129, %v2527, %v2529
    %v2531 = vrot.slane %v2383, 2
    %v2532 = vsel %vm1129, %v2529, %v2531
    %v2533 = vrot.slane %v2386, 2
    %v2534 = vsel %vm1129, %v2531, %v2533
    %v2535 = vrot.slane %v2388, 2
    %v2536 = vsel %vm1129, %v2533, %v2535
    %v2537 = vrot.slane %v2391, 2
    %v2538 = vsel %vm1129, %v2535, %v2537
    %v2539 = vrot.slane %v2393, 2
    %v2540 = vsel %vm1129, %v2537, %v2539
    %v2541 = vrot.slane %v2396, 2
    %v2542 = vsel %vm1129, %v2539, %v2541
    %v2543 = vrot.slane %v2398, 2
    %v2544 = vsel %vm1129, %v2541, %v2543
    %v2545 = vrot.slane %v2401, 2
    %v2546 = vsel %vm1129, %v2543, %v2545
    %v2547 = vrot.slane %v2403, 2
    %v2548 = vsel %vm1129, %v2545, %v2547
    %v2549 = vrot.slane %v2406, 2
    %v2550 = vsel %vm1129, %v2547, %v2549
    %v2551 = vrot.slane %v2408, 2
    %v2552 = vsel %vm1129, %v2549, %v2551
    %v2553 = vrot.slane %v2411, 2
    %v2554 = vsel %vm1129, %v2551, %v2553
    %v2579 = vrot.slane %v2413, 2
    %v2580 = vsel %vm1129, %v2553, %v2579
    %vm2583 = vcmask 1044480
    %v2584 = vrot.slane %v2358, 3
    %v2585 = vrot.slane %v2361, 3
    %v2586 = vsel %vm2583, %v2584, %v2585
    %v2587 = vrot.slane %v2363, 3
    %v2588 = vsel %vm2583, %v2585, %v2587
    %v2589 = vrot.slane %v2366, 3
    %v2590 = vsel %vm2583, %v2587, %v2589
    %v2591 = vrot.slane %v2368, 3
    %v2592 = vsel %vm2583, %v2589, %v2591
    %v2593 = vrot.slane %v2371, 3
    %v2594 = vsel %vm2583, %v2591, %v2593
    %v2595 = vrot.slane %v2373, 3
    %v2596 = vsel %vm2583, %v2593, %v2595
    %v2597 = vrot.slane %v2376, 3
    %v2598 = vsel %vm2583, %v2595, %v2597
    %v2599 = vrot.slane %v2378, 3
    %v2600 = vsel %vm2583, %v2597, %v2599
    %v2601 = vrot.slane %v2381, 3
    %v2602 = vsel %vm2583, %v2599, %v2601
    %v2603 = vrot.slane %v2383, 3
    %v2604 = vsel %vm2583, %v2601, %v2603
    %v2605 = vrot.slane %v2386, 3
    %v2606 = vsel %vm2583, %v2603, %v2605
    %v2607 = vrot.slane %v2388, 3
    %v2608 = vsel %vm2583, %v2605, %v2607
    %v2609 = vrot.slane %v2391, 3
    %v2610 = vsel %vm2583, %v2607, %v2609
    %v2611 = vrot.slane %v2393, 3
    %v2612 = vsel %vm2583, %v2609, %v2611
    %v2613 = vrot.slane %v2396, 3
    %v2614 = vsel %vm2583, %v2611, %v2613
    %v2615 = vrot.slane %v2398, 3
    %v2616 = vsel %vm2583, %v2613, %v2615
    %v2617 = vrot.slane %v2401, 3
    %v2618 = vsel %vm2583, %v2615, %v2617
    %v2619 = vrot.slane %v2403, 3
    %v2620 = vsel %vm2583, %v2617, %v2619
    %v2621 = vrot.slane %v2406, 3
    %v2622 = vsel %vm2583, %v2619, %v2621
    %v2623 = vrot.slane %v2408, 3
    %v2624 = vsel %vm2583, %v2621, %v2623
    %v2625 = vrot.slane %v2411, 3
    %v2626 = vsel %vm2583, %v2623, %v2625
    %v2627 = vrot.slane %v2413, 3
    %v2628 = vsel %vm2583, %v2625, %v2627
    %vm2652 = vcmask 1043456
    %v2653 = vrot.slane %v2358, 4
    %v2654 = vrot.slane %v2361, 4
    %v2655 = vsel %vm2652, %v2653, %v2654
    %v2656 = vrot.slane %v2363, 4
    %v2657 = vsel %vm2652, %v2654, %v2656
    %v2658 = vrot.slane %v2366, 4
    %v2659 = vsel %vm2652, %v2656, %v2658
    %v2660 = vrot.slane %v2368, 4
    %v2661 = vsel %vm2652, %v2658, %v2660
    %v2662 = vrot.slane %v2371, 4
    %v2663 = vsel %vm2652, %v2660, %v2662
    %v2664 = vrot.slane %v2373, 4
    %v2665 = vsel %vm2652, %v2662, %v2664
    %v2666 = vrot.slane %v2376, 4
    %v2667 = vsel %vm2652, %v2664, %v2666
    %v2668 = vrot.slane %v2378, 4
    %v2669 = vsel %vm2652, %v2666, %v2668
    %v2670 = vrot.slane %v2381, 4
    %v2671 = vsel %vm2652, %v2668, %v2670
    %v2672 = vrot.slane %v2383, 4
    %v2673 = vsel %vm2652, %v2670, %v2672
    %v2674 = vrot.slane %v2386, 4
    %v2675 = vsel %vm2652, %v2672, %v2674
    %v2676 = vrot.slane %v2388, 4
    %v2677 = vsel %vm2652, %v2674, %v2676
    %v2678 = vrot.slane %v2391, 4
    %v2679 = vsel %vm2652, %v2676, %v2678
    %v2680 = vrot.slane %v2393, 4
    %v2681 = vsel %vm2652, %v2678, %v2680
    %v2682 = vrot.slane %v2396, 4
    %v2683 = vsel %vm2652, %v2680, %v2682
    %v2684 = vrot.slane %v2398, 4
    %v2685 = vsel %vm2652, %v2682, %v2684
    %v2686 = vrot.slane %v2401, 4
    %v2687 = vsel %vm2652, %v2684, %v2686
    %v2688 = vrot.slane %v2403, 4
    %v2689 = vsel %vm2652, %v2686, %v2688
    %v2690 = vrot.slane %v2406, 4
    %v2691 = vsel %vm2652, %v2688, %v2690
    %v2692 = vrot.slane %v2408, 4
    %v2693 = vsel %vm2652, %v2690, %v2692
    %v2694 = vrot.slane %v2411, 4
    %v2695 = vsel %vm2652, %v2692, %v2694
    %v2696 = vrot.slane %v2413, 4
    %v2697 = vsel %vm2652, %v2694, %v2696
    %v2722 = vrot.slane %v2416, 4
    %v2723 = vsel %vm2652, %v2696, %v2722
    %vm2726 = vcmask 1042432
    %v2727 = vrot.slane %v2361, 5
    %v2728 = vrot.slane %v2363, 5
    %v2729 = vsel %vm2726, %v2727, %v2728
    %v2730 = vrot.slane %v2366, 5
    %v2731 = vsel %vm2726, %v2728, %v2730
    %v2732 = vrot.slane %v2368, 5
    %v2733 = vsel %vm2726, %v2730, %v2732
    %v2734 = vrot.slane %v2371, 5
    %v2735 = vsel %vm2726, %v2732, %v2734
    %v2736 = vrot.slane %v2373, 5
    %v2737 = vsel %vm2726, %v2734, %v2736
    %v2738 = vrot.slane %v2376, 5
    %v2739 = vsel %vm2726, %v2736, %v2738
    %v2740 = vrot.slane %v2378, 5
    %v2741 = vsel %vm2726, %v2738, %v2740
    %v2742 = vrot.slane %v2381, 5
    %v2743 = vsel %vm2726, %v2740, %v2742
    %v2744 = vrot.slane %v2383, 5
    %v2745 = vsel %vm2726, %v2742, %v2744
    %v2746 = vrot.slane %v2386, 5
    %v2747 = vsel %vm2726, %v2744, %v2746
    %v2748 = vrot.slane %v2388, 5
    %v2749 = vsel %vm2726, %v2746, %v2748
    %v2750 = vrot.slane %v2391, 5
    %v2751 = vsel %vm2726, %v2748, %v2750
    %v2752 = vrot.slane %v2393, 5
    %v2753 = vsel %vm2726, %v2750, %v2752
    %v2754 = vrot.slane %v2396, 5
    %v2755 = vsel %vm2726, %v2752, %v2754
    %v2756 = vrot.slane %v2398, 5
    %v2757 = vsel %vm2726, %v2754, %v2756
    %v2758 = vrot.slane %v2401, 5
    %v2759 = vsel %vm2726, %v2756, %v2758
    %v2760 = vrot.slane %v2403, 5
    %v2761 = vsel %vm2726, %v2758, %v2760
    %v2762 = vrot.slane %v2406, 5
    %v2763 = vsel %vm2726, %v2760, %v2762
    %v2764 = vrot.slane %v2408, 5
    %v2765 = vsel %vm2726, %v2762, %v2764
    %v2766 = vrot.slane %v2411, 5
    %v2767 = vsel %vm2726, %v2764, %v2766
    %v2768 = vrot.slane %v2413, 5
    %v2769 = vsel %vm2726, %v2766, %v2768
    %v2770 = vrot.slane %v2416, 5
    %v2771 = vsel %vm2726, %v2768, %v2770
    %v2795 = vrot.slane %v2361, 6
    %v2796 = vrot.slane %v2363, 6
    %v2797 = vsel %vm460, %v2795, %v2796
    %v2798 = vrot.slane %v2366, 6
    %v2799 = vsel %vm460, %v2796, %v2798
    %v2800 = vrot.slane %v2368, 6
    %v2801 = vsel %vm460, %v2798, %v2800
    %v2802 = vrot.slane %v2371, 6
    %v2803 = vsel %vm460, %v2800, %v2802
    %v2804 = vrot.slane %v2373, 6
    %v2805 = vsel %vm460, %v2802, %v2804
    %v2806 = vrot.slane %v2376, 6
    %v2807 = vsel %vm460, %v2804, %v2806
    %v2808 = vrot.slane %v2378, 6
    %v2809 = vsel %vm460, %v2806, %v2808
    %v2810 = vrot.slane %v2381, 6
    %v2811 = vsel %vm460, %v2808, %v2810
    %v2812 = vrot.slane %v2383, 6
    %v2813 = vsel %vm460, %v2810, %v2812
    %v2814 = vrot.slane %v2386, 6
    %v2815 = vsel %vm460, %v2812, %v2814
    %v2816 = vrot.slane %v2388, 6
    %v2817 = vsel %vm460, %v2814, %v2816
    %v2818 = vrot.slane %v2391, 6
    %v2819 = vsel %vm460, %v2816, %v2818
    %v2820 = vrot.slane %v2393, 6
    %v2821 = vsel %vm460, %v2818, %v2820
    %v2822 = vrot.slane %v2396, 6
    %v2823 = vsel %vm460, %v2820, %v2822
    %v2824 = vrot.slane %v2398, 6
    %v2825 = vsel %vm460, %v2822, %v2824
    %v2826 = vrot.slane %v2401, 6
    %v2827 = vsel %vm460, %v2824, %v2826
    %v2828 = vrot.slane %v2403, 6
    %v2829 = vsel %vm460, %v2826, %v2828
    %v2830 = vrot.slane %v2406, 6
    %v2831 = vsel %vm460, %v2828, %v2830
    %v2832 = vrot.slane %v2408, 6
    %v2833 = vsel %vm460, %v2830, %v2832
    %v2834 = vrot.slane %v2411, 6
    %v2835 = vsel %vm460, %v2832, %v2834
    %v2836 = vrot.slane %v2413, 6
    %v2837 = vsel %vm460, %v2834, %v2836
    %v2838 = vrot.slane %v2416, 6
    %v2839 = vsel %vm460, %v2836, %v2838
    %v2863 = vpack.c.bf16 %v2358, %v2356
    %v2864 = vpack.c.bf16 %v2446, %v2444
    %v2865 = vpack.c.bf16 %v2514, %v2512
    %v2866 = vpack.c.bf16 %v2516, %v2514
    %v2867 = vpack.c.bf16 %v2588, %v2586
    %v2868 = vpack.c.bf16 %v2657, %v2655
    %v2869 = vpack.c.bf16 %v2659, %v2657
    %v2870 = vpack.c.bf16 %v2731, %v2729
    %v2871 = vpack.c.bf16 %v2799, %v2797
    %v2872 = vpack.c.bf16 %v2363, %v2361
    %v2873 = vpack.c.bf16 %v2450, %v2448
    %v2874 = vpack.c.bf16 %v2518, %v2516
    %v2875 = vpack.c.bf16 %v2520, %v2518
    %v2876 = vpack.c.bf16 %v2592, %v2590
    %v2877 = vpack.c.bf16 %v2661, %v2659
    %v2878 = vpack.c.bf16 %v2663, %v2661
    %v2879 = vpack.c.bf16 %v2735, %v2733
    %v2880 = vpack.c.bf16 %v2803, %v2801
    %v2881 = vpack.c.bf16 %v2368, %v2366
    %v2882 = vpack.c.bf16 %v2454, %v2452
    %v2883 = vpack.c.bf16 %v2522, %v2520
    %v2884 = vpack.c.bf16 %v2524, %v2522
    %v2885 = vpack.c.bf16 %v2596, %v2594
    %v2886 = vpack.c.bf16 %v2665, %v2663
    %v2887 = vpack.c.bf16 %v2667, %v2665
    %v2888 = vpack.c.bf16 %v2739, %v2737
    %v2889 = vpack.c.bf16 %v2807, %v2805
    %v2890 = vpack.c.bf16 %v2373, %v2371
    %v2891 = vpack.c.bf16 %v2458, %v2456
    %v2892 = vpack.c.bf16 %v2526, %v2524
    %v2893 = vpack.c.bf16 %v2528, %v2526
    %v2894 = vpack.c.bf16 %v2600, %v2598
    %v2895 = vpack.c.bf16 %v2669, %v2667
    %v2896 = vpack.c.bf16 %v2671, %v2669
    %v2897 = vpack.c.bf16 %v2743, %v2741
    %v2898 = vpack.c.bf16 %v2811, %v2809
    %v2899 = vpack.c.bf16 %v2378, %v2376
    %v2900 = vpack.c.bf16 %v2462, %v2460
    %v2901 = vpack.c.bf16 %v2530, %v2528
    %v2902 = vpack.c.bf16 %v2532, %v2530
    %v2903 = vpack.c.bf16 %v2604, %v2602
    %v2904 = vpack.c.bf16 %v2673, %v2671
    %v2905 = vpack.c.bf16 %v2675, %v2673
    %v2906 = vpack.c.bf16 %v2747, %v2745
    %v2907 = vpack.c.bf16 %v2815, %v2813
    %v2908 = vpack.c.bf16 %v2383, %v2381
    %v2909 = vpack.c.bf16 %v2466, %v2464
    %v2910 = vpack.c.bf16 %v2534, %v2532
    %v2911 = vpack.c.bf16 %v2536, %v2534
    %v2912 = vpack.c.bf16 %v2608, %v2606
    %v2913 = vpack.c.bf16 %v2677, %v2675
    %v2914 = vpack.c.bf16 %v2679, %v2677
    %v2915 = vpack.c.bf16 %v2751, %v2749
    %v2916 = vpack.c.bf16 %v2819, %v2817
    %v2917 = vpack.c.bf16 %v2388, %v2386
    %v2918 = vpack.c.bf16 %v2470, %v2468
    %v2919 = vpack.c.bf16 %v2538, %v2536
    %v2920 = vpack.c.bf16 %v2540, %v2538
    %v2921 = vpack.c.bf16 %v2612, %v2610
    %v2922 = vpack.c.bf16 %v2681, %v2679
    %v2923 = vpack.c.bf16 %v2683, %v2681
    %v2924 = vpack.c.bf16 %v2755, %v2753
    %v2925 = vpack.c.bf16 %v2823, %v2821
    %v2926 = vpack.c.bf16 %v2393, %v2391
    %v2927 = vpack.c.bf16 %v2474, %v2472
    %v2928 = vpack.c.bf16 %v2542, %v2540
    %v2929 = vpack.c.bf16 %v2544, %v2542
    %v2930 = vpack.c.bf16 %v2616, %v2614
    %v2931 = vpack.c.bf16 %v2685, %v2683
    %v2932 = vpack.c.bf16 %v2687, %v2685
    %v2933 = vpack.c.bf16 %v2759, %v2757
    %v2934 = vpack.c.bf16 %v2827, %v2825
    %v2935 = vpack.c.bf16 %v2398, %v2396
    %v2936 = vpack.c.bf16 %v2478, %v2476
    %v2937 = vpack.c.bf16 %v2546, %v2544
    %v2938 = vpack.c.bf16 %v2548, %v2546
    %v2939 = vpack.c.bf16 %v2620, %v2618
    %v2940 = vpack.c.bf16 %v2689, %v2687
    %v2941 = vpack.c.bf16 %v2691, %v2689
    %v2942 = vpack.c.bf16 %v2763, %v2761
    %v2943 = vpack.c.bf16 %v2831, %v2829
    %v2944 = vpack.c.bf16 %v2403, %v2401
    %v2945 = vpack.c.bf16 %v2482, %v2480
    %v2946 = vpack.c.bf16 %v2550, %v2548
    %v2947 = vpack.c.bf16 %v2552, %v2550
    %v2948 = vpack.c.bf16 %v2624, %v2622
    %v2949 = vpack.c.bf16 %v2693, %v2691
    %v2950 = vpack.c.bf16 %v2695, %v2693
    %v2951 = vpack.c.bf16 %v2767, %v2765
    %v2952 = vpack.c.bf16 %v2835, %v2833
    %v2953 = vpack.c.bf16 %v2408, %v2406
    %v2954 = vpack.c.bf16 %v2486, %v2484
    %v2955 = vpack.c.bf16 %v2554, %v2552
    %v2956 = vpack.c.bf16 %v2580, %v2554
    %v2957 = vpack.c.bf16 %v2628, %v2626
    %v2958 = vpack.c.bf16 %v2697, %v2695
    %v2959 = vpack.c.bf16 %v2723, %v2697
    %v2960 = vpack.c.bf16 %v2771, %v2769
    %v2961 = vpack.c.bf16 %v2839, %v2837
    %v2962 = vpack.c.bf16 %v2411, %v2411
    %v2963 = vpack.c.bf16 %v2485, %v2485
    %v2964 = vpack.c.bf16 %v2553, %v2553
    %v2965 = vpack.c.bf16 %v2579, %v2579
    %v2966 = vpack.c.bf16 %v2627, %v2627
    %v2967 = vpack.c.bf16 %v2696, %v2696
    %v2968 = vpack.c.bf16 %v2722, %v2722
    %v2969 = vpack.c.bf16 %v2770, %v2770
    %v2970 = vpack.c.bf16 %v2838, %v2838
    %v2971 = vld [vmem:[%s4] sm:$0xf]
    %v2972 = vld [vmem:[%s4 + $0x4] sm:$0xf]
    %v2973 = vld [vmem:[%s4 + $0x8] sm:$0xf]
    %v2974 = vld [vmem:[%s4 + $0xc] sm:$0xf]
    %v2975 = vld [vmem:[%s4 + $0x10] sm:$0xf]
    %v2976 = vld [vmem:[%s4 + $0x14] sm:$0xf]
    %v2977 = vld [vmem:[%s4 + $0x18] sm:$0xf]
    %v2978 = vld [vmem:[%s4 + $0x1c] sm:$0xf]
    %v2979 = vld [vmem:[%s4 + $0x20] sm:$0xf]
    %v2980 = vld [vmem:[%s4 + $0x24] sm:$0xf]
    %v2981 = vld [vmem:[%s4 + $0x28] sm:$0xf]
    %v2982 = vld [vmem:[%s4 + $0x2c] sm:$0xf]
    %v2983 = vld [vmem:[%s4 + $0x30] sm:$0xf]
    %v2984 = vld [vmem:[%s4 + $0x34] sm:$0xf]
    %v2985 = vld [vmem:[%s4 + $0x38] sm:$0xf]
    %v2986 = vld [vmem:[%s4 + $0x3c] sm:$0xf]
    %v2987 = vld [vmem:[%s4 + $0x40] sm:$0xf]
    %v2988 = vld [vmem:[%s4 + $0x44] sm:$0xf]
    %v2989 = vld [vmem:[%s4 + $0x48] sm:$0xf]
    %v2990 = vld [vmem:[%s4 + $0x4c] sm:$0xf]
    %v2991 = vld [vmem:[%s4 + $0x50] sm:$0xf]
    %v2992 = vld [vmem:[%s4 + $0x54] sm:$0xf]
    %v2993 = vld [vmem:[%s4 + $0x58] sm:$0xf]
    %v2994 = vld [vmem:[%s4 + $0x5c] sm:$0xf]
    %v2995 = vld [vmem:[%s4 + $0x60] sm:$0xf]
    %v2996 = vld [vmem:[%s4 + $0x64] sm:$0xf]
    %v2997 = vld [vmem:[%s4 + $0x68] sm:$0xf]
    %v2998 = vld [vmem:[%s4 + $0x6c] sm:$0xf]
    %v2999 = vld [vmem:[%s4 + $0x70] sm:$0xf]
    %v3000 = vld [vmem:[%s4 + $0x74] sm:$0xf]
    %v3001 = vld [vmem:[%s4 + $0x78] sm:$0xf]
    %v3002 = vld [vmem:[%s4 + $0x7c] sm:$0xf]
    %v3003 = vld [vmem:[%s4 + $0x80] sm:$0xf]
    %v3004 = vld [vmem:[%s4 + $0x84] sm:$0xf]
    %v3005 = vld [vmem:[%s4 + $0x88] sm:$0xf]
    %v3006 = vld [vmem:[%s4 + $0x8c] sm:$0xf]
    %v3007 = vld [vmem:[%s4 + $0x90] sm:$0xf]
    %v3008 = vld [vmem:[%s4 + $0x94] sm:$0xf]
    %v3009 = vld [vmem:[%s4 + $0x98] sm:$0xf]
    %v3010 = vld [vmem:[%s4 + $0x9c] sm:$0xf]
    %v3011 = vld [vmem:[%s4 + $0xa0] sm:$0xf]
    %v3012 = vld [vmem:[%s4 + $0xa4] sm:$0xf]
    %v3013 = vld [vmem:[%s4 + $0xa8] sm:$0xf]
    %v3014 = vld [vmem:[%s4 + $0xac] sm:$0xf]
    %v3015 = vld [vmem:[%s4 + $0xb0] sm:$0xf]
    %v3016 = vld [vmem:[%s4 + $0xb4] sm:$0xf]
    %v3017 = vld [vmem:[%s4 + $0xb8] sm:$0xf]
    %v3018 = vld [vmem:[%s4 + $0xbc] sm:$0xf]
    %v3019 = vld [vmem:[%s4 + $0xc0] sm:$0xf]
    %v3020 = vld [vmem:[%s4 + $0xc4] sm:$0xf]
    %v3021 = vld [vmem:[%s4 + $0xc8] sm:$0xf]
    %v3022 = vld [vmem:[%s4 + $0xcc] sm:$0xf]
    %v3023 = vld [vmem:[%s4 + $0xd0] sm:$0xf]
    %v3024 = vld [vmem:[%s4 + $0xd4] sm:$0xf]
    %v3025 = vld [vmem:[%s4 + $0xd8] sm:$0xf]
    %v3026 = vld [vmem:[%s4 + $0xdc] sm:$0xf]
    %v3027 = vld [vmem:[%s4 + $0xe0] sm:$0xf]
    %v3028 = vld [vmem:[%s4 + $0xe4] sm:$0xf]
    %v3029 = vld [vmem:[%s4 + $0xe8] sm:$0xf]
    %v3030 = vld [vmem:[%s4 + $0xec] sm:$0xf]
    %v3031 = vld [vmem:[%s4 + $0xf0] sm:$0xf]
    %v3032 = vld [vmem:[%s4 + $0xf4] sm:$0xf]
    %v3033 = vld [vmem:[%s4 + $0xf8] sm:$0xf]
    %v3034 = vld [vmem:[%s4 + $0xfc] sm:$0xf]
    %v3035 = vld [vmem:[%s4 + $0x100] sm:$0xf]
    %v3036 = vld [vmem:[%s4 + $0x104] sm:$0xf]
    %v3037 = vld [vmem:[%s4 + $0x108] sm:$0xf]
    %v3038 = vld [vmem:[%s4 + $0x10c] sm:$0xf]
    %v3039 = vld [vmem:[%s4 + $0x110] sm:$0xf]
    %v3040 = vld [vmem:[%s4 + $0x114] sm:$0xf]
    %v3041 = vld [vmem:[%s4 + $0x118] sm:$0xf]
    %v3042 = vld [vmem:[%s4 + $0x11c] sm:$0xf]
    %v3043 = vld [vmem:[%s4 + $0x120] sm:$0xf]
    %v3044 = vld [vmem:[%s4 + $0x124] sm:$0xf]
    %v3045 = vld [vmem:[%s4 + $0x128] sm:$0xf]
    %v3046 = vld [vmem:[%s4 + $0x12c] sm:$0xf]
    %v3047 = vld [vmem:[%s4 + $0x130] sm:$0xf]
    %v3048 = vld [vmem:[%s4 + $0x134] sm:$0xf]
    %v3049 = vld [vmem:[%s4 + $0x138] sm:$0xf]
    %v3050 = vld [vmem:[%s4 + $0x13c] sm:$0xf]
    %v3051 = vld [vmem:[%s4 + $0x140] sm:$0xf]
    %v3052 = vld [vmem:[%s4 + $0x144] sm:$0xf]
    %v3053 = vld [vmem:[%s4 + $0x148] sm:$0xf]
    %v3054 = vld [vmem:[%s4 + $0x14c] sm:$0xf]
    %v3055 = vld [vmem:[%s4 + $0x150] sm:$0xf]
    %v3056 = vld [vmem:[%s4 + $0x154] sm:$0xf]
    %v3057 = vld [vmem:[%s4 + $0x158] sm:$0xf]
    %v3058 = vld [vmem:[%s4 + $0x15c] sm:$0xf]
    %v3059 = vld [vmem:[%s4 + $0x160] sm:$0xf]
    %v3060 = vld [vmem:[%s4 + $0x164] sm:$0xf]
    %v3061 = vld [vmem:[%s4 + $0x168] sm:$0xf]
    %v3062 = vld [vmem:[%s4 + $0x16c] sm:$0xf]
    %v3063 = vld [vmem:[%s4 + $0x170] sm:$0xf]
    %v3064 = vld [vmem:[%s4 + $0x174] sm:$0xf]
    %v3065 = vld [vmem:[%s4 + $0x178] sm:$0xf]
    %v3066 = vld [vmem:[%s4 + $0x17c] sm:$0xf]
    %v3067 = vld [vmem:[%s4 + $0x180] sm:$0xf]
    %v3068 = vld [vmem:[%s4 + $0x184] sm:$0xf]
    %v3069 = vld [vmem:[%s4 + $0x188] sm:$0xf]
    %v3070 = vld [vmem:[%s4 + $0x18c] sm:$0xf]
    %v3071 = vld [vmem:[%s4 + $0x190] sm:$0xf]
    %v3072 = vld [vmem:[%s4 + $0x194] sm:$0xf]
    %v3073 = vld [vmem:[%s4 + $0x198] sm:$0xf]
    %v3074 = vld [vmem:[%s4 + $0x19c] sm:$0xf]
    %v3075 = vld [vmem:[%s4 + $0x1a0] sm:$0xf]
    %v3076 = vld [vmem:[%s4 + $0x1a4] sm:$0xf]
    %v3077 = vld [vmem:[%s4 + $0x1a8] sm:$0xf]
    %v3078 = vld [vmem:[%s4 + $0x1ac] sm:$0xf]
    %v3079 = vld [vmem:[%s4 + $0x1b0] sm:$0xf]
    %v3080 = vld [vmem:[%s4 + $0x1b4] sm:$0xf]
    %v3081 = vld [vmem:[%s4 + $0x1b8] sm:$0xf]
    %v3082 = vld [vmem:[%s4 + $0x1bc] sm:$0xf]
    %v3083 = vld [vmem:[%s4 + $0x1c0] sm:$0xf]
    %v3084 = vld [vmem:[%s4 + $0x1c4] sm:$0xf]
    %v3085 = vld [vmem:[%s4 + $0x1c8] sm:$0xf]
    %v3086 = vld [vmem:[%s4 + $0x1cc] sm:$0xf]
    %v3087 = vld [vmem:[%s4 + $0x1d0] sm:$0xf]
    %v3088 = vld [vmem:[%s4 + $0x1d4] sm:$0xf]
    %v3089 = vld [vmem:[%s4 + $0x1d8] sm:$0xf]
    %v3090 = vld [vmem:[%s4 + $0x1dc] sm:$0xf]
    %v3091 = vld [vmem:[%s4 + $0x1e0] sm:$0xf]
    %v3092 = vld [vmem:[%s4 + $0x1e4] sm:$0xf]
    %v3093 = vld [vmem:[%s4 + $0x1e8] sm:$0xf]
    %v3094 = vld [vmem:[%s4 + $0x1ec] sm:$0xf]
    %v3095 = vld [vmem:[%s4 + $0x1f0] sm:$0xf]
    %v3096 = vld [vmem:[%s4 + $0x1f4] sm:$0xf]
    %v3097 = vld [vmem:[%s4 + $0x1f8] sm:$0xf]
    %v3098 = vld [vmem:[%s4 + $0x1fc] sm:$0xf]
    %v3099 = vld [vmem:[%s4 + $0x200] sm:$0xf]
    %v3100 = vld [vmem:[%s4 + $0x204] sm:$0xf]
    %v3101 = vld [vmem:[%s4 + $0x208] sm:$0xf]
    %v3102 = vld [vmem:[%s4 + $0x20c] sm:$0xf]
    %v3103 = vld [vmem:[%s4 + $0x210] sm:$0xf]
    %v3104 = vld [vmem:[%s4 + $0x214] sm:$0xf]
    %v3105 = vld [vmem:[%s4 + $0x218] sm:$0xf]
    %v3106 = vld [vmem:[%s4 + $0x21c] sm:$0xf]
    %v3107 = vld [vmem:[%s4 + $0x220] sm:$0xf]
    %v3108 = vld [vmem:[%s4 + $0x224] sm:$0xf]
    %v3109 = vld [vmem:[%s4 + $0x228] sm:$0xf]
    %v3110 = vld [vmem:[%s4 + $0x22c] sm:$0xf]
    %v3111 = vld [vmem:[%s4 + $0x230] sm:$0xf]
    %v3112 = vld [vmem:[%s4 + $0x234] sm:$0xf]
    %v3113 = vld [vmem:[%s4 + $0x238] sm:$0xf]
    %v3114 = vld [vmem:[%s4 + $0x23c] sm:$0xf]
    %v3259 = vunpack.c.l.b16 %v2971
    %v3260 = vunpack.c.l.b16 %v2972
    %v3261 = vunpack.c.l.b16 %v2973
    %v3262 = vunpack.c.l.b16 %v2974
    %v3263 = vunpack.c.l.b16 %v2975
    %v3264 = vunpack.c.l.b16 %v2976
    %v3265 = vunpack.c.l.b16 %v2977
    %v3266 = vunpack.c.l.b16 %v2978
    %v3267 = vunpack.c.l.b16 %v2979
    %v3268 = vunpack.c.l.b16 %v2980
    %v3269 = vunpack.c.l.b16 %v2981
    %v3270 = vunpack.c.l.b16 %v2982
    %v3271 = vunpack.c.l.b16 %v2983
    %v3272 = vunpack.c.l.b16 %v2984
    %v3273 = vunpack.c.l.b16 %v2985
    %v3274 = vunpack.c.l.b16 %v2986
    %v3275 = vunpack.c.l.b16 %v2987
    %v3276 = vunpack.c.l.b16 %v2988
    %v3277 = vunpack.c.l.b16 %v2989
    %v3278 = vunpack.c.l.b16 %v2990
    %v3279 = vunpack.c.l.b16 %v2991
    %v3280 = vunpack.c.l.b16 %v2992
    %v3281 = vunpack.c.l.b16 %v2993
    %v3282 = vunpack.c.l.b16 %v2994
    %v3283 = vunpack.c.l.b16 %v2995
    %v3284 = vunpack.c.l.b16 %v2996
    %v3285 = vunpack.c.l.b16 %v2997
    %v3286 = vunpack.c.l.b16 %v2998
    %v3287 = vunpack.c.l.b16 %v2999
    %v3288 = vunpack.c.l.b16 %v3000
    %v3289 = vunpack.c.l.b16 %v3001
    %v3290 = vunpack.c.l.b16 %v3002
    %v3291 = vunpack.c.l.b16 %v3003
    %v3292 = vunpack.c.l.b16 %v3004
    %v3293 = vunpack.c.l.b16 %v3005
    %v3294 = vunpack.c.l.b16 %v3006
    %v3295 = vunpack.c.l.b16 %v3007
    %v3296 = vunpack.c.l.b16 %v3008
    %v3297 = vunpack.c.l.b16 %v3009
    %v3298 = vunpack.c.l.b16 %v3010
    %v3299 = vunpack.c.l.b16 %v3011
    %v3300 = vunpack.c.l.b16 %v3012
    %v3301 = vunpack.c.l.b16 %v3013
    %v3302 = vunpack.c.l.b16 %v3014
    %v3303 = vunpack.c.l.b16 %v3015
    %v3304 = vunpack.c.l.b16 %v3016
    %v3305 = vunpack.c.l.b16 %v3017
    %v3306 = vunpack.c.l.b16 %v3018
    %v3307 = vunpack.c.l.b16 %v3019
    %v3308 = vunpack.c.l.b16 %v3020
    %v3309 = vunpack.c.l.b16 %v3021
    %v3310 = vunpack.c.l.b16 %v3022
    %v3311 = vunpack.c.l.b16 %v3023
    %v3312 = vunpack.c.l.b16 %v3024
    %v3313 = vunpack.c.l.b16 %v3025
    %v3314 = vunpack.c.l.b16 %v3026
    %v3315 = vunpack.c.l.b16 %v3027
    %v3316 = vunpack.c.l.b16 %v3028
    %v3317 = vunpack.c.l.b16 %v3029
    %v3318 = vunpack.c.l.b16 %v3030
    %v3319 = vunpack.c.l.b16 %v3031
    %v3320 = vunpack.c.l.b16 %v3032
    %v3321 = vunpack.c.l.b16 %v3033
    %v3322 = vunpack.c.l.b16 %v3034
    %v3323 = vunpack.c.l.b16 %v3035
    %v3324 = vunpack.c.l.b16 %v3036
    %v3325 = vunpack.c.l.b16 %v3037
    %v3326 = vunpack.c.l.b16 %v3038
    %v3327 = vunpack.c.l.b16 %v3039
    %v3328 = vunpack.c.l.b16 %v3040
    %v3329 = vunpack.c.l.b16 %v3041
    %v3330 = vunpack.c.l.b16 %v3042
    %v3331 = vunpack.c.l.b16 %v3043
    %v3332 = vunpack.c.l.b16 %v3044
    %v3333 = vunpack.c.l.b16 %v3045
    %v3334 = vunpack.c.l.b16 %v3046
    %v3335 = vunpack.c.l.b16 %v3047
    %v3336 = vunpack.c.l.b16 %v3048
    %v3337 = vunpack.c.l.b16 %v3049
    %v3338 = vunpack.c.l.b16 %v3050
    %v3339 = vunpack.c.l.b16 %v3051
    %v3340 = vunpack.c.l.b16 %v3052
    %v3341 = vunpack.c.l.b16 %v3053
    %v3342 = vunpack.c.l.b16 %v3054
    %v3343 = vunpack.c.l.b16 %v3055
    %v3344 = vunpack.c.l.b16 %v3056
    %v3345 = vunpack.c.l.b16 %v3057
    %v3346 = vunpack.c.l.b16 %v3058
    %v3347 = vunpack.c.l.b16 %v3059
    %v3348 = vunpack.c.l.b16 %v3060
    %v3349 = vunpack.c.l.b16 %v3061
    %v3350 = vunpack.c.l.b16 %v3062
    %v3351 = vunpack.c.l.b16 %v3063
    %v3352 = vunpack.c.l.b16 %v3064
    %v3353 = vunpack.c.l.b16 %v3065
    %v3354 = vunpack.c.l.b16 %v3066
    %v3355 = vunpack.c.l.b16 %v3067
    %v3356 = vunpack.c.l.b16 %v3068
    %v3357 = vunpack.c.l.b16 %v3069
    %v3358 = vunpack.c.l.b16 %v3070
    %v3359 = vunpack.c.l.b16 %v3071
    %v3360 = vunpack.c.l.b16 %v3072
    %v3361 = vunpack.c.l.b16 %v3073
    %v3362 = vunpack.c.l.b16 %v3074
    %v3363 = vunpack.c.l.b16 %v3075
    %v3364 = vunpack.c.l.b16 %v3076
    %v3365 = vunpack.c.l.b16 %v3077
    %v3366 = vunpack.c.l.b16 %v3078
    %v3367 = vunpack.c.l.b16 %v3079
    %v3368 = vunpack.c.l.b16 %v3080
    %v3369 = vunpack.c.l.b16 %v3081
    %v3370 = vunpack.c.l.b16 %v3082
    %v3371 = vunpack.c.l.b16 %v3083
    %v3372 = vunpack.c.l.b16 %v3084
    %v3373 = vunpack.c.l.b16 %v3085
    %v3374 = vunpack.c.l.b16 %v3086
    %v3375 = vunpack.c.l.b16 %v3087
    %v3376 = vunpack.c.l.b16 %v3088
    %v3377 = vunpack.c.l.b16 %v3089
    %v3378 = vunpack.c.l.b16 %v3090
    %v3379 = vunpack.c.l.b16 %v3091
    %v3380 = vunpack.c.l.b16 %v3092
    %v3381 = vunpack.c.l.b16 %v3093
    %v3382 = vunpack.c.l.b16 %v3094
    %v3383 = vunpack.c.l.b16 %v3095
    %v3384 = vunpack.c.l.b16 %v3096
    %v3385 = vunpack.c.l.b16 %v3097
    %v3386 = vunpack.c.l.b16 %v3098
    %v3387 = vunpack.c.l.b16 %v3099
    %v3388 = vunpack.c.l.b16 %v3100
    %v3389 = vunpack.c.l.b16 %v3101
    %v3390 = vunpack.c.l.b16 %v3102
    %v3391 = vunpack.c.l.b16 %v3103
    %v3392 = vunpack.c.l.b16 %v3104
    %v3393 = vunpack.c.l.b16 %v3105
    %v3394 = vunpack.c.l.b16 %v3106
    %v3395 = vunpack.c.l.b16 %v3107
    %v3396 = vunpack.c.l.b16 %v3108
    %v3397 = vunpack.c.l.b16 %v3109
    %v3398 = vunpack.c.l.b16 %v3110
    %v3399 = vunpack.c.l.b16 %v3111
    %v3400 = vunpack.c.l.b16 %v3112
    %v3401 = vunpack.c.l.b16 %v3113
    %v3402 = vunpack.c.l.b16 %v3114
    %v3403 = vpack.c.b16 %v3260, %v3259
    %v3404 = vpack.c.b16 %v3262, %v3261
    %v3405 = vpack.c.b16 %v3264, %v3263
    %v3406 = vpack.c.b16 %v3266, %v3265
    %v3407 = vpack.c.b16 %v3268, %v3267
    %v3408 = vpack.c.b16 %v3270, %v3269
    %v3409 = vpack.c.b16 %v3272, %v3271
    %v3410 = vpack.c.b16 %v3274, %v3273
    %v3411 = vpack.c.b16 %v3276, %v3275
    %v3412 = vpack.c.b16 %v3278, %v3277
    %v3413 = vpack.c.b16 %v3280, %v3279
    %v3414 = vpack.c.b16 %v3282, %v3281
    %v3415 = vpack.c.b16 %v3284, %v3283
    %v3416 = vpack.c.b16 %v3286, %v3285
    %v3417 = vpack.c.b16 %v3288, %v3287
    %v3418 = vpack.c.b16 %v3290, %v3289
    %v3419 = vpack.c.b16 %v3292, %v3291
    %v3420 = vpack.c.b16 %v3294, %v3293
    %v3421 = vpack.c.b16 %v3296, %v3295
    %v3422 = vpack.c.b16 %v3298, %v3297
    %v3423 = vpack.c.b16 %v3300, %v3299
    %v3424 = vpack.c.b16 %v3302, %v3301
    %v3425 = vpack.c.b16 %v3304, %v3303
    %v3426 = vpack.c.b16 %v3306, %v3305
    %v3427 = vpack.c.b16 %v3308, %v3307
    %v3428 = vpack.c.b16 %v3310, %v3309
    %v3429 = vpack.c.b16 %v3312, %v3311
    %v3430 = vpack.c.b16 %v3314, %v3313
    %v3431 = vpack.c.b16 %v3316, %v3315
    %v3432 = vpack.c.b16 %v3318, %v3317
    %v3433 = vpack.c.b16 %v3320, %v3319
    %v3434 = vpack.c.b16 %v3322, %v3321
    %v3435 = vpack.c.b16 %v3324, %v3323
    %v3436 = vpack.c.b16 %v3326, %v3325
    %v3437 = vpack.c.b16 %v3328, %v3327
    %v3438 = vpack.c.b16 %v3330, %v3329
    %v3439 = vpack.c.b16 %v3332, %v3331
    %v3440 = vpack.c.b16 %v3334, %v3333
    %v3441 = vpack.c.b16 %v3336, %v3335
    %v3442 = vpack.c.b16 %v3338, %v3337
    %v3443 = vpack.c.b16 %v3340, %v3339
    %v3444 = vpack.c.b16 %v3342, %v3341
    %v3445 = vpack.c.b16 %v3344, %v3343
    %v3446 = vpack.c.b16 %v3346, %v3345
    %v3447 = vpack.c.b16 %v3348, %v3347
    %v3448 = vpack.c.b16 %v3350, %v3349
    %v3449 = vpack.c.b16 %v3352, %v3351
    %v3450 = vpack.c.b16 %v3354, %v3353
    %v3451 = vpack.c.b16 %v3356, %v3355
    %v3452 = vpack.c.b16 %v3358, %v3357
    %v3453 = vpack.c.b16 %v3360, %v3359
    %v3454 = vpack.c.b16 %v3362, %v3361
    %v3455 = vpack.c.b16 %v3364, %v3363
    %v3456 = vpack.c.b16 %v3366, %v3365
    %v3457 = vpack.c.b16 %v3368, %v3367
    %v3458 = vpack.c.b16 %v3370, %v3369
    %v3459 = vpack.c.b16 %v3372, %v3371
    %v3460 = vpack.c.b16 %v3374, %v3373
    %v3461 = vpack.c.b16 %v3376, %v3375
    %v3462 = vpack.c.b16 %v3378, %v3377
    %v3463 = vpack.c.b16 %v3380, %v3379
    %v3464 = vpack.c.b16 %v3382, %v3381
    %v3465 = vpack.c.b16 %v3384, %v3383
    %v3466 = vpack.c.b16 %v3386, %v3385
    %v3467 = vpack.c.b16 %v3388, %v3387
    %v3468 = vpack.c.b16 %v3390, %v3389
    %v3469 = vpack.c.b16 %v3392, %v3391
    %v3470 = vpack.c.b16 %v3394, %v3393
    %v3471 = vpack.c.b16 %v3396, %v3395
    %v3472 = vpack.c.b16 %v3398, %v3397
    %v3473 = vpack.c.b16 %v3400, %v3399
    %v3474 = vpack.c.b16 %v3402, %v3401
    %3547 = vmatpush.bf16.msra.mxu0 %v3410
    %3548 = vmatpush.bf16.msra.mxu0 %v3409
    %3549 = vmatpush.bf16.msra.mxu0 %v3408
    %3550 = vmatpush.bf16.msra.mxu0 %v3407
    %3551 = vmatpush.bf16.msra.mxu0 %v3406
    %3552 = vmatpush.bf16.msra.mxu0 %v3405
    %3553 = vmatpush.bf16.msra.mxu0 %v3404
    %3554 = vmatpush.bf16.msra.mxu0 %v3403
    %3555 = vmatmul.bf16.gmra.mxu0 %v2863
    %v3556 = vpop.f32.mrf.mxu0
    %v3557 = vadd.f32 0.0, %v3556
    %v3558 = vpop.f32.mrf.mxu0
    %v3559 = vadd.f32 0.0, %v3558
    %3560 = vmatmul.bf16.gmra.mxu0 %v2872
    %v3561 = vpop.f32.mrf.mxu0
    %v3562 = vadd.f32 0.0, %v3561
    %v3563 = vpop.f32.mrf.mxu0
    %v3564 = vadd.f32 0.0, %v3563
    %3565 = vmatmul.bf16.gmra.mxu0 %v2881
    %v3566 = vpop.f32.mrf.mxu0
    %v3567 = vadd.f32 0.0, %v3566
    %v3568 = vpop.f32.mrf.mxu0
    %v3569 = vadd.f32 0.0, %v3568
    %3570 = vmatmul.bf16.gmra.mxu0 %v2890
    %v3571 = vpop.f32.mrf.mxu0
    %v3572 = vadd.f32 0.0, %v3571
    %v3573 = vpop.f32.mrf.mxu0
    %v3574 = vadd.f32 0.0, %v3573
    %3575 = vmatmul.bf16.gmra.mxu0 %v2899
    %v3576 = vpop.f32.mrf.mxu0
    %v3577 = vadd.f32 0.0, %v3576
    %v3578 = vpop.f32.mrf.mxu0
    %v3579 = vadd.f32 0.0, %v3578
    %3580 = vmatmul.bf16.gmra.mxu0 %v2908
    %v3581 = vpop.f32.mrf.mxu0
    %v3582 = vadd.f32 0.0, %v3581
    %v3583 = vpop.f32.mrf.mxu0
    %v3584 = vadd.f32 0.0, %v3583
    %3585 = vmatmul.bf16.gmra.mxu0 %v2917
    %v3586 = vpop.f32.mrf.mxu0
    %v3587 = vadd.f32 0.0, %v3586
    %v3588 = vpop.f32.mrf.mxu0
    %v3589 = vadd.f32 0.0, %v3588
    %3590 = vmatmul.bf16.gmra.mxu0 %v2926
    %v3591 = vpop.f32.mrf.mxu0
    %v3592 = vadd.f32 0.0, %v3591
    %v3593 = vpop.f32.mrf.mxu0
    %v3594 = vadd.f32 0.0, %v3593
    %3595 = vmatmul.bf16.gmra.mxu0 %v2935
    %v3596 = vpop.f32.mrf.mxu0
    %v3597 = vadd.f32 0.0, %v3596
    %v3598 = vpop.f32.mrf.mxu0
    %v3599 = vadd.f32 0.0, %v3598
    %3600 = vmatmul.bf16.gmra.mxu0 %v2944
    %v3601 = vpop.f32.mrf.mxu0
    %v3602 = vadd.f32 0.0, %v3601
    %v3603 = vpop.f32.mrf.mxu0
    %v3604 = vadd.f32 0.0, %v3603
    %3605 = vmatmul.bf16.gmra.mxu0 %v2953
    %v3606 = vpop.f32.mrf.mxu0
    %v3607 = vadd.f32 0.0, %v3606
    %v3608 = vpop.f32.mrf.mxu0
    %v3609 = vadd.f32 0.0, %v3608
    %3610 = vmatmul.bf16.gmra.mxu0 %v2962
    %v3611 = vpop.f32.mrf.mxu0
    %v3612 = vadd.f32 0.0, %v3611
    %v3613 = vpop.f32.mrf.mxu0
    %3614 = vdwg.mxu0
    %3615 = vmatpush.bf16.msra.mxu0 %v3418
    %3616 = vmatpush.bf16.msra.mxu0 %v3417
    %3617 = vmatpush.bf16.msra.mxu0 %v3416
    %3618 = vmatpush.bf16.msra.mxu0 %v3415
    %3619 = vmatpush.bf16.msra.mxu0 %v3414
    %3620 = vmatpush.bf16.msra.mxu0 %v3413
    %3621 = vmatpush.bf16.msra.mxu0 %v3412
    %3622 = vmatpush.bf16.msra.mxu0 %v3411
    %3623 = vmatmul.bf16.gmra.mxu0 %v2864
    %v3624 = vpop.f32.mrf.mxu0
    %v3625 = vadd.f32 %v3557, %v3624
    %v3626 = vpop.f32.mrf.mxu0
    %v3627 = vadd.f32 %v3559, %v3626
    %3628 = vmatmul.bf16.gmra.mxu0 %v2873
    %v3629 = vpop.f32.mrf.mxu0
    %v3630 = vadd.f32 %v3562, %v3629
    %v3631 = vpop.f32.mrf.mxu0
    %v3632 = vadd.f32 %v3564, %v3631
    %3633 = vmatmul.bf16.gmra.mxu0 %v2882
    %v3634 = vpop.f32.mrf.mxu0
    %v3635 = vadd.f32 %v3567, %v3634
    %v3636 = vpop.f32.mrf.mxu0
    %v3637 = vadd.f32 %v3569, %v3636
    %3638 = vmatmul.bf16.gmra.mxu0 %v2891
    %v3639 = vpop.f32.mrf.mxu0
    %v3640 = vadd.f32 %v3572, %v3639
    %v3641 = vpop.f32.mrf.mxu0
    %v3642 = vadd.f32 %v3574, %v3641
    %3643 = vmatmul.bf16.gmra.mxu0 %v2900
    %v3644 = vpop.f32.mrf.mxu0
    %v3645 = vadd.f32 %v3577, %v3644
    %v3646 = vpop.f32.mrf.mxu0
    %v3647 = vadd.f32 %v3579, %v3646
    %3648 = vmatmul.bf16.gmra.mxu0 %v2909
    %v3649 = vpop.f32.mrf.mxu0
    %v3650 = vadd.f32 %v3582, %v3649
    %v3651 = vpop.f32.mrf.mxu0
    %v3652 = vadd.f32 %v3584, %v3651
    %3653 = vmatmul.bf16.gmra.mxu0 %v2918
    %v3654 = vpop.f32.mrf.mxu0
    %v3655 = vadd.f32 %v3587, %v3654
    %v3656 = vpop.f32.mrf.mxu0
    %v3657 = vadd.f32 %v3589, %v3656
    %3658 = vmatmul.bf16.gmra.mxu0 %v2927
    %v3659 = vpop.f32.mrf.mxu0
    %v3660 = vadd.f32 %v3592, %v3659
    %v3661 = vpop.f32.mrf.mxu0
    %v3662 = vadd.f32 %v3594, %v3661
    %3663 = vmatmul.bf16.gmra.mxu0 %v2936
    %v3664 = vpop.f32.mrf.mxu0
    %v3665 = vadd.f32 %v3597, %v3664
    %v3666 = vpop.f32.mrf.mxu0
    %v3667 = vadd.f32 %v3599, %v3666
    %3668 = vmatmul.bf16.gmra.mxu0 %v2945
    %v3669 = vpop.f32.mrf.mxu0
    %v3670 = vadd.f32 %v3602, %v3669
    %v3671 = vpop.f32.mrf.mxu0
    %v3672 = vadd.f32 %v3604, %v3671
    %3673 = vmatmul.bf16.gmra.mxu0 %v2954
    %v3674 = vpop.f32.mrf.mxu0
    %v3675 = vadd.f32 %v3607, %v3674
    %v3676 = vpop.f32.mrf.mxu0
    %v3677 = vadd.f32 %v3609, %v3676
    %3678 = vmatmul.bf16.gmra.mxu0 %v2963
    %v3679 = vpop.f32.mrf.mxu0
    %v3680 = vadd.f32 %v3612, %v3679
    %v3681 = vpop.f32.mrf.mxu0
    %3682 = vdwg.mxu0
    %3683 = vmatpush.bf16.msra.mxu0 %v3426
    %3684 = vmatpush.bf16.msra.mxu0 %v3425
    %3685 = vmatpush.bf16.msra.mxu0 %v3424
    %3686 = vmatpush.bf16.msra.mxu0 %v3423
    %3687 = vmatpush.bf16.msra.mxu0 %v3422
    %3688 = vmatpush.bf16.msra.mxu0 %v3421
    %3689 = vmatpush.bf16.msra.mxu0 %v3420
    %3690 = vmatpush.bf16.msra.mxu0 %v3419
    %3691 = vmatmul.bf16.gmra.mxu0 %v2865
    %v3692 = vpop.f32.mrf.mxu0
    %v3693 = vadd.f32 %v3625, %v3692
    %v3694 = vpop.f32.mrf.mxu0
    %v3695 = vadd.f32 %v3627, %v3694
    %3696 = vmatmul.bf16.gmra.mxu0 %v2874
    %v3697 = vpop.f32.mrf.mxu0
    %v3698 = vadd.f32 %v3630, %v3697
    %v3699 = vpop.f32.mrf.mxu0
    %v3700 = vadd.f32 %v3632, %v3699
    %3701 = vmatmul.bf16.gmra.mxu0 %v2883
    %v3702 = vpop.f32.mrf.mxu0
    %v3703 = vadd.f32 %v3635, %v3702
    %v3704 = vpop.f32.mrf.mxu0
    %v3705 = vadd.f32 %v3637, %v3704
    %3706 = vmatmul.bf16.gmra.mxu0 %v2892
    %v3707 = vpop.f32.mrf.mxu0
    %v3708 = vadd.f32 %v3640, %v3707
    %v3709 = vpop.f32.mrf.mxu0
    %v3710 = vadd.f32 %v3642, %v3709
    %3711 = vmatmul.bf16.gmra.mxu0 %v2901
    %v3712 = vpop.f32.mrf.mxu0
    %v3713 = vadd.f32 %v3645, %v3712
    %v3714 = vpop.f32.mrf.mxu0
    %v3715 = vadd.f32 %v3647, %v3714
    %3716 = vmatmul.bf16.gmra.mxu0 %v2910
    %v3717 = vpop.f32.mrf.mxu0
    %v3718 = vadd.f32 %v3650, %v3717
    %v3719 = vpop.f32.mrf.mxu0
    %v3720 = vadd.f32 %v3652, %v3719
    %3721 = vmatmul.bf16.gmra.mxu0 %v2919
    %v3722 = vpop.f32.mrf.mxu0
    %v3723 = vadd.f32 %v3655, %v3722
    %v3724 = vpop.f32.mrf.mxu0
    %v3725 = vadd.f32 %v3657, %v3724
    %3726 = vmatmul.bf16.gmra.mxu0 %v2928
    %v3727 = vpop.f32.mrf.mxu0
    %v3728 = vadd.f32 %v3660, %v3727
    %v3729 = vpop.f32.mrf.mxu0
    %v3730 = vadd.f32 %v3662, %v3729
    %3731 = vmatmul.bf16.gmra.mxu0 %v2937
    %v3732 = vpop.f32.mrf.mxu0
    %v3733 = vadd.f32 %v3665, %v3732
    %v3734 = vpop.f32.mrf.mxu0
    %v3735 = vadd.f32 %v3667, %v3734
    %3736 = vmatmul.bf16.gmra.mxu0 %v2946
    %v3737 = vpop.f32.mrf.mxu0
    %v3738 = vadd.f32 %v3670, %v3737
    %v3739 = vpop.f32.mrf.mxu0
    %v3740 = vadd.f32 %v3672, %v3739
    %3741 = vmatmul.bf16.gmra.mxu0 %v2955
    %v3742 = vpop.f32.mrf.mxu0
    %v3743 = vadd.f32 %v3675, %v3742
    %v3744 = vpop.f32.mrf.mxu0
    %v3745 = vadd.f32 %v3677, %v3744
    %3746 = vmatmul.bf16.gmra.mxu0 %v2964
    %v3747 = vpop.f32.mrf.mxu0
    %v3748 = vadd.f32 %v3680, %v3747
    %v3749 = vpop.f32.mrf.mxu0
    %3750 = vdwg.mxu0
    %3751 = vmatpush.bf16.msra.mxu0 %v3434
    %3752 = vmatpush.bf16.msra.mxu0 %v3433
    %3753 = vmatpush.bf16.msra.mxu0 %v3432
    %3754 = vmatpush.bf16.msra.mxu0 %v3431
    %3755 = vmatpush.bf16.msra.mxu0 %v3430
    %3756 = vmatpush.bf16.msra.mxu0 %v3429
    %3757 = vmatpush.bf16.msra.mxu0 %v3428
    %3758 = vmatpush.bf16.msra.mxu0 %v3427
    %3759 = vmatmul.bf16.gmra.mxu0 %v2866
    %v3760 = vpop.f32.mrf.mxu0
    %v3761 = vadd.f32 %v3693, %v3760
    %v3762 = vpop.f32.mrf.mxu0
    %v3763 = vadd.f32 %v3695, %v3762
    %3764 = vmatmul.bf16.gmra.mxu0 %v2875
    %v3765 = vpop.f32.mrf.mxu0
    %v3766 = vadd.f32 %v3698, %v3765
    %v3767 = vpop.f32.mrf.mxu0
    %v3768 = vadd.f32 %v3700, %v3767
    %3769 = vmatmul.bf16.gmra.mxu0 %v2884
    %v3770 = vpop.f32.mrf.mxu0
    %v3771 = vadd.f32 %v3703, %v3770
    %v3772 = vpop.f32.mrf.mxu0
    %v3773 = vadd.f32 %v3705, %v3772
    %3774 = vmatmul.bf16.gmra.mxu0 %v2893
    %v3775 = vpop.f32.mrf.mxu0
    %v3776 = vadd.f32 %v3708, %v3775
    %v3777 = vpop.f32.mrf.mxu0
    %v3778 = vadd.f32 %v3710, %v3777
    %3779 = vmatmul.bf16.gmra.mxu0 %v2902
    %v3780 = vpop.f32.mrf.mxu0
    %v3781 = vadd.f32 %v3713, %v3780
    %v3782 = vpop.f32.mrf.mxu0
    %v3783 = vadd.f32 %v3715, %v3782
    %3784 = vmatmul.bf16.gmra.mxu0 %v2911
    %v3785 = vpop.f32.mrf.mxu0
    %v3786 = vadd.f32 %v3718, %v3785
    %v3787 = vpop.f32.mrf.mxu0
    %v3788 = vadd.f32 %v3720, %v3787
    %3789 = vmatmul.bf16.gmra.mxu0 %v2920
    %v3790 = vpop.f32.mrf.mxu0
    %v3791 = vadd.f32 %v3723, %v3790
    %v3792 = vpop.f32.mrf.mxu0
    %v3793 = vadd.f32 %v3725, %v3792
    %3794 = vmatmul.bf16.gmra.mxu0 %v2929
    %v3795 = vpop.f32.mrf.mxu0
    %v3796 = vadd.f32 %v3728, %v3795
    %v3797 = vpop.f32.mrf.mxu0
    %v3798 = vadd.f32 %v3730, %v3797
    %3799 = vmatmul.bf16.gmra.mxu0 %v2938
    %v3800 = vpop.f32.mrf.mxu0
    %v3801 = vadd.f32 %v3733, %v3800
    %v3802 = vpop.f32.mrf.mxu0
    %v3803 = vadd.f32 %v3735, %v3802
    %3804 = vmatmul.bf16.gmra.mxu0 %v2947
    %v3805 = vpop.f32.mrf.mxu0
    %v3806 = vadd.f32 %v3738, %v3805
    %v3807 = vpop.f32.mrf.mxu0
    %v3808 = vadd.f32 %v3740, %v3807
    %3809 = vmatmul.bf16.gmra.mxu0 %v2956
    %v3810 = vpop.f32.mrf.mxu0
    %v3811 = vadd.f32 %v3743, %v3810
    %v3812 = vpop.f32.mrf.mxu0
    %v3813 = vadd.f32 %v3745, %v3812
    %3814 = vmatmul.bf16.gmra.mxu0 %v2965
    %v3815 = vpop.f32.mrf.mxu0
    %v3816 = vadd.f32 %v3748, %v3815
    %v3817 = vpop.f32.mrf.mxu0
    %3818 = vdwg.mxu0
    %3819 = vmatpush.bf16.msra.mxu0 %v3442
    %3820 = vmatpush.bf16.msra.mxu0 %v3441
    %3821 = vmatpush.bf16.msra.mxu0 %v3440
    %3822 = vmatpush.bf16.msra.mxu0 %v3439
    %3823 = vmatpush.bf16.msra.mxu0 %v3438
    %3824 = vmatpush.bf16.msra.mxu0 %v3437
    %3825 = vmatpush.bf16.msra.mxu0 %v3436
    %3826 = vmatpush.bf16.msra.mxu0 %v3435
    %3827 = vmatmul.bf16.gmra.mxu0 %v2867
    %v3828 = vpop.f32.mrf.mxu0
    %v3829 = vadd.f32 %v3761, %v3828
    %v3830 = vpop.f32.mrf.mxu0
    %v3831 = vadd.f32 %v3763, %v3830
    %3832 = vmatmul.bf16.gmra.mxu0 %v2876
    %v3833 = vpop.f32.mrf.mxu0
    %v3834 = vadd.f32 %v3766, %v3833
    %v3835 = vpop.f32.mrf.mxu0
    %v3836 = vadd.f32 %v3768, %v3835
    %3837 = vmatmul.bf16.gmra.mxu0 %v2885
    %v3838 = vpop.f32.mrf.mxu0
    %v3839 = vadd.f32 %v3771, %v3838
    %v3840 = vpop.f32.mrf.mxu0
    %v3841 = vadd.f32 %v3773, %v3840
    %3842 = vmatmul.bf16.gmra.mxu0 %v2894
    %v3843 = vpop.f32.mrf.mxu0
    %v3844 = vadd.f32 %v3776, %v3843
    %v3845 = vpop.f32.mrf.mxu0
    %v3846 = vadd.f32 %v3778, %v3845
    %3847 = vmatmul.bf16.gmra.mxu0 %v2903
    %v3848 = vpop.f32.mrf.mxu0
    %v3849 = vadd.f32 %v3781, %v3848
    %v3850 = vpop.f32.mrf.mxu0
    %v3851 = vadd.f32 %v3783, %v3850
    %3852 = vmatmul.bf16.gmra.mxu0 %v2912
    %v3853 = vpop.f32.mrf.mxu0
    %v3854 = vadd.f32 %v3786, %v3853
    %v3855 = vpop.f32.mrf.mxu0
    %v3856 = vadd.f32 %v3788, %v3855
    %3857 = vmatmul.bf16.gmra.mxu0 %v2921
    %v3858 = vpop.f32.mrf.mxu0
    %v3859 = vadd.f32 %v3791, %v3858
    %v3860 = vpop.f32.mrf.mxu0
    %v3861 = vadd.f32 %v3793, %v3860
    %3862 = vmatmul.bf16.gmra.mxu0 %v2930
    %v3863 = vpop.f32.mrf.mxu0
    %v3864 = vadd.f32 %v3796, %v3863
    %v3865 = vpop.f32.mrf.mxu0
    %v3866 = vadd.f32 %v3798, %v3865
    %3867 = vmatmul.bf16.gmra.mxu0 %v2939
    %v3868 = vpop.f32.mrf.mxu0
    %v3869 = vadd.f32 %v3801, %v3868
    %v3870 = vpop.f32.mrf.mxu0
    %v3871 = vadd.f32 %v3803, %v3870
    %3872 = vmatmul.bf16.gmra.mxu0 %v2948
    %v3873 = vpop.f32.mrf.mxu0
    %v3874 = vadd.f32 %v3806, %v3873
    %v3875 = vpop.f32.mrf.mxu0
    %v3876 = vadd.f32 %v3808, %v3875
    %3877 = vmatmul.bf16.gmra.mxu0 %v2957
    %v3878 = vpop.f32.mrf.mxu0
    %v3879 = vadd.f32 %v3811, %v3878
    %v3880 = vpop.f32.mrf.mxu0
    %v3881 = vadd.f32 %v3813, %v3880
    %3882 = vmatmul.bf16.gmra.mxu0 %v2966
    %v3883 = vpop.f32.mrf.mxu0
    %v3884 = vadd.f32 %v3816, %v3883
    %v3885 = vpop.f32.mrf.mxu0
    %3886 = vdwg.mxu0
    %3887 = vmatpush.bf16.msra.mxu0 %v3450
    %3888 = vmatpush.bf16.msra.mxu0 %v3449
    %3889 = vmatpush.bf16.msra.mxu0 %v3448
    %3890 = vmatpush.bf16.msra.mxu0 %v3447
    %3891 = vmatpush.bf16.msra.mxu0 %v3446
    %3892 = vmatpush.bf16.msra.mxu0 %v3445
    %3893 = vmatpush.bf16.msra.mxu0 %v3444
    %3894 = vmatpush.bf16.msra.mxu0 %v3443
    %3895 = vmatmul.bf16.gmra.mxu0 %v2868
    %v3896 = vpop.f32.mrf.mxu0
    %v3897 = vadd.f32 %v3829, %v3896
    %v3898 = vpop.f32.mrf.mxu0
    %v3899 = vadd.f32 %v3831, %v3898
    %3900 = vmatmul.bf16.gmra.mxu0 %v2877
    %v3901 = vpop.f32.mrf.mxu0
    %v3902 = vadd.f32 %v3834, %v3901
    %v3903 = vpop.f32.mrf.mxu0
    %v3904 = vadd.f32 %v3836, %v3903
    %3905 = vmatmul.bf16.gmra.mxu0 %v2886
    %v3906 = vpop.f32.mrf.mxu0
    %v3907 = vadd.f32 %v3839, %v3906
    %v3908 = vpop.f32.mrf.mxu0
    %v3909 = vadd.f32 %v3841, %v3908
    %3910 = vmatmul.bf16.gmra.mxu0 %v2895
    %v3911 = vpop.f32.mrf.mxu0
    %v3912 = vadd.f32 %v3844, %v3911
    %v3913 = vpop.f32.mrf.mxu0
    %v3914 = vadd.f32 %v3846, %v3913
    %3915 = vmatmul.bf16.gmra.mxu0 %v2904
    %v3916 = vpop.f32.mrf.mxu0
    %v3917 = vadd.f32 %v3849, %v3916
    %v3918 = vpop.f32.mrf.mxu0
    %v3919 = vadd.f32 %v3851, %v3918
    %3920 = vmatmul.bf16.gmra.mxu0 %v2913
    %v3921 = vpop.f32.mrf.mxu0
    %v3922 = vadd.f32 %v3854, %v3921
    %v3923 = vpop.f32.mrf.mxu0
    %v3924 = vadd.f32 %v3856, %v3923
    %3925 = vmatmul.bf16.gmra.mxu0 %v2922
    %v3926 = vpop.f32.mrf.mxu0
    %v3927 = vadd.f32 %v3859, %v3926
    %v3928 = vpop.f32.mrf.mxu0
    %v3929 = vadd.f32 %v3861, %v3928
    %3930 = vmatmul.bf16.gmra.mxu0 %v2931
    %v3931 = vpop.f32.mrf.mxu0
    %v3932 = vadd.f32 %v3864, %v3931
    %v3933 = vpop.f32.mrf.mxu0
    %v3934 = vadd.f32 %v3866, %v3933
    %3935 = vmatmul.bf16.gmra.mxu0 %v2940
    %v3936 = vpop.f32.mrf.mxu0
    %v3937 = vadd.f32 %v3869, %v3936
    %v3938 = vpop.f32.mrf.mxu0
    %v3939 = vadd.f32 %v3871, %v3938
    %3940 = vmatmul.bf16.gmra.mxu0 %v2949
    %v3941 = vpop.f32.mrf.mxu0
    %v3942 = vadd.f32 %v3874, %v3941
    %v3943 = vpop.f32.mrf.mxu0
    %v3944 = vadd.f32 %v3876, %v3943
    %3945 = vmatmul.bf16.gmra.mxu0 %v2958
    %v3946 = vpop.f32.mrf.mxu0
    %v3947 = vadd.f32 %v3879, %v3946
    %v3948 = vpop.f32.mrf.mxu0
    %v3949 = vadd.f32 %v3881, %v3948
    %3950 = vmatmul.bf16.gmra.mxu0 %v2967
    %v3951 = vpop.f32.mrf.mxu0
    %v3952 = vadd.f32 %v3884, %v3951
    %v3953 = vpop.f32.mrf.mxu0
    %3954 = vdwg.mxu0
    %3955 = vmatpush.bf16.msra.mxu0 %v3458
    %3956 = vmatpush.bf16.msra.mxu0 %v3457
    %3957 = vmatpush.bf16.msra.mxu0 %v3456
    %3958 = vmatpush.bf16.msra.mxu0 %v3455
    %3959 = vmatpush.bf16.msra.mxu0 %v3454
    %3960 = vmatpush.bf16.msra.mxu0 %v3453
    %3961 = vmatpush.bf16.msra.mxu0 %v3452
    %3962 = vmatpush.bf16.msra.mxu0 %v3451
    %3963 = vmatmul.bf16.gmra.mxu0 %v2869
    %v3964 = vpop.f32.mrf.mxu0
    %v3965 = vadd.f32 %v3897, %v3964
    %v3966 = vpop.f32.mrf.mxu0
    %v3967 = vadd.f32 %v3899, %v3966
    %3968 = vmatmul.bf16.gmra.mxu0 %v2878
    %v3969 = vpop.f32.mrf.mxu0
    %v3970 = vadd.f32 %v3902, %v3969
    %v3971 = vpop.f32.mrf.mxu0
    %v3972 = vadd.f32 %v3904, %v3971
    %3973 = vmatmul.bf16.gmra.mxu0 %v2887
    %v3974 = vpop.f32.mrf.mxu0
    %v3975 = vadd.f32 %v3907, %v3974
    %v3976 = vpop.f32.mrf.mxu0
    %v3977 = vadd.f32 %v3909, %v3976
    %3978 = vmatmul.bf16.gmra.mxu0 %v2896
    %v3979 = vpop.f32.mrf.mxu0
    %v3980 = vadd.f32 %v3912, %v3979
    %v3981 = vpop.f32.mrf.mxu0
    %v3982 = vadd.f32 %v3914, %v3981
    %3983 = vmatmul.bf16.gmra.mxu0 %v2905
    %v3984 = vpop.f32.mrf.mxu0
    %v3985 = vadd.f32 %v3917, %v3984
    %v3986 = vpop.f32.mrf.mxu0
    %v3987 = vadd.f32 %v3919, %v3986
    %3988 = vmatmul.bf16.gmra.mxu0 %v2914
    %v3989 = vpop.f32.mrf.mxu0
    %v3990 = vadd.f32 %v3922, %v3989
    %v3991 = vpop.f32.mrf.mxu0
    %v3992 = vadd.f32 %v3924, %v3991
    %3993 = vmatmul.bf16.gmra.mxu0 %v2923
    %v3994 = vpop.f32.mrf.mxu0
    %v3995 = vadd.f32 %v3927, %v3994
    %v3996 = vpop.f32.mrf.mxu0
    %v3997 = vadd.f32 %v3929, %v3996
    %3998 = vmatmul.bf16.gmra.mxu0 %v2932
    %v3999 = vpop.f32.mrf.mxu0
    %v4000 = vadd.f32 %v3932, %v3999
    %v4001 = vpop.f32.mrf.mxu0
    %v4002 = vadd.f32 %v3934, %v4001
    %4003 = vmatmul.bf16.gmra.mxu0 %v2941
    %v4004 = vpop.f32.mrf.mxu0
    %v4005 = vadd.f32 %v3937, %v4004
    %v4006 = vpop.f32.mrf.mxu0
    %v4007 = vadd.f32 %v3939, %v4006
    %4008 = vmatmul.bf16.gmra.mxu0 %v2950
    %v4009 = vpop.f32.mrf.mxu0
    %v4010 = vadd.f32 %v3942, %v4009
    %v4011 = vpop.f32.mrf.mxu0
    %v4012 = vadd.f32 %v3944, %v4011
    %4013 = vmatmul.bf16.gmra.mxu0 %v2959
    %v4014 = vpop.f32.mrf.mxu0
    %v4015 = vadd.f32 %v3947, %v4014
    %v4016 = vpop.f32.mrf.mxu0
    %v4017 = vadd.f32 %v3949, %v4016
    %4018 = vmatmul.bf16.gmra.mxu0 %v2968
    %v4019 = vpop.f32.mrf.mxu0
    %v4020 = vadd.f32 %v3952, %v4019
    %v4021 = vpop.f32.mrf.mxu0
    %4022 = vdwg.mxu0
    %4023 = vmatpush.bf16.msra.mxu0 %v3466
    %4024 = vmatpush.bf16.msra.mxu0 %v3465
    %4025 = vmatpush.bf16.msra.mxu0 %v3464
    %4026 = vmatpush.bf16.msra.mxu0 %v3463
    %4027 = vmatpush.bf16.msra.mxu0 %v3462
    %4028 = vmatpush.bf16.msra.mxu0 %v3461
    %4029 = vmatpush.bf16.msra.mxu0 %v3460
    %4030 = vmatpush.bf16.msra.mxu0 %v3459
    %4031 = vmatmul.bf16.gmra.mxu0 %v2870
    %v4032 = vpop.f32.mrf.mxu0
    %v4033 = vadd.f32 %v3965, %v4032
    %v4034 = vpop.f32.mrf.mxu0
    %v4035 = vadd.f32 %v3967, %v4034
    %4036 = vmatmul.bf16.gmra.mxu0 %v2879
    %v4037 = vpop.f32.mrf.mxu0
    %v4038 = vadd.f32 %v3970, %v4037
    %v4039 = vpop.f32.mrf.mxu0
    %v4040 = vadd.f32 %v3972, %v4039
    %4041 = vmatmul.bf16.gmra.mxu0 %v2888
    %v4042 = vpop.f32.mrf.mxu0
    %v4043 = vadd.f32 %v3975, %v4042
    %v4044 = vpop.f32.mrf.mxu0
    %v4045 = vadd.f32 %v3977, %v4044
    %4046 = vmatmul.bf16.gmra.mxu0 %v2897
    %v4047 = vpop.f32.mrf.mxu0
    %v4048 = vadd.f32 %v3980, %v4047
    %v4049 = vpop.f32.mrf.mxu0
    %v4050 = vadd.f32 %v3982, %v4049
    %4051 = vmatmul.bf16.gmra.mxu0 %v2906
    %v4052 = vpop.f32.mrf.mxu0
    %v4053 = vadd.f32 %v3985, %v4052
    %v4054 = vpop.f32.mrf.mxu0
    %v4055 = vadd.f32 %v3987, %v4054
    %4056 = vmatmul.bf16.gmra.mxu0 %v2915
    %v4057 = vpop.f32.mrf.mxu0
    %v4058 = vadd.f32 %v3990, %v4057
    %v4059 = vpop.f32.mrf.mxu0
    %v4060 = vadd.f32 %v3992, %v4059
    %4061 = vmatmul.bf16.gmra.mxu0 %v2924
    %v4062 = vpop.f32.mrf.mxu0
    %v4063 = vadd.f32 %v3995, %v4062
    %v4064 = vpop.f32.mrf.mxu0
    %v4065 = vadd.f32 %v3997, %v4064
    %4066 = vmatmul.bf16.gmra.mxu0 %v2933
    %v4067 = vpop.f32.mrf.mxu0
    %v4068 = vadd.f32 %v4000, %v4067
    %v4069 = vpop.f32.mrf.mxu0
    %v4070 = vadd.f32 %v4002, %v4069
    %4071 = vmatmul.bf16.gmra.mxu0 %v2942
    %v4072 = vpop.f32.mrf.mxu0
    %v4073 = vadd.f32 %v4005, %v4072
    %v4074 = vpop.f32.mrf.mxu0
    %v4075 = vadd.f32 %v4007, %v4074
    %4076 = vmatmul.bf16.gmra.mxu0 %v2951
    %v4077 = vpop.f32.mrf.mxu0
    %v4078 = vadd.f32 %v4010, %v4077
    %v4079 = vpop.f32.mrf.mxu0
    %v4080 = vadd.f32 %v4012, %v4079
    %4081 = vmatmul.bf16.gmra.mxu0 %v2960
    %v4082 = vpop.f32.mrf.mxu0
    %v4083 = vadd.f32 %v4015, %v4082
    %v4084 = vpop.f32.mrf.mxu0
    %v4085 = vadd.f32 %v4017, %v4084
    %4086 = vmatmul.bf16.gmra.mxu0 %v2969
    %v4087 = vpop.f32.mrf.mxu0
    %v4088 = vadd.f32 %v4020, %v4087
    %v4089 = vpop.f32.mrf.mxu0
    %4090 = vdwg.mxu0
    %4091 = vmatpush.bf16.msra.mxu0 %v3474
    %4092 = vmatpush.bf16.msra.mxu0 %v3473
    %4093 = vmatpush.bf16.msra.mxu0 %v3472
    %4094 = vmatpush.bf16.msra.mxu0 %v3471
    %4095 = vmatpush.bf16.msra.mxu0 %v3470
    %4096 = vmatpush.bf16.msra.mxu0 %v3469
    %4097 = vmatpush.bf16.msra.mxu0 %v3468
    %4098 = vmatpush.bf16.msra.mxu0 %v3467
    %4099 = vmatmul.bf16.gmra.mxu0 %v2871
    %v4100 = vpop.f32.mrf.mxu0
    %v4101 = vadd.f32 %v4033, %v4100
    %v4102 = vpop.f32.mrf.mxu0
    %v4103 = vadd.f32 %v4035, %v4102
    %4104 = vmatmul.bf16.gmra.mxu0 %v2880
    %v4105 = vpop.f32.mrf.mxu0
    %v4106 = vadd.f32 %v4038, %v4105
    %v4107 = vpop.f32.mrf.mxu0
    %v4108 = vadd.f32 %v4040, %v4107
    %4109 = vmatmul.bf16.gmra.mxu0 %v2889
    %v4110 = vpop.f32.mrf.mxu0
    %v4111 = vadd.f32 %v4043, %v4110
    %v4112 = vpop.f32.mrf.mxu0
    %v4113 = vadd.f32 %v4045, %v4112
    %4114 = vmatmul.bf16.gmra.mxu0 %v2898
    %v4115 = vpop.f32.mrf.mxu0
    %v4116 = vadd.f32 %v4048, %v4115
    %v4117 = vpop.f32.mrf.mxu0
    %v4118 = vadd.f32 %v4050, %v4117
    %4119 = vmatmul.bf16.gmra.mxu0 %v2907
    %v4120 = vpop.f32.mrf.mxu0
    %v4121 = vadd.f32 %v4053, %v4120
    %v4122 = vpop.f32.mrf.mxu0
    %v4123 = vadd.f32 %v4055, %v4122
    %4124 = vmatmul.bf16.gmra.mxu0 %v2916
    %v4125 = vpop.f32.mrf.mxu0
    %v4126 = vadd.f32 %v4058, %v4125
    %v4127 = vpop.f32.mrf.mxu0
    %v4128 = vadd.f32 %v4060, %v4127
    %4129 = vmatmul.bf16.gmra.mxu0 %v2925
    %v4130 = vpop.f32.mrf.mxu0
    %v4131 = vadd.f32 %v4063, %v4130
    %v4132 = vpop.f32.mrf.mxu0
    %v4133 = vadd.f32 %v4065, %v4132
    %4134 = vmatmul.bf16.gmra.mxu0 %v2934
    %v4135 = vpop.f32.mrf.mxu0
    %v4136 = vadd.f32 %v4068, %v4135
    %v4137 = vpop.f32.mrf.mxu0
    %v4138 = vadd.f32 %v4070, %v4137
    %4139 = vmatmul.bf16.gmra.mxu0 %v2943
    %v4140 = vpop.f32.mrf.mxu0
    %v4141 = vadd.f32 %v4073, %v4140
    %v4142 = vpop.f32.mrf.mxu0
    %v4143 = vadd.f32 %v4075, %v4142
    %4144 = vmatmul.bf16.gmra.mxu0 %v2952
    %v4145 = vpop.f32.mrf.mxu0
    %v4146 = vadd.f32 %v4078, %v4145
    %v4147 = vpop.f32.mrf.mxu0
    %v4148 = vadd.f32 %v4080, %v4147
    %4149 = vmatmul.bf16.gmra.mxu0 %v2961
    %v4150 = vpop.f32.mrf.mxu0
    %v4151 = vadd.f32 %v4083, %v4150
    %v4152 = vpop.f32.mrf.mxu0
    %v4153 = vadd.f32 %v4085, %v4152
    %4154 = vmatmul.bf16.gmra.mxu0 %v2970
    %v4155 = vpop.f32.mrf.mxu0
    %v4156 = vadd.f32 %v4088, %v4155
    %v4157 = vpop.f32.mrf.mxu0
    %4158 = vdwg.mxu0
    %v4180 = vrot.slane %v4101, 1
    %v4181 = vrot.slane %v4103, 1
    %v4182 = vsel %vm741, %v4180, %v4181
    %v4183 = vrot.slane %v4106, 1
    %v4184 = vsel %vm741, %v4181, %v4183
    %v4185 = vrot.slane %v4108, 1
    %v4186 = vsel %vm741, %v4183, %v4185
    %v4187 = vrot.slane %v4111, 1
    %v4188 = vsel %vm741, %v4185, %v4187
    %v4189 = vrot.slane %v4113, 1
    %v4190 = vsel %vm741, %v4187, %v4189
    %v4191 = vrot.slane %v4116, 1
    %v4192 = vsel %vm741, %v4189, %v4191
    %v4193 = vrot.slane %v4118, 1
    %v4194 = vsel %vm741, %v4191, %v4193
    %v4195 = vrot.slane %v4121, 1
    %v4196 = vsel %vm741, %v4193, %v4195
    %v4197 = vrot.slane %v4123, 1
    %v4198 = vsel %vm741, %v4195, %v4197
    %v4199 = vrot.slane %v4126, 1
    %v4200 = vsel %vm741, %v4197, %v4199
    %v4201 = vrot.slane %v4128, 1
    %v4202 = vsel %vm741, %v4199, %v4201
    %v4203 = vrot.slane %v4131, 1
    %v4204 = vsel %vm741, %v4201, %v4203
    %v4205 = vrot.slane %v4133, 1
    %v4206 = vsel %vm741, %v4203, %v4205
    %v4207 = vrot.slane %v4136, 1
    %v4208 = vsel %vm741, %v4205, %v4207
    %v4209 = vrot.slane %v4138, 1
    %v4210 = vsel %vm741, %v4207, %v4209
    %v4211 = vrot.slane %v4141, 1
    %v4212 = vsel %vm741, %v4209, %v4211
    %v4213 = vrot.slane %v4143, 1
    %v4214 = vsel %vm741, %v4211, %v4213
    %v4215 = vrot.slane %v4146, 1
    %v4216 = vsel %vm741, %v4213, %v4215
    %v4217 = vrot.slane %v4148, 1
    %v4218 = vsel %vm741, %v4215, %v4217
    %v4219 = vrot.slane %v4151, 1
    %v4220 = vsel %vm741, %v4217, %v4219
    %v4242 = vmax.f32 %v4101, %v4182
    %v4243 = vmax.f32 %v4103, %v4184
    %v4244 = vmax.f32 %v4106, %v4186
    %v4245 = vmax.f32 %v4108, %v4188
    %v4246 = vmax.f32 %v4111, %v4190
    %v4247 = vmax.f32 %v4113, %v4192
    %v4248 = vmax.f32 %v4116, %v4194
    %v4249 = vmax.f32 %v4118, %v4196
    %v4250 = vmax.f32 %v4121, %v4198
    %v4251 = vmax.f32 %v4123, %v4200
    %v4252 = vmax.f32 %v4126, %v4202
    %v4253 = vmax.f32 %v4128, %v4204
    %v4254 = vmax.f32 %v4131, %v4206
    %v4255 = vmax.f32 %v4133, %v4208
    %v4256 = vmax.f32 %v4136, %v4210
    %v4257 = vmax.f32 %v4138, %v4212
    %v4258 = vmax.f32 %v4141, %v4214
    %v4259 = vmax.f32 %v4143, %v4216
    %v4260 = vmax.f32 %v4146, %v4218
    %v4261 = vmax.f32 %v4148, %v4220
    %v4262 = vmax.f32 %v4151, %v4219
    %v4265 = vrot.slane %v4153, 1
    %v4266 = vsel %vm741, %v4219, %v4265
    %v4267 = vrot.slane %v4156, 1
    %v4268 = vsel %vm741, %v4265, %v4267
    %v4272 = vmax.f32 %v4151, %v4266
    %v4273 = vmax.f32 %v4153, %v4268
    %v4274 = vmax.f32 %v4156, %v4267
    %v4297 = vrot.slane %v4243, 2
    %v4298 = vrot.slane %v4244, 2
    %v4299 = vsel %vm1129, %v4297, %v4298
    %v4300 = vrot.slane %v4245, 2
    %v4301 = vsel %vm1129, %v4298, %v4300
    %v4302 = vrot.slane %v4246, 2
    %v4303 = vsel %vm1129, %v4300, %v4302
    %v4304 = vrot.slane %v4247, 2
    %v4305 = vsel %vm1129, %v4302, %v4304
    %v4306 = vrot.slane %v4248, 2
    %v4307 = vsel %vm1129, %v4304, %v4306
    %v4308 = vrot.slane %v4249, 2
    %v4309 = vsel %vm1129, %v4306, %v4308
    %v4310 = vrot.slane %v4250, 2
    %v4311 = vsel %vm1129, %v4308, %v4310
    %v4312 = vrot.slane %v4251, 2
    %v4313 = vsel %vm1129, %v4310, %v4312
    %v4314 = vrot.slane %v4252, 2
    %v4315 = vsel %vm1129, %v4312, %v4314
    %v4316 = vrot.slane %v4253, 2
    %v4317 = vsel %vm1129, %v4314, %v4316
    %v4318 = vrot.slane %v4254, 2
    %v4319 = vsel %vm1129, %v4316, %v4318
    %v4320 = vrot.slane %v4255, 2
    %v4321 = vsel %vm1129, %v4318, %v4320
    %v4322 = vrot.slane %v4256, 2
    %v4323 = vsel %vm1129, %v4320, %v4322
    %v4324 = vrot.slane %v4257, 2
    %v4325 = vsel %vm1129, %v4322, %v4324
    %v4326 = vrot.slane %v4258, 2
    %v4327 = vsel %vm1129, %v4324, %v4326
    %v4328 = vrot.slane %v4259, 2
    %v4329 = vsel %vm1129, %v4326, %v4328
    %v4330 = vrot.slane %v4260, 2
    %v4331 = vsel %vm1129, %v4328, %v4330
    %v4332 = vrot.slane %v4261, 2
    %v4333 = vsel %vm1129, %v4330, %v4332
    %v4334 = vrot.slane %v4272, 2
    %v4335 = vsel %vm1129, %v4332, %v4334
    %v4336 = vrot.slane %v4273, 2
    %v4337 = vsel %vm1129, %v4334, %v4336
    %v4338 = vrot.slane %v4274, 2
    %v4339 = vsel %vm1129, %v4336, %v4338
    %v4361 = vmax.f32 %v4242, %v4299
    %v4362 = vmax.f32 %v4243, %v4301
    %v4363 = vmax.f32 %v4244, %v4303
    %v4364 = vmax.f32 %v4245, %v4305
    %v4365 = vmax.f32 %v4246, %v4307
    %v4366 = vmax.f32 %v4247, %v4309
    %v4367 = vmax.f32 %v4248, %v4311
    %v4368 = vmax.f32 %v4249, %v4313
    %v4369 = vmax.f32 %v4250, %v4315
    %v4370 = vmax.f32 %v4251, %v4317
    %v4371 = vmax.f32 %v4252, %v4319
    %v4372 = vmax.f32 %v4253, %v4321
    %v4373 = vmax.f32 %v4254, %v4323
    %v4374 = vmax.f32 %v4255, %v4325
    %v4375 = vmax.f32 %v4256, %v4327
    %v4376 = vmax.f32 %v4257, %v4329
    %v4377 = vmax.f32 %v4258, %v4331
    %v4378 = vmax.f32 %v4259, %v4333
    %v4379 = vmax.f32 %v4260, %v4335
    %v4380 = vmax.f32 %v4261, %v4337
    %v4381 = vmax.f32 %v4262, %v4339
    %v4382 = vld [vmem:[%s5] sm:$0x1]
    %v4384 = vperm.slane %v4382, 0
    %v4386 = vadd.f32 %v4361, %v4384
    %v4387 = vadd.f32 %v4362, %v4384
    %v4388 = vadd.f32 %v4363, %v4384
    %v4389 = vadd.f32 %v4364, %v4384
    %v4390 = vadd.f32 %v4365, %v4384
    %v4391 = vadd.f32 %v4366, %v4384
    %v4392 = vadd.f32 %v4367, %v4384
    %v4393 = vadd.f32 %v4368, %v4384
    %v4394 = vadd.f32 %v4369, %v4384
    %v4395 = vadd.f32 %v4370, %v4384
    %v4396 = vadd.f32 %v4371, %v4384
    %v4397 = vadd.f32 %v4372, %v4384
    %v4398 = vadd.f32 %v4373, %v4384
    %v4399 = vadd.f32 %v4374, %v4384
    %v4400 = vadd.f32 %v4375, %v4384
    %v4401 = vadd.f32 %v4376, %v4384
    %v4402 = vadd.f32 %v4377, %v4384
    %v4403 = vadd.f32 %v4378, %v4384
    %v4404 = vadd.f32 %v4379, %v4384
    %v4405 = vadd.f32 %v4380, %v4384
    %v4406 = vadd.f32 %v4381, %v4384
    %v4407 = vmax.f32 %v4386, 0.0
    %v4408 = vmax.f32 %v4387, 0.0
    %v4409 = vmax.f32 %v4388, 0.0
    %v4410 = vmax.f32 %v4389, 0.0
    %v4411 = vmax.f32 %v4390, 0.0
    %v4412 = vmax.f32 %v4391, 0.0
    %v4413 = vmax.f32 %v4392, 0.0
    %v4414 = vmax.f32 %v4393, 0.0
    %v4415 = vmax.f32 %v4394, 0.0
    %v4416 = vmax.f32 %v4395, 0.0
    %v4417 = vmax.f32 %v4396, 0.0
    %v4418 = vmax.f32 %v4397, 0.0
    %v4419 = vmax.f32 %v4398, 0.0
    %v4420 = vmax.f32 %v4399, 0.0
    %v4421 = vmax.f32 %v4400, 0.0
    %v4422 = vmax.f32 %v4401, 0.0
    %v4423 = vmax.f32 %v4402, 0.0
    %v4424 = vmax.f32 %v4403, 0.0
    %v4425 = vmax.f32 %v4404, 0.0
    %v4426 = vmax.f32 %v4405, 0.0
    %v4427 = vmax.f32 %v4406, 0.0
    %v4428 = vld [vmem:[%s6] sm:$0xff]
    %v4429 = vld [vmem:[%s6 + $0x8] sm:$0xff]
    %v4430 = vld [vmem:[%s6 + $0x10] sm:$0xff]
    %v4431 = vld [vmem:[%s6 + $0x18] sm:$0xff]
    %v4432 = vld [vmem:[%s6 + $0x20] sm:$0xff]
    %v4433 = vld [vmem:[%s6 + $0x28] sm:$0xff]
    %v4434 = vld [vmem:[%s6 + $0x30] sm:$0xff]
    %v4435 = vld [vmem:[%s6 + $0x38] sm:$0xff]
    %v4436 = vld [vmem:[%s6 + $0x40] sm:$0xff]
    %v4437 = vpack.c.bf16 %v4408, %v4407
    %v4438 = vpack.c.bf16 %v4410, %v4409
    %v4439 = vpack.c.bf16 %v4412, %v4411
    %v4440 = vpack.c.bf16 %v4414, %v4413
    %v4441 = vpack.c.bf16 %v4416, %v4415
    %v4442 = vpack.c.bf16 %v4418, %v4417
    %v4443 = vpack.c.bf16 %v4420, %v4419
    %v4444 = vpack.c.bf16 %v4422, %v4421
    %v4445 = vpack.c.bf16 %v4424, %v4423
    %v4446 = vpack.c.bf16 %v4426, %v4425
    %v4447 = vpack.c.bf16 %v4427, %v4427
    %v4457 = vunpack.c.l.b16 %v4428
    %v4458 = vunpack.c.h.b16 %v4428
    %v4459 = vunpack.c.l.b16 %v4429
    %v4460 = vunpack.c.h.b16 %v4429
    %v4461 = vunpack.c.l.b16 %v4430
    %v4462 = vunpack.c.h.b16 %v4430
    %v4463 = vunpack.c.l.b16 %v4431
    %v4464 = vunpack.c.h.b16 %v4431
    %v4465 = vunpack.c.l.b16 %v4432
    %v4466 = vunpack.c.h.b16 %v4432
    %v4467 = vunpack.c.l.b16 %v4433
    %v4468 = vunpack.c.h.b16 %v4433
    %v4469 = vunpack.c.l.b16 %v4434
    %v4470 = vunpack.c.h.b16 %v4434
    %v4471 = vunpack.c.l.b16 %v4435
    %v4472 = vunpack.c.h.b16 %v4435
    %v4473 = vunpack.c.l.b16 %v4436
    %v4474 = vunpack.c.h.b16 %v4436
    %v4475 = vpack.c.b16 %v4459, %v4457
    %v4476 = vpack.c.b16 %v4460, %v4458
    %v4477 = vpack.c.b16 %v4463, %v4461
    %v4478 = vpack.c.b16 %v4464, %v4462
    %v4479 = vpack.c.b16 %v4467, %v4465
    %v4480 = vpack.c.b16 %v4468, %v4466
    %v4481 = vpack.c.b16 %v4471, %v4469
    %v4482 = vpack.c.b16 %v4472, %v4470
    %v4483 = vpack.c.b16 %v4473, %v4473
    %v4484 = vpack.c.b16 %v4474, %v4474
    %vm4490 = vcmask 318464
    %v4492 = vsel %vm4490, %v4476, 0
    %v4495 = vsel %vm4490, %v4478, 0
    %v4498 = vsel %vm4490, %v4480, 0
    %v4501 = vsel %vm4490, %v4482, 0
    %v4504 = vsel %vm4490, %v4484, 0
    %v4506 = vsel %vm2726, 4294967295, 65535
    %v4507 = vsel %vm2652, %v4506, 0
    %v4509 = vand.u32 %v4447, %v4507
    %4511 = vmatpush.bf16.msra.mxu0 %v4444
    %4512 = vmatpush.bf16.msra.mxu0 %v4443
    %4513 = vmatpush.bf16.msra.mxu0 %v4442
    %4514 = vmatpush.bf16.msra.mxu0 %v4441
    %4515 = vmatpush.bf16.msra.mxu0 %v4440
    %4516 = vmatpush.bf16.msra.mxu0 %v4439
    %4517 = vmatpush.bf16.msra.mxu0 %v4438
    %4518 = vmatpush.bf16.msra.mxu0 %v4437
    %4519 = vmatmul.bf16.gmra.mxu0 %v4475
    %v4520 = vpop.f32.mrf.mxu0
    %v4521 = vadd.f32 0.0, %v4520
    %v4522 = vpop.f32.mrf.mxu0
    %v4523 = vadd.f32 0.0, %v4522
    %4524 = vmatmul.bf16.gmra.mxu0 %v4477
    %v4525 = vpop.f32.mrf.mxu0
    %v4526 = vadd.f32 0.0, %v4525
    %v4527 = vpop.f32.mrf.mxu0
    %v4528 = vadd.f32 0.0, %v4527
    %4529 = vmatmul.bf16.gmra.mxu0 %v4479
    %v4530 = vpop.f32.mrf.mxu0
    %v4531 = vadd.f32 0.0, %v4530
    %v4532 = vpop.f32.mrf.mxu0
    %v4533 = vadd.f32 0.0, %v4532
    %4534 = vmatmul.bf16.gmra.mxu0 %v4481
    %v4535 = vpop.f32.mrf.mxu0
    %v4536 = vadd.f32 0.0, %v4535
    %v4537 = vpop.f32.mrf.mxu0
    %v4538 = vadd.f32 0.0, %v4537
    %4539 = vmatmul.bf16.gmra.mxu0 %v4483
    %v4540 = vpop.f32.mrf.mxu0
    %v4541 = vadd.f32 0.0, %v4540
    %v4542 = vpop.f32.mrf.mxu0
    %4543 = vdwg.mxu0
    %4544 = vmatpush.bf16.msra.mxu0 0
    %4545 = vmatpush.bf16.msra.mxu0 0
    %4546 = vmatpush.bf16.msra.mxu0 0
    %4547 = vmatpush.bf16.msra.mxu0 0
    %4548 = vmatpush.bf16.msra.mxu0 0
    %4549 = vmatpush.bf16.msra.mxu0 %v4509
    %4550 = vmatpush.bf16.msra.mxu0 %v4446
    %4551 = vmatpush.bf16.msra.mxu0 %v4445
    %4552 = vmatmul.bf16.gmra.mxu0 %v4492
    %v4553 = vpop.f32.mrf.mxu0
    %v4554 = vadd.f32 %v4521, %v4553
    %v4555 = vpop.f32.mrf.mxu0
    %v4556 = vadd.f32 %v4523, %v4555
    %4557 = vmatmul.bf16.gmra.mxu0 %v4495
    %v4558 = vpop.f32.mrf.mxu0
    %v4559 = vadd.f32 %v4526, %v4558
    %v4560 = vpop.f32.mrf.mxu0
    %v4561 = vadd.f32 %v4528, %v4560
    %4562 = vmatmul.bf16.gmra.mxu0 %v4498
    %v4563 = vpop.f32.mrf.mxu0
    %v4564 = vadd.f32 %v4531, %v4563
    %v4565 = vpop.f32.mrf.mxu0
    %v4566 = vadd.f32 %v4533, %v4565
    %4567 = vmatmul.bf16.gmra.mxu0 %v4501
    %v4568 = vpop.f32.mrf.mxu0
    %v4569 = vadd.f32 %v4536, %v4568
    %v4570 = vpop.f32.mrf.mxu0
    %v4571 = vadd.f32 %v4538, %v4570
    %4572 = vmatmul.bf16.gmra.mxu0 %v4504
    %v4573 = vpop.f32.mrf.mxu0
    %v4574 = vadd.f32 %v4541, %v4573
    %v4575 = vpop.f32.mrf.mxu0
    %4576 = vdwg.mxu0
    %v4585 = vrot.slane %v4554, 1
    %v4586 = vrot.slane %v4556, 1
    %v4587 = vsel %vm741, %v4585, %v4586
    %v4588 = vrot.slane %v4559, 1
    %v4589 = vsel %vm741, %v4586, %v4588
    %v4590 = vrot.slane %v4561, 1
    %v4591 = vsel %vm741, %v4588, %v4590
    %v4592 = vrot.slane %v4564, 1
    %v4593 = vsel %vm741, %v4590, %v4592
    %v4594 = vrot.slane %v4566, 1
    %v4595 = vsel %vm741, %v4592, %v4594
    %v4596 = vrot.slane %v4569, 1
    %v4597 = vsel %vm741, %v4594, %v4596
    %v4598 = vrot.slane %v4571, 1
    %v4599 = vsel %vm741, %v4596, %v4598
    %v4608 = vrot.slane %v4554, 2
    %v4609 = vrot.slane %v4556, 2
    %v4610 = vsel %vm1129, %v4608, %v4609
    %v4611 = vrot.slane %v4559, 2
    %v4612 = vsel %vm1129, %v4609, %v4611
    %v4613 = vrot.slane %v4561, 2
    %v4614 = vsel %vm1129, %v4611, %v4613
    %v4615 = vrot.slane %v4564, 2
    %v4616 = vsel %vm1129, %v4613, %v4615
    %v4617 = vrot.slane %v4566, 2
    %v4618 = vsel %vm1129, %v4615, %v4617
    %v4619 = vrot.slane %v4569, 2
    %v4620 = vsel %vm1129, %v4617, %v4619
    %v4621 = vrot.slane %v4571, 2
    %v4622 = vsel %vm1129, %v4619, %v4621
    %v4631 = vrot.slane %v4554, 6
    %v4632 = vrot.slane %v4556, 6
    %v4633 = vsel %vm460, %v4631, %v4632
    %v4634 = vrot.slane %v4559, 6
    %v4635 = vsel %vm460, %v4632, %v4634
    %v4636 = vrot.slane %v4561, 6
    %v4637 = vsel %vm460, %v4634, %v4636
    %v4638 = vrot.slane %v4564, 6
    %v4639 = vsel %vm460, %v4636, %v4638
    %v4640 = vrot.slane %v4566, 6
    %v4641 = vsel %vm460, %v4638, %v4640
    %v4642 = vrot.slane %v4569, 6
    %v4643 = vsel %vm460, %v4640, %v4642
    %v4644 = vrot.slane %v4571, 6
    %v4645 = vsel %vm460, %v4642, %v4644
    %vm4655 = vcmask 1040384
    %v4656 = vrot.slane %v4554, 7
    %v4657 = vrot.slane %v4556, 7
    %v4658 = vsel %vm4655, %v4656, %v4657
    %v4659 = vrot.slane %v4559, 7
    %v4660 = vsel %vm4655, %v4657, %v4659
    %v4661 = vrot.slane %v4561, 7
    %v4662 = vsel %vm4655, %v4659, %v4661
    %v4663 = vrot.slane %v4564, 7
    %v4664 = vsel %vm4655, %v4661, %v4663
    %v4665 = vrot.slane %v4566, 7
    %v4666 = vsel %vm4655, %v4663, %v4665
    %v4667 = vrot.slane %v4569, 7
    %v4668 = vsel %vm4655, %v4665, %v4667
    %v4669 = vrot.slane %v4571, 7
    %v4670 = vsel %vm4655, %v4667, %v4669
    %v4671 = vrot.slane %v4574, 7
    %v4672 = vsel %vm4655, %v4669, %v4671
    %v4681 = vrot.slane %v4556, 4
    %v4682 = vrot.slane %v4559, 4
    %v4683 = vsel %vm2652, %v4681, %v4682
    %v4684 = vrot.slane %v4561, 4
    %v4685 = vsel %vm2652, %v4682, %v4684
    %v4686 = vrot.slane %v4564, 4
    %v4687 = vsel %vm2652, %v4684, %v4686
    %v4688 = vrot.slane %v4566, 4
    %v4689 = vsel %vm2652, %v4686, %v4688
    %v4690 = vrot.slane %v4569, 4
    %v4691 = vsel %vm2652, %v4688, %v4690
    %v4692 = vrot.slane %v4571, 4
    %v4693 = vsel %vm2652, %v4690, %v4692
    %v4694 = vrot.slane %v4574, 4
    %v4695 = vsel %vm2652, %v4692, %v4694
    %v4704 = vrot.slane %v4556, 5
    %v4705 = vrot.slane %v4559, 5
    %v4706 = vsel %vm2726, %v4704, %v4705
    %v4707 = vrot.slane %v4561, 5
    %v4708 = vsel %vm2726, %v4705, %v4707
    %v4709 = vrot.slane %v4564, 5
    %v4710 = vsel %vm2726, %v4707, %v4709
    %v4711 = vrot.slane %v4566, 5
    %v4712 = vsel %vm2726, %v4709, %v4711
    %v4713 = vrot.slane %v4569, 5
    %v4714 = vsel %vm2726, %v4711, %v4713
    %v4715 = vrot.slane %v4571, 5
    %v4716 = vsel %vm2726, %v4713, %v4715
    %v4717 = vrot.slane %v4574, 5
    %v4718 = vsel %vm2726, %v4715, %v4717
    %v4727 = vrot.slane %v4574, 6
    %v4728 = vsel %vm460, %v4644, %v4727
    %v4731 = vpack.c.bf16 %v4556, %v4554
    %v4732 = vpack.c.bf16 %v4589, %v4587
    %v4733 = vpack.c.bf16 %v4612, %v4610
    %v4734 = vpack.c.bf16 %v4635, %v4633
    %v4735 = vpack.c.bf16 %v4660, %v4658
    %v4736 = vpack.c.bf16 %v4559, %v4556
    %v4737 = vpack.c.bf16 %v4685, %v4683
    %v4738 = vpack.c.bf16 %v4708, %v4706
    %v4739 = vpack.c.bf16 %v4637, %v4635
    %v4740 = vpack.c.bf16 %v4561, %v4559
    %v4741 = vpack.c.bf16 %v4593, %v4591
    %v4742 = vpack.c.bf16 %v4616, %v4614
    %v4743 = vpack.c.bf16 %v4639, %v4637
    %v4744 = vpack.c.bf16 %v4664, %v4662
    %v4745 = vpack.c.bf16 %v4564, %v4561
    %v4746 = vpack.c.bf16 %v4689, %v4687
    %v4747 = vpack.c.bf16 %v4712, %v4710
    %v4748 = vpack.c.bf16 %v4641, %v4639
    %v4749 = vpack.c.bf16 %v4566, %v4564
    %v4750 = vpack.c.bf16 %v4597, %v4595
    %v4751 = vpack.c.bf16 %v4620, %v4618
    %v4752 = vpack.c.bf16 %v4643, %v4641
    %v4753 = vpack.c.bf16 %v4668, %v4666
    %v4754 = vpack.c.bf16 %v4569, %v4566
    %v4755 = vpack.c.bf16 %v4693, %v4691
    %v4756 = vpack.c.bf16 %v4716, %v4714
    %v4757 = vpack.c.bf16 %v4645, %v4643
    %v4758 = vpack.c.bf16 %v4571, %v4569
    %v4759 = vpack.c.bf16 %v4598, %v4599
    %v4760 = vpack.c.bf16 %v4621, %v4622
    %v4761 = vpack.c.bf16 %v4644, %v4645
    %v4762 = vpack.c.bf16 %v4672, %v4670
    %v4763 = vpack.c.bf16 %v4574, %v4571
    %v4764 = vpack.c.bf16 %v4694, %v4695
    %v4765 = vpack.c.bf16 %v4717, %v4718
    %v4766 = vpack.c.bf16 %v4727, %v4728
    %v4767 = vld [vmem:[%s7] sm:$0xff]
    %v4768 = vld [vmem:[%s7 + $0x8] sm:$0xff]
    %v4769 = vld [vmem:[%s7 + $0x10] sm:$0xff]
    %v4770 = vld [vmem:[%s7 + $0x18] sm:$0xff]
    %v4771 = vld [vmem:[%s7 + $0x20] sm:$0xff]
    %v4772 = vld [vmem:[%s7 + $0x28] sm:$0xff]
    %v4773 = vld [vmem:[%s7 + $0x30] sm:$0xff]
    %v4774 = vld [vmem:[%s7 + $0x38] sm:$0xff]
    %v4775 = vld [vmem:[%s7 + $0x40] sm:$0xff]
    %v4776 = vld [vmem:[%s7 + $0x48] sm:$0xff]
    %v4777 = vld [vmem:[%s7 + $0x50] sm:$0xff]
    %v4778 = vld [vmem:[%s7 + $0x58] sm:$0xff]
    %v4779 = vld [vmem:[%s7 + $0x60] sm:$0xff]
    %v4780 = vld [vmem:[%s7 + $0x68] sm:$0xff]
    %v4781 = vld [vmem:[%s7 + $0x70] sm:$0xff]
    %v4782 = vld [vmem:[%s7 + $0x78] sm:$0xff]
    %v4783 = vld [vmem:[%s7 + $0x80] sm:$0xff]
    %v4784 = vld [vmem:[%s7 + $0x88] sm:$0xff]
    %v4785 = vld [vmem:[%s7 + $0x90] sm:$0xff]
    %v4786 = vld [vmem:[%s7 + $0x98] sm:$0xff]
    %v4787 = vld [vmem:[%s7 + $0xa0] sm:$0xff]
    %v4788 = vld [vmem:[%s7 + $0xa8] sm:$0xff]
    %v4789 = vld [vmem:[%s7 + $0xb0] sm:$0xff]
    %v4790 = vld [vmem:[%s7 + $0xb8] sm:$0xff]
    %v4791 = vld [vmem:[%s7 + $0xc0] sm:$0xff]
    %v4792 = vld [vmem:[%s7 + $0xc8] sm:$0xff]
    %v4793 = vld [vmem:[%s7 + $0xd0] sm:$0xff]
    %v4794 = vld [vmem:[%s7 + $0xd8] sm:$0xff]
    %v4795 = vld [vmem:[%s7 + $0xe0] sm:$0xff]
    %v4796 = vld [vmem:[%s7 + $0xe8] sm:$0xff]
    %v4797 = vld [vmem:[%s7 + $0xf0] sm:$0xff]
    %v4798 = vld [vmem:[%s7 + $0xf8] sm:$0xff]
    %v4799 = vld [vmem:[%s7 + $0x100] sm:$0xff]
    %v4800 = vld [vmem:[%s7 + $0x108] sm:$0xff]
    %v4801 = vld [vmem:[%s7 + $0x110] sm:$0xff]
    %v4802 = vld [vmem:[%s7 + $0x118] sm:$0xff]
    %v4803 = vld [vmem:[%s7 + $0x120] sm:$0xff]
    %v4804 = vld [vmem:[%s7 + $0x128] sm:$0xff]
    %v4805 = vld [vmem:[%s7 + $0x130] sm:$0xff]
    %v4806 = vld [vmem:[%s7 + $0x138] sm:$0xff]
    %v4807 = vld [vmem:[%s7 + $0x140] sm:$0xff]
    %v4808 = vld [vmem:[%s7 + $0x148] sm:$0xff]
    %v4809 = vld [vmem:[%s7 + $0x150] sm:$0xff]
    %v4810 = vld [vmem:[%s7 + $0x158] sm:$0xff]
    %v4811 = vld [vmem:[%s7 + $0x160] sm:$0xff]
    %v4812 = vld [vmem:[%s7 + $0x168] sm:$0xff]
    %v4813 = vld [vmem:[%s7 + $0x170] sm:$0xff]
    %v4814 = vld [vmem:[%s7 + $0x178] sm:$0xff]
    %v4815 = vld [vmem:[%s7 + $0x180] sm:$0xff]
    %v4816 = vld [vmem:[%s7 + $0x188] sm:$0xff]
    %v4817 = vld [vmem:[%s7 + $0x190] sm:$0xff]
    %v4818 = vld [vmem:[%s7 + $0x198] sm:$0xff]
    %v4819 = vld [vmem:[%s7 + $0x1a0] sm:$0xff]
    %v4820 = vld [vmem:[%s7 + $0x1a8] sm:$0xff]
    %v4821 = vld [vmem:[%s7 + $0x1b0] sm:$0xff]
    %v4822 = vld [vmem:[%s7 + $0x1b8] sm:$0xff]
    %v4823 = vld [vmem:[%s7 + $0x1c0] sm:$0xff]
    %v4824 = vld [vmem:[%s7 + $0x1c8] sm:$0xff]
    %v4825 = vld [vmem:[%s7 + $0x1d0] sm:$0xff]
    %v4826 = vld [vmem:[%s7 + $0x1d8] sm:$0xff]
    %v4827 = vld [vmem:[%s7 + $0x1e0] sm:$0xff]
    %v4828 = vld [vmem:[%s7 + $0x1e8] sm:$0xff]
    %v4829 = vld [vmem:[%s7 + $0x1f0] sm:$0xff]
    %v4830 = vld [vmem:[%s7 + $0x1f8] sm:$0xff]
    %v4831 = vld [vmem:[%s7 + $0x200] sm:$0xff]
    %v4832 = vld [vmem:[%s7 + $0x208] sm:$0xff]
    %v4833 = vld [vmem:[%s7 + $0x210] sm:$0xff]
    %v4834 = vld [vmem:[%s7 + $0x218] sm:$0xff]
    %v4835 = vld [vmem:[%s7 + $0x220] sm:$0xff]
    %v4836 = vld [vmem:[%s7 + $0x228] sm:$0xff]
    %v4837 = vld [vmem:[%s7 + $0x230] sm:$0xff]
    %v4838 = vld [vmem:[%s7 + $0x238] sm:$0xff]
    %v4839 = vld [vmem:[%s7 + $0x240] sm:$0xff]
    %v4840 = vld [vmem:[%s7 + $0x248] sm:$0xff]
    %v4841 = vld [vmem:[%s7 + $0x250] sm:$0xff]
    %v4842 = vld [vmem:[%s7 + $0x258] sm:$0xff]
    %v4843 = vld [vmem:[%s7 + $0x260] sm:$0xff]
    %v4844 = vld [vmem:[%s7 + $0x268] sm:$0xff]
    %v4845 = vld [vmem:[%s7 + $0x270] sm:$0xff]
    %v4846 = vld [vmem:[%s7 + $0x278] sm:$0xff]
    %v4847 = vld [vmem:[%s7 + $0x280] sm:$0xff]
    %v4848 = vld [vmem:[%s7 + $0x288] sm:$0xff]
    %v4849 = vld [vmem:[%s7 + $0x290] sm:$0xff]
    %v4850 = vld [vmem:[%s7 + $0x298] sm:$0xff]
    %v4851 = vld [vmem:[%s7 + $0x2a0] sm:$0xff]
    %v4852 = vld [vmem:[%s7 + $0x2a8] sm:$0xff]
    %v4853 = vld [vmem:[%s7 + $0x2b0] sm:$0xff]
    %v4854 = vld [vmem:[%s7 + $0x2b8] sm:$0xff]
    %v4855 = vld [vmem:[%s7 + $0x2c0] sm:$0xff]
    %v4856 = vld [vmem:[%s7 + $0x2c8] sm:$0xff]
    %v4857 = vld [vmem:[%s7 + $0x2d0] sm:$0xff]
    %v4858 = vld [vmem:[%s7 + $0x2d8] sm:$0xff]
    %v4859 = vld [vmem:[%s7 + $0x2e0] sm:$0xff]
    %v4860 = vld [vmem:[%s7 + $0x2e8] sm:$0xff]
    %v4861 = vld [vmem:[%s7 + $0x2f0] sm:$0xff]
    %v4862 = vld [vmem:[%s7 + $0x2f8] sm:$0xff]
    %v4863 = vld [vmem:[%s7 + $0x300] sm:$0xff]
    %v4864 = vld [vmem:[%s7 + $0x308] sm:$0xff]
    %v4865 = vld [vmem:[%s7 + $0x310] sm:$0xff]
    %v4866 = vld [vmem:[%s7 + $0x318] sm:$0xff]
    %v4867 = vld [vmem:[%s7 + $0x320] sm:$0xff]
    %v4868 = vld [vmem:[%s7 + $0x328] sm:$0xff]
    %v4869 = vld [vmem:[%s7 + $0x330] sm:$0xff]
    %v4870 = vld [vmem:[%s7 + $0x338] sm:$0xff]
    %v4871 = vld [vmem:[%s7 + $0x340] sm:$0xff]
    %v4872 = vld [vmem:[%s7 + $0x348] sm:$0xff]
    %v4873 = vld [vmem:[%s7 + $0x350] sm:$0xff]
    %v4874 = vld [vmem:[%s7 + $0x358] sm:$0xff]
    %v4875 = vld [vmem:[%s7 + $0x360] sm:$0xff]
    %v4876 = vld [vmem:[%s7 + $0x368] sm:$0xff]
    %v4877 = vld [vmem:[%s7 + $0x370] sm:$0xff]
    %v4878 = vld [vmem:[%s7 + $0x378] sm:$0xff]
    %v4879 = vld [vmem:[%s7 + $0x380] sm:$0xff]
    %v4880 = vld [vmem:[%s7 + $0x388] sm:$0xff]
    %v4881 = vld [vmem:[%s7 + $0x390] sm:$0xff]
    %v4882 = vld [vmem:[%s7 + $0x398] sm:$0xff]
    %v4883 = vld [vmem:[%s7 + $0x3a0] sm:$0xff]
    %v4884 = vld [vmem:[%s7 + $0x3a8] sm:$0xff]
    %v4885 = vld [vmem:[%s7 + $0x3b0] sm:$0xff]
    %v4886 = vld [vmem:[%s7 + $0x3b8] sm:$0xff]
    %v4887 = vld [vmem:[%s7 + $0x3c0] sm:$0xff]
    %v4888 = vld [vmem:[%s7 + $0x3c8] sm:$0xff]
    %v4889 = vld [vmem:[%s7 + $0x3d0] sm:$0xff]
    %v4890 = vld [vmem:[%s7 + $0x3d8] sm:$0xff]
    %v4891 = vld [vmem:[%s7 + $0x3e0] sm:$0xff]
    %v4892 = vld [vmem:[%s7 + $0x3e8] sm:$0xff]
    %v4893 = vld [vmem:[%s7 + $0x3f0] sm:$0xff]
    %v4894 = vld [vmem:[%s7 + $0x3f8] sm:$0xff]
    %v4895 = vld [vmem:[%s7 + $0x400] sm:$0xff]
    %v4896 = vld [vmem:[%s7 + $0x408] sm:$0xff]
    %v4897 = vld [vmem:[%s7 + $0x410] sm:$0xff]
    %v4898 = vld [vmem:[%s7 + $0x418] sm:$0xff]
    %v4899 = vld [vmem:[%s7 + $0x420] sm:$0xff]
    %v4900 = vld [vmem:[%s7 + $0x428] sm:$0xff]
    %v4901 = vld [vmem:[%s7 + $0x430] sm:$0xff]
    %v4902 = vld [vmem:[%s7 + $0x438] sm:$0xff]
    %v4903 = vld [vmem:[%s7 + $0x440] sm:$0xff]
    %v4904 = vld [vmem:[%s7 + $0x448] sm:$0xff]
    %v4905 = vld [vmem:[%s7 + $0x450] sm:$0xff]
    %v4906 = vld [vmem:[%s7 + $0x458] sm:$0xff]
    %v4907 = vld [vmem:[%s7 + $0x460] sm:$0xff]
    %v4908 = vld [vmem:[%s7 + $0x468] sm:$0xff]
    %v4909 = vld [vmem:[%s7 + $0x470] sm:$0xff]
    %v4910 = vld [vmem:[%s7 + $0x478] sm:$0xff]
    %v5055 = vunpack.c.l.b16 %v4767
    %v5056 = vunpack.c.h.b16 %v4767
    %v5057 = vunpack.c.l.b16 %v4768
    %v5058 = vunpack.c.h.b16 %v4768
    %v5059 = vunpack.c.l.b16 %v4769
    %v5060 = vunpack.c.h.b16 %v4769
    %v5061 = vunpack.c.l.b16 %v4770
    %v5062 = vunpack.c.h.b16 %v4770
    %v5063 = vunpack.c.l.b16 %v4771
    %v5064 = vunpack.c.h.b16 %v4771
    %v5065 = vunpack.c.l.b16 %v4772
    %v5066 = vunpack.c.h.b16 %v4772
    %v5067 = vunpack.c.l.b16 %v4773
    %v5068 = vunpack.c.h.b16 %v4773
    %v5069 = vunpack.c.l.b16 %v4774
    %v5070 = vunpack.c.h.b16 %v4774
    %v5071 = vunpack.c.l.b16 %v4775
    %v5072 = vunpack.c.h.b16 %v4775
    %v5073 = vunpack.c.l.b16 %v4776
    %v5074 = vunpack.c.h.b16 %v4776
    %v5075 = vunpack.c.l.b16 %v4777
    %v5076 = vunpack.c.h.b16 %v4777
    %v5077 = vunpack.c.l.b16 %v4778
    %v5078 = vunpack.c.h.b16 %v4778
    %v5079 = vunpack.c.l.b16 %v4779
    %v5080 = vunpack.c.h.b16 %v4779
    %v5081 = vunpack.c.l.b16 %v4780
    %v5082 = vunpack.c.h.b16 %v4780
    %v5083 = vunpack.c.l.b16 %v4781
    %v5084 = vunpack.c.h.b16 %v4781
    %v5085 = vunpack.c.l.b16 %v4782
    %v5086 = vunpack.c.h.b16 %v4782
    %v5087 = vunpack.c.l.b16 %v4783
    %v5088 = vunpack.c.h.b16 %v4783
    %v5089 = vunpack.c.l.b16 %v4784
    %v5090 = vunpack.c.h.b16 %v4784
    %v5091 = vunpack.c.l.b16 %v4785
    %v5092 = vunpack.c.h.b16 %v4785
    %v5093 = vunpack.c.l.b16 %v4786
    %v5094 = vunpack.c.h.b16 %v4786
    %v5095 = vunpack.c.l.b16 %v4787
    %v5096 = vunpack.c.h.b16 %v4787
    %v5097 = vunpack.c.l.b16 %v4788
    %v5098 = vunpack.c.h.b16 %v4788
    %v5099 = vunpack.c.l.b16 %v4789
    %v5100 = vunpack.c.h.b16 %v4789
    %v5101 = vunpack.c.l.b16 %v4790
    %v5102 = vunpack.c.h.b16 %v4790
    %v5103 = vunpack.c.l.b16 %v4791
    %v5104 = vunpack.c.h.b16 %v4791
    %v5105 = vunpack.c.l.b16 %v4792
    %v5106 = vunpack.c.h.b16 %v4792
    %v5107 = vunpack.c.l.b16 %v4793
    %v5108 = vunpack.c.h.b16 %v4793
    %v5109 = vunpack.c.l.b16 %v4794
    %v5110 = vunpack.c.h.b16 %v4794
    %v5111 = vunpack.c.l.b16 %v4795
    %v5112 = vunpack.c.h.b16 %v4795
    %v5113 = vunpack.c.l.b16 %v4796
    %v5114 = vunpack.c.h.b16 %v4796
    %v5115 = vunpack.c.l.b16 %v4797
    %v5116 = vunpack.c.h.b16 %v4797
    %v5117 = vunpack.c.l.b16 %v4798
    %v5118 = vunpack.c.h.b16 %v4798
    %v5119 = vunpack.c.l.b16 %v4799
    %v5120 = vunpack.c.h.b16 %v4799
    %v5121 = vunpack.c.l.b16 %v4800
    %v5122 = vunpack.c.h.b16 %v4800
    %v5123 = vunpack.c.l.b16 %v4801
    %v5124 = vunpack.c.h.b16 %v4801
    %v5125 = vunpack.c.l.b16 %v4802
    %v5126 = vunpack.c.h.b16 %v4802
    %v5127 = vunpack.c.l.b16 %v4803
    %v5128 = vunpack.c.h.b16 %v4803
    %v5129 = vunpack.c.l.b16 %v4804
    %v5130 = vunpack.c.h.b16 %v4804
    %v5131 = vunpack.c.l.b16 %v4805
    %v5132 = vunpack.c.h.b16 %v4805
    %v5133 = vunpack.c.l.b16 %v4806
    %v5134 = vunpack.c.h.b16 %v4806
    %v5135 = vunpack.c.l.b16 %v4807
    %v5136 = vunpack.c.h.b16 %v4807
    %v5137 = vunpack.c.l.b16 %v4808
    %v5138 = vunpack.c.h.b16 %v4808
    %v5139 = vunpack.c.l.b16 %v4809
    %v5140 = vunpack.c.h.b16 %v4809
    %v5141 = vunpack.c.l.b16 %v4810
    %v5142 = vunpack.c.h.b16 %v4810
    %v5143 = vunpack.c.l.b16 %v4811
    %v5144 = vunpack.c.h.b16 %v4811
    %v5145 = vunpack.c.l.b16 %v4812
    %v5146 = vunpack.c.h.b16 %v4812
    %v5147 = vunpack.c.l.b16 %v4813
    %v5148 = vunpack.c.h.b16 %v4813
    %v5149 = vunpack.c.l.b16 %v4814
    %v5150 = vunpack.c.h.b16 %v4814
    %v5151 = vunpack.c.l.b16 %v4815
    %v5152 = vunpack.c.h.b16 %v4815
    %v5153 = vunpack.c.l.b16 %v4816
    %v5154 = vunpack.c.h.b16 %v4816
    %v5155 = vunpack.c.l.b16 %v4817
    %v5156 = vunpack.c.h.b16 %v4817
    %v5157 = vunpack.c.l.b16 %v4818
    %v5158 = vunpack.c.h.b16 %v4818
    %v5159 = vunpack.c.l.b16 %v4819
    %v5160 = vunpack.c.h.b16 %v4819
    %v5161 = vunpack.c.l.b16 %v4820
    %v5162 = vunpack.c.h.b16 %v4820
    %v5163 = vunpack.c.l.b16 %v4821
    %v5164 = vunpack.c.h.b16 %v4821
    %v5165 = vunpack.c.l.b16 %v4822
    %v5166 = vunpack.c.h.b16 %v4822
    %v5167 = vunpack.c.l.b16 %v4823
    %v5168 = vunpack.c.h.b16 %v4823
    %v5169 = vunpack.c.l.b16 %v4824
    %v5170 = vunpack.c.h.b16 %v4824
    %v5171 = vunpack.c.l.b16 %v4825
    %v5172 = vunpack.c.h.b16 %v4825
    %v5173 = vunpack.c.l.b16 %v4826
    %v5174 = vunpack.c.h.b16 %v4826
    %v5175 = vunpack.c.l.b16 %v4827
    %v5176 = vunpack.c.h.b16 %v4827
    %v5177 = vunpack.c.l.b16 %v4828
    %v5178 = vunpack.c.h.b16 %v4828
    %v5179 = vunpack.c.l.b16 %v4829
    %v5180 = vunpack.c.h.b16 %v4829
    %v5181 = vunpack.c.l.b16 %v4830
    %v5182 = vunpack.c.h.b16 %v4830
    %v5183 = vunpack.c.l.b16 %v4831
    %v5184 = vunpack.c.h.b16 %v4831
    %v5185 = vunpack.c.l.b16 %v4832
    %v5186 = vunpack.c.h.b16 %v4832
    %v5187 = vunpack.c.l.b16 %v4833
    %v5188 = vunpack.c.h.b16 %v4833
    %v5189 = vunpack.c.l.b16 %v4834
    %v5190 = vunpack.c.h.b16 %v4834
    %v5191 = vunpack.c.l.b16 %v4835
    %v5192 = vunpack.c.h.b16 %v4835
    %v5193 = vunpack.c.l.b16 %v4836
    %v5194 = vunpack.c.h.b16 %v4836
    %v5195 = vunpack.c.l.b16 %v4837
    %v5196 = vunpack.c.h.b16 %v4837
    %v5197 = vunpack.c.l.b16 %v4838
    %v5198 = vunpack.c.h.b16 %v4838
    %v5199 = vunpack.c.l.b16 %v4839
    %v5200 = vunpack.c.h.b16 %v4839
    %v5201 = vunpack.c.l.b16 %v4840
    %v5202 = vunpack.c.h.b16 %v4840
    %v5203 = vunpack.c.l.b16 %v4841
    %v5204 = vunpack.c.h.b16 %v4841
    %v5205 = vunpack.c.l.b16 %v4842
    %v5206 = vunpack.c.h.b16 %v4842
    %v5207 = vunpack.c.l.b16 %v4843
    %v5208 = vunpack.c.h.b16 %v4843
    %v5209 = vunpack.c.l.b16 %v4844
    %v5210 = vunpack.c.h.b16 %v4844
    %v5211 = vunpack.c.l.b16 %v4845
    %v5212 = vunpack.c.h.b16 %v4845
    %v5213 = vunpack.c.l.b16 %v4846
    %v5214 = vunpack.c.h.b16 %v4846
    %v5215 = vunpack.c.l.b16 %v4847
    %v5216 = vunpack.c.h.b16 %v4847
    %v5217 = vunpack.c.l.b16 %v4848
    %v5218 = vunpack.c.h.b16 %v4848
    %v5219 = vunpack.c.l.b16 %v4849
    %v5220 = vunpack.c.h.b16 %v4849
    %v5221 = vunpack.c.l.b16 %v4850
    %v5222 = vunpack.c.h.b16 %v4850
    %v5223 = vunpack.c.l.b16 %v4851
    %v5224 = vunpack.c.h.b16 %v4851
    %v5225 = vunpack.c.l.b16 %v4852
    %v5226 = vunpack.c.h.b16 %v4852
    %v5227 = vunpack.c.l.b16 %v4853
    %v5228 = vunpack.c.h.b16 %v4853
    %v5229 = vunpack.c.l.b16 %v4854
    %v5230 = vunpack.c.h.b16 %v4854
    %v5231 = vunpack.c.l.b16 %v4855
    %v5232 = vunpack.c.h.b16 %v4855
    %v5233 = vunpack.c.l.b16 %v4856
    %v5234 = vunpack.c.h.b16 %v4856
    %v5235 = vunpack.c.l.b16 %v4857
    %v5236 = vunpack.c.h.b16 %v4857
    %v5237 = vunpack.c.l.b16 %v4858
    %v5238 = vunpack.c.h.b16 %v4858
    %v5239 = vunpack.c.l.b16 %v4859
    %v5240 = vunpack.c.h.b16 %v4859
    %v5241 = vunpack.c.l.b16 %v4860
    %v5242 = vunpack.c.h.b16 %v4860
    %v5243 = vunpack.c.l.b16 %v4861
    %v5244 = vunpack.c.h.b16 %v4861
    %v5245 = vunpack.c.l.b16 %v4862
    %v5246 = vunpack.c.h.b16 %v4862
    %v5247 = vunpack.c.l.b16 %v4863
    %v5248 = vunpack.c.h.b16 %v4863
    %v5249 = vunpack.c.l.b16 %v4864
    %v5250 = vunpack.c.h.b16 %v4864
    %v5251 = vunpack.c.l.b16 %v4865
    %v5252 = vunpack.c.h.b16 %v4865
    %v5253 = vunpack.c.l.b16 %v4866
    %v5254 = vunpack.c.h.b16 %v4866
    %v5255 = vunpack.c.l.b16 %v4867
    %v5256 = vunpack.c.h.b16 %v4867
    %v5257 = vunpack.c.l.b16 %v4868
    %v5258 = vunpack.c.h.b16 %v4868
    %v5259 = vunpack.c.l.b16 %v4869
    %v5260 = vunpack.c.h.b16 %v4869
    %v5261 = vunpack.c.l.b16 %v4870
    %v5262 = vunpack.c.h.b16 %v4870
    %v5263 = vunpack.c.l.b16 %v4871
    %v5264 = vunpack.c.h.b16 %v4871
    %v5265 = vunpack.c.l.b16 %v4872
    %v5266 = vunpack.c.h.b16 %v4872
    %v5267 = vunpack.c.l.b16 %v4873
    %v5268 = vunpack.c.h.b16 %v4873
    %v5269 = vunpack.c.l.b16 %v4874
    %v5270 = vunpack.c.h.b16 %v4874
    %v5271 = vunpack.c.l.b16 %v4875
    %v5272 = vunpack.c.h.b16 %v4875
    %v5273 = vunpack.c.l.b16 %v4876
    %v5274 = vunpack.c.h.b16 %v4876
    %v5275 = vunpack.c.l.b16 %v4877
    %v5276 = vunpack.c.h.b16 %v4877
    %v5277 = vunpack.c.l.b16 %v4878
    %v5278 = vunpack.c.h.b16 %v4878
    %v5279 = vunpack.c.l.b16 %v4879
    %v5280 = vunpack.c.h.b16 %v4879
    %v5281 = vunpack.c.l.b16 %v4880
    %v5282 = vunpack.c.h.b16 %v4880
    %v5283 = vunpack.c.l.b16 %v4881
    %v5284 = vunpack.c.h.b16 %v4881
    %v5285 = vunpack.c.l.b16 %v4882
    %v5286 = vunpack.c.h.b16 %v4882
    %v5287 = vunpack.c.l.b16 %v4883
    %v5288 = vunpack.c.h.b16 %v4883
    %v5289 = vunpack.c.l.b16 %v4884
    %v5290 = vunpack.c.h.b16 %v4884
    %v5291 = vunpack.c.l.b16 %v4885
    %v5292 = vunpack.c.h.b16 %v4885
    %v5293 = vunpack.c.l.b16 %v4886
    %v5294 = vunpack.c.h.b16 %v4886
    %v5295 = vunpack.c.l.b16 %v4887
    %v5296 = vunpack.c.h.b16 %v4887
    %v5297 = vunpack.c.l.b16 %v4888
    %v5298 = vunpack.c.h.b16 %v4888
    %v5299 = vunpack.c.l.b16 %v4889
    %v5300 = vunpack.c.h.b16 %v4889
    %v5301 = vunpack.c.l.b16 %v4890
    %v5302 = vunpack.c.h.b16 %v4890
    %v5303 = vunpack.c.l.b16 %v4891
    %v5304 = vunpack.c.h.b16 %v4891
    %v5305 = vunpack.c.l.b16 %v4892
    %v5306 = vunpack.c.h.b16 %v4892
    %v5307 = vunpack.c.l.b16 %v4893
    %v5308 = vunpack.c.h.b16 %v4893
    %v5309 = vunpack.c.l.b16 %v4894
    %v5310 = vunpack.c.h.b16 %v4894
    %v5311 = vunpack.c.l.b16 %v4895
    %v5312 = vunpack.c.h.b16 %v4895
    %v5313 = vunpack.c.l.b16 %v4896
    %v5314 = vunpack.c.h.b16 %v4896
    %v5315 = vunpack.c.l.b16 %v4897
    %v5316 = vunpack.c.h.b16 %v4897
    %v5317 = vunpack.c.l.b16 %v4898
    %v5318 = vunpack.c.h.b16 %v4898
    %v5319 = vunpack.c.l.b16 %v4899
    %v5320 = vunpack.c.h.b16 %v4899
    %v5321 = vunpack.c.l.b16 %v4900
    %v5322 = vunpack.c.h.b16 %v4900
    %v5323 = vunpack.c.l.b16 %v4901
    %v5324 = vunpack.c.h.b16 %v4901
    %v5325 = vunpack.c.l.b16 %v4902
    %v5326 = vunpack.c.h.b16 %v4902
    %v5327 = vunpack.c.l.b16 %v4903
    %v5328 = vunpack.c.h.b16 %v4903
    %v5329 = vunpack.c.l.b16 %v4904
    %v5330 = vunpack.c.h.b16 %v4904
    %v5331 = vunpack.c.l.b16 %v4905
    %v5332 = vunpack.c.h.b16 %v4905
    %v5333 = vunpack.c.l.b16 %v4906
    %v5334 = vunpack.c.h.b16 %v4906
    %v5335 = vunpack.c.l.b16 %v4907
    %v5336 = vunpack.c.h.b16 %v4907
    %v5337 = vunpack.c.l.b16 %v4908
    %v5338 = vunpack.c.h.b16 %v4908
    %v5339 = vunpack.c.l.b16 %v4909
    %v5340 = vunpack.c.h.b16 %v4909
    %v5341 = vunpack.c.l.b16 %v4910
    %v5342 = vunpack.c.h.b16 %v4910
    %v5343 = vpack.c.b16 %v5057, %v5055
    %v5344 = vpack.c.b16 %v5058, %v5056
    %v5345 = vpack.c.b16 %v5061, %v5059
    %v5346 = vpack.c.b16 %v5062, %v5060
    %v5347 = vpack.c.b16 %v5065, %v5063
    %v5348 = vpack.c.b16 %v5066, %v5064
    %v5349 = vpack.c.b16 %v5069, %v5067
    %v5350 = vpack.c.b16 %v5070, %v5068
    %v5351 = vpack.c.b16 %v5073, %v5071
    %v5352 = vpack.c.b16 %v5074, %v5072
    %v5353 = vpack.c.b16 %v5077, %v5075
    %v5354 = vpack.c.b16 %v5078, %v5076
    %v5355 = vpack.c.b16 %v5081, %v5079
    %v5356 = vpack.c.b16 %v5082, %v5080
    %v5357 = vpack.c.b16 %v5085, %v5083
    %v5358 = vpack.c.b16 %v5086, %v5084
    %v5359 = vpack.c.b16 %v5089, %v5087
    %v5360 = vpack.c.b16 %v5090, %v5088
    %v5361 = vpack.c.b16 %v5093, %v5091
    %v5362 = vpack.c.b16 %v5094, %v5092
    %v5363 = vpack.c.b16 %v5097, %v5095
    %v5364 = vpack.c.b16 %v5098, %v5096
    %v5365 = vpack.c.b16 %v5101, %v5099
    %v5366 = vpack.c.b16 %v5102, %v5100
    %v5367 = vpack.c.b16 %v5105, %v5103
    %v5368 = vpack.c.b16 %v5106, %v5104
    %v5369 = vpack.c.b16 %v5109, %v5107
    %v5370 = vpack.c.b16 %v5110, %v5108
    %v5371 = vpack.c.b16 %v5113, %v5111
    %v5372 = vpack.c.b16 %v5114, %v5112
    %v5373 = vpack.c.b16 %v5117, %v5115
    %v5374 = vpack.c.b16 %v5118, %v5116
    %v5375 = vpack.c.b16 %v5121, %v5119
    %v5376 = vpack.c.b16 %v5122, %v5120
    %v5377 = vpack.c.b16 %v5125, %v5123
    %v5378 = vpack.c.b16 %v5126, %v5124
    %v5379 = vpack.c.b16 %v5129, %v5127
    %v5380 = vpack.c.b16 %v5130, %v5128
    %v5381 = vpack.c.b16 %v5133, %v5131
    %v5382 = vpack.c.b16 %v5134, %v5132
    %v5383 = vpack.c.b16 %v5137, %v5135
    %v5384 = vpack.c.b16 %v5138, %v5136
    %v5385 = vpack.c.b16 %v5141, %v5139
    %v5386 = vpack.c.b16 %v5142, %v5140
    %v5387 = vpack.c.b16 %v5145, %v5143
    %v5388 = vpack.c.b16 %v5146, %v5144
    %v5389 = vpack.c.b16 %v5149, %v5147
    %v5390 = vpack.c.b16 %v5150, %v5148
    %v5391 = vpack.c.b16 %v5153, %v5151
    %v5392 = vpack.c.b16 %v5154, %v5152
    %v5393 = vpack.c.b16 %v5157, %v5155
    %v5394 = vpack.c.b16 %v5158, %v5156
    %v5395 = vpack.c.b16 %v5161, %v5159
    %v5396 = vpack.c.b16 %v5162, %v5160
    %v5397 = vpack.c.b16 %v5165, %v5163
    %v5398 = vpack.c.b16 %v5166, %v5164
    %v5399 = vpack.c.b16 %v5169, %v5167
    %v5400 = vpack.c.b16 %v5170, %v5168
    %v5401 = vpack.c.b16 %v5173, %v5171
    %v5402 = vpack.c.b16 %v5174, %v5172
    %v5403 = vpack.c.b16 %v5177, %v5175
    %v5404 = vpack.c.b16 %v5178, %v5176
    %v5405 = vpack.c.b16 %v5181, %v5179
    %v5406 = vpack.c.b16 %v5182, %v5180
    %v5407 = vpack.c.b16 %v5185, %v5183
    %v5408 = vpack.c.b16 %v5186, %v5184
    %v5409 = vpack.c.b16 %v5189, %v5187
    %v5410 = vpack.c.b16 %v5190, %v5188
    %v5411 = vpack.c.b16 %v5193, %v5191
    %v5412 = vpack.c.b16 %v5194, %v5192
    %v5413 = vpack.c.b16 %v5197, %v5195
    %v5414 = vpack.c.b16 %v5198, %v5196
    %v5415 = vpack.c.b16 %v5201, %v5199
    %v5416 = vpack.c.b16 %v5202, %v5200
    %v5417 = vpack.c.b16 %v5205, %v5203
    %v5418 = vpack.c.b16 %v5206, %v5204
    %v5419 = vpack.c.b16 %v5209, %v5207
    %v5420 = vpack.c.b16 %v5210, %v5208
    %v5421 = vpack.c.b16 %v5213, %v5211
    %v5422 = vpack.c.b16 %v5214, %v5212
    %v5423 = vpack.c.b16 %v5217, %v5215
    %v5424 = vpack.c.b16 %v5218, %v5216
    %v5425 = vpack.c.b16 %v5221, %v5219
    %v5426 = vpack.c.b16 %v5222, %v5220
    %v5427 = vpack.c.b16 %v5225, %v5223
    %v5428 = vpack.c.b16 %v5226, %v5224
    %v5429 = vpack.c.b16 %v5229, %v5227
    %v5430 = vpack.c.b16 %v5230, %v5228
    %v5431 = vpack.c.b16 %v5233, %v5231
    %v5432 = vpack.c.b16 %v5234, %v5232
    %v5433 = vpack.c.b16 %v5237, %v5235
    %v5434 = vpack.c.b16 %v5238, %v5236
    %v5435 = vpack.c.b16 %v5241, %v5239
    %v5436 = vpack.c.b16 %v5242, %v5240
    %v5437 = vpack.c.b16 %v5245, %v5243
    %v5438 = vpack.c.b16 %v5246, %v5244
    %v5439 = vpack.c.b16 %v5249, %v5247
    %v5440 = vpack.c.b16 %v5250, %v5248
    %v5441 = vpack.c.b16 %v5253, %v5251
    %v5442 = vpack.c.b16 %v5254, %v5252
    %v5443 = vpack.c.b16 %v5257, %v5255
    %v5444 = vpack.c.b16 %v5258, %v5256
    %v5445 = vpack.c.b16 %v5261, %v5259
    %v5446 = vpack.c.b16 %v5262, %v5260
    %v5447 = vpack.c.b16 %v5265, %v5263
    %v5448 = vpack.c.b16 %v5266, %v5264
    %v5449 = vpack.c.b16 %v5269, %v5267
    %v5450 = vpack.c.b16 %v5270, %v5268
    %v5451 = vpack.c.b16 %v5273, %v5271
    %v5452 = vpack.c.b16 %v5274, %v5272
    %v5453 = vpack.c.b16 %v5277, %v5275
    %v5454 = vpack.c.b16 %v5278, %v5276
    %v5455 = vpack.c.b16 %v5281, %v5279
    %v5456 = vpack.c.b16 %v5282, %v5280
    %v5457 = vpack.c.b16 %v5285, %v5283
    %v5458 = vpack.c.b16 %v5286, %v5284
    %v5459 = vpack.c.b16 %v5289, %v5287
    %v5460 = vpack.c.b16 %v5290, %v5288
    %v5461 = vpack.c.b16 %v5293, %v5291
    %v5462 = vpack.c.b16 %v5294, %v5292
    %v5463 = vpack.c.b16 %v5297, %v5295
    %v5464 = vpack.c.b16 %v5298, %v5296
    %v5465 = vpack.c.b16 %v5301, %v5299
    %v5466 = vpack.c.b16 %v5302, %v5300
    %v5467 = vpack.c.b16 %v5305, %v5303
    %v5468 = vpack.c.b16 %v5306, %v5304
    %v5469 = vpack.c.b16 %v5309, %v5307
    %v5470 = vpack.c.b16 %v5310, %v5308
    %v5471 = vpack.c.b16 %v5313, %v5311
    %v5472 = vpack.c.b16 %v5314, %v5312
    %v5473 = vpack.c.b16 %v5317, %v5315
    %v5474 = vpack.c.b16 %v5318, %v5316
    %v5475 = vpack.c.b16 %v5321, %v5319
    %v5476 = vpack.c.b16 %v5322, %v5320
    %v5477 = vpack.c.b16 %v5325, %v5323
    %v5478 = vpack.c.b16 %v5326, %v5324
    %v5479 = vpack.c.b16 %v5329, %v5327
    %v5480 = vpack.c.b16 %v5330, %v5328
    %v5481 = vpack.c.b16 %v5333, %v5331
    %v5482 = vpack.c.b16 %v5334, %v5332
    %v5483 = vpack.c.b16 %v5337, %v5335
    %v5484 = vpack.c.b16 %v5338, %v5336
    %v5485 = vpack.c.b16 %v5341, %v5339
    %v5486 = vpack.c.b16 %v5342, %v5340
    %5631 = vmatpush.bf16.msra.mxu0 %v5357
    %5632 = vmatpush.bf16.msra.mxu0 %v5355
    %5633 = vmatpush.bf16.msra.mxu0 %v5353
    %5634 = vmatpush.bf16.msra.mxu0 %v5351
    %5635 = vmatpush.bf16.msra.mxu0 %v5349
    %5636 = vmatpush.bf16.msra.mxu0 %v5347
    %5637 = vmatpush.bf16.msra.mxu0 %v5345
    %5638 = vmatpush.bf16.msra.mxu0 %v5343
    %5639 = vmatmul.bf16.gmra.mxu0 %v4731
    %v5640 = vpop.f32.mrf.mxu0
    %v5641 = vadd.f32 0.0, %v5640
    %v5642 = vpop.f32.mrf.mxu0
    %v5643 = vadd.f32 0.0, %v5642
    %5644 = vmatmul.bf16.gmra.mxu0 %v4740
    %v5645 = vpop.f32.mrf.mxu0
    %v5646 = vadd.f32 0.0, %v5645
    %v5647 = vpop.f32.mrf.mxu0
    %v5648 = vadd.f32 0.0, %v5647
    %5649 = vmatmul.bf16.gmra.mxu0 %v4749
    %v5650 = vpop.f32.mrf.mxu0
    %v5651 = vadd.f32 0.0, %v5650
    %v5652 = vpop.f32.mrf.mxu0
    %v5653 = vadd.f32 0.0, %v5652
    %5654 = vmatmul.bf16.gmra.mxu0 %v4758
    %v5655 = vpop.f32.mrf.mxu0
    %v5656 = vadd.f32 0.0, %v5655
    %v5657 = vpop.f32.mrf.mxu0
    %v5658 = vadd.f32 0.0, %v5657
    %5659 = vdwg.mxu0
    %5660 = vmatpush.bf16.msra.mxu0 %v5373
    %5661 = vmatpush.bf16.msra.mxu0 %v5371
    %5662 = vmatpush.bf16.msra.mxu0 %v5369
    %5663 = vmatpush.bf16.msra.mxu0 %v5367
    %5664 = vmatpush.bf16.msra.mxu0 %v5365
    %5665 = vmatpush.bf16.msra.mxu0 %v5363
    %5666 = vmatpush.bf16.msra.mxu0 %v5361
    %5667 = vmatpush.bf16.msra.mxu0 %v5359
    %5668 = vmatmul.bf16.gmra.mxu0 %v4732
    %v5669 = vpop.f32.mrf.mxu0
    %v5670 = vadd.f32 %v5641, %v5669
    %v5671 = vpop.f32.mrf.mxu0
    %v5672 = vadd.f32 %v5643, %v5671
    %5673 = vmatmul.bf16.gmra.mxu0 %v4741
    %v5674 = vpop.f32.mrf.mxu0
    %v5675 = vadd.f32 %v5646, %v5674
    %v5676 = vpop.f32.mrf.mxu0
    %v5677 = vadd.f32 %v5648, %v5676
    %5678 = vmatmul.bf16.gmra.mxu0 %v4750
    %v5679 = vpop.f32.mrf.mxu0
    %v5680 = vadd.f32 %v5651, %v5679
    %v5681 = vpop.f32.mrf.mxu0
    %v5682 = vadd.f32 %v5653, %v5681
    %5683 = vmatmul.bf16.gmra.mxu0 %v4759
    %v5684 = vpop.f32.mrf.mxu0
    %v5685 = vadd.f32 %v5656, %v5684
    %v5686 = vpop.f32.mrf.mxu0
    %v5687 = vadd.f32 %v5658, %v5686
    %5688 = vdwg.mxu0
    %5689 = vmatpush.bf16.msra.mxu0 %v5389
    %5690 = vmatpush.bf16.msra.mxu0 %v5387
    %5691 = vmatpush.bf16.msra.mxu0 %v5385
    %5692 = vmatpush.bf16.msra.mxu0 %v5383
    %5693 = vmatpush.bf16.msra.mxu0 %v5381
    %5694 = vmatpush.bf16.msra.mxu0 %v5379
    %5695 = vmatpush.bf16.msra.mxu0 %v5377
    %5696 = vmatpush.bf16.msra.mxu0 %v5375
    %5697 = vmatmul.bf16.gmra.mxu0 %v4733
    %v5698 = vpop.f32.mrf.mxu0
    %v5699 = vadd.f32 %v5670, %v5698
    %v5700 = vpop.f32.mrf.mxu0
    %v5701 = vadd.f32 %v5672, %v5700
    %5702 = vmatmul.bf16.gmra.mxu0 %v4742
    %v5703 = vpop.f32.mrf.mxu0
    %v5704 = vadd.f32 %v5675, %v5703
    %v5705 = vpop.f32.mrf.mxu0
    %v5706 = vadd.f32 %v5677, %v5705
    %5707 = vmatmul.bf16.gmra.mxu0 %v4751
    %v5708 = vpop.f32.mrf.mxu0
    %v5709 = vadd.f32 %v5680, %v5708
    %v5710 = vpop.f32.mrf.mxu0
    %v5711 = vadd.f32 %v5682, %v5710
    %5712 = vmatmul.bf16.gmra.mxu0 %v4760
    %v5713 = vpop.f32.mrf.mxu0
    %v5714 = vadd.f32 %v5685, %v5713
    %v5715 = vpop.f32.mrf.mxu0
    %v5716 = vadd.f32 %v5687, %v5715
    %5717 = vdwg.mxu0
    %5718 = vmatpush.bf16.msra.mxu0 %v5405
    %5719 = vmatpush.bf16.msra.mxu0 %v5403
    %5720 = vmatpush.bf16.msra.mxu0 %v5401
    %5721 = vmatpush.bf16.msra.mxu0 %v5399
    %5722 = vmatpush.bf16.msra.mxu0 %v5397
    %5723 = vmatpush.bf16.msra.mxu0 %v5395
    %5724 = vmatpush.bf16.msra.mxu0 %v5393
    %5725 = vmatpush.bf16.msra.mxu0 %v5391
    %5726 = vmatmul.bf16.gmra.mxu0 %v4734
    %v5727 = vpop.f32.mrf.mxu0
    %v5728 = vadd.f32 %v5699, %v5727
    %v5729 = vpop.f32.mrf.mxu0
    %v5730 = vadd.f32 %v5701, %v5729
    %5731 = vmatmul.bf16.gmra.mxu0 %v4743
    %v5732 = vpop.f32.mrf.mxu0
    %v5733 = vadd.f32 %v5704, %v5732
    %v5734 = vpop.f32.mrf.mxu0
    %v5735 = vadd.f32 %v5706, %v5734
    %5736 = vmatmul.bf16.gmra.mxu0 %v4752
    %v5737 = vpop.f32.mrf.mxu0
    %v5738 = vadd.f32 %v5709, %v5737
    %v5739 = vpop.f32.mrf.mxu0
    %v5740 = vadd.f32 %v5711, %v5739
    %5741 = vmatmul.bf16.gmra.mxu0 %v4761
    %v5742 = vpop.f32.mrf.mxu0
    %v5743 = vadd.f32 %v5714, %v5742
    %v5744 = vpop.f32.mrf.mxu0
    %v5745 = vadd.f32 %v5716, %v5744
    %5746 = vdwg.mxu0
    %5747 = vmatpush.bf16.msra.mxu0 %v5421
    %5748 = vmatpush.bf16.msra.mxu0 %v5419
    %5749 = vmatpush.bf16.msra.mxu0 %v5417
    %5750 = vmatpush.bf16.msra.mxu0 %v5415
    %5751 = vmatpush.bf16.msra.mxu0 %v5413
    %5752 = vmatpush.bf16.msra.mxu0 %v5411
    %5753 = vmatpush.bf16.msra.mxu0 %v5409
    %5754 = vmatpush.bf16.msra.mxu0 %v5407
    %5755 = vmatmul.bf16.gmra.mxu0 %v4735
    %v5756 = vpop.f32.mrf.mxu0
    %v5757 = vadd.f32 %v5728, %v5756
    %v5758 = vpop.f32.mrf.mxu0
    %v5759 = vadd.f32 %v5730, %v5758
    %5760 = vmatmul.bf16.gmra.mxu0 %v4744
    %v5761 = vpop.f32.mrf.mxu0
    %v5762 = vadd.f32 %v5733, %v5761
    %v5763 = vpop.f32.mrf.mxu0
    %v5764 = vadd.f32 %v5735, %v5763
    %5765 = vmatmul.bf16.gmra.mxu0 %v4753
    %v5766 = vpop.f32.mrf.mxu0
    %v5767 = vadd.f32 %v5738, %v5766
    %v5768 = vpop.f32.mrf.mxu0
    %v5769 = vadd.f32 %v5740, %v5768
    %5770 = vmatmul.bf16.gmra.mxu0 %v4762
    %v5771 = vpop.f32.mrf.mxu0
    %v5772 = vadd.f32 %v5743, %v5771
    %v5773 = vpop.f32.mrf.mxu0
    %v5774 = vadd.f32 %v5745, %v5773
    %5775 = vdwg.mxu0
    %5776 = vmatpush.bf16.msra.mxu0 %v5437
    %5777 = vmatpush.bf16.msra.mxu0 %v5435
    %5778 = vmatpush.bf16.msra.mxu0 %v5433
    %5779 = vmatpush.bf16.msra.mxu0 %v5431
    %5780 = vmatpush.bf16.msra.mxu0 %v5429
    %5781 = vmatpush.bf16.msra.mxu0 %v5427
    %5782 = vmatpush.bf16.msra.mxu0 %v5425
    %5783 = vmatpush.bf16.msra.mxu0 %v5423
    %5784 = vmatmul.bf16.gmra.mxu0 %v4736
    %v5785 = vpop.f32.mrf.mxu0
    %v5786 = vadd.f32 %v5757, %v5785
    %v5787 = vpop.f32.mrf.mxu0
    %v5788 = vadd.f32 %v5759, %v5787
    %5789 = vmatmul.bf16.gmra.mxu0 %v4745
    %v5790 = vpop.f32.mrf.mxu0
    %v5791 = vadd.f32 %v5762, %v5790
    %v5792 = vpop.f32.mrf.mxu0
    %v5793 = vadd.f32 %v5764, %v5792
    %5794 = vmatmul.bf16.gmra.mxu0 %v4754
    %v5795 = vpop.f32.mrf.mxu0
    %v5796 = vadd.f32 %v5767, %v5795
    %v5797 = vpop.f32.mrf.mxu0
    %v5798 = vadd.f32 %v5769, %v5797
    %5799 = vmatmul.bf16.gmra.mxu0 %v4763
    %v5800 = vpop.f32.mrf.mxu0
    %v5801 = vadd.f32 %v5772, %v5800
    %v5802 = vpop.f32.mrf.mxu0
    %v5803 = vadd.f32 %v5774, %v5802
    %5804 = vdwg.mxu0
    %5805 = vmatpush.bf16.msra.mxu0 %v5453
    %5806 = vmatpush.bf16.msra.mxu0 %v5451
    %5807 = vmatpush.bf16.msra.mxu0 %v5449
    %5808 = vmatpush.bf16.msra.mxu0 %v5447
    %5809 = vmatpush.bf16.msra.mxu0 %v5445
    %5810 = vmatpush.bf16.msra.mxu0 %v5443
    %5811 = vmatpush.bf16.msra.mxu0 %v5441
    %5812 = vmatpush.bf16.msra.mxu0 %v5439
    %5813 = vmatmul.bf16.gmra.mxu0 %v4737
    %v5814 = vpop.f32.mrf.mxu0
    %v5815 = vadd.f32 %v5786, %v5814
    %v5816 = vpop.f32.mrf.mxu0
    %v5817 = vadd.f32 %v5788, %v5816
    %5818 = vmatmul.bf16.gmra.mxu0 %v4746
    %v5819 = vpop.f32.mrf.mxu0
    %v5820 = vadd.f32 %v5791, %v5819
    %v5821 = vpop.f32.mrf.mxu0
    %v5822 = vadd.f32 %v5793, %v5821
    %5823 = vmatmul.bf16.gmra.mxu0 %v4755
    %v5824 = vpop.f32.mrf.mxu0
    %v5825 = vadd.f32 %v5796, %v5824
    %v5826 = vpop.f32.mrf.mxu0
    %v5827 = vadd.f32 %v5798, %v5826
    %5828 = vmatmul.bf16.gmra.mxu0 %v4764
    %v5829 = vpop.f32.mrf.mxu0
    %v5830 = vadd.f32 %v5801, %v5829
    %v5831 = vpop.f32.mrf.mxu0
    %v5832 = vadd.f32 %v5803, %v5831
    %5833 = vdwg.mxu0
    %5834 = vmatpush.bf16.msra.mxu0 %v5469
    %5835 = vmatpush.bf16.msra.mxu0 %v5467
    %5836 = vmatpush.bf16.msra.mxu0 %v5465
    %5837 = vmatpush.bf16.msra.mxu0 %v5463
    %5838 = vmatpush.bf16.msra.mxu0 %v5461
    %5839 = vmatpush.bf16.msra.mxu0 %v5459
    %5840 = vmatpush.bf16.msra.mxu0 %v5457
    %5841 = vmatpush.bf16.msra.mxu0 %v5455
    %5842 = vmatmul.bf16.gmra.mxu0 %v4738
    %v5843 = vpop.f32.mrf.mxu0
    %v5844 = vadd.f32 %v5815, %v5843
    %v5845 = vpop.f32.mrf.mxu0
    %v5846 = vadd.f32 %v5817, %v5845
    %5847 = vmatmul.bf16.gmra.mxu0 %v4747
    %v5848 = vpop.f32.mrf.mxu0
    %v5849 = vadd.f32 %v5820, %v5848
    %v5850 = vpop.f32.mrf.mxu0
    %v5851 = vadd.f32 %v5822, %v5850
    %5852 = vmatmul.bf16.gmra.mxu0 %v4756
    %v5853 = vpop.f32.mrf.mxu0
    %v5854 = vadd.f32 %v5825, %v5853
    %v5855 = vpop.f32.mrf.mxu0
    %v5856 = vadd.f32 %v5827, %v5855
    %5857 = vmatmul.bf16.gmra.mxu0 %v4765
    %v5858 = vpop.f32.mrf.mxu0
    %v5859 = vadd.f32 %v5830, %v5858
    %v5860 = vpop.f32.mrf.mxu0
    %v5861 = vadd.f32 %v5832, %v5860
    %5862 = vdwg.mxu0
    %5863 = vmatpush.bf16.msra.mxu0 %v5485
    %5864 = vmatpush.bf16.msra.mxu0 %v5483
    %5865 = vmatpush.bf16.msra.mxu0 %v5481
    %5866 = vmatpush.bf16.msra.mxu0 %v5479
    %5867 = vmatpush.bf16.msra.mxu0 %v5477
    %5868 = vmatpush.bf16.msra.mxu0 %v5475
    %5869 = vmatpush.bf16.msra.mxu0 %v5473
    %5870 = vmatpush.bf16.msra.mxu0 %v5471
    %5871 = vmatmul.bf16.gmra.mxu0 %v4739
    %v5872 = vpop.f32.mrf.mxu0
    %v5873 = vadd.f32 %v5844, %v5872
    %v5874 = vpop.f32.mrf.mxu0
    %v5875 = vadd.f32 %v5846, %v5874
    %5876 = vmatmul.bf16.gmra.mxu0 %v4748
    %v5877 = vpop.f32.mrf.mxu0
    %v5878 = vadd.f32 %v5849, %v5877
    %v5879 = vpop.f32.mrf.mxu0
    %v5880 = vadd.f32 %v5851, %v5879
    %5881 = vmatmul.bf16.gmra.mxu0 %v4757
    %v5882 = vpop.f32.mrf.mxu0
    %v5883 = vadd.f32 %v5854, %v5882
    %v5884 = vpop.f32.mrf.mxu0
    %v5885 = vadd.f32 %v5856, %v5884
    %5886 = vmatmul.bf16.gmra.mxu0 %v4766
    %v5887 = vpop.f32.mrf.mxu0
    %v5888 = vadd.f32 %v5859, %v5887
    %v5889 = vpop.f32.mrf.mxu0
    %v5890 = vadd.f32 %v5861, %v5889
    %5891 = vdwg.mxu0
    %5892 = vmatpush.bf16.msra.mxu0 %v5358
    %5893 = vmatpush.bf16.msra.mxu0 %v5356
    %5894 = vmatpush.bf16.msra.mxu0 %v5354
    %5895 = vmatpush.bf16.msra.mxu0 %v5352
    %5896 = vmatpush.bf16.msra.mxu0 %v5350
    %5897 = vmatpush.bf16.msra.mxu0 %v5348
    %5898 = vmatpush.bf16.msra.mxu0 %v5346
    %5899 = vmatpush.bf16.msra.mxu0 %v5344
    %5900 = vmatmul.bf16.gmra.mxu0 %v4731
    %v5901 = vpop.f32.mrf.mxu0
    %v5902 = vadd.f32 0.0, %v5901
    %v5903 = vpop.f32.mrf.mxu0
    %v5904 = vadd.f32 0.0, %v5903
    %5905 = vmatmul.bf16.gmra.mxu0 %v4740
    %v5906 = vpop.f32.mrf.mxu0
    %v5907 = vadd.f32 0.0, %v5906
    %v5908 = vpop.f32.mrf.mxu0
    %v5909 = vadd.f32 0.0, %v5908
    %5910 = vmatmul.bf16.gmra.mxu0 %v4749
    %v5911 = vpop.f32.mrf.mxu0
    %v5912 = vadd.f32 0.0, %v5911
    %v5913 = vpop.f32.mrf.mxu0
    %v5914 = vadd.f32 0.0, %v5913
    %5915 = vmatmul.bf16.gmra.mxu0 %v4758
    %v5916 = vpop.f32.mrf.mxu0
    %v5917 = vadd.f32 0.0, %v5916
    %v5918 = vpop.f32.mrf.mxu0
    %v5919 = vadd.f32 0.0, %v5918
    %5920 = vdwg.mxu0
    %5921 = vmatpush.bf16.msra.mxu0 %v5374
    %5922 = vmatpush.bf16.msra.mxu0 %v5372
    %5923 = vmatpush.bf16.msra.mxu0 %v5370
    %5924 = vmatpush.bf16.msra.mxu0 %v5368
    %5925 = vmatpush.bf16.msra.mxu0 %v5366
    %5926 = vmatpush.bf16.msra.mxu0 %v5364
    %5927 = vmatpush.bf16.msra.mxu0 %v5362
    %5928 = vmatpush.bf16.msra.mxu0 %v5360
    %5929 = vmatmul.bf16.gmra.mxu0 %v4732
    %v5930 = vpop.f32.mrf.mxu0
    %v5931 = vadd.f32 %v5902, %v5930
    %v5932 = vpop.f32.mrf.mxu0
    %v5933 = vadd.f32 %v5904, %v5932
    %5934 = vmatmul.bf16.gmra.mxu0 %v4741
    %v5935 = vpop.f32.mrf.mxu0
    %v5936 = vadd.f32 %v5907, %v5935
    %v5937 = vpop.f32.mrf.mxu0
    %v5938 = vadd.f32 %v5909, %v5937
    %5939 = vmatmul.bf16.gmra.mxu0 %v4750
    %v5940 = vpop.f32.mrf.mxu0
    %v5941 = vadd.f32 %v5912, %v5940
    %v5942 = vpop.f32.mrf.mxu0
    %v5943 = vadd.f32 %v5914, %v5942
    %5944 = vmatmul.bf16.gmra.mxu0 %v4759
    %v5945 = vpop.f32.mrf.mxu0
    %v5946 = vadd.f32 %v5917, %v5945
    %v5947 = vpop.f32.mrf.mxu0
    %v5948 = vadd.f32 %v5919, %v5947
    %5949 = vdwg.mxu0
    %5950 = vmatpush.bf16.msra.mxu0 %v5390
    %5951 = vmatpush.bf16.msra.mxu0 %v5388
    %5952 = vmatpush.bf16.msra.mxu0 %v5386
    %5953 = vmatpush.bf16.msra.mxu0 %v5384
    %5954 = vmatpush.bf16.msra.mxu0 %v5382
    %5955 = vmatpush.bf16.msra.mxu0 %v5380
    %5956 = vmatpush.bf16.msra.mxu0 %v5378
    %5957 = vmatpush.bf16.msra.mxu0 %v5376
    %5958 = vmatmul.bf16.gmra.mxu0 %v4733
    %v5959 = vpop.f32.mrf.mxu0
    %v5960 = vadd.f32 %v5931, %v5959
    %v5961 = vpop.f32.mrf.mxu0
    %v5962 = vadd.f32 %v5933, %v5961
    %5963 = vmatmul.bf16.gmra.mxu0 %v4742
    %v5964 = vpop.f32.mrf.mxu0
    %v5965 = vadd.f32 %v5936, %v5964
    %v5966 = vpop.f32.mrf.mxu0
    %v5967 = vadd.f32 %v5938, %v5966
    %5968 = vmatmul.bf16.gmra.mxu0 %v4751
    %v5969 = vpop.f32.mrf.mxu0
    %v5970 = vadd.f32 %v5941, %v5969
    %v5971 = vpop.f32.mrf.mxu0
    %v5972 = vadd.f32 %v5943, %v5971
    %5973 = vmatmul.bf16.gmra.mxu0 %v4760
    %v5974 = vpop.f32.mrf.mxu0
    %v5975 = vadd.f32 %v5946, %v5974
    %v5976 = vpop.f32.mrf.mxu0
    %v5977 = vadd.f32 %v5948, %v5976
    %5978 = vdwg.mxu0
    %5979 = vmatpush.bf16.msra.mxu0 %v5406
    %5980 = vmatpush.bf16.msra.mxu0 %v5404
    %5981 = vmatpush.bf16.msra.mxu0 %v5402
    %5982 = vmatpush.bf16.msra.mxu0 %v5400
    %5983 = vmatpush.bf16.msra.mxu0 %v5398
    %5984 = vmatpush.bf16.msra.mxu0 %v5396
    %5985 = vmatpush.bf16.msra.mxu0 %v5394
    %5986 = vmatpush.bf16.msra.mxu0 %v5392
    %5987 = vmatmul.bf16.gmra.mxu0 %v4734
    %v5988 = vpop.f32.mrf.mxu0
    %v5989 = vadd.f32 %v5960, %v5988
    %v5990 = vpop.f32.mrf.mxu0
    %v5991 = vadd.f32 %v5962, %v5990
    %5992 = vmatmul.bf16.gmra.mxu0 %v4743
    %v5993 = vpop.f32.mrf.mxu0
    %v5994 = vadd.f32 %v5965, %v5993
    %v5995 = vpop.f32.mrf.mxu0
    %v5996 = vadd.f32 %v5967, %v5995
    %5997 = vmatmul.bf16.gmra.mxu0 %v4752
    %v5998 = vpop.f32.mrf.mxu0
    %v5999 = vadd.f32 %v5970, %v5998
    %v6000 = vpop.f32.mrf.mxu0
    %v6001 = vadd.f32 %v5972, %v6000
    %6002 = vmatmul.bf16.gmra.mxu0 %v4761
    %v6003 = vpop.f32.mrf.mxu0
    %v6004 = vadd.f32 %v5975, %v6003
    %v6005 = vpop.f32.mrf.mxu0
    %v6006 = vadd.f32 %v5977, %v6005
    %6007 = vdwg.mxu0
    %6008 = vmatpush.bf16.msra.mxu0 %v5422
    %6009 = vmatpush.bf16.msra.mxu0 %v5420
    %6010 = vmatpush.bf16.msra.mxu0 %v5418
    %6011 = vmatpush.bf16.msra.mxu0 %v5416
    %6012 = vmatpush.bf16.msra.mxu0 %v5414
    %6013 = vmatpush.bf16.msra.mxu0 %v5412
    %6014 = vmatpush.bf16.msra.mxu0 %v5410
    %6015 = vmatpush.bf16.msra.mxu0 %v5408
    %6016 = vmatmul.bf16.gmra.mxu0 %v4735
    %v6017 = vpop.f32.mrf.mxu0
    %v6018 = vadd.f32 %v5989, %v6017
    %v6019 = vpop.f32.mrf.mxu0
    %v6020 = vadd.f32 %v5991, %v6019
    %6021 = vmatmul.bf16.gmra.mxu0 %v4744
    %v6022 = vpop.f32.mrf.mxu0
    %v6023 = vadd.f32 %v5994, %v6022
    %v6024 = vpop.f32.mrf.mxu0
    %v6025 = vadd.f32 %v5996, %v6024
    %6026 = vmatmul.bf16.gmra.mxu0 %v4753
    %v6027 = vpop.f32.mrf.mxu0
    %v6028 = vadd.f32 %v5999, %v6027
    %v6029 = vpop.f32.mrf.mxu0
    %v6030 = vadd.f32 %v6001, %v6029
    %6031 = vmatmul.bf16.gmra.mxu0 %v4762
    %v6032 = vpop.f32.mrf.mxu0
    %v6033 = vadd.f32 %v6004, %v6032
    %v6034 = vpop.f32.mrf.mxu0
    %v6035 = vadd.f32 %v6006, %v6034
    %6036 = vdwg.mxu0
    %6037 = vmatpush.bf16.msra.mxu0 %v5438
    %6038 = vmatpush.bf16.msra.mxu0 %v5436
    %6039 = vmatpush.bf16.msra.mxu0 %v5434
    %6040 = vmatpush.bf16.msra.mxu0 %v5432
    %6041 = vmatpush.bf16.msra.mxu0 %v5430
    %6042 = vmatpush.bf16.msra.mxu0 %v5428
    %6043 = vmatpush.bf16.msra.mxu0 %v5426
    %6044 = vmatpush.bf16.msra.mxu0 %v5424
    %6045 = vmatmul.bf16.gmra.mxu0 %v4736
    %v6046 = vpop.f32.mrf.mxu0
    %v6047 = vadd.f32 %v6018, %v6046
    %v6048 = vpop.f32.mrf.mxu0
    %v6049 = vadd.f32 %v6020, %v6048
    %6050 = vmatmul.bf16.gmra.mxu0 %v4745
    %v6051 = vpop.f32.mrf.mxu0
    %v6052 = vadd.f32 %v6023, %v6051
    %v6053 = vpop.f32.mrf.mxu0
    %v6054 = vadd.f32 %v6025, %v6053
    %6055 = vmatmul.bf16.gmra.mxu0 %v4754
    %v6056 = vpop.f32.mrf.mxu0
    %v6057 = vadd.f32 %v6028, %v6056
    %v6058 = vpop.f32.mrf.mxu0
    %v6059 = vadd.f32 %v6030, %v6058
    %6060 = vmatmul.bf16.gmra.mxu0 %v4763
    %v6061 = vpop.f32.mrf.mxu0
    %v6062 = vadd.f32 %v6033, %v6061
    %v6063 = vpop.f32.mrf.mxu0
    %v6064 = vadd.f32 %v6035, %v6063
    %6065 = vdwg.mxu0
    %6066 = vmatpush.bf16.msra.mxu0 %v5454
    %6067 = vmatpush.bf16.msra.mxu0 %v5452
    %6068 = vmatpush.bf16.msra.mxu0 %v5450
    %6069 = vmatpush.bf16.msra.mxu0 %v5448
    %6070 = vmatpush.bf16.msra.mxu0 %v5446
    %6071 = vmatpush.bf16.msra.mxu0 %v5444
    %6072 = vmatpush.bf16.msra.mxu0 %v5442
    %6073 = vmatpush.bf16.msra.mxu0 %v5440
    %6074 = vmatmul.bf16.gmra.mxu0 %v4737
    %v6075 = vpop.f32.mrf.mxu0
    %v6076 = vadd.f32 %v6047, %v6075
    %v6077 = vpop.f32.mrf.mxu0
    %v6078 = vadd.f32 %v6049, %v6077
    %6079 = vmatmul.bf16.gmra.mxu0 %v4746
    %v6080 = vpop.f32.mrf.mxu0
    %v6081 = vadd.f32 %v6052, %v6080
    %v6082 = vpop.f32.mrf.mxu0
    %v6083 = vadd.f32 %v6054, %v6082
    %6084 = vmatmul.bf16.gmra.mxu0 %v4755
    %v6085 = vpop.f32.mrf.mxu0
    %v6086 = vadd.f32 %v6057, %v6085
    %v6087 = vpop.f32.mrf.mxu0
    %v6088 = vadd.f32 %v6059, %v6087
    %6089 = vmatmul.bf16.gmra.mxu0 %v4764
    %v6090 = vpop.f32.mrf.mxu0
    %v6091 = vadd.f32 %v6062, %v6090
    %v6092 = vpop.f32.mrf.mxu0
    %v6093 = vadd.f32 %v6064, %v6092
    %6094 = vdwg.mxu0
    %6095 = vmatpush.bf16.msra.mxu0 %v5470
    %6096 = vmatpush.bf16.msra.mxu0 %v5468
    %6097 = vmatpush.bf16.msra.mxu0 %v5466
    %6098 = vmatpush.bf16.msra.mxu0 %v5464
    %6099 = vmatpush.bf16.msra.mxu0 %v5462
    %6100 = vmatpush.bf16.msra.mxu0 %v5460
    %6101 = vmatpush.bf16.msra.mxu0 %v5458
    %6102 = vmatpush.bf16.msra.mxu0 %v5456
    %6103 = vmatmul.bf16.gmra.mxu0 %v4738
    %v6104 = vpop.f32.mrf.mxu0
    %v6105 = vadd.f32 %v6076, %v6104
    %v6106 = vpop.f32.mrf.mxu0
    %v6107 = vadd.f32 %v6078, %v6106
    %6108 = vmatmul.bf16.gmra.mxu0 %v4747
    %v6109 = vpop.f32.mrf.mxu0
    %v6110 = vadd.f32 %v6081, %v6109
    %v6111 = vpop.f32.mrf.mxu0
    %v6112 = vadd.f32 %v6083, %v6111
    %6113 = vmatmul.bf16.gmra.mxu0 %v4756
    %v6114 = vpop.f32.mrf.mxu0
    %v6115 = vadd.f32 %v6086, %v6114
    %v6116 = vpop.f32.mrf.mxu0
    %v6117 = vadd.f32 %v6088, %v6116
    %6118 = vmatmul.bf16.gmra.mxu0 %v4765
    %v6119 = vpop.f32.mrf.mxu0
    %v6120 = vadd.f32 %v6091, %v6119
    %v6121 = vpop.f32.mrf.mxu0
    %v6122 = vadd.f32 %v6093, %v6121
    %6123 = vdwg.mxu0
    %6124 = vmatpush.bf16.msra.mxu0 %v5486
    %6125 = vmatpush.bf16.msra.mxu0 %v5484
    %6126 = vmatpush.bf16.msra.mxu0 %v5482
    %6127 = vmatpush.bf16.msra.mxu0 %v5480
    %6128 = vmatpush.bf16.msra.mxu0 %v5478
    %6129 = vmatpush.bf16.msra.mxu0 %v5476
    %6130 = vmatpush.bf16.msra.mxu0 %v5474
    %6131 = vmatpush.bf16.msra.mxu0 %v5472
    %6132 = vmatmul.bf16.gmra.mxu0 %v4739
    %v6133 = vpop.f32.mrf.mxu0
    %v6134 = vadd.f32 %v6105, %v6133
    %v6135 = vpop.f32.mrf.mxu0
    %v6136 = vadd.f32 %v6107, %v6135
    %6137 = vmatmul.bf16.gmra.mxu0 %v4748
    %v6138 = vpop.f32.mrf.mxu0
    %v6139 = vadd.f32 %v6110, %v6138
    %v6140 = vpop.f32.mrf.mxu0
    %v6141 = vadd.f32 %v6112, %v6140
    %6142 = vmatmul.bf16.gmra.mxu0 %v4757
    %v6143 = vpop.f32.mrf.mxu0
    %v6144 = vadd.f32 %v6115, %v6143
    %v6145 = vpop.f32.mrf.mxu0
    %v6146 = vadd.f32 %v6117, %v6145
    %6147 = vmatmul.bf16.gmra.mxu0 %v4766
    %v6148 = vpop.f32.mrf.mxu0
    %v6149 = vadd.f32 %v6120, %v6148
    %v6150 = vpop.f32.mrf.mxu0
    %v6151 = vadd.f32 %v6122, %v6150
    %6152 = vdwg.mxu0
    %v6167 = vrot.slane %v5873, 1
    %v6168 = vrot.slane %v5875, 1
    %v6169 = vsel %vm741, %v6167, %v6168
    %v6170 = vrot.slane %v6134, 1
    %v6171 = vrot.slane %v6136, 1
    %v6172 = vsel %vm741, %v6170, %v6171
    %v6173 = vrot.slane %v5878, 1
    %v6174 = vsel %vm741, %v6168, %v6173
    %v6175 = vrot.slane %v6139, 1
    %v6176 = vsel %vm741, %v6171, %v6175
    %v6177 = vrot.slane %v5880, 1
    %v6178 = vsel %vm741, %v6173, %v6177
    %v6179 = vrot.slane %v6141, 1
    %v6180 = vsel %vm741, %v6175, %v6179
    %v6181 = vrot.slane %v5883, 1
    %v6182 = vsel %vm741, %v6177, %v6181
    %v6183 = vrot.slane %v6144, 1
    %v6184 = vsel %vm741, %v6179, %v6183
    %v6185 = vrot.slane %v5885, 1
    %v6186 = vsel %vm741, %v6181, %v6185
    %v6187 = vrot.slane %v6146, 1
    %v6188 = vsel %vm741, %v6183, %v6187
    %v6189 = vrot.slane %v5888, 1
    %v6190 = vsel %vm741, %v6185, %v6189
    %v6191 = vrot.slane %v6149, 1
    %v6192 = vsel %vm741, %v6187, %v6191
    %v6207 = vmax.f32 %v5873, %v6169
    %v6208 = vmax.f32 %v6134, %v6172
    %v6209 = vmax.f32 %v5875, %v6174
    %v6210 = vmax.f32 %v6136, %v6176
    %v6211 = vmax.f32 %v5878, %v6178
    %v6212 = vmax.f32 %v6139, %v6180
    %v6213 = vmax.f32 %v5880, %v6182
    %v6214 = vmax.f32 %v6141, %v6184
    %v6215 = vmax.f32 %v5883, %v6186
    %v6216 = vmax.f32 %v6144, %v6188
    %v6217 = vmax.f32 %v5885, %v6190
    %v6218 = vmax.f32 %v6146, %v6192
    %v6219 = vmax.f32 %v5888, %v6189
    %v6220 = vmax.f32 %v6149, %v6191
    %v6223 = vrot.slane %v5890, 1
    %v6224 = vsel %vm741, %v6189, %v6223
    %v6225 = vrot.slane %v6151, 1
    %v6226 = vsel %vm741, %v6191, %v6225
    %v6231 = vmax.f32 %v5888, %v6224
    %v6232 = vmax.f32 %v6149, %v6226
    %v6233 = vmax.f32 %v5890, %v6223
    %v6234 = vmax.f32 %v6151, %v6225
    %v6251 = vrot.slane %v6207, 6
    %v6252 = vrot.slane %v6209, 6
    %v6253 = vsel %vm460, %v6251, %v6252
    %v6254 = vrot.slane %v6208, 6
    %v6255 = vrot.slane %v6210, 6
    %v6256 = vsel %vm460, %v6254, %v6255
    %v6257 = vrot.slane %v6211, 6
    %v6258 = vsel %vm460, %v6252, %v6257
    %v6259 = vrot.slane %v6212, 6
    %v6260 = vsel %vm460, %v6255, %v6259
    %v6261 = vrot.slane %v6213, 6
    %v6262 = vsel %vm460, %v6257, %v6261
    %v6263 = vrot.slane %v6214, 6
    %v6264 = vsel %vm460, %v6259, %v6263
    %v6265 = vrot.slane %v6215, 6
    %v6266 = vsel %vm460, %v6261, %v6265
    %v6267 = vrot.slane %v6216, 6
    %v6268 = vsel %vm460, %v6263, %v6267
    %v6269 = vrot.slane %v6217, 6
    %v6270 = vsel %vm460, %v6265, %v6269
    %v6271 = vrot.slane %v6218, 6
    %v6272 = vsel %vm460, %v6267, %v6271
    %v6273 = vrot.slane %v6231, 6
    %v6274 = vsel %vm460, %v6269, %v6273
    %v6275 = vrot.slane %v6232, 6
    %v6276 = vsel %vm460, %v6271, %v6275
    %v6277 = vrot.slane %v6233, 6
    %v6278 = vsel %vm460, %v6273, %v6277
    %v6279 = vrot.slane %v6234, 6
    %v6280 = vsel %vm460, %v6275, %v6279
    %v6295 = vmax.f32 %v6207, %v6253
    %v6296 = vmax.f32 %v6208, %v6256
    %v6297 = vmax.f32 %v6209, %v6258
    %v6298 = vmax.f32 %v6210, %v6260
    %v6299 = vmax.f32 %v6211, %v6262
    %v6300 = vmax.f32 %v6212, %v6264
    %v6301 = vmax.f32 %v6213, %v6266
    %v6302 = vmax.f32 %v6214, %v6268
    %v6303 = vmax.f32 %v6215, %v6270
    %v6304 = vmax.f32 %v6216, %v6272
    %v6305 = vmax.f32 %v6217, %v6274
    %v6306 = vmax.f32 %v6218, %v6276
    %v6307 = vmax.f32 %v6219, %v6278
    %v6308 = vmax.f32 %v6220, %v6280
    %v6309 = vld [vmem:[%s8] sm:$0x3]
    %v6311 = vperm.slane %v6309, 0
    %v6312 = vperm.slane %v6309, 1
    %v6315 = vadd.f32 %v6295, %v6311
    %v6316 = vadd.f32 %v6296, %v6312
    %v6317 = vadd.f32 %v6297, %v6311
    %v6318 = vadd.f32 %v6298, %v6312
    %v6319 = vadd.f32 %v6299, %v6311
    %v6320 = vadd.f32 %v6300, %v6312
    %v6321 = vadd.f32 %v6301, %v6311
    %v6322 = vadd.f32 %v6302, %v6312
    %v6323 = vadd.f32 %v6303, %v6311
    %v6324 = vadd.f32 %v6304, %v6312
    %v6325 = vadd.f32 %v6305, %v6311
    %v6326 = vadd.f32 %v6306, %v6312
    %v6327 = vadd.f32 %v6307, %v6311
    %v6328 = vadd.f32 %v6308, %v6312
    %v6329 = vmax.f32 %v6315, 0.0
    %v6330 = vmax.f32 %v6316, 0.0
    %v6331 = vmax.f32 %v6317, 0.0
    %v6332 = vmax.f32 %v6318, 0.0
    %v6333 = vmax.f32 %v6319, 0.0
    %v6334 = vmax.f32 %v6320, 0.0
    %v6335 = vmax.f32 %v6321, 0.0
    %v6336 = vmax.f32 %v6322, 0.0
    %v6337 = vmax.f32 %v6323, 0.0
    %v6338 = vmax.f32 %v6324, 0.0
    %v6339 = vmax.f32 %v6325, 0.0
    %v6340 = vmax.f32 %v6326, 0.0
    %v6341 = vmax.f32 %v6327, 0.0
    %v6342 = vmax.f32 %v6328, 0.0
    %v6343 = vld [vmem:[%s9] sm:$0xf]
    %v6344 = vld [vmem:[%s9 + $0x4] sm:$0xf]
    %v6345 = vld [vmem:[%s9 + $0x8] sm:$0xf]
    %v6346 = vld [vmem:[%s9 + $0xc] sm:$0xf]
    %v6347 = vpack.c.bf16 %v6331, %v6329
    %v6348 = vpack.c.bf16 %v6332, %v6330
    %v6349 = vpack.c.bf16 %v6335, %v6333
    %v6350 = vpack.c.bf16 %v6336, %v6334
    %v6351 = vpack.c.bf16 %v6339, %v6337
    %v6352 = vpack.c.bf16 %v6340, %v6338
    %v6353 = vpack.c.bf16 %v6341, %v6341
    %v6354 = vpack.c.bf16 %v6342, %v6342
    %v6359 = vunpack.c.l.b16 %v6343
    %v6360 = vunpack.c.l.b16 %v6344
    %v6361 = vunpack.c.l.b16 %v6345
    %v6362 = vunpack.c.l.b16 %v6346
    %v6363 = vpack.c.b16 %v6360, %v6359
    %v6364 = vpack.c.b16 %v6362, %v6361
    %vm6365 = vcmask 416768
    %v6367 = vsel %vm6365, %v6363, 0
    %v6370 = vsel %vm6365, %v6364, 0
    %v6372 = vsel %vm4655, 4294967295, 65535
    %v6373 = vsel %vm460, %v6372, 0
    %v6375 = vand.u32 %v6353, %v6373
    %v6378 = vand.u32 %v6354, %v6373
    %6380 = vmatpush.bf16.msra.mxu0 0
    %6381 = vmatpush.bf16.msra.mxu0 0
    %6382 = vmatpush.bf16.msra.mxu0 0
    %6383 = vmatpush.bf16.msra.mxu0 0
    %6384 = vmatpush.bf16.msra.mxu0 %v6375
    %6385 = vmatpush.bf16.msra.mxu0 %v6351
    %6386 = vmatpush.bf16.msra.mxu0 %v6349
    %6387 = vmatpush.bf16.msra.mxu0 %v6347
    %6388 = vmatmul.bf16.gmra.mxu0 %v6367
    %v6389 = vpop.f32.mrf.mxu0
    %v6390 = vadd.f32 0.0, %v6389
    %v6391 = vpop.f32.mrf.mxu0
    %v6392 = vadd.f32 0.0, %v6391
    %6393 = vmatmul.bf16.gmra.mxu0 %v6370
    %v6394 = vpop.f32.mrf.mxu0
    %v6395 = vadd.f32 0.0, %v6394
    %v6396 = vpop.f32.mrf.mxu0
    %v6397 = vadd.f32 0.0, %v6396
    %6398 = vdwg.mxu0
    %6399 = vmatpush.bf16.msra.mxu0 0
    %6400 = vmatpush.bf16.msra.mxu0 0
    %6401 = vmatpush.bf16.msra.mxu0 0
    %6402 = vmatpush.bf16.msra.mxu0 0
    %6403 = vmatpush.bf16.msra.mxu0 %v6378
    %6404 = vmatpush.bf16.msra.mxu0 %v6352
    %6405 = vmatpush.bf16.msra.mxu0 %v6350
    %6406 = vmatpush.bf16.msra.mxu0 %v6348
    %6407 = vmatmul.bf16.gmra.mxu0 %v6367
    %v6408 = vpop.f32.mrf.mxu0
    %v6409 = vadd.f32 0.0, %v6408
    %v6410 = vpop.f32.mrf.mxu0
    %v6411 = vadd.f32 0.0, %v6410
    %6412 = vmatmul.bf16.gmra.mxu0 %v6370
    %v6413 = vpop.f32.mrf.mxu0
    %v6414 = vadd.f32 0.0, %v6413
    %v6415 = vpop.f32.mrf.mxu0
    %v6416 = vadd.f32 0.0, %v6415
    %6417 = vdwg.mxu0
    %v6424 = vrot.slane %v6390, 1
    %v6425 = vrot.slane %v6392, 1
    %v6426 = vsel %vm741, %v6424, %v6425
    %v6427 = vrot.slane %v6409, 1
    %v6428 = vrot.slane %v6411, 1
    %v6429 = vsel %vm741, %v6427, %v6428
    %v6430 = vrot.slane %v6395, 1
    %v6431 = vsel %vm741, %v6425, %v6430
    %v6432 = vrot.slane %v6414, 1
    %v6433 = vsel %vm741, %v6428, %v6432
    %v6440 = vrot.slane %v6390, 2
    %v6441 = vrot.slane %v6392, 2
    %v6442 = vsel %vm1129, %v6440, %v6441
    %v6443 = vrot.slane %v6409, 2
    %v6444 = vrot.slane %v6411, 2
    %v6445 = vsel %vm1129, %v6443, %v6444
    %v6446 = vrot.slane %v6395, 2
    %v6447 = vsel %vm1129, %v6441, %v6446
    %v6448 = vrot.slane %v6414, 2
    %v6449 = vsel %vm1129, %v6444, %v6448
    %v6458 = vrot.slane %v6390, 4
    %v6459 = vrot.slane %v6392, 4
    %v6460 = vsel %vm2652, %v6458, %v6459
    %v6461 = vrot.slane %v6409, 4
    %v6462 = vrot.slane %v6411, 4
    %v6463 = vsel %vm2652, %v6461, %v6462
    %v6464 = vrot.slane %v6395, 4
    %v6465 = vsel %vm2652, %v6459, %v6464
    %v6466 = vrot.slane %v6414, 4
    %v6467 = vsel %vm2652, %v6462, %v6466
    %v6468 = vrot.slane %v6397, 4
    %v6469 = vsel %vm2652, %v6464, %v6468
    %v6470 = vrot.slane %v6416, 4
    %v6471 = vsel %vm2652, %v6466, %v6470
    %v6478 = vrot.slane %v6390, 5
    %v6479 = vrot.slane %v6392, 5
    %v6480 = vsel %vm2726, %v6478, %v6479
    %v6481 = vrot.slane %v6409, 5
    %v6482 = vrot.slane %v6411, 5
    %v6483 = vsel %vm2726, %v6481, %v6482
    %v6484 = vrot.slane %v6395, 5
    %v6485 = vsel %vm2726, %v6479, %v6484
    %v6486 = vrot.slane %v6414, 5
    %v6487 = vsel %vm2726, %v6482, %v6486
    %v6488 = vrot.slane %v6397, 5
    %v6489 = vsel %vm2726, %v6484, %v6488
    %v6490 = vrot.slane %v6416, 5
    %v6491 = vsel %vm2726, %v6486, %v6490
    %v6498 = vrot.slane %v6390, 6
    %v6499 = vrot.slane %v6392, 6
    %v6500 = vsel %vm460, %v6498, %v6499
    %v6501 = vrot.slane %v6409, 6
    %v6502 = vrot.slane %v6411, 6
    %v6503 = vsel %vm460, %v6501, %v6502
    %v6504 = vrot.slane %v6395, 6
    %v6505 = vsel %vm460, %v6499, %v6504
    %v6506 = vrot.slane %v6414, 6
    %v6507 = vsel %vm460, %v6502, %v6506
    %v6508 = vrot.slane %v6397, 6
    %v6509 = vsel %vm460, %v6504, %v6508
    %v6510 = vrot.slane %v6416, 6
    %v6511 = vsel %vm460, %v6506, %v6510
    %v6518 = vrot.slane %v6397, 1
    %v6519 = vsel %vm741, %v6430, %v6518
    %v6520 = vrot.slane %v6416, 1
    %v6521 = vsel %vm741, %v6432, %v6520
    %v6526 = vrot.slane %v6397, 2
    %v6527 = vsel %vm1129, %v6446, %v6526
    %v6528 = vrot.slane %v6416, 2
    %v6529 = vsel %vm1129, %v6448, %v6528
    %v6534 = vpack.c.bf16 %v6392, %v6390
    %v6535 = vpack.c.bf16 %v6411, %v6409
    %v6536 = vpack.c.bf16 %v6431, %v6426
    %v6537 = vpack.c.bf16 %v6433, %v6429
    %v6538 = vpack.c.bf16 %v6447, %v6442
    %v6539 = vpack.c.bf16 %v6449, %v6445
    %v6540 = vpack.c.bf16 %v6465, %v6460
    %v6541 = vpack.c.bf16 %v6467, %v6463
    %v6542 = vpack.c.bf16 %v6485, %v6480
    %v6543 = vpack.c.bf16 %v6487, %v6483
    %v6544 = vpack.c.bf16 %v6505, %v6500
    %v6545 = vpack.c.bf16 %v6507, %v6503
    %v6546 = vpack.c.bf16 %v6395, %v6392
    %v6547 = vpack.c.bf16 %v6414, %v6411
    %v6548 = vpack.c.bf16 %v6519, %v6431
    %v6549 = vpack.c.bf16 %v6521, %v6433
    %v6550 = vpack.c.bf16 %v6527, %v6447
    %v6551 = vpack.c.bf16 %v6529, %v6449
    %v6552 = vpack.c.bf16 %v6395, %v6395
    %v6553 = vpack.c.bf16 %v6414, %v6414
    %v6554 = vpack.c.bf16 %v6430, %v6430
    %v6555 = vpack.c.bf16 %v6432, %v6432
    %v6556 = vpack.c.bf16 %v6446, %v6446
    %v6557 = vpack.c.bf16 %v6448, %v6448
    %v6558 = vpack.c.bf16 %v6469, %v6469
    %v6559 = vpack.c.bf16 %v6471, %v6471
    %v6560 = vpack.c.bf16 %v6489, %v6489
    %v6561 = vpack.c.bf16 %v6491, %v6491
    %v6562 = vpack.c.bf16 %v6509, %v6509
    %v6563 = vpack.c.bf16 %v6511, %v6511
    %v6564 = vpack.c.bf16 %v6397, %v6397
    %v6565 = vpack.c.bf16 %v6416, %v6416
    %v6566 = vpack.c.bf16 %v6518, %v6518
    %v6567 = vpack.c.bf16 %v6520, %v6520
    %v6568 = vpack.c.bf16 %v6526, %v6526
    %v6569 = vpack.c.bf16 %v6528, %v6528
    %v6570 = vld [vmem:[%s10] sm:$0xff]
    %v6571 = vld [vmem:[%s10 + $0x8] sm:$0xff]
    %v6572 = vld [vmem:[%s10 + $0x10] sm:$0xff]
    %v6573 = vld [vmem:[%s10 + $0x18] sm:$0xff]
    %v6574 = vld [vmem:[%s10 + $0x20] sm:$0xff]
    %v6575 = vld [vmem:[%s10 + $0x28] sm:$0xff]
    %v6576 = vld [vmem:[%s10 + $0x30] sm:$0xff]
    %v6577 = vld [vmem:[%s10 + $0x38] sm:$0xff]
    %v6578 = vld [vmem:[%s10 + $0x40] sm:$0xff]
    %v6579 = vld [vmem:[%s10 + $0x48] sm:$0xff]
    %v6580 = vld [vmem:[%s10 + $0x50] sm:$0xff]
    %v6581 = vld [vmem:[%s10 + $0x58] sm:$0xff]
    %v6582 = vld [vmem:[%s10 + $0x60] sm:$0xff]
    %v6583 = vld [vmem:[%s10 + $0x68] sm:$0xff]
    %v6584 = vld [vmem:[%s10 + $0x70] sm:$0xff]
    %v6585 = vld [vmem:[%s10 + $0x78] sm:$0xff]
    %v6586 = vld [vmem:[%s10 + $0x80] sm:$0xff]
    %v6587 = vld [vmem:[%s10 + $0x88] sm:$0xff]
    %v6588 = vld [vmem:[%s10 + $0x90] sm:$0xff]
    %v6589 = vld [vmem:[%s10 + $0x98] sm:$0xff]
    %v6590 = vld [vmem:[%s10 + $0xa0] sm:$0xff]
    %v6591 = vld [vmem:[%s10 + $0xa8] sm:$0xff]
    %v6592 = vld [vmem:[%s10 + $0xb0] sm:$0xff]
    %v6593 = vld [vmem:[%s10 + $0xb8] sm:$0xff]
    %v6594 = vld [vmem:[%s10 + $0xc0] sm:$0xff]
    %v6595 = vld [vmem:[%s10 + $0xc8] sm:$0xff]
    %v6596 = vld [vmem:[%s10 + $0xd0] sm:$0xff]
    %v6597 = vld [vmem:[%s10 + $0xd8] sm:$0xff]
    %v6598 = vld [vmem:[%s10 + $0xe0] sm:$0xff]
    %v6599 = vld [vmem:[%s10 + $0xe8] sm:$0xff]
    %v6600 = vld [vmem:[%s10 + $0xf0] sm:$0xff]
    %v6601 = vld [vmem:[%s10 + $0xf8] sm:$0xff]
    %v6602 = vld [vmem:[%s10 + $0x100] sm:$0xff]
    %v6603 = vld [vmem:[%s10 + $0x108] sm:$0xff]
    %v6604 = vld [vmem:[%s10 + $0x110] sm:$0xff]
    %v6605 = vld [vmem:[%s10 + $0x118] sm:$0xff]
    %v6606 = vld [vmem:[%s10 + $0x120] sm:$0xff]
    %v6607 = vld [vmem:[%s10 + $0x128] sm:$0xff]
    %v6608 = vld [vmem:[%s10 + $0x130] sm:$0xff]
    %v6609 = vld [vmem:[%s10 + $0x138] sm:$0xff]
    %v6610 = vld [vmem:[%s10 + $0x140] sm:$0xff]
    %v6611 = vld [vmem:[%s10 + $0x148] sm:$0xff]
    %v6612 = vld [vmem:[%s10 + $0x150] sm:$0xff]
    %v6613 = vld [vmem:[%s10 + $0x158] sm:$0xff]
    %v6614 = vld [vmem:[%s10 + $0x160] sm:$0xff]
    %v6615 = vld [vmem:[%s10 + $0x168] sm:$0xff]
    %v6616 = vld [vmem:[%s10 + $0x170] sm:$0xff]
    %v6617 = vld [vmem:[%s10 + $0x178] sm:$0xff]
    %v6618 = vld [vmem:[%s10 + $0x180] sm:$0xff]
    %v6619 = vld [vmem:[%s10 + $0x188] sm:$0xff]
    %v6620 = vld [vmem:[%s10 + $0x190] sm:$0xff]
    %v6621 = vld [vmem:[%s10 + $0x198] sm:$0xff]
    %v6622 = vld [vmem:[%s10 + $0x1a0] sm:$0xff]
    %v6623 = vld [vmem:[%s10 + $0x1a8] sm:$0xff]
    %v6624 = vld [vmem:[%s10 + $0x1b0] sm:$0xff]
    %v6625 = vld [vmem:[%s10 + $0x1b8] sm:$0xff]
    %v6626 = vld [vmem:[%s10 + $0x1c0] sm:$0xff]
    %v6627 = vld [vmem:[%s10 + $0x1c8] sm:$0xff]
    %v6628 = vld [vmem:[%s10 + $0x1d0] sm:$0xff]
    %v6629 = vld [vmem:[%s10 + $0x1d8] sm:$0xff]
    %v6630 = vld [vmem:[%s10 + $0x1e0] sm:$0xff]
    %v6631 = vld [vmem:[%s10 + $0x1e8] sm:$0xff]
    %v6632 = vld [vmem:[%s10 + $0x1f0] sm:$0xff]
    %v6633 = vld [vmem:[%s10 + $0x1f8] sm:$0xff]
    %v6634 = vld [vmem:[%s10 + $0x200] sm:$0xff]
    %v6635 = vld [vmem:[%s10 + $0x208] sm:$0xff]
    %v6636 = vld [vmem:[%s10 + $0x210] sm:$0xff]
    %v6637 = vld [vmem:[%s10 + $0x218] sm:$0xff]
    %v6638 = vld [vmem:[%s10 + $0x220] sm:$0xff]
    %v6639 = vld [vmem:[%s10 + $0x228] sm:$0xff]
    %v6640 = vld [vmem:[%s10 + $0x230] sm:$0xff]
    %v6641 = vld [vmem:[%s10 + $0x238] sm:$0xff]
    %v6642 = vld [vmem:[%s10 + $0x240] sm:$0xff]
    %v6643 = vld [vmem:[%s10 + $0x248] sm:$0xff]
    %v6644 = vld [vmem:[%s10 + $0x250] sm:$0xff]
    %v6645 = vld [vmem:[%s10 + $0x258] sm:$0xff]
    %v6646 = vld [vmem:[%s10 + $0x260] sm:$0xff]
    %v6647 = vld [vmem:[%s10 + $0x268] sm:$0xff]
    %v6648 = vld [vmem:[%s10 + $0x270] sm:$0xff]
    %v6649 = vld [vmem:[%s10 + $0x278] sm:$0xff]
    %v6650 = vld [vmem:[%s10 + $0x280] sm:$0xff]
    %v6651 = vld [vmem:[%s10 + $0x288] sm:$0xff]
    %v6652 = vld [vmem:[%s10 + $0x290] sm:$0xff]
    %v6653 = vld [vmem:[%s10 + $0x298] sm:$0xff]
    %v6654 = vld [vmem:[%s10 + $0x2a0] sm:$0xff]
    %v6655 = vld [vmem:[%s10 + $0x2a8] sm:$0xff]
    %v6656 = vld [vmem:[%s10 + $0x2b0] sm:$0xff]
    %v6657 = vld [vmem:[%s10 + $0x2b8] sm:$0xff]
    %v6658 = vld [vmem:[%s10 + $0x2c0] sm:$0xff]
    %v6659 = vld [vmem:[%s10 + $0x2c8] sm:$0xff]
    %v6660 = vld [vmem:[%s10 + $0x2d0] sm:$0xff]
    %v6661 = vld [vmem:[%s10 + $0x2d8] sm:$0xff]
    %v6662 = vld [vmem:[%s10 + $0x2e0] sm:$0xff]
    %v6663 = vld [vmem:[%s10 + $0x2e8] sm:$0xff]
    %v6664 = vld [vmem:[%s10 + $0x2f0] sm:$0xff]
    %v6665 = vld [vmem:[%s10 + $0x2f8] sm:$0xff]
    %v6666 = vld [vmem:[%s10 + $0x300] sm:$0xff]
    %v6667 = vld [vmem:[%s10 + $0x308] sm:$0xff]
    %v6668 = vld [vmem:[%s10 + $0x310] sm:$0xff]
    %v6669 = vld [vmem:[%s10 + $0x318] sm:$0xff]
    %v6670 = vld [vmem:[%s10 + $0x320] sm:$0xff]
    %v6671 = vld [vmem:[%s10 + $0x328] sm:$0xff]
    %v6672 = vld [vmem:[%s10 + $0x330] sm:$0xff]
    %v6673 = vld [vmem:[%s10 + $0x338] sm:$0xff]
    %v6674 = vld [vmem:[%s10 + $0x340] sm:$0xff]
    %v6675 = vld [vmem:[%s10 + $0x348] sm:$0xff]
    %v6676 = vld [vmem:[%s10 + $0x350] sm:$0xff]
    %v6677 = vld [vmem:[%s10 + $0x358] sm:$0xff]
    %v6678 = vld [vmem:[%s10 + $0x360] sm:$0xff]
    %v6679 = vld [vmem:[%s10 + $0x368] sm:$0xff]
    %v6680 = vld [vmem:[%s10 + $0x370] sm:$0xff]
    %v6681 = vld [vmem:[%s10 + $0x378] sm:$0xff]
    %v6682 = vld [vmem:[%s10 + $0x380] sm:$0xff]
    %v6683 = vld [vmem:[%s10 + $0x388] sm:$0xff]
    %v6684 = vld [vmem:[%s10 + $0x390] sm:$0xff]
    %v6685 = vld [vmem:[%s10 + $0x398] sm:$0xff]
    %v6686 = vld [vmem:[%s10 + $0x3a0] sm:$0xff]
    %v6687 = vld [vmem:[%s10 + $0x3a8] sm:$0xff]
    %v6688 = vld [vmem:[%s10 + $0x3b0] sm:$0xff]
    %v6689 = vld [vmem:[%s10 + $0x3b8] sm:$0xff]
    %v6690 = vld [vmem:[%s10 + $0x3c0] sm:$0xff]
    %v6691 = vld [vmem:[%s10 + $0x3c8] sm:$0xff]
    %v6692 = vld [vmem:[%s10 + $0x3d0] sm:$0xff]
    %v6693 = vld [vmem:[%s10 + $0x3d8] sm:$0xff]
    %v6694 = vld [vmem:[%s10 + $0x3e0] sm:$0xff]
    %v6695 = vld [vmem:[%s10 + $0x3e8] sm:$0xff]
    %v6696 = vld [vmem:[%s10 + $0x3f0] sm:$0xff]
    %v6697 = vld [vmem:[%s10 + $0x3f8] sm:$0xff]
    %v6698 = vld [vmem:[%s10 + $0x400] sm:$0xff]
    %v6699 = vld [vmem:[%s10 + $0x408] sm:$0xff]
    %v6700 = vld [vmem:[%s10 + $0x410] sm:$0xff]
    %v6701 = vld [vmem:[%s10 + $0x418] sm:$0xff]
    %v6702 = vld [vmem:[%s10 + $0x420] sm:$0xff]
    %v6703 = vld [vmem:[%s10 + $0x428] sm:$0xff]
    %v6704 = vld [vmem:[%s10 + $0x430] sm:$0xff]
    %v6705 = vld [vmem:[%s10 + $0x438] sm:$0xff]
    %v6706 = vld [vmem:[%s10 + $0x440] sm:$0xff]
    %v6707 = vld [vmem:[%s10 + $0x448] sm:$0xff]
    %v6708 = vld [vmem:[%s10 + $0x450] sm:$0xff]
    %v6709 = vld [vmem:[%s10 + $0x458] sm:$0xff]
    %v6710 = vld [vmem:[%s10 + $0x460] sm:$0xff]
    %v6711 = vld [vmem:[%s10 + $0x468] sm:$0xff]
    %v6712 = vld [vmem:[%s10 + $0x470] sm:$0xff]
    %v6713 = vld [vmem:[%s10 + $0x478] sm:$0xff]
    %v6714 = vld [vmem:[%s10 + $0x480] sm:$0xff]
    %v6715 = vld [vmem:[%s10 + $0x488] sm:$0xff]
    %v6716 = vld [vmem:[%s10 + $0x490] sm:$0xff]
    %v6717 = vld [vmem:[%s10 + $0x498] sm:$0xff]
    %v6718 = vld [vmem:[%s10 + $0x4a0] sm:$0xff]
    %v6719 = vld [vmem:[%s10 + $0x4a8] sm:$0xff]
    %v6720 = vld [vmem:[%s10 + $0x4b0] sm:$0xff]
    %v6721 = vld [vmem:[%s10 + $0x4b8] sm:$0xff]
    %v6722 = vld [vmem:[%s10 + $0x4c0] sm:$0xff]
    %v6723 = vld [vmem:[%s10 + $0x4c8] sm:$0xff]
    %v6724 = vld [vmem:[%s10 + $0x4d0] sm:$0xff]
    %v6725 = vld [vmem:[%s10 + $0x4d8] sm:$0xff]
    %v6726 = vld [vmem:[%s10 + $0x4e0] sm:$0xff]
    %v6727 = vld [vmem:[%s10 + $0x4e8] sm:$0xff]
    %v6728 = vld [vmem:[%s10 + $0x4f0] sm:$0xff]
    %v6729 = vld [vmem:[%s10 + $0x4f8] sm:$0xff]
    %v6730 = vld [vmem:[%s10 + $0x500] sm:$0xff]
    %v6731 = vld [vmem:[%s10 + $0x508] sm:$0xff]
    %v6732 = vld [vmem:[%s10 + $0x510] sm:$0xff]
    %v6733 = vld [vmem:[%s10 + $0x518] sm:$0xff]
    %v6734 = vld [vmem:[%s10 + $0x520] sm:$0xff]
    %v6735 = vld [vmem:[%s10 + $0x528] sm:$0xff]
    %v6736 = vld [vmem:[%s10 + $0x530] sm:$0xff]
    %v6737 = vld [vmem:[%s10 + $0x538] sm:$0xff]
    %v6738 = vld [vmem:[%s10 + $0x540] sm:$0xff]
    %v6739 = vld [vmem:[%s10 + $0x548] sm:$0xff]
    %v6740 = vld [vmem:[%s10 + $0x550] sm:$0xff]
    %v6741 = vld [vmem:[%s10 + $0x558] sm:$0xff]
    %v6742 = vld [vmem:[%s10 + $0x560] sm:$0xff]
    %v6743 = vld [vmem:[%s10 + $0x568] sm:$0xff]
    %v6744 = vld [vmem:[%s10 + $0x570] sm:$0xff]
    %v6745 = vld [vmem:[%s10 + $0x578] sm:$0xff]
    %v6746 = vld [vmem:[%s10 + $0x580] sm:$0xff]
    %v6747 = vld [vmem:[%s10 + $0x588] sm:$0xff]
    %v6748 = vld [vmem:[%s10 + $0x590] sm:$0xff]
    %v6749 = vld [vmem:[%s10 + $0x598] sm:$0xff]
    %v6750 = vld [vmem:[%s10 + $0x5a0] sm:$0xff]
    %v6751 = vld [vmem:[%s10 + $0x5a8] sm:$0xff]
    %v6752 = vld [vmem:[%s10 + $0x5b0] sm:$0xff]
    %v6753 = vld [vmem:[%s10 + $0x5b8] sm:$0xff]
    %v6754 = vld [vmem:[%s10 + $0x5c0] sm:$0xff]
    %v6755 = vld [vmem:[%s10 + $0x5c8] sm:$0xff]
    %v6756 = vld [vmem:[%s10 + $0x5d0] sm:$0xff]
    %v6757 = vld [vmem:[%s10 + $0x5d8] sm:$0xff]
    %v6758 = vld [vmem:[%s10 + $0x5e0] sm:$0xff]
    %v6759 = vld [vmem:[%s10 + $0x5e8] sm:$0xff]
    %v6760 = vld [vmem:[%s10 + $0x5f0] sm:$0xff]
    %v6761 = vld [vmem:[%s10 + $0x5f8] sm:$0xff]
    %v6762 = vld [vmem:[%s10 + $0x600] sm:$0xff]
    %v6763 = vld [vmem:[%s10 + $0x608] sm:$0xff]
    %v6764 = vld [vmem:[%s10 + $0x610] sm:$0xff]
    %v6765 = vld [vmem:[%s10 + $0x618] sm:$0xff]
    %v6766 = vld [vmem:[%s10 + $0x620] sm:$0xff]
    %v6767 = vld [vmem:[%s10 + $0x628] sm:$0xff]
    %v6768 = vld [vmem:[%s10 + $0x630] sm:$0xff]
    %v6769 = vld [vmem:[%s10 + $0x638] sm:$0xff]
    %v6770 = vld [vmem:[%s10 + $0x640] sm:$0xff]
    %v6771 = vld [vmem:[%s10 + $0x648] sm:$0xff]
    %v6772 = vld [vmem:[%s10 + $0x650] sm:$0xff]
    %v6773 = vld [vmem:[%s10 + $0x658] sm:$0xff]
    %v6774 = vld [vmem:[%s10 + $0x660] sm:$0xff]
    %v6775 = vld [vmem:[%s10 + $0x668] sm:$0xff]
    %v6776 = vld [vmem:[%s10 + $0x670] sm:$0xff]
    %v6777 = vld [vmem:[%s10 + $0x678] sm:$0xff]
    %v6778 = vld [vmem:[%s10 + $0x680] sm:$0xff]
    %v6779 = vld [vmem:[%s10 + $0x688] sm:$0xff]
    %v6780 = vld [vmem:[%s10 + $0x690] sm:$0xff]
    %v6781 = vld [vmem:[%s10 + $0x698] sm:$0xff]
    %v6782 = vld [vmem:[%s10 + $0x6a0] sm:$0xff]
    %v6783 = vld [vmem:[%s10 + $0x6a8] sm:$0xff]
    %v6784 = vld [vmem:[%s10 + $0x6b0] sm:$0xff]
    %v6785 = vld [vmem:[%s10 + $0x6b8] sm:$0xff]
    %v6786 = vld [vmem:[%s10 + $0x6c0] sm:$0xff]
    %v6787 = vld [vmem:[%s10 + $0x6c8] sm:$0xff]
    %v6788 = vld [vmem:[%s10 + $0x6d0] sm:$0xff]
    %v6789 = vld [vmem:[%s10 + $0x6d8] sm:$0xff]
    %v6790 = vld [vmem:[%s10 + $0x6e0] sm:$0xff]
    %v6791 = vld [vmem:[%s10 + $0x6e8] sm:$0xff]
    %v6792 = vld [vmem:[%s10 + $0x6f0] sm:$0xff]
    %v6793 = vld [vmem:[%s10 + $0x6f8] sm:$0xff]
    %v6794 = vld [vmem:[%s10 + $0x700] sm:$0xff]
    %v6795 = vld [vmem:[%s10 + $0x708] sm:$0xff]
    %v6796 = vld [vmem:[%s10 + $0x710] sm:$0xff]
    %v6797 = vld [vmem:[%s10 + $0x718] sm:$0xff]
    %v6798 = vld [vmem:[%s10 + $0x720] sm:$0xff]
    %v6799 = vld [vmem:[%s10 + $0x728] sm:$0xff]
    %v6800 = vld [vmem:[%s10 + $0x730] sm:$0xff]
    %v6801 = vld [vmem:[%s10 + $0x738] sm:$0xff]
    %v6802 = vld [vmem:[%s10 + $0x740] sm:$0xff]
    %v6803 = vld [vmem:[%s10 + $0x748] sm:$0xff]
    %v6804 = vld [vmem:[%s10 + $0x750] sm:$0xff]
    %v6805 = vld [vmem:[%s10 + $0x758] sm:$0xff]
    %v6806 = vld [vmem:[%s10 + $0x760] sm:$0xff]
    %v6807 = vld [vmem:[%s10 + $0x768] sm:$0xff]
    %v6808 = vld [vmem:[%s10 + $0x770] sm:$0xff]
    %v6809 = vld [vmem:[%s10 + $0x778] sm:$0xff]
    %v6810 = vld [vmem:[%s10 + $0x780] sm:$0xff]
    %v6811 = vld [vmem:[%s10 + $0x788] sm:$0xff]
    %v6812 = vld [vmem:[%s10 + $0x790] sm:$0xff]
    %v6813 = vld [vmem:[%s10 + $0x798] sm:$0xff]
    %v6814 = vld [vmem:[%s10 + $0x7a0] sm:$0xff]
    %v6815 = vld [vmem:[%s10 + $0x7a8] sm:$0xff]
    %v6816 = vld [vmem:[%s10 + $0x7b0] sm:$0xff]
    %v6817 = vld [vmem:[%s10 + $0x7b8] sm:$0xff]
    %v6818 = vld [vmem:[%s10 + $0x7c0] sm:$0xff]
    %v6819 = vld [vmem:[%s10 + $0x7c8] sm:$0xff]
    %v6820 = vld [vmem:[%s10 + $0x7d0] sm:$0xff]
    %v6821 = vld [vmem:[%s10 + $0x7d8] sm:$0xff]
    %v6822 = vld [vmem:[%s10 + $0x7e0] sm:$0xff]
    %v6823 = vld [vmem:[%s10 + $0x7e8] sm:$0xff]
    %v6824 = vld [vmem:[%s10 + $0x7f0] sm:$0xff]
    %v6825 = vld [vmem:[%s10 + $0x7f8] sm:$0xff]
    %v6826 = vld [vmem:[%s10 + $0x800] sm:$0xff]
    %v6827 = vld [vmem:[%s10 + $0x808] sm:$0xff]
    %v6828 = vld [vmem:[%s10 + $0x810] sm:$0xff]
    %v6829 = vld [vmem:[%s10 + $0x818] sm:$0xff]
    %v6830 = vld [vmem:[%s10 + $0x820] sm:$0xff]
    %v6831 = vld [vmem:[%s10 + $0x828] sm:$0xff]
    %v6832 = vld [vmem:[%s10 + $0x830] sm:$0xff]
    %v6833 = vld [vmem:[%s10 + $0x838] sm:$0xff]
    %v6834 = vld [vmem:[%s10 + $0x840] sm:$0xff]
    %v6835 = vld [vmem:[%s10 + $0x848] sm:$0xff]
    %v6836 = vld [vmem:[%s10 + $0x850] sm:$0xff]
    %v6837 = vld [vmem:[%s10 + $0x858] sm:$0xff]
    %v6838 = vld [vmem:[%s10 + $0x860] sm:$0xff]
    %v6839 = vld [vmem:[%s10 + $0x868] sm:$0xff]
    %v6840 = vld [vmem:[%s10 + $0x870] sm:$0xff]
    %v6841 = vld [vmem:[%s10 + $0x878] sm:$0xff]
    %v6842 = vld [vmem:[%s10 + $0x880] sm:$0xff]
    %v6843 = vld [vmem:[%s10 + $0x888] sm:$0xff]
    %v6844 = vld [vmem:[%s10 + $0x890] sm:$0xff]
    %v6845 = vld [vmem:[%s10 + $0x898] sm:$0xff]
    %v6846 = vld [vmem:[%s10 + $0x8a0] sm:$0xff]
    %v6847 = vld [vmem:[%s10 + $0x8a8] sm:$0xff]
    %v6848 = vld [vmem:[%s10 + $0x8b0] sm:$0xff]
    %v6849 = vld [vmem:[%s10 + $0x8b8] sm:$0xff]
    %v6850 = vld [vmem:[%s10 + $0x8c0] sm:$0xff]
    %v6851 = vld [vmem:[%s10 + $0x8c8] sm:$0xff]
    %v6852 = vld [vmem:[%s10 + $0x8d0] sm:$0xff]
    %v6853 = vld [vmem:[%s10 + $0x8d8] sm:$0xff]
    %v6854 = vld [vmem:[%s10 + $0x8e0] sm:$0xff]
    %v6855 = vld [vmem:[%s10 + $0x8e8] sm:$0xff]
    %v6856 = vld [vmem:[%s10 + $0x8f0] sm:$0xff]
    %v6857 = vld [vmem:[%s10 + $0x8f8] sm:$0xff]
    %v6858 = vld [vmem:[%s10 + $0x900] sm:$0xff]
    %v6859 = vld [vmem:[%s10 + $0x908] sm:$0xff]
    %v6860 = vld [vmem:[%s10 + $0x910] sm:$0xff]
    %v6861 = vld [vmem:[%s10 + $0x918] sm:$0xff]
    %v6862 = vld [vmem:[%s10 + $0x920] sm:$0xff]
    %v6863 = vld [vmem:[%s10 + $0x928] sm:$0xff]
    %v6864 = vld [vmem:[%s10 + $0x930] sm:$0xff]
    %v6865 = vld [vmem:[%s10 + $0x938] sm:$0xff]
    %v6866 = vld [vmem:[%s10 + $0x940] sm:$0xff]
    %v6867 = vld [vmem:[%s10 + $0x948] sm:$0xff]
    %v6868 = vld [vmem:[%s10 + $0x950] sm:$0xff]
    %v6869 = vld [vmem:[%s10 + $0x958] sm:$0xff]
    %v6870 = vld [vmem:[%s10 + $0x960] sm:$0xff]
    %v6871 = vld [vmem:[%s10 + $0x968] sm:$0xff]
    %v6872 = vld [vmem:[%s10 + $0x970] sm:$0xff]
    %v6873 = vld [vmem:[%s10 + $0x978] sm:$0xff]
    %v6874 = vld [vmem:[%s10 + $0x980] sm:$0xff]
    %v6875 = vld [vmem:[%s10 + $0x988] sm:$0xff]
    %v6876 = vld [vmem:[%s10 + $0x990] sm:$0xff]
    %v6877 = vld [vmem:[%s10 + $0x998] sm:$0xff]
    %v6878 = vld [vmem:[%s10 + $0x9a0] sm:$0xff]
    %v6879 = vld [vmem:[%s10 + $0x9a8] sm:$0xff]
    %v6880 = vld [vmem:[%s10 + $0x9b0] sm:$0xff]
    %v6881 = vld [vmem:[%s10 + $0x9b8] sm:$0xff]
    %v6882 = vld [vmem:[%s10 + $0x9c0] sm:$0xff]
    %v6883 = vld [vmem:[%s10 + $0x9c8] sm:$0xff]
    %v6884 = vld [vmem:[%s10 + $0x9d0] sm:$0xff]
    %v6885 = vld [vmem:[%s10 + $0x9d8] sm:$0xff]
    %v6886 = vld [vmem:[%s10 + $0x9e0] sm:$0xff]
    %v6887 = vld [vmem:[%s10 + $0x9e8] sm:$0xff]
    %v6888 = vld [vmem:[%s10 + $0x9f0] sm:$0xff]
    %v6889 = vld [vmem:[%s10 + $0x9f8] sm:$0xff]
    %v6890 = vld [vmem:[%s10 + $0xa00] sm:$0xff]
    %v6891 = vld [vmem:[%s10 + $0xa08] sm:$0xff]
    %v6892 = vld [vmem:[%s10 + $0xa10] sm:$0xff]
    %v6893 = vld [vmem:[%s10 + $0xa18] sm:$0xff]
    %v6894 = vld [vmem:[%s10 + $0xa20] sm:$0xff]
    %v6895 = vld [vmem:[%s10 + $0xa28] sm:$0xff]
    %v6896 = vld [vmem:[%s10 + $0xa30] sm:$0xff]
    %v6897 = vld [vmem:[%s10 + $0xa38] sm:$0xff]
    %v6898 = vld [vmem:[%s10 + $0xa40] sm:$0xff]
    %v6899 = vld [vmem:[%s10 + $0xa48] sm:$0xff]
    %v6900 = vld [vmem:[%s10 + $0xa50] sm:$0xff]
    %v6901 = vld [vmem:[%s10 + $0xa58] sm:$0xff]
    %v6902 = vld [vmem:[%s10 + $0xa60] sm:$0xff]
    %v6903 = vld [vmem:[%s10 + $0xa68] sm:$0xff]
    %v6904 = vld [vmem:[%s10 + $0xa70] sm:$0xff]
    %v6905 = vld [vmem:[%s10 + $0xa78] sm:$0xff]
    %v6906 = vld [vmem:[%s10 + $0xa80] sm:$0xff]
    %v6907 = vld [vmem:[%s10 + $0xa88] sm:$0xff]
    %v6908 = vld [vmem:[%s10 + $0xa90] sm:$0xff]
    %v6909 = vld [vmem:[%s10 + $0xa98] sm:$0xff]
    %v6910 = vld [vmem:[%s10 + $0xaa0] sm:$0xff]
    %v6911 = vld [vmem:[%s10 + $0xaa8] sm:$0xff]
    %v6912 = vld [vmem:[%s10 + $0xab0] sm:$0xff]
    %v6913 = vld [vmem:[%s10 + $0xab8] sm:$0xff]
    %v6914 = vld [vmem:[%s10 + $0xac0] sm:$0xff]
    %v6915 = vld [vmem:[%s10 + $0xac8] sm:$0xff]
    %v6916 = vld [vmem:[%s10 + $0xad0] sm:$0xff]
    %v6917 = vld [vmem:[%s10 + $0xad8] sm:$0xff]
    %v6918 = vld [vmem:[%s10 + $0xae0] sm:$0xff]
    %v6919 = vld [vmem:[%s10 + $0xae8] sm:$0xff]
    %v6920 = vld [vmem:[%s10 + $0xaf0] sm:$0xff]
    %v6921 = vld [vmem:[%s10 + $0xaf8] sm:$0xff]
    %v6922 = vld [vmem:[%s10 + $0xb00] sm:$0xff]
    %v6923 = vld [vmem:[%s10 + $0xb08] sm:$0xff]
    %v6924 = vld [vmem:[%s10 + $0xb10] sm:$0xff]
    %v6925 = vld [vmem:[%s10 + $0xb18] sm:$0xff]
    %v6926 = vld [vmem:[%s10 + $0xb20] sm:$0xff]
    %v6927 = vld [vmem:[%s10 + $0xb28] sm:$0xff]
    %v6928 = vld [vmem:[%s10 + $0xb30] sm:$0xff]
    %v6929 = vld [vmem:[%s10 + $0xb38] sm:$0xff]
    %v6930 = vld [vmem:[%s10 + $0xb40] sm:$0xff]
    %v6931 = vld [vmem:[%s10 + $0xb48] sm:$0xff]
    %v6932 = vld [vmem:[%s10 + $0xb50] sm:$0xff]
    %v6933 = vld [vmem:[%s10 + $0xb58] sm:$0xff]
    %v6934 = vld [vmem:[%s10 + $0xb60] sm:$0xff]
    %v6935 = vld [vmem:[%s10 + $0xb68] sm:$0xff]
    %v6936 = vld [vmem:[%s10 + $0xb70] sm:$0xff]
    %v6937 = vld [vmem:[%s10 + $0xb78] sm:$0xff]
    %v6938 = vld [vmem:[%s10 + $0xb80] sm:$0xff]
    %v6939 = vld [vmem:[%s10 + $0xb88] sm:$0xff]
    %v6940 = vld [vmem:[%s10 + $0xb90] sm:$0xff]
    %v6941 = vld [vmem:[%s10 + $0xb98] sm:$0xff]
    %v6942 = vld [vmem:[%s10 + $0xba0] sm:$0xff]
    %v6943 = vld [vmem:[%s10 + $0xba8] sm:$0xff]
    %v6944 = vld [vmem:[%s10 + $0xbb0] sm:$0xff]
    %v6945 = vld [vmem:[%s10 + $0xbb8] sm:$0xff]
    %v6946 = vld [vmem:[%s10 + $0xbc0] sm:$0xff]
    %v6947 = vld [vmem:[%s10 + $0xbc8] sm:$0xff]
    %v6948 = vld [vmem:[%s10 + $0xbd0] sm:$0xff]
    %v6949 = vld [vmem:[%s10 + $0xbd8] sm:$0xff]
    %v6950 = vld [vmem:[%s10 + $0xbe0] sm:$0xff]
    %v6951 = vld [vmem:[%s10 + $0xbe8] sm:$0xff]
    %v6952 = vld [vmem:[%s10 + $0xbf0] sm:$0xff]
    %v6953 = vld [vmem:[%s10 + $0xbf8] sm:$0xff]
    %v6954 = vld [vmem:[%s10 + $0xc00] sm:$0xff]
    %v6955 = vld [vmem:[%s10 + $0xc08] sm:$0xff]
    %v6956 = vld [vmem:[%s10 + $0xc10] sm:$0xff]
    %v6957 = vld [vmem:[%s10 + $0xc18] sm:$0xff]
    %v6958 = vld [vmem:[%s10 + $0xc20] sm:$0xff]
    %v6959 = vld [vmem:[%s10 + $0xc28] sm:$0xff]
    %v6960 = vld [vmem:[%s10 + $0xc30] sm:$0xff]
    %v6961 = vld [vmem:[%s10 + $0xc38] sm:$0xff]
    %v6962 = vld [vmem:[%s10 + $0xc40] sm:$0xff]
    %v6963 = vld [vmem:[%s10 + $0xc48] sm:$0xff]
    %v6964 = vld [vmem:[%s10 + $0xc50] sm:$0xff]
    %v6965 = vld [vmem:[%s10 + $0xc58] sm:$0xff]
    %v6966 = vld [vmem:[%s10 + $0xc60] sm:$0xff]
    %v6967 = vld [vmem:[%s10 + $0xc68] sm:$0xff]
    %v6968 = vld [vmem:[%s10 + $0xc70] sm:$0xff]
    %v6969 = vld [vmem:[%s10 + $0xc78] sm:$0xff]
    %v6970 = vld [vmem:[%s10 + $0xc80] sm:$0xff]
    %v6971 = vld [vmem:[%s10 + $0xc88] sm:$0xff]
    %v6972 = vld [vmem:[%s10 + $0xc90] sm:$0xff]
    %v6973 = vld [vmem:[%s10 + $0xc98] sm:$0xff]
    %v6974 = vld [vmem:[%s10 + $0xca0] sm:$0xff]
    %v6975 = vld [vmem:[%s10 + $0xca8] sm:$0xff]
    %v6976 = vld [vmem:[%s10 + $0xcb0] sm:$0xff]
    %v6977 = vld [vmem:[%s10 + $0xcb8] sm:$0xff]
    %v6978 = vld [vmem:[%s10 + $0xcc0] sm:$0xff]
    %v6979 = vld [vmem:[%s10 + $0xcc8] sm:$0xff]
    %v6980 = vld [vmem:[%s10 + $0xcd0] sm:$0xff]
    %v6981 = vld [vmem:[%s10 + $0xcd8] sm:$0xff]
    %v6982 = vld [vmem:[%s10 + $0xce0] sm:$0xff]
    %v6983 = vld [vmem:[%s10 + $0xce8] sm:$0xff]
    %v6984 = vld [vmem:[%s10 + $0xcf0] sm:$0xff]
    %v6985 = vld [vmem:[%s10 + $0xcf8] sm:$0xff]
    %v6986 = vld [vmem:[%s10 + $0xd00] sm:$0xff]
    %v6987 = vld [vmem:[%s10 + $0xd08] sm:$0xff]
    %v6988 = vld [vmem:[%s10 + $0xd10] sm:$0xff]
    %v6989 = vld [vmem:[%s10 + $0xd18] sm:$0xff]
    %v6990 = vld [vmem:[%s10 + $0xd20] sm:$0xff]
    %v6991 = vld [vmem:[%s10 + $0xd28] sm:$0xff]
    %v6992 = vld [vmem:[%s10 + $0xd30] sm:$0xff]
    %v6993 = vld [vmem:[%s10 + $0xd38] sm:$0xff]
    %v6994 = vld [vmem:[%s10 + $0xd40] sm:$0xff]
    %v6995 = vld [vmem:[%s10 + $0xd48] sm:$0xff]
    %v6996 = vld [vmem:[%s10 + $0xd50] sm:$0xff]
    %v6997 = vld [vmem:[%s10 + $0xd58] sm:$0xff]
    %v6998 = vld [vmem:[%s10 + $0xd60] sm:$0xff]
    %v6999 = vld [vmem:[%s10 + $0xd68] sm:$0xff]
    %v7000 = vld [vmem:[%s10 + $0xd70] sm:$0xff]
    %v7001 = vld [vmem:[%s10 + $0xd78] sm:$0xff]
    %v7002 = vld [vmem:[%s10 + $0xd80] sm:$0xff]
    %v7003 = vld [vmem:[%s10 + $0xd88] sm:$0xff]
    %v7004 = vld [vmem:[%s10 + $0xd90] sm:$0xff]
    %v7005 = vld [vmem:[%s10 + $0xd98] sm:$0xff]
    %v7006 = vld [vmem:[%s10 + $0xda0] sm:$0xff]
    %v7007 = vld [vmem:[%s10 + $0xda8] sm:$0xff]
    %v7008 = vld [vmem:[%s10 + $0xdb0] sm:$0xff]
    %v7009 = vld [vmem:[%s10 + $0xdb8] sm:$0xff]
    %v7010 = vld [vmem:[%s10 + $0xdc0] sm:$0xff]
    %v7011 = vld [vmem:[%s10 + $0xdc8] sm:$0xff]
    %v7012 = vld [vmem:[%s10 + $0xdd0] sm:$0xff]
    %v7013 = vld [vmem:[%s10 + $0xdd8] sm:$0xff]
    %v7014 = vld [vmem:[%s10 + $0xde0] sm:$0xff]
    %v7015 = vld [vmem:[%s10 + $0xde8] sm:$0xff]
    %v7016 = vld [vmem:[%s10 + $0xdf0] sm:$0xff]
    %v7017 = vld [vmem:[%s10 + $0xdf8] sm:$0xff]
    %v7018 = vld [vmem:[%s10 + $0xe00] sm:$0xff]
    %v7019 = vld [vmem:[%s10 + $0xe08] sm:$0xff]
    %v7020 = vld [vmem:[%s10 + $0xe10] sm:$0xff]
    %v7021 = vld [vmem:[%s10 + $0xe18] sm:$0xff]
    %v7022 = vld [vmem:[%s10 + $0xe20] sm:$0xff]
    %v7023 = vld [vmem:[%s10 + $0xe28] sm:$0xff]
    %v7024 = vld [vmem:[%s10 + $0xe30] sm:$0xff]
    %v7025 = vld [vmem:[%s10 + $0xe38] sm:$0xff]
    %v7026 = vld [vmem:[%s10 + $0xe40] sm:$0xff]
    %v7027 = vld [vmem:[%s10 + $0xe48] sm:$0xff]
    %v7028 = vld [vmem:[%s10 + $0xe50] sm:$0xff]
    %v7029 = vld [vmem:[%s10 + $0xe58] sm:$0xff]
    %v7030 = vld [vmem:[%s10 + $0xe60] sm:$0xff]
    %v7031 = vld [vmem:[%s10 + $0xe68] sm:$0xff]
    %v7032 = vld [vmem:[%s10 + $0xe70] sm:$0xff]
    %v7033 = vld [vmem:[%s10 + $0xe78] sm:$0xff]
    %v7034 = vld [vmem:[%s10 + $0xe80] sm:$0xff]
    %v7035 = vld [vmem:[%s10 + $0xe88] sm:$0xff]
    %v7036 = vld [vmem:[%s10 + $0xe90] sm:$0xff]
    %v7037 = vld [vmem:[%s10 + $0xe98] sm:$0xff]
    %v7038 = vld [vmem:[%s10 + $0xea0] sm:$0xff]
    %v7039 = vld [vmem:[%s10 + $0xea8] sm:$0xff]
    %v7040 = vld [vmem:[%s10 + $0xeb0] sm:$0xff]
    %v7041 = vld [vmem:[%s10 + $0xeb8] sm:$0xff]
    %v7042 = vld [vmem:[%s10 + $0xec0] sm:$0xff]
    %v7043 = vld [vmem:[%s10 + $0xec8] sm:$0xff]
    %v7044 = vld [vmem:[%s10 + $0xed0] sm:$0xff]
    %v7045 = vld [vmem:[%s10 + $0xed8] sm:$0xff]
    %v7046 = vld [vmem:[%s10 + $0xee0] sm:$0xff]
    %v7047 = vld [vmem:[%s10 + $0xee8] sm:$0xff]
    %v7048 = vld [vmem:[%s10 + $0xef0] sm:$0xff]
    %v7049 = vld [vmem:[%s10 + $0xef8] sm:$0xff]
    %v7050 = vld [vmem:[%s10 + $0xf00] sm:$0xff]
    %v7051 = vld [vmem:[%s10 + $0xf08] sm:$0xff]
    %v7052 = vld [vmem:[%s10 + $0xf10] sm:$0xff]
    %v7053 = vld [vmem:[%s10 + $0xf18] sm:$0xff]
    %v7054 = vld [vmem:[%s10 + $0xf20] sm:$0xff]
    %v7055 = vld [vmem:[%s10 + $0xf28] sm:$0xff]
    %v7056 = vld [vmem:[%s10 + $0xf30] sm:$0xff]
    %v7057 = vld [vmem:[%s10 + $0xf38] sm:$0xff]
    %v7058 = vld [vmem:[%s10 + $0xf40] sm:$0xff]
    %v7059 = vld [vmem:[%s10 + $0xf48] sm:$0xff]
    %v7060 = vld [vmem:[%s10 + $0xf50] sm:$0xff]
    %v7061 = vld [vmem:[%s10 + $0xf58] sm:$0xff]
    %v7062 = vld [vmem:[%s10 + $0xf60] sm:$0xff]
    %v7063 = vld [vmem:[%s10 + $0xf68] sm:$0xff]
    %v7064 = vld [vmem:[%s10 + $0xf70] sm:$0xff]
    %v7065 = vld [vmem:[%s10 + $0xf78] sm:$0xff]
    %v7066 = vld [vmem:[%s10 + $0xf80] sm:$0xff]
    %v7067 = vld [vmem:[%s10 + $0xf88] sm:$0xff]
    %v7068 = vld [vmem:[%s10 + $0xf90] sm:$0xff]
    %v7069 = vld [vmem:[%s10 + $0xf98] sm:$0xff]
    %v7070 = vld [vmem:[%s10 + $0xfa0] sm:$0xff]
    %v7071 = vld [vmem:[%s10 + $0xfa8] sm:$0xff]
    %v7072 = vld [vmem:[%s10 + $0xfb0] sm:$0xff]
    %v7073 = vld [vmem:[%s10 + $0xfb8] sm:$0xff]
    %v7074 = vld [vmem:[%s10 + $0xfc0] sm:$0xff]
    %v7075 = vld [vmem:[%s10 + $0xfc8] sm:$0xff]
    %v7076 = vld [vmem:[%s10 + $0xfd0] sm:$0xff]
    %v7077 = vld [vmem:[%s10 + $0xfd8] sm:$0xff]
    %v7078 = vld [vmem:[%s10 + $0xfe0] sm:$0xff]
    %v7079 = vld [vmem:[%s10 + $0xfe8] sm:$0xff]
    %v7080 = vld [vmem:[%s10 + $0xff0] sm:$0xff]
    %v7081 = vld [vmem:[%s10 + $0xff8] sm:$0xff]
    %v7082 = vld [vmem:[%s10 + $0x1000] sm:$0xff]
    %v7083 = vld [vmem:[%s10 + $0x1008] sm:$0xff]
    %v7084 = vld [vmem:[%s10 + $0x1010] sm:$0xff]
    %v7085 = vld [vmem:[%s10 + $0x1018] sm:$0xff]
    %v7086 = vld [vmem:[%s10 + $0x1020] sm:$0xff]
    %v7087 = vld [vmem:[%s10 + $0x1028] sm:$0xff]
    %v7088 = vld [vmem:[%s10 + $0x1030] sm:$0xff]
    %v7089 = vld [vmem:[%s10 + $0x1038] sm:$0xff]
    %v7090 = vld [vmem:[%s10 + $0x1040] sm:$0xff]
    %v7091 = vld [vmem:[%s10 + $0x1048] sm:$0xff]
    %v7092 = vld [vmem:[%s10 + $0x1050] sm:$0xff]
    %v7093 = vld [vmem:[%s10 + $0x1058] sm:$0xff]
    %v7094 = vld [vmem:[%s10 + $0x1060] sm:$0xff]
    %v7095 = vld [vmem:[%s10 + $0x1068] sm:$0xff]
    %v7096 = vld [vmem:[%s10 + $0x1070] sm:$0xff]
    %v7097 = vld [vmem:[%s10 + $0x1078] sm:$0xff]
    %v7098 = vld [vmem:[%s10 + $0x1080] sm:$0xff]
    %v7099 = vld [vmem:[%s10 + $0x1088] sm:$0xff]
    %v7100 = vld [vmem:[%s10 + $0x1090] sm:$0xff]
    %v7101 = vld [vmem:[%s10 + $0x1098] sm:$0xff]
    %v7102 = vld [vmem:[%s10 + $0x10a0] sm:$0xff]
    %v7103 = vld [vmem:[%s10 + $0x10a8] sm:$0xff]
    %v7104 = vld [vmem:[%s10 + $0x10b0] sm:$0xff]
    %v7105 = vld [vmem:[%s10 + $0x10b8] sm:$0xff]
    %v7106 = vld [vmem:[%s10 + $0x10c0] sm:$0xff]
    %v7107 = vld [vmem:[%s10 + $0x10c8] sm:$0xff]
    %v7108 = vld [vmem:[%s10 + $0x10d0] sm:$0xff]
    %v7109 = vld [vmem:[%s10 + $0x10d8] sm:$0xff]
    %v7110 = vld [vmem:[%s10 + $0x10e0] sm:$0xff]
    %v7111 = vld [vmem:[%s10 + $0x10e8] sm:$0xff]
    %v7112 = vld [vmem:[%s10 + $0x10f0] sm:$0xff]
    %v7113 = vld [vmem:[%s10 + $0x10f8] sm:$0xff]
    %v7114 = vld [vmem:[%s10 + $0x1100] sm:$0xff]
    %v7115 = vld [vmem:[%s10 + $0x1108] sm:$0xff]
    %v7116 = vld [vmem:[%s10 + $0x1110] sm:$0xff]
    %v7117 = vld [vmem:[%s10 + $0x1118] sm:$0xff]
    %v7118 = vld [vmem:[%s10 + $0x1120] sm:$0xff]
    %v7119 = vld [vmem:[%s10 + $0x1128] sm:$0xff]
    %v7120 = vld [vmem:[%s10 + $0x1130] sm:$0xff]
    %v7121 = vld [vmem:[%s10 + $0x1138] sm:$0xff]
    %v7122 = vld [vmem:[%s10 + $0x1140] sm:$0xff]
    %v7123 = vld [vmem:[%s10 + $0x1148] sm:$0xff]
    %v7124 = vld [vmem:[%s10 + $0x1150] sm:$0xff]
    %v7125 = vld [vmem:[%s10 + $0x1158] sm:$0xff]
    %v7126 = vld [vmem:[%s10 + $0x1160] sm:$0xff]
    %v7127 = vld [vmem:[%s10 + $0x1168] sm:$0xff]
    %v7128 = vld [vmem:[%s10 + $0x1170] sm:$0xff]
    %v7129 = vld [vmem:[%s10 + $0x1178] sm:$0xff]
    %v7130 = vld [vmem:[%s10 + $0x1180] sm:$0xff]
    %v7131 = vld [vmem:[%s10 + $0x1188] sm:$0xff]
    %v7132 = vld [vmem:[%s10 + $0x1190] sm:$0xff]
    %v7133 = vld [vmem:[%s10 + $0x1198] sm:$0xff]
    %v7134 = vld [vmem:[%s10 + $0x11a0] sm:$0xff]
    %v7135 = vld [vmem:[%s10 + $0x11a8] sm:$0xff]
    %v7136 = vld [vmem:[%s10 + $0x11b0] sm:$0xff]
    %v7137 = vld [vmem:[%s10 + $0x11b8] sm:$0xff]
    %v7138 = vld [vmem:[%s10 + $0x11c0] sm:$0xff]
    %v7139 = vld [vmem:[%s10 + $0x11c8] sm:$0xff]
    %v7140 = vld [vmem:[%s10 + $0x11d0] sm:$0xff]
    %v7141 = vld [vmem:[%s10 + $0x11d8] sm:$0xff]
    %v7142 = vld [vmem:[%s10 + $0x11e0] sm:$0xff]
    %v7143 = vld [vmem:[%s10 + $0x11e8] sm:$0xff]
    %v7144 = vld [vmem:[%s10 + $0x11f0] sm:$0xff]
    %v7145 = vld [vmem:[%s10 + $0x11f8] sm:$0xff]
    %v7722 = vunpack.c.l.b16 %v6570
    %v7723 = vunpack.c.h.b16 %v6570
    %v7724 = vunpack.c.l.b16 %v6571
    %v7725 = vunpack.c.h.b16 %v6571
    %v7726 = vunpack.c.l.b16 %v6572
    %v7727 = vunpack.c.h.b16 %v6572
    %v7728 = vunpack.c.l.b16 %v6573
    %v7729 = vunpack.c.h.b16 %v6573
    %v7730 = vunpack.c.l.b16 %v6574
    %v7731 = vunpack.c.h.b16 %v6574
    %v7732 = vunpack.c.l.b16 %v6575
    %v7733 = vunpack.c.h.b16 %v6575
    %v7734 = vunpack.c.l.b16 %v6576
    %v7735 = vunpack.c.h.b16 %v6576
    %v7736 = vunpack.c.l.b16 %v6577
    %v7737 = vunpack.c.h.b16 %v6577
    %v7738 = vunpack.c.l.b16 %v6578
    %v7739 = vunpack.c.h.b16 %v6578
    %v7740 = vunpack.c.l.b16 %v6579
    %v7741 = vunpack.c.h.b16 %v6579
    %v7742 = vunpack.c.l.b16 %v6580
    %v7743 = vunpack.c.h.b16 %v6580
    %v7744 = vunpack.c.l.b16 %v6581
    %v7745 = vunpack.c.h.b16 %v6581
    %v7746 = vunpack.c.l.b16 %v6582
    %v7747 = vunpack.c.h.b16 %v6582
    %v7748 = vunpack.c.l.b16 %v6583
    %v7749 = vunpack.c.h.b16 %v6583
    %v7750 = vunpack.c.l.b16 %v6584
    %v7751 = vunpack.c.h.b16 %v6584
    %v7752 = vunpack.c.l.b16 %v6585
    %v7753 = vunpack.c.h.b16 %v6585
    %v7754 = vunpack.c.l.b16 %v6586
    %v7755 = vunpack.c.h.b16 %v6586
    %v7756 = vunpack.c.l.b16 %v6587
    %v7757 = vunpack.c.h.b16 %v6587
    %v7758 = vunpack.c.l.b16 %v6588
    %v7759 = vunpack.c.h.b16 %v6588
    %v7760 = vunpack.c.l.b16 %v6589
    %v7761 = vunpack.c.h.b16 %v6589
    %v7762 = vunpack.c.l.b16 %v6590
    %v7763 = vunpack.c.h.b16 %v6590
    %v7764 = vunpack.c.l.b16 %v6591
    %v7765 = vunpack.c.h.b16 %v6591
    %v7766 = vunpack.c.l.b16 %v6592
    %v7767 = vunpack.c.h.b16 %v6592
    %v7768 = vunpack.c.l.b16 %v6593
    %v7769 = vunpack.c.h.b16 %v6593
    %v7770 = vunpack.c.l.b16 %v6594
    %v7771 = vunpack.c.h.b16 %v6594
    %v7772 = vunpack.c.l.b16 %v6595
    %v7773 = vunpack.c.h.b16 %v6595
    %v7774 = vunpack.c.l.b16 %v6596
    %v7775 = vunpack.c.h.b16 %v6596
    %v7776 = vunpack.c.l.b16 %v6597
    %v7777 = vunpack.c.h.b16 %v6597
    %v7778 = vunpack.c.l.b16 %v6598
    %v7779 = vunpack.c.h.b16 %v6598
    %v7780 = vunpack.c.l.b16 %v6599
    %v7781 = vunpack.c.h.b16 %v6599
    %v7782 = vunpack.c.l.b16 %v6600
    %v7783 = vunpack.c.h.b16 %v6600
    %v7784 = vunpack.c.l.b16 %v6601
    %v7785 = vunpack.c.h.b16 %v6601
    %v7786 = vunpack.c.l.b16 %v6602
    %v7787 = vunpack.c.h.b16 %v6602
    %v7788 = vunpack.c.l.b16 %v6603
    %v7789 = vunpack.c.h.b16 %v6603
    %v7790 = vunpack.c.l.b16 %v6604
    %v7791 = vunpack.c.h.b16 %v6604
    %v7792 = vunpack.c.l.b16 %v6605
    %v7793 = vunpack.c.h.b16 %v6605
    %v7794 = vunpack.c.l.b16 %v6606
    %v7795 = vunpack.c.h.b16 %v6606
    %v7796 = vunpack.c.l.b16 %v6607
    %v7797 = vunpack.c.h.b16 %v6607
    %v7798 = vunpack.c.l.b16 %v6608
    %v7799 = vunpack.c.h.b16 %v6608
    %v7800 = vunpack.c.l.b16 %v6609
    %v7801 = vunpack.c.h.b16 %v6609
    %v7802 = vunpack.c.l.b16 %v6610
    %v7803 = vunpack.c.h.b16 %v6610
    %v7804 = vunpack.c.l.b16 %v6611
    %v7805 = vunpack.c.h.b16 %v6611
    %v7806 = vunpack.c.l.b16 %v6612
    %v7807 = vunpack.c.h.b16 %v6612
    %v7808 = vunpack.c.l.b16 %v6613
    %v7809 = vunpack.c.h.b16 %v6613
    %v7810 = vunpack.c.l.b16 %v6614
    %v7811 = vunpack.c.h.b16 %v6614
    %v7812 = vunpack.c.l.b16 %v6615
    %v7813 = vunpack.c.h.b16 %v6615
    %v7814 = vunpack.c.l.b16 %v6616
    %v7815 = vunpack.c.h.b16 %v6616
    %v7816 = vunpack.c.l.b16 %v6617
    %v7817 = vunpack.c.h.b16 %v6617
    %v7818 = vunpack.c.l.b16 %v6618
    %v7819 = vunpack.c.h.b16 %v6618
    %v7820 = vunpack.c.l.b16 %v6619
    %v7821 = vunpack.c.h.b16 %v6619
    %v7822 = vunpack.c.l.b16 %v6620
    %v7823 = vunpack.c.h.b16 %v6620
    %v7824 = vunpack.c.l.b16 %v6621
    %v7825 = vunpack.c.h.b16 %v6621
    %v7826 = vunpack.c.l.b16 %v6622
    %v7827 = vunpack.c.h.b16 %v6622
    %v7828 = vunpack.c.l.b16 %v6623
    %v7829 = vunpack.c.h.b16 %v6623
    %v7830 = vunpack.c.l.b16 %v6624
    %v7831 = vunpack.c.h.b16 %v6624
    %v7832 = vunpack.c.l.b16 %v6625
    %v7833 = vunpack.c.h.b16 %v6625
    %v7834 = vunpack.c.l.b16 %v6626
    %v7835 = vunpack.c.h.b16 %v6626
    %v7836 = vunpack.c.l.b16 %v6627
    %v7837 = vunpack.c.h.b16 %v6627
    %v7838 = vunpack.c.l.b16 %v6628
    %v7839 = vunpack.c.h.b16 %v6628
    %v7840 = vunpack.c.l.b16 %v6629
    %v7841 = vunpack.c.h.b16 %v6629
    %v7842 = vunpack.c.l.b16 %v6630
    %v7843 = vunpack.c.h.b16 %v6630
    %v7844 = vunpack.c.l.b16 %v6631
    %v7845 = vunpack.c.h.b16 %v6631
    %v7846 = vunpack.c.l.b16 %v6632
    %v7847 = vunpack.c.h.b16 %v6632
    %v7848 = vunpack.c.l.b16 %v6633
    %v7849 = vunpack.c.h.b16 %v6633
    %v7850 = vunpack.c.l.b16 %v6634
    %v7851 = vunpack.c.h.b16 %v6634
    %v7852 = vunpack.c.l.b16 %v6635
    %v7853 = vunpack.c.h.b16 %v6635
    %v7854 = vunpack.c.l.b16 %v6636
    %v7855 = vunpack.c.h.b16 %v6636
    %v7856 = vunpack.c.l.b16 %v6637
    %v7857 = vunpack.c.h.b16 %v6637
    %v7858 = vunpack.c.l.b16 %v6638
    %v7859 = vunpack.c.h.b16 %v6638
    %v7860 = vunpack.c.l.b16 %v6639
    %v7861 = vunpack.c.h.b16 %v6639
    %v7862 = vunpack.c.l.b16 %v6640
    %v7863 = vunpack.c.h.b16 %v6640
    %v7864 = vunpack.c.l.b16 %v6641
    %v7865 = vunpack.c.h.b16 %v6641
    %v7866 = vunpack.c.l.b16 %v6642
    %v7867 = vunpack.c.h.b16 %v6642
    %v7868 = vunpack.c.l.b16 %v6643
    %v7869 = vunpack.c.h.b16 %v6643
    %v7870 = vunpack.c.l.b16 %v6644
    %v7871 = vunpack.c.h.b16 %v6644
    %v7872 = vunpack.c.l.b16 %v6645
    %v7873 = vunpack.c.h.b16 %v6645
    %v7874 = vunpack.c.l.b16 %v6646
    %v7875 = vunpack.c.h.b16 %v6646
    %v7876 = vunpack.c.l.b16 %v6647
    %v7877 = vunpack.c.h.b16 %v6647
    %v7878 = vunpack.c.l.b16 %v6648
    %v7879 = vunpack.c.h.b16 %v6648
    %v7880 = vunpack.c.l.b16 %v6649
    %v7881 = vunpack.c.h.b16 %v6649
    %v7882 = vunpack.c.l.b16 %v6650
    %v7883 = vunpack.c.h.b16 %v6650
    %v7884 = vunpack.c.l.b16 %v6651
    %v7885 = vunpack.c.h.b16 %v6651
    %v7886 = vunpack.c.l.b16 %v6652
    %v7887 = vunpack.c.h.b16 %v6652
    %v7888 = vunpack.c.l.b16 %v6653
    %v7889 = vunpack.c.h.b16 %v6653
    %v7890 = vunpack.c.l.b16 %v6654
    %v7891 = vunpack.c.h.b16 %v6654
    %v7892 = vunpack.c.l.b16 %v6655
    %v7893 = vunpack.c.h.b16 %v6655
    %v7894 = vunpack.c.l.b16 %v6656
    %v7895 = vunpack.c.h.b16 %v6656
    %v7896 = vunpack.c.l.b16 %v6657
    %v7897 = vunpack.c.h.b16 %v6657
    %v7898 = vunpack.c.l.b16 %v6658
    %v7899 = vunpack.c.h.b16 %v6658
    %v7900 = vunpack.c.l.b16 %v6659
    %v7901 = vunpack.c.h.b16 %v6659
    %v7902 = vunpack.c.l.b16 %v6660
    %v7903 = vunpack.c.h.b16 %v6660
    %v7904 = vunpack.c.l.b16 %v6661
    %v7905 = vunpack.c.h.b16 %v6661
    %v7906 = vunpack.c.l.b16 %v6662
    %v7907 = vunpack.c.h.b16 %v6662
    %v7908 = vunpack.c.l.b16 %v6663
    %v7909 = vunpack.c.h.b16 %v6663
    %v7910 = vunpack.c.l.b16 %v6664
    %v7911 = vunpack.c.h.b16 %v6664
    %v7912 = vunpack.c.l.b16 %v6665
    %v7913 = vunpack.c.h.b16 %v6665
    %v7914 = vunpack.c.l.b16 %v6666
    %v7915 = vunpack.c.h.b16 %v6666
    %v7916 = vunpack.c.l.b16 %v6667
    %v7917 = vunpack.c.h.b16 %v6667
    %v7918 = vunpack.c.l.b16 %v6668
    %v7919 = vunpack.c.h.b16 %v6668
    %v7920 = vunpack.c.l.b16 %v6669
    %v7921 = vunpack.c.h.b16 %v6669
    %v7922 = vunpack.c.l.b16 %v6670
    %v7923 = vunpack.c.h.b16 %v6670
    %v7924 = vunpack.c.l.b16 %v6671
    %v7925 = vunpack.c.h.b16 %v6671
    %v7926 = vunpack.c.l.b16 %v6672
    %v7927 = vunpack.c.h.b16 %v6672
    %v7928 = vunpack.c.l.b16 %v6673
    %v7929 = vunpack.c.h.b16 %v6673
    %v7930 = vunpack.c.l.b16 %v6674
    %v7931 = vunpack.c.h.b16 %v6674
    %v7932 = vunpack.c.l.b16 %v6675
    %v7933 = vunpack.c.h.b16 %v6675
    %v7934 = vunpack.c.l.b16 %v6676
    %v7935 = vunpack.c.h.b16 %v6676
    %v7936 = vunpack.c.l.b16 %v6677
    %v7937 = vunpack.c.h.b16 %v6677
    %v7938 = vunpack.c.l.b16 %v6678
    %v7939 = vunpack.c.h.b16 %v6678
    %v7940 = vunpack.c.l.b16 %v6679
    %v7941 = vunpack.c.h.b16 %v6679
    %v7942 = vunpack.c.l.b16 %v6680
    %v7943 = vunpack.c.h.b16 %v6680
    %v7944 = vunpack.c.l.b16 %v6681
    %v7945 = vunpack.c.h.b16 %v6681
    %v7946 = vunpack.c.l.b16 %v6682
    %v7947 = vunpack.c.h.b16 %v6682
    %v7948 = vunpack.c.l.b16 %v6683
    %v7949 = vunpack.c.h.b16 %v6683
    %v7950 = vunpack.c.l.b16 %v6684
    %v7951 = vunpack.c.h.b16 %v6684
    %v7952 = vunpack.c.l.b16 %v6685
    %v7953 = vunpack.c.h.b16 %v6685
    %v7954 = vunpack.c.l.b16 %v6686
    %v7955 = vunpack.c.h.b16 %v6686
    %v7956 = vunpack.c.l.b16 %v6687
    %v7957 = vunpack.c.h.b16 %v6687
    %v7958 = vunpack.c.l.b16 %v6688
    %v7959 = vunpack.c.h.b16 %v6688
    %v7960 = vunpack.c.l.b16 %v6689
    %v7961 = vunpack.c.h.b16 %v6689
    %v7962 = vunpack.c.l.b16 %v6690
    %v7963 = vunpack.c.h.b16 %v6690
    %v7964 = vunpack.c.l.b16 %v6691
    %v7965 = vunpack.c.h.b16 %v6691
    %v7966 = vunpack.c.l.b16 %v6692
    %v7967 = vunpack.c.h.b16 %v6692
    %v7968 = vunpack.c.l.b16 %v6693
    %v7969 = vunpack.c.h.b16 %v6693
    %v7970 = vunpack.c.l.b16 %v6694
    %v7971 = vunpack.c.h.b16 %v6694
    %v7972 = vunpack.c.l.b16 %v6695
    %v7973 = vunpack.c.h.b16 %v6695
    %v7974 = vunpack.c.l.b16 %v6696
    %v7975 = vunpack.c.h.b16 %v6696
    %v7976 = vunpack.c.l.b16 %v6697
    %v7977 = vunpack.c.h.b16 %v6697
    %v7978 = vunpack.c.l.b16 %v6698
    %v7979 = vunpack.c.h.b16 %v6698
    %v7980 = vunpack.c.l.b16 %v6699
    %v7981 = vunpack.c.h.b16 %v6699
    %v7982 = vunpack.c.l.b16 %v6700
    %v7983 = vunpack.c.h.b16 %v6700
    %v7984 = vunpack.c.l.b16 %v6701
    %v7985 = vunpack.c.h.b16 %v6701
    %v7986 = vunpack.c.l.b16 %v6702
    %v7987 = vunpack.c.h.b16 %v6702
    %v7988 = vunpack.c.l.b16 %v6703
    %v7989 = vunpack.c.h.b16 %v6703
    %v7990 = vunpack.c.l.b16 %v6704
    %v7991 = vunpack.c.h.b16 %v6704
    %v7992 = vunpack.c.l.b16 %v6705
    %v7993 = vunpack.c.h.b16 %v6705
    %v7994 = vunpack.c.l.b16 %v6706
    %v7995 = vunpack.c.h.b16 %v6706
    %v7996 = vunpack.c.l.b16 %v6707
    %v7997 = vunpack.c.h.b16 %v6707
    %v7998 = vunpack.c.l.b16 %v6708
    %v7999 = vunpack.c.h.b16 %v6708
    %v8000 = vunpack.c.l.b16 %v6709
    %v8001 = vunpack.c.h.b16 %v6709
    %v8002 = vunpack.c.l.b16 %v6710
    %v8003 = vunpack.c.h.b16 %v6710
    %v8004 = vunpack.c.l.b16 %v6711
    %v8005 = vunpack.c.h.b16 %v6711
    %v8006 = vunpack.c.l.b16 %v6712
    %v8007 = vunpack.c.h.b16 %v6712
    %v8008 = vunpack.c.l.b16 %v6713
    %v8009 = vunpack.c.h.b16 %v6713
    %v8010 = vunpack.c.l.b16 %v6714
    %v8011 = vunpack.c.h.b16 %v6714
    %v8012 = vunpack.c.l.b16 %v6715
    %v8013 = vunpack.c.h.b16 %v6715
    %v8014 = vunpack.c.l.b16 %v6716
    %v8015 = vunpack.c.h.b16 %v6716
    %v8016 = vunpack.c.l.b16 %v6717
    %v8017 = vunpack.c.h.b16 %v6717
    %v8018 = vunpack.c.l.b16 %v6718
    %v8019 = vunpack.c.h.b16 %v6718
    %v8020 = vunpack.c.l.b16 %v6719
    %v8021 = vunpack.c.h.b16 %v6719
    %v8022 = vunpack.c.l.b16 %v6720
    %v8023 = vunpack.c.h.b16 %v6720
    %v8024 = vunpack.c.l.b16 %v6721
    %v8025 = vunpack.c.h.b16 %v6721
    %v8026 = vunpack.c.l.b16 %v6722
    %v8027 = vunpack.c.h.b16 %v6722
    %v8028 = vunpack.c.l.b16 %v6723
    %v8029 = vunpack.c.h.b16 %v6723
    %v8030 = vunpack.c.l.b16 %v6724
    %v8031 = vunpack.c.h.b16 %v6724
    %v8032 = vunpack.c.l.b16 %v6725
    %v8033 = vunpack.c.h.b16 %v6725
    %v8034 = vunpack.c.l.b16 %v6726
    %v8035 = vunpack.c.h.b16 %v6726
    %v8036 = vunpack.c.l.b16 %v6727
    %v8037 = vunpack.c.h.b16 %v6727
    %v8038 = vunpack.c.l.b16 %v6728
    %v8039 = vunpack.c.h.b16 %v6728
    %v8040 = vunpack.c.l.b16 %v6729
    %v8041 = vunpack.c.h.b16 %v6729
    %v8042 = vunpack.c.l.b16 %v6730
    %v8043 = vunpack.c.h.b16 %v6730
    %v8044 = vunpack.c.l.b16 %v6731
    %v8045 = vunpack.c.h.b16 %v6731
    %v8046 = vunpack.c.l.b16 %v6732
    %v8047 = vunpack.c.h.b16 %v6732
    %v8048 = vunpack.c.l.b16 %v6733
    %v8049 = vunpack.c.h.b16 %v6733
    %v8050 = vunpack.c.l.b16 %v6734
    %v8051 = vunpack.c.h.b16 %v6734
    %v8052 = vunpack.c.l.b16 %v6735
    %v8053 = vunpack.c.h.b16 %v6735
    %v8054 = vunpack.c.l.b16 %v6736
    %v8055 = vunpack.c.h.b16 %v6736
    %v8056 = vunpack.c.l.b16 %v6737
    %v8057 = vunpack.c.h.b16 %v6737
    %v8058 = vunpack.c.l.b16 %v6738
    %v8059 = vunpack.c.h.b16 %v6738
    %v8060 = vunpack.c.l.b16 %v6739
    %v8061 = vunpack.c.h.b16 %v6739
    %v8062 = vunpack.c.l.b16 %v6740
    %v8063 = vunpack.c.h.b16 %v6740
    %v8064 = vunpack.c.l.b16 %v6741
    %v8065 = vunpack.c.h.b16 %v6741
    %v8066 = vunpack.c.l.b16 %v6742
    %v8067 = vunpack.c.h.b16 %v6742
    %v8068 = vunpack.c.l.b16 %v6743
    %v8069 = vunpack.c.h.b16 %v6743
    %v8070 = vunpack.c.l.b16 %v6744
    %v8071 = vunpack.c.h.b16 %v6744
    %v8072 = vunpack.c.l.b16 %v6745
    %v8073 = vunpack.c.h.b16 %v6745
    %v8074 = vunpack.c.l.b16 %v6746
    %v8075 = vunpack.c.h.b16 %v6746
    %v8076 = vunpack.c.l.b16 %v6747
    %v8077 = vunpack.c.h.b16 %v6747
    %v8078 = vunpack.c.l.b16 %v6748
    %v8079 = vunpack.c.h.b16 %v6748
    %v8080 = vunpack.c.l.b16 %v6749
    %v8081 = vunpack.c.h.b16 %v6749
    %v8082 = vunpack.c.l.b16 %v6750
    %v8083 = vunpack.c.h.b16 %v6750
    %v8084 = vunpack.c.l.b16 %v6751
    %v8085 = vunpack.c.h.b16 %v6751
    %v8086 = vunpack.c.l.b16 %v6752
    %v8087 = vunpack.c.h.b16 %v6752
    %v8088 = vunpack.c.l.b16 %v6753
    %v8089 = vunpack.c.h.b16 %v6753
    %v8090 = vunpack.c.l.b16 %v6754
    %v8091 = vunpack.c.h.b16 %v6754
    %v8092 = vunpack.c.l.b16 %v6755
    %v8093 = vunpack.c.h.b16 %v6755
    %v8094 = vunpack.c.l.b16 %v6756
    %v8095 = vunpack.c.h.b16 %v6756
    %v8096 = vunpack.c.l.b16 %v6757
    %v8097 = vunpack.c.h.b16 %v6757
    %v8098 = vunpack.c.l.b16 %v6758
    %v8099 = vunpack.c.h.b16 %v6758
    %v8100 = vunpack.c.l.b16 %v6759
    %v8101 = vunpack.c.h.b16 %v6759
    %v8102 = vunpack.c.l.b16 %v6760
    %v8103 = vunpack.c.h.b16 %v6760
    %v8104 = vunpack.c.l.b16 %v6761
    %v8105 = vunpack.c.h.b16 %v6761
    %v8106 = vunpack.c.l.b16 %v6762
    %v8107 = vunpack.c.h.b16 %v6762
    %v8108 = vunpack.c.l.b16 %v6763
    %v8109 = vunpack.c.h.b16 %v6763
    %v8110 = vunpack.c.l.b16 %v6764
    %v8111 = vunpack.c.h.b16 %v6764
    %v8112 = vunpack.c.l.b16 %v6765
    %v8113 = vunpack.c.h.b16 %v6765
    %v8114 = vunpack.c.l.b16 %v6766
    %v8115 = vunpack.c.h.b16 %v6766
    %v8116 = vunpack.c.l.b16 %v6767
    %v8117 = vunpack.c.h.b16 %v6767
    %v8118 = vunpack.c.l.b16 %v6768
    %v8119 = vunpack.c.h.b16 %v6768
    %v8120 = vunpack.c.l.b16 %v6769
    %v8121 = vunpack.c.h.b16 %v6769
    %v8122 = vunpack.c.l.b16 %v6770
    %v8123 = vunpack.c.h.b16 %v6770
    %v8124 = vunpack.c.l.b16 %v6771
    %v8125 = vunpack.c.h.b16 %v6771
    %v8126 = vunpack.c.l.b16 %v6772
    %v8127 = vunpack.c.h.b16 %v6772
    %v8128 = vunpack.c.l.b16 %v6773
    %v8129 = vunpack.c.h.b16 %v6773
    %v8130 = vunpack.c.l.b16 %v6774
    %v8131 = vunpack.c.h.b16 %v6774
    %v8132 = vunpack.c.l.b16 %v6775
    %v8133 = vunpack.c.h.b16 %v6775
    %v8134 = vunpack.c.l.b16 %v6776
    %v8135 = vunpack.c.h.b16 %v6776
    %v8136 = vunpack.c.l.b16 %v6777
    %v8137 = vunpack.c.h.b16 %v6777
    %v8138 = vunpack.c.l.b16 %v6778
    %v8139 = vunpack.c.h.b16 %v6778
    %v8140 = vunpack.c.l.b16 %v6779
    %v8141 = vunpack.c.h.b16 %v6779
    %v8142 = vunpack.c.l.b16 %v6780
    %v8143 = vunpack.c.h.b16 %v6780
    %v8144 = vunpack.c.l.b16 %v6781
    %v8145 = vunpack.c.h.b16 %v6781
    %v8146 = vunpack.c.l.b16 %v6782
    %v8147 = vunpack.c.h.b16 %v6782
    %v8148 = vunpack.c.l.b16 %v6783
    %v8149 = vunpack.c.h.b16 %v6783
    %v8150 = vunpack.c.l.b16 %v6784
    %v8151 = vunpack.c.h.b16 %v6784
    %v8152 = vunpack.c.l.b16 %v6785
    %v8153 = vunpack.c.h.b16 %v6785
    %v8154 = vunpack.c.l.b16 %v6786
    %v8155 = vunpack.c.h.b16 %v6786
    %v8156 = vunpack.c.l.b16 %v6787
    %v8157 = vunpack.c.h.b16 %v6787
    %v8158 = vunpack.c.l.b16 %v6788
    %v8159 = vunpack.c.h.b16 %v6788
    %v8160 = vunpack.c.l.b16 %v6789
    %v8161 = vunpack.c.h.b16 %v6789
    %v8162 = vunpack.c.l.b16 %v6790
    %v8163 = vunpack.c.h.b16 %v6790
    %v8164 = vunpack.c.l.b16 %v6791
    %v8165 = vunpack.c.h.b16 %v6791
    %v8166 = vunpack.c.l.b16 %v6792
    %v8167 = vunpack.c.h.b16 %v6792
    %v8168 = vunpack.c.l.b16 %v6793
    %v8169 = vunpack.c.h.b16 %v6793
    %v8170 = vunpack.c.l.b16 %v6794
    %v8171 = vunpack.c.h.b16 %v6794
    %v8172 = vunpack.c.l.b16 %v6795
    %v8173 = vunpack.c.h.b16 %v6795
    %v8174 = vunpack.c.l.b16 %v6796
    %v8175 = vunpack.c.h.b16 %v6796
    %v8176 = vunpack.c.l.b16 %v6797
    %v8177 = vunpack.c.h.b16 %v6797
    %v8178 = vunpack.c.l.b16 %v6798
    %v8179 = vunpack.c.h.b16 %v6798
    %v8180 = vunpack.c.l.b16 %v6799
    %v8181 = vunpack.c.h.b16 %v6799
    %v8182 = vunpack.c.l.b16 %v6800
    %v8183 = vunpack.c.h.b16 %v6800
    %v8184 = vunpack.c.l.b16 %v6801
    %v8185 = vunpack.c.h.b16 %v6801
    %v8186 = vunpack.c.l.b16 %v6802
    %v8187 = vunpack.c.h.b16 %v6802
    %v8188 = vunpack.c.l.b16 %v6803
    %v8189 = vunpack.c.h.b16 %v6803
    %v8190 = vunpack.c.l.b16 %v6804
    %v8191 = vunpack.c.h.b16 %v6804
    %v8192 = vunpack.c.l.b16 %v6805
    %v8193 = vunpack.c.h.b16 %v6805
    %v8194 = vunpack.c.l.b16 %v6806
    %v8195 = vunpack.c.h.b16 %v6806
    %v8196 = vunpack.c.l.b16 %v6807
    %v8197 = vunpack.c.h.b16 %v6807
    %v8198 = vunpack.c.l.b16 %v6808
    %v8199 = vunpack.c.h.b16 %v6808
    %v8200 = vunpack.c.l.b16 %v6809
    %v8201 = vunpack.c.h.b16 %v6809
    %v8202 = vunpack.c.l.b16 %v6810
    %v8203 = vunpack.c.h.b16 %v6810
    %v8204 = vunpack.c.l.b16 %v6811
    %v8205 = vunpack.c.h.b16 %v6811
    %v8206 = vunpack.c.l.b16 %v6812
    %v8207 = vunpack.c.h.b16 %v6812
    %v8208 = vunpack.c.l.b16 %v6813
    %v8209 = vunpack.c.h.b16 %v6813
    %v8210 = vunpack.c.l.b16 %v6814
    %v8211 = vunpack.c.h.b16 %v6814
    %v8212 = vunpack.c.l.b16 %v6815
    %v8213 = vunpack.c.h.b16 %v6815
    %v8214 = vunpack.c.l.b16 %v6816
    %v8215 = vunpack.c.h.b16 %v6816
    %v8216 = vunpack.c.l.b16 %v6817
    %v8217 = vunpack.c.h.b16 %v6817
    %v8218 = vunpack.c.l.b16 %v6818
    %v8219 = vunpack.c.h.b16 %v6818
    %v8220 = vunpack.c.l.b16 %v6819
    %v8221 = vunpack.c.h.b16 %v6819
    %v8222 = vunpack.c.l.b16 %v6820
    %v8223 = vunpack.c.h.b16 %v6820
    %v8224 = vunpack.c.l.b16 %v6821
    %v8225 = vunpack.c.h.b16 %v6821
    %v8226 = vunpack.c.l.b16 %v6822
    %v8227 = vunpack.c.h.b16 %v6822
    %v8228 = vunpack.c.l.b16 %v6823
    %v8229 = vunpack.c.h.b16 %v6823
    %v8230 = vunpack.c.l.b16 %v6824
    %v8231 = vunpack.c.h.b16 %v6824
    %v8232 = vunpack.c.l.b16 %v6825
    %v8233 = vunpack.c.h.b16 %v6825
    %v8234 = vunpack.c.l.b16 %v6826
    %v8235 = vunpack.c.h.b16 %v6826
    %v8236 = vunpack.c.l.b16 %v6827
    %v8237 = vunpack.c.h.b16 %v6827
    %v8238 = vunpack.c.l.b16 %v6828
    %v8239 = vunpack.c.h.b16 %v6828
    %v8240 = vunpack.c.l.b16 %v6829
    %v8241 = vunpack.c.h.b16 %v6829
    %v8242 = vunpack.c.l.b16 %v6830
    %v8243 = vunpack.c.h.b16 %v6830
    %v8244 = vunpack.c.l.b16 %v6831
    %v8245 = vunpack.c.h.b16 %v6831
    %v8246 = vunpack.c.l.b16 %v6832
    %v8247 = vunpack.c.h.b16 %v6832
    %v8248 = vunpack.c.l.b16 %v6833
    %v8249 = vunpack.c.h.b16 %v6833
    %v8250 = vunpack.c.l.b16 %v6834
    %v8251 = vunpack.c.h.b16 %v6834
    %v8252 = vunpack.c.l.b16 %v6835
    %v8253 = vunpack.c.h.b16 %v6835
    %v8254 = vunpack.c.l.b16 %v6836
    %v8255 = vunpack.c.h.b16 %v6836
    %v8256 = vunpack.c.l.b16 %v6837
    %v8257 = vunpack.c.h.b16 %v6837
    %v8258 = vunpack.c.l.b16 %v6838
    %v8259 = vunpack.c.h.b16 %v6838
    %v8260 = vunpack.c.l.b16 %v6839
    %v8261 = vunpack.c.h.b16 %v6839
    %v8262 = vunpack.c.l.b16 %v6840
    %v8263 = vunpack.c.h.b16 %v6840
    %v8264 = vunpack.c.l.b16 %v6841
    %v8265 = vunpack.c.h.b16 %v6841
    %v8266 = vunpack.c.l.b16 %v6842
    %v8267 = vunpack.c.h.b16 %v6842
    %v8268 = vunpack.c.l.b16 %v6843
    %v8269 = vunpack.c.h.b16 %v6843
    %v8270 = vunpack.c.l.b16 %v6844
    %v8271 = vunpack.c.h.b16 %v6844
    %v8272 = vunpack.c.l.b16 %v6845
    %v8273 = vunpack.c.h.b16 %v6845
    %v8274 = vunpack.c.l.b16 %v6846
    %v8275 = vunpack.c.h.b16 %v6846
    %v8276 = vunpack.c.l.b16 %v6847
    %v8277 = vunpack.c.h.b16 %v6847
    %v8278 = vunpack.c.l.b16 %v6848
    %v8279 = vunpack.c.h.b16 %v6848
    %v8280 = vunpack.c.l.b16 %v6849
    %v8281 = vunpack.c.h.b16 %v6849
    %v8282 = vunpack.c.l.b16 %v6850
    %v8283 = vunpack.c.h.b16 %v6850
    %v8284 = vunpack.c.l.b16 %v6851
    %v8285 = vunpack.c.h.b16 %v6851
    %v8286 = vunpack.c.l.b16 %v6852
    %v8287 = vunpack.c.h.b16 %v6852
    %v8288 = vunpack.c.l.b16 %v6853
    %v8289 = vunpack.c.h.b16 %v6853
    %v8290 = vunpack.c.l.b16 %v6854
    %v8291 = vunpack.c.h.b16 %v6854
    %v8292 = vunpack.c.l.b16 %v6855
    %v8293 = vunpack.c.h.b16 %v6855
    %v8294 = vunpack.c.l.b16 %v6856
    %v8295 = vunpack.c.h.b16 %v6856
    %v8296 = vunpack.c.l.b16 %v6857
    %v8297 = vunpack.c.h.b16 %v6857
    %v8298 = vunpack.c.l.b16 %v6858
    %v8299 = vunpack.c.h.b16 %v6858
    %v8300 = vunpack.c.l.b16 %v6859
    %v8301 = vunpack.c.h.b16 %v6859
    %v8302 = vunpack.c.l.b16 %v6860
    %v8303 = vunpack.c.h.b16 %v6860
    %v8304 = vunpack.c.l.b16 %v6861
    %v8305 = vunpack.c.h.b16 %v6861
    %v8306 = vunpack.c.l.b16 %v6862
    %v8307 = vunpack.c.h.b16 %v6862
    %v8308 = vunpack.c.l.b16 %v6863
    %v8309 = vunpack.c.h.b16 %v6863
    %v8310 = vunpack.c.l.b16 %v6864
    %v8311 = vunpack.c.h.b16 %v6864
    %v8312 = vunpack.c.l.b16 %v6865
    %v8313 = vunpack.c.h.b16 %v6865
    %v8314 = vunpack.c.l.b16 %v6866
    %v8315 = vunpack.c.h.b16 %v6866
    %v8316 = vunpack.c.l.b16 %v6867
    %v8317 = vunpack.c.h.b16 %v6867
    %v8318 = vunpack.c.l.b16 %v6868
    %v8319 = vunpack.c.h.b16 %v6868
    %v8320 = vunpack.c.l.b16 %v6869
    %v8321 = vunpack.c.h.b16 %v6869
    %v8322 = vunpack.c.l.b16 %v6870
    %v8323 = vunpack.c.h.b16 %v6870
    %v8324 = vunpack.c.l.b16 %v6871
    %v8325 = vunpack.c.h.b16 %v6871
    %v8326 = vunpack.c.l.b16 %v6872
    %v8327 = vunpack.c.h.b16 %v6872
    %v8328 = vunpack.c.l.b16 %v6873
    %v8329 = vunpack.c.h.b16 %v6873
    %v8330 = vunpack.c.l.b16 %v6874
    %v8331 = vunpack.c.h.b16 %v6874
    %v8332 = vunpack.c.l.b16 %v6875
    %v8333 = vunpack.c.h.b16 %v6875
    %v8334 = vunpack.c.l.b16 %v6876
    %v8335 = vunpack.c.h.b16 %v6876
    %v8336 = vunpack.c.l.b16 %v6877
    %v8337 = vunpack.c.h.b16 %v6877
    %v8338 = vunpack.c.l.b16 %v6878
    %v8339 = vunpack.c.h.b16 %v6878
    %v8340 = vunpack.c.l.b16 %v6879
    %v8341 = vunpack.c.h.b16 %v6879
    %v8342 = vunpack.c.l.b16 %v6880
    %v8343 = vunpack.c.h.b16 %v6880
    %v8344 = vunpack.c.l.b16 %v6881
    %v8345 = vunpack.c.h.b16 %v6881
    %v8346 = vunpack.c.l.b16 %v6882
    %v8347 = vunpack.c.h.b16 %v6882
    %v8348 = vunpack.c.l.b16 %v6883
    %v8349 = vunpack.c.h.b16 %v6883
    %v8350 = vunpack.c.l.b16 %v6884
    %v8351 = vunpack.c.h.b16 %v6884
    %v8352 = vunpack.c.l.b16 %v6885
    %v8353 = vunpack.c.h.b16 %v6885
    %v8354 = vunpack.c.l.b16 %v6886
    %v8355 = vunpack.c.h.b16 %v6886
    %v8356 = vunpack.c.l.b16 %v6887
    %v8357 = vunpack.c.h.b16 %v6887
    %v8358 = vunpack.c.l.b16 %v6888
    %v8359 = vunpack.c.h.b16 %v6888
    %v8360 = vunpack.c.l.b16 %v6889
    %v8361 = vunpack.c.h.b16 %v6889
    %v8362 = vunpack.c.l.b16 %v6890
    %v8363 = vunpack.c.h.b16 %v6890
    %v8364 = vunpack.c.l.b16 %v6891
    %v8365 = vunpack.c.h.b16 %v6891
    %v8366 = vunpack.c.l.b16 %v6892
    %v8367 = vunpack.c.h.b16 %v6892
    %v8368 = vunpack.c.l.b16 %v6893
    %v8369 = vunpack.c.h.b16 %v6893
    %v8370 = vunpack.c.l.b16 %v6894
    %v8371 = vunpack.c.h.b16 %v6894
    %v8372 = vunpack.c.l.b16 %v6895
    %v8373 = vunpack.c.h.b16 %v6895
    %v8374 = vunpack.c.l.b16 %v6896
    %v8375 = vunpack.c.h.b16 %v6896
    %v8376 = vunpack.c.l.b16 %v6897
    %v8377 = vunpack.c.h.b16 %v6897
    %v8378 = vunpack.c.l.b16 %v6898
    %v8379 = vunpack.c.h.b16 %v6898
    %v8380 = vunpack.c.l.b16 %v6899
    %v8381 = vunpack.c.h.b16 %v6899
    %v8382 = vunpack.c.l.b16 %v6900
    %v8383 = vunpack.c.h.b16 %v6900
    %v8384 = vunpack.c.l.b16 %v6901
    %v8385 = vunpack.c.h.b16 %v6901
    %v8386 = vunpack.c.l.b16 %v6902
    %v8387 = vunpack.c.h.b16 %v6902
    %v8388 = vunpack.c.l.b16 %v6903
    %v8389 = vunpack.c.h.b16 %v6903
    %v8390 = vunpack.c.l.b16 %v6904
    %v8391 = vunpack.c.h.b16 %v6904
    %v8392 = vunpack.c.l.b16 %v6905
    %v8393 = vunpack.c.h.b16 %v6905
    %v8394 = vunpack.c.l.b16 %v6906
    %v8395 = vunpack.c.h.b16 %v6906
    %v8396 = vunpack.c.l.b16 %v6907
    %v8397 = vunpack.c.h.b16 %v6907
    %v8398 = vunpack.c.l.b16 %v6908
    %v8399 = vunpack.c.h.b16 %v6908
    %v8400 = vunpack.c.l.b16 %v6909
    %v8401 = vunpack.c.h.b16 %v6909
    %v8402 = vunpack.c.l.b16 %v6910
    %v8403 = vunpack.c.h.b16 %v6910
    %v8404 = vunpack.c.l.b16 %v6911
    %v8405 = vunpack.c.h.b16 %v6911
    %v8406 = vunpack.c.l.b16 %v6912
    %v8407 = vunpack.c.h.b16 %v6912
    %v8408 = vunpack.c.l.b16 %v6913
    %v8409 = vunpack.c.h.b16 %v6913
    %v8410 = vunpack.c.l.b16 %v6914
    %v8411 = vunpack.c.h.b16 %v6914
    %v8412 = vunpack.c.l.b16 %v6915
    %v8413 = vunpack.c.h.b16 %v6915
    %v8414 = vunpack.c.l.b16 %v6916
    %v8415 = vunpack.c.h.b16 %v6916
    %v8416 = vunpack.c.l.b16 %v6917
    %v8417 = vunpack.c.h.b16 %v6917
    %v8418 = vunpack.c.l.b16 %v6918
    %v8419 = vunpack.c.h.b16 %v6918
    %v8420 = vunpack.c.l.b16 %v6919
    %v8421 = vunpack.c.h.b16 %v6919
    %v8422 = vunpack.c.l.b16 %v6920
    %v8423 = vunpack.c.h.b16 %v6920
    %v8424 = vunpack.c.l.b16 %v6921
    %v8425 = vunpack.c.h.b16 %v6921
    %v8426 = vunpack.c.l.b16 %v6922
    %v8427 = vunpack.c.h.b16 %v6922
    %v8428 = vunpack.c.l.b16 %v6923
    %v8429 = vunpack.c.h.b16 %v6923
    %v8430 = vunpack.c.l.b16 %v6924
    %v8431 = vunpack.c.h.b16 %v6924
    %v8432 = vunpack.c.l.b16 %v6925
    %v8433 = vunpack.c.h.b16 %v6925
    %v8434 = vunpack.c.l.b16 %v6926
    %v8435 = vunpack.c.h.b16 %v6926
    %v8436 = vunpack.c.l.b16 %v6927
    %v8437 = vunpack.c.h.b16 %v6927
    %v8438 = vunpack.c.l.b16 %v6928
    %v8439 = vunpack.c.h.b16 %v6928
    %v8440 = vunpack.c.l.b16 %v6929
    %v8441 = vunpack.c.h.b16 %v6929
    %v8442 = vunpack.c.l.b16 %v6930
    %v8443 = vunpack.c.h.b16 %v6930
    %v8444 = vunpack.c.l.b16 %v6931
    %v8445 = vunpack.c.h.b16 %v6931
    %v8446 = vunpack.c.l.b16 %v6932
    %v8447 = vunpack.c.h.b16 %v6932
    %v8448 = vunpack.c.l.b16 %v6933
    %v8449 = vunpack.c.h.b16 %v6933
    %v8450 = vunpack.c.l.b16 %v6934
    %v8451 = vunpack.c.h.b16 %v6934
    %v8452 = vunpack.c.l.b16 %v6935
    %v8453 = vunpack.c.h.b16 %v6935
    %v8454 = vunpack.c.l.b16 %v6936
    %v8455 = vunpack.c.h.b16 %v6936
    %v8456 = vunpack.c.l.b16 %v6937
    %v8457 = vunpack.c.h.b16 %v6937
    %v8458 = vunpack.c.l.b16 %v6938
    %v8459 = vunpack.c.h.b16 %v6938
    %v8460 = vunpack.c.l.b16 %v6939
    %v8461 = vunpack.c.h.b16 %v6939
    %v8462 = vunpack.c.l.b16 %v6940
    %v8463 = vunpack.c.h.b16 %v6940
    %v8464 = vunpack.c.l.b16 %v6941
    %v8465 = vunpack.c.h.b16 %v6941
    %v8466 = vunpack.c.l.b16 %v6942
    %v8467 = vunpack.c.h.b16 %v6942
    %v8468 = vunpack.c.l.b16 %v6943
    %v8469 = vunpack.c.h.b16 %v6943
    %v8470 = vunpack.c.l.b16 %v6944
    %v8471 = vunpack.c.h.b16 %v6944
    %v8472 = vunpack.c.l.b16 %v6945
    %v8473 = vunpack.c.h.b16 %v6945
    %v8474 = vunpack.c.l.b16 %v6946
    %v8475 = vunpack.c.h.b16 %v6946
    %v8476 = vunpack.c.l.b16 %v6947
    %v8477 = vunpack.c.h.b16 %v6947
    %v8478 = vunpack.c.l.b16 %v6948
    %v8479 = vunpack.c.h.b16 %v6948
    %v8480 = vunpack.c.l.b16 %v6949
    %v8481 = vunpack.c.h.b16 %v6949
    %v8482 = vunpack.c.l.b16 %v6950
    %v8483 = vunpack.c.h.b16 %v6950
    %v8484 = vunpack.c.l.b16 %v6951
    %v8485 = vunpack.c.h.b16 %v6951
    %v8486 = vunpack.c.l.b16 %v6952
    %v8487 = vunpack.c.h.b16 %v6952
    %v8488 = vunpack.c.l.b16 %v6953
    %v8489 = vunpack.c.h.b16 %v6953
    %v8490 = vunpack.c.l.b16 %v6954
    %v8491 = vunpack.c.h.b16 %v6954
    %v8492 = vunpack.c.l.b16 %v6955
    %v8493 = vunpack.c.h.b16 %v6955
    %v8494 = vunpack.c.l.b16 %v6956
    %v8495 = vunpack.c.h.b16 %v6956
    %v8496 = vunpack.c.l.b16 %v6957
    %v8497 = vunpack.c.h.b16 %v6957
    %v8498 = vunpack.c.l.b16 %v6958
    %v8499 = vunpack.c.h.b16 %v6958
    %v8500 = vunpack.c.l.b16 %v6959
    %v8501 = vunpack.c.h.b16 %v6959
    %v8502 = vunpack.c.l.b16 %v6960
    %v8503 = vunpack.c.h.b16 %v6960
    %v8504 = vunpack.c.l.b16 %v6961
    %v8505 = vunpack.c.h.b16 %v6961
    %v8506 = vunpack.c.l.b16 %v6962
    %v8507 = vunpack.c.h.b16 %v6962
    %v8508 = vunpack.c.l.b16 %v6963
    %v8509 = vunpack.c.h.b16 %v6963
    %v8510 = vunpack.c.l.b16 %v6964
    %v8511 = vunpack.c.h.b16 %v6964
    %v8512 = vunpack.c.l.b16 %v6965
    %v8513 = vunpack.c.h.b16 %v6965
    %v8514 = vunpack.c.l.b16 %v6966
    %v8515 = vunpack.c.h.b16 %v6966
    %v8516 = vunpack.c.l.b16 %v6967
    %v8517 = vunpack.c.h.b16 %v6967
    %v8518 = vunpack.c.l.b16 %v6968
    %v8519 = vunpack.c.h.b16 %v6968
    %v8520 = vunpack.c.l.b16 %v6969
    %v8521 = vunpack.c.h.b16 %v6969
    %v8522 = vunpack.c.l.b16 %v6970
    %v8523 = vunpack.c.h.b16 %v6970
    %v8524 = vunpack.c.l.b16 %v6971
    %v8525 = vunpack.c.h.b16 %v6971
    %v8526 = vunpack.c.l.b16 %v6972
    %v8527 = vunpack.c.h.b16 %v6972
    %v8528 = vunpack.c.l.b16 %v6973
    %v8529 = vunpack.c.h.b16 %v6973
    %v8530 = vunpack.c.l.b16 %v6974
    %v8531 = vunpack.c.h.b16 %v6974
    %v8532 = vunpack.c.l.b16 %v6975
    %v8533 = vunpack.c.h.b16 %v6975
    %v8534 = vunpack.c.l.b16 %v6976
    %v8535 = vunpack.c.h.b16 %v6976
    %v8536 = vunpack.c.l.b16 %v6977
    %v8537 = vunpack.c.h.b16 %v6977
    %v8538 = vunpack.c.l.b16 %v6978
    %v8539 = vunpack.c.h.b16 %v6978
    %v8540 = vunpack.c.l.b16 %v6979
    %v8541 = vunpack.c.h.b16 %v6979
    %v8542 = vunpack.c.l.b16 %v6980
    %v8543 = vunpack.c.h.b16 %v6980
    %v8544 = vunpack.c.l.b16 %v6981
    %v8545 = vunpack.c.h.b16 %v6981
    %v8546 = vunpack.c.l.b16 %v6982
    %v8547 = vunpack.c.h.b16 %v6982
    %v8548 = vunpack.c.l.b16 %v6983
    %v8549 = vunpack.c.h.b16 %v6983
    %v8550 = vunpack.c.l.b16 %v6984
    %v8551 = vunpack.c.h.b16 %v6984
    %v8552 = vunpack.c.l.b16 %v6985
    %v8553 = vunpack.c.h.b16 %v6985
    %v8554 = vunpack.c.l.b16 %v6986
    %v8555 = vunpack.c.h.b16 %v6986
    %v8556 = vunpack.c.l.b16 %v6987
    %v8557 = vunpack.c.h.b16 %v6987
    %v8558 = vunpack.c.l.b16 %v6988
    %v8559 = vunpack.c.h.b16 %v6988
    %v8560 = vunpack.c.l.b16 %v6989
    %v8561 = vunpack.c.h.b16 %v6989
    %v8562 = vunpack.c.l.b16 %v6990
    %v8563 = vunpack.c.h.b16 %v6990
    %v8564 = vunpack.c.l.b16 %v6991
    %v8565 = vunpack.c.h.b16 %v6991
    %v8566 = vunpack.c.l.b16 %v6992
    %v8567 = vunpack.c.h.b16 %v6992
    %v8568 = vunpack.c.l.b16 %v6993
    %v8569 = vunpack.c.h.b16 %v6993
    %v8570 = vunpack.c.l.b16 %v6994
    %v8571 = vunpack.c.h.b16 %v6994
    %v8572 = vunpack.c.l.b16 %v6995
    %v8573 = vunpack.c.h.b16 %v6995
    %v8574 = vunpack.c.l.b16 %v6996
    %v8575 = vunpack.c.h.b16 %v6996
    %v8576 = vunpack.c.l.b16 %v6997
    %v8577 = vunpack.c.h.b16 %v6997
    %v8578 = vunpack.c.l.b16 %v6998
    %v8579 = vunpack.c.h.b16 %v6998
    %v8580 = vunpack.c.l.b16 %v6999
    %v8581 = vunpack.c.h.b16 %v6999
    %v8582 = vunpack.c.l.b16 %v7000
    %v8583 = vunpack.c.h.b16 %v7000
    %v8584 = vunpack.c.l.b16 %v7001
    %v8585 = vunpack.c.h.b16 %v7001
    %v8586 = vunpack.c.l.b16 %v7002
    %v8587 = vunpack.c.h.b16 %v7002
    %v8588 = vunpack.c.l.b16 %v7003
    %v8589 = vunpack.c.h.b16 %v7003
    %v8590 = vunpack.c.l.b16 %v7004
    %v8591 = vunpack.c.h.b16 %v7004
    %v8592 = vunpack.c.l.b16 %v7005
    %v8593 = vunpack.c.h.b16 %v7005
    %v8594 = vunpack.c.l.b16 %v7006
    %v8595 = vunpack.c.h.b16 %v7006
    %v8596 = vunpack.c.l.b16 %v7007
    %v8597 = vunpack.c.h.b16 %v7007
    %v8598 = vunpack.c.l.b16 %v7008
    %v8599 = vunpack.c.h.b16 %v7008
    %v8600 = vunpack.c.l.b16 %v7009
    %v8601 = vunpack.c.h.b16 %v7009
    %v8602 = vunpack.c.l.b16 %v7010
    %v8603 = vunpack.c.h.b16 %v7010
    %v8604 = vunpack.c.l.b16 %v7011
    %v8605 = vunpack.c.h.b16 %v7011
    %v8606 = vunpack.c.l.b16 %v7012
    %v8607 = vunpack.c.h.b16 %v7012
    %v8608 = vunpack.c.l.b16 %v7013
    %v8609 = vunpack.c.h.b16 %v7013
    %v8610 = vunpack.c.l.b16 %v7014
    %v8611 = vunpack.c.h.b16 %v7014
    %v8612 = vunpack.c.l.b16 %v7015
    %v8613 = vunpack.c.h.b16 %v7015
    %v8614 = vunpack.c.l.b16 %v7016
    %v8615 = vunpack.c.h.b16 %v7016
    %v8616 = vunpack.c.l.b16 %v7017
    %v8617 = vunpack.c.h.b16 %v7017
    %v8618 = vunpack.c.l.b16 %v7018
    %v8619 = vunpack.c.h.b16 %v7018
    %v8620 = vunpack.c.l.b16 %v7019
    %v8621 = vunpack.c.h.b16 %v7019
    %v8622 = vunpack.c.l.b16 %v7020
    %v8623 = vunpack.c.h.b16 %v7020
    %v8624 = vunpack.c.l.b16 %v7021
    %v8625 = vunpack.c.h.b16 %v7021
    %v8626 = vunpack.c.l.b16 %v7022
    %v8627 = vunpack.c.h.b16 %v7022
    %v8628 = vunpack.c.l.b16 %v7023
    %v8629 = vunpack.c.h.b16 %v7023
    %v8630 = vunpack.c.l.b16 %v7024
    %v8631 = vunpack.c.h.b16 %v7024
    %v8632 = vunpack.c.l.b16 %v7025
    %v8633 = vunpack.c.h.b16 %v7025
    %v8634 = vunpack.c.l.b16 %v7026
    %v8635 = vunpack.c.h.b16 %v7026
    %v8636 = vunpack.c.l.b16 %v7027
    %v8637 = vunpack.c.h.b16 %v7027
    %v8638 = vunpack.c.l.b16 %v7028
    %v8639 = vunpack.c.h.b16 %v7028
    %v8640 = vunpack.c.l.b16 %v7029
    %v8641 = vunpack.c.h.b16 %v7029
    %v8642 = vunpack.c.l.b16 %v7030
    %v8643 = vunpack.c.h.b16 %v7030
    %v8644 = vunpack.c.l.b16 %v7031
    %v8645 = vunpack.c.h.b16 %v7031
    %v8646 = vunpack.c.l.b16 %v7032
    %v8647 = vunpack.c.h.b16 %v7032
    %v8648 = vunpack.c.l.b16 %v7033
    %v8649 = vunpack.c.h.b16 %v7033
    %v8650 = vunpack.c.l.b16 %v7034
    %v8651 = vunpack.c.h.b16 %v7034
    %v8652 = vunpack.c.l.b16 %v7035
    %v8653 = vunpack.c.h.b16 %v7035
    %v8654 = vunpack.c.l.b16 %v7036
    %v8655 = vunpack.c.h.b16 %v7036
    %v8656 = vunpack.c.l.b16 %v7037
    %v8657 = vunpack.c.h.b16 %v7037
    %v8658 = vunpack.c.l.b16 %v7038
    %v8659 = vunpack.c.h.b16 %v7038
    %v8660 = vunpack.c.l.b16 %v7039
    %v8661 = vunpack.c.h.b16 %v7039
    %v8662 = vunpack.c.l.b16 %v7040
    %v8663 = vunpack.c.h.b16 %v7040
    %v8664 = vunpack.c.l.b16 %v7041
    %v8665 = vunpack.c.h.b16 %v7041
    %v8666 = vunpack.c.l.b16 %v7042
    %v8667 = vunpack.c.h.b16 %v7042
    %v8668 = vunpack.c.l.b16 %v7043
    %v8669 = vunpack.c.h.b16 %v7043
    %v8670 = vunpack.c.l.b16 %v7044
    %v8671 = vunpack.c.h.b16 %v7044
    %v8672 = vunpack.c.l.b16 %v7045
    %v8673 = vunpack.c.h.b16 %v7045
    %v8674 = vunpack.c.l.b16 %v7046
    %v8675 = vunpack.c.h.b16 %v7046
    %v8676 = vunpack.c.l.b16 %v7047
    %v8677 = vunpack.c.h.b16 %v7047
    %v8678 = vunpack.c.l.b16 %v7048
    %v8679 = vunpack.c.h.b16 %v7048
    %v8680 = vunpack.c.l.b16 %v7049
    %v8681 = vunpack.c.h.b16 %v7049
    %v8682 = vunpack.c.l.b16 %v7050
    %v8683 = vunpack.c.h.b16 %v7050
    %v8684 = vunpack.c.l.b16 %v7051
    %v8685 = vunpack.c.h.b16 %v7051
    %v8686 = vunpack.c.l.b16 %v7052
    %v8687 = vunpack.c.h.b16 %v7052
    %v8688 = vunpack.c.l.b16 %v7053
    %v8689 = vunpack.c.h.b16 %v7053
    %v8690 = vunpack.c.l.b16 %v7054
    %v8691 = vunpack.c.h.b16 %v7054
    %v8692 = vunpack.c.l.b16 %v7055
    %v8693 = vunpack.c.h.b16 %v7055
    %v8694 = vunpack.c.l.b16 %v7056
    %v8695 = vunpack.c.h.b16 %v7056
    %v8696 = vunpack.c.l.b16 %v7057
    %v8697 = vunpack.c.h.b16 %v7057
    %v8698 = vunpack.c.l.b16 %v7058
    %v8699 = vunpack.c.h.b16 %v7058
    %v8700 = vunpack.c.l.b16 %v7059
    %v8701 = vunpack.c.h.b16 %v7059
    %v8702 = vunpack.c.l.b16 %v7060
    %v8703 = vunpack.c.h.b16 %v7060
    %v8704 = vunpack.c.l.b16 %v7061
    %v8705 = vunpack.c.h.b16 %v7061
    %v8706 = vunpack.c.l.b16 %v7062
    %v8707 = vunpack.c.h.b16 %v7062
    %v8708 = vunpack.c.l.b16 %v7063
    %v8709 = vunpack.c.h.b16 %v7063
    %v8710 = vunpack.c.l.b16 %v7064
    %v8711 = vunpack.c.h.b16 %v7064
    %v8712 = vunpack.c.l.b16 %v7065
    %v8713 = vunpack.c.h.b16 %v7065
    %v8714 = vunpack.c.l.b16 %v7066
    %v8715 = vunpack.c.h.b16 %v7066
    %v8716 = vunpack.c.l.b16 %v7067
    %v8717 = vunpack.c.h.b16 %v7067
    %v8718 = vunpack.c.l.b16 %v7068
    %v8719 = vunpack.c.h.b16 %v7068
    %v8720 = vunpack.c.l.b16 %v7069
    %v8721 = vunpack.c.h.b16 %v7069
    %v8722 = vunpack.c.l.b16 %v7070
    %v8723 = vunpack.c.h.b16 %v7070
    %v8724 = vunpack.c.l.b16 %v7071
    %v8725 = vunpack.c.h.b16 %v7071
    %v8726 = vunpack.c.l.b16 %v7072
    %v8727 = vunpack.c.h.b16 %v7072
    %v8728 = vunpack.c.l.b16 %v7073
    %v8729 = vunpack.c.h.b16 %v7073
    %v8730 = vunpack.c.l.b16 %v7074
    %v8731 = vunpack.c.h.b16 %v7074
    %v8732 = vunpack.c.l.b16 %v7075
    %v8733 = vunpack.c.h.b16 %v7075
    %v8734 = vunpack.c.l.b16 %v7076
    %v8735 = vunpack.c.h.b16 %v7076
    %v8736 = vunpack.c.l.b16 %v7077
    %v8737 = vunpack.c.h.b16 %v7077
    %v8738 = vunpack.c.l.b16 %v7078
    %v8739 = vunpack.c.h.b16 %v7078
    %v8740 = vunpack.c.l.b16 %v7079
    %v8741 = vunpack.c.h.b16 %v7079
    %v8742 = vunpack.c.l.b16 %v7080
    %v8743 = vunpack.c.h.b16 %v7080
    %v8744 = vunpack.c.l.b16 %v7081
    %v8745 = vunpack.c.h.b16 %v7081
    %v8746 = vunpack.c.l.b16 %v7082
    %v8747 = vunpack.c.h.b16 %v7082
    %v8748 = vunpack.c.l.b16 %v7083
    %v8749 = vunpack.c.h.b16 %v7083
    %v8750 = vunpack.c.l.b16 %v7084
    %v8751 = vunpack.c.h.b16 %v7084
    %v8752 = vunpack.c.l.b16 %v7085
    %v8753 = vunpack.c.h.b16 %v7085
    %v8754 = vunpack.c.l.b16 %v7086
    %v8755 = vunpack.c.h.b16 %v7086
    %v8756 = vunpack.c.l.b16 %v7087
    %v8757 = vunpack.c.h.b16 %v7087
    %v8758 = vunpack.c.l.b16 %v7088
    %v8759 = vunpack.c.h.b16 %v7088
    %v8760 = vunpack.c.l.b16 %v7089
    %v8761 = vunpack.c.h.b16 %v7089
    %v8762 = vunpack.c.l.b16 %v7090
    %v8763 = vunpack.c.h.b16 %v7090
    %v8764 = vunpack.c.l.b16 %v7091
    %v8765 = vunpack.c.h.b16 %v7091
    %v8766 = vunpack.c.l.b16 %v7092
    %v8767 = vunpack.c.h.b16 %v7092
    %v8768 = vunpack.c.l.b16 %v7093
    %v8769 = vunpack.c.h.b16 %v7093
    %v8770 = vunpack.c.l.b16 %v7094
    %v8771 = vunpack.c.h.b16 %v7094
    %v8772 = vunpack.c.l.b16 %v7095
    %v8773 = vunpack.c.h.b16 %v7095
    %v8774 = vunpack.c.l.b16 %v7096
    %v8775 = vunpack.c.h.b16 %v7096
    %v8776 = vunpack.c.l.b16 %v7097
    %v8777 = vunpack.c.h.b16 %v7097
    %v8778 = vunpack.c.l.b16 %v7098
    %v8779 = vunpack.c.h.b16 %v7098
    %v8780 = vunpack.c.l.b16 %v7099
    %v8781 = vunpack.c.h.b16 %v7099
    %v8782 = vunpack.c.l.b16 %v7100
    %v8783 = vunpack.c.h.b16 %v7100
    %v8784 = vunpack.c.l.b16 %v7101
    %v8785 = vunpack.c.h.b16 %v7101
    %v8786 = vunpack.c.l.b16 %v7102
    %v8787 = vunpack.c.h.b16 %v7102
    %v8788 = vunpack.c.l.b16 %v7103
    %v8789 = vunpack.c.h.b16 %v7103
    %v8790 = vunpack.c.l.b16 %v7104
    %v8791 = vunpack.c.h.b16 %v7104
    %v8792 = vunpack.c.l.b16 %v7105
    %v8793 = vunpack.c.h.b16 %v7105
    %v8794 = vunpack.c.l.b16 %v7106
    %v8795 = vunpack.c.h.b16 %v7106
    %v8796 = vunpack.c.l.b16 %v7107
    %v8797 = vunpack.c.h.b16 %v7107
    %v8798 = vunpack.c.l.b16 %v7108
    %v8799 = vunpack.c.h.b16 %v7108
    %v8800 = vunpack.c.l.b16 %v7109
    %v8801 = vunpack.c.h.b16 %v7109
    %v8802 = vunpack.c.l.b16 %v7110
    %v8803 = vunpack.c.h.b16 %v7110
    %v8804 = vunpack.c.l.b16 %v7111
    %v8805 = vunpack.c.h.b16 %v7111
    %v8806 = vunpack.c.l.b16 %v7112
    %v8807 = vunpack.c.h.b16 %v7112
    %v8808 = vunpack.c.l.b16 %v7113
    %v8809 = vunpack.c.h.b16 %v7113
    %v8810 = vunpack.c.l.b16 %v7114
    %v8811 = vunpack.c.h.b16 %v7114
    %v8812 = vunpack.c.l.b16 %v7115
    %v8813 = vunpack.c.h.b16 %v7115
    %v8814 = vunpack.c.l.b16 %v7116
    %v8815 = vunpack.c.h.b16 %v7116
    %v8816 = vunpack.c.l.b16 %v7117
    %v8817 = vunpack.c.h.b16 %v7117
    %v8818 = vunpack.c.l.b16 %v7118
    %v8819 = vunpack.c.h.b16 %v7118
    %v8820 = vunpack.c.l.b16 %v7119
    %v8821 = vunpack.c.h.b16 %v7119
    %v8822 = vunpack.c.l.b16 %v7120
    %v8823 = vunpack.c.h.b16 %v7120
    %v8824 = vunpack.c.l.b16 %v7121
    %v8825 = vunpack.c.h.b16 %v7121
    %v8826 = vunpack.c.l.b16 %v7122
    %v8827 = vunpack.c.h.b16 %v7122
    %v8828 = vunpack.c.l.b16 %v7123
    %v8829 = vunpack.c.h.b16 %v7123
    %v8830 = vunpack.c.l.b16 %v7124
    %v8831 = vunpack.c.h.b16 %v7124
    %v8832 = vunpack.c.l.b16 %v7125
    %v8833 = vunpack.c.h.b16 %v7125
    %v8834 = vunpack.c.l.b16 %v7126
    %v8835 = vunpack.c.h.b16 %v7126
    %v8836 = vunpack.c.l.b16 %v7127
    %v8837 = vunpack.c.h.b16 %v7127
    %v8838 = vunpack.c.l.b16 %v7128
    %v8839 = vunpack.c.h.b16 %v7128
    %v8840 = vunpack.c.l.b16 %v7129
    %v8841 = vunpack.c.h.b16 %v7129
    %v8842 = vunpack.c.l.b16 %v7130
    %v8843 = vunpack.c.h.b16 %v7130
    %v8844 = vunpack.c.l.b16 %v7131
    %v8845 = vunpack.c.h.b16 %v7131
    %v8846 = vunpack.c.l.b16 %v7132
    %v8847 = vunpack.c.h.b16 %v7132
    %v8848 = vunpack.c.l.b16 %v7133
    %v8849 = vunpack.c.h.b16 %v7133
    %v8850 = vunpack.c.l.b16 %v7134
    %v8851 = vunpack.c.h.b16 %v7134
    %v8852 = vunpack.c.l.b16 %v7135
    %v8853 = vunpack.c.h.b16 %v7135
    %v8854 = vunpack.c.l.b16 %v7136
    %v8855 = vunpack.c.h.b16 %v7136
    %v8856 = vunpack.c.l.b16 %v7137
    %v8857 = vunpack.c.h.b16 %v7137
    %v8858 = vunpack.c.l.b16 %v7138
    %v8859 = vunpack.c.h.b16 %v7138
    %v8860 = vunpack.c.l.b16 %v7139
    %v8861 = vunpack.c.h.b16 %v7139
    %v8862 = vunpack.c.l.b16 %v7140
    %v8863 = vunpack.c.h.b16 %v7140
    %v8864 = vunpack.c.l.b16 %v7141
    %v8865 = vunpack.c.h.b16 %v7141
    %v8866 = vunpack.c.l.b16 %v7142
    %v8867 = vunpack.c.h.b16 %v7142
    %v8868 = vunpack.c.l.b16 %v7143
    %v8869 = vunpack.c.h.b16 %v7143
    %v8870 = vunpack.c.l.b16 %v7144
    %v8871 = vunpack.c.h.b16 %v7144
    %v8872 = vunpack.c.l.b16 %v7145
    %v8873 = vunpack.c.h.b16 %v7145
    %v8874 = vpack.c.b16 %v7726, %v7722
    %v8875 = vpack.c.b16 %v7727, %v7723
    %v8876 = vpack.c.b16 %v7728, %v7724
    %v8877 = vpack.c.b16 %v7729, %v7725
    %v8878 = vpack.c.b16 %v7734, %v7730
    %v8879 = vpack.c.b16 %v7735, %v7731
    %v8880 = vpack.c.b16 %v7736, %v7732
    %v8881 = vpack.c.b16 %v7737, %v7733
    %v8882 = vpack.c.b16 %v7742, %v7738
    %v8883 = vpack.c.b16 %v7743, %v7739
    %v8884 = vpack.c.b16 %v7744, %v7740
    %v8885 = vpack.c.b16 %v7745, %v7741
    %v8886 = vpack.c.b16 %v7750, %v7746
    %v8887 = vpack.c.b16 %v7751, %v7747
    %v8888 = vpack.c.b16 %v7752, %v7748
    %v8889 = vpack.c.b16 %v7753, %v7749
    %v8890 = vpack.c.b16 %v7758, %v7754
    %v8891 = vpack.c.b16 %v7759, %v7755
    %v8892 = vpack.c.b16 %v7760, %v7756
    %v8893 = vpack.c.b16 %v7761, %v7757
    %v8894 = vpack.c.b16 %v7766, %v7762
    %v8895 = vpack.c.b16 %v7767, %v7763
    %v8896 = vpack.c.b16 %v7768, %v7764
    %v8897 = vpack.c.b16 %v7769, %v7765
    %v8898 = vpack.c.b16 %v7774, %v7770
    %v8899 = vpack.c.b16 %v7775, %v7771
    %v8900 = vpack.c.b16 %v7776, %v7772
    %v8901 = vpack.c.b16 %v7777, %v7773
    %v8902 = vpack.c.b16 %v7782, %v7778
    %v8903 = vpack.c.b16 %v7783, %v7779
    %v8904 = vpack.c.b16 %v7784, %v7780
    %v8905 = vpack.c.b16 %v7785, %v7781
    %v8906 = vpack.c.b16 %v7790, %v7786
    %v8907 = vpack.c.b16 %v7791, %v7787
    %v8908 = vpack.c.b16 %v7792, %v7788
    %v8909 = vpack.c.b16 %v7793, %v7789
    %v8910 = vpack.c.b16 %v7798, %v7794
    %v8911 = vpack.c.b16 %v7799, %v7795
    %v8912 = vpack.c.b16 %v7800, %v7796
    %v8913 = vpack.c.b16 %v7801, %v7797
    %v8914 = vpack.c.b16 %v7806, %v7802
    %v8915 = vpack.c.b16 %v7807, %v7803
    %v8916 = vpack.c.b16 %v7808, %v7804
    %v8917 = vpack.c.b16 %v7809, %v7805
    %v8918 = vpack.c.b16 %v7814, %v7810
    %v8919 = vpack.c.b16 %v7815, %v7811
    %v8920 = vpack.c.b16 %v7816, %v7812
    %v8921 = vpack.c.b16 %v7817, %v7813
    %v8922 = vpack.c.b16 %v7822, %v7818
    %v8923 = vpack.c.b16 %v7823, %v7819
    %v8924 = vpack.c.b16 %v7824, %v7820
    %v8925 = vpack.c.b16 %v7825, %v7821
    %v8926 = vpack.c.b16 %v7830, %v7826
    %v8927 = vpack.c.b16 %v7831, %v7827
    %v8928 = vpack.c.b16 %v7832, %v7828
    %v8929 = vpack.c.b16 %v7833, %v7829
    %v8930 = vpack.c.b16 %v7838, %v7834
    %v8931 = vpack.c.b16 %v7839, %v7835
    %v8932 = vpack.c.b16 %v7840, %v7836
    %v8933 = vpack.c.b16 %v7841, %v7837
    %v8934 = vpack.c.b16 %v7846, %v7842
    %v8935 = vpack.c.b16 %v7847, %v7843
    %v8936 = vpack.c.b16 %v7848, %v7844
    %v8937 = vpack.c.b16 %v7849, %v7845
    %v8938 = vpack.c.b16 %v7854, %v7850
    %v8939 = vpack.c.b16 %v7855, %v7851
    %v8940 = vpack.c.b16 %v7856, %v7852
    %v8941 = vpack.c.b16 %v7857, %v7853
    %v8942 = vpack.c.b16 %v7862, %v7858
    %v8943 = vpack.c.b16 %v7863, %v7859
    %v8944 = vpack.c.b16 %v7864, %v7860
    %v8945 = vpack.c.b16 %v7865, %v7861
    %v8946 = vpack.c.b16 %v7870, %v7866
    %v8947 = vpack.c.b16 %v7871, %v7867
    %v8948 = vpack.c.b16 %v7872, %v7868
    %v8949 = vpack.c.b16 %v7873, %v7869
    %v8950 = vpack.c.b16 %v7878, %v7874
    %v8951 = vpack.c.b16 %v7879, %v7875
    %v8952 = vpack.c.b16 %v7880, %v7876
    %v8953 = vpack.c.b16 %v7881, %v7877
    %v8954 = vpack.c.b16 %v7886, %v7882
    %v8955 = vpack.c.b16 %v7887, %v7883
    %v8956 = vpack.c.b16 %v7888, %v7884
    %v8957 = vpack.c.b16 %v7889, %v7885
    %v8958 = vpack.c.b16 %v7894, %v7890
    %v8959 = vpack.c.b16 %v7895, %v7891
    %v8960 = vpack.c.b16 %v7896, %v7892
    %v8961 = vpack.c.b16 %v7897, %v7893
    %v8962 = vpack.c.b16 %v7902, %v7898
    %v8963 = vpack.c.b16 %v7903, %v7899
    %v8964 = vpack.c.b16 %v7904, %v7900
    %v8965 = vpack.c.b16 %v7905, %v7901
    %v8966 = vpack.c.b16 %v7910, %v7906
    %v8967 = vpack.c.b16 %v7911, %v7907
    %v8968 = vpack.c.b16 %v7912, %v7908
    %v8969 = vpack.c.b16 %v7913, %v7909
    %v8970 = vpack.c.b16 %v7918, %v7914
    %v8971 = vpack.c.b16 %v7919, %v7915
    %v8972 = vpack.c.b16 %v7920, %v7916
    %v8973 = vpack.c.b16 %v7921, %v7917
    %v8974 = vpack.c.b16 %v7926, %v7922
    %v8975 = vpack.c.b16 %v7927, %v7923
    %v8976 = vpack.c.b16 %v7928, %v7924
    %v8977 = vpack.c.b16 %v7929, %v7925
    %v8978 = vpack.c.b16 %v7934, %v7930
    %v8979 = vpack.c.b16 %v7935, %v7931
    %v8980 = vpack.c.b16 %v7936, %v7932
    %v8981 = vpack.c.b16 %v7937, %v7933
    %v8982 = vpack.c.b16 %v7942, %v7938
    %v8983 = vpack.c.b16 %v7943, %v7939
    %v8984 = vpack.c.b16 %v7944, %v7940
    %v8985 = vpack.c.b16 %v7945, %v7941
    %v8986 = vpack.c.b16 %v7950, %v7946
    %v8987 = vpack.c.b16 %v7951, %v7947
    %v8988 = vpack.c.b16 %v7952, %v7948
    %v8989 = vpack.c.b16 %v7953, %v7949
    %v8990 = vpack.c.b16 %v7958, %v7954
    %v8991 = vpack.c.b16 %v7959, %v7955
    %v8992 = vpack.c.b16 %v7960, %v7956
    %v8993 = vpack.c.b16 %v7961, %v7957
    %v8994 = vpack.c.b16 %v7966, %v7962
    %v8995 = vpack.c.b16 %v7967, %v7963
    %v8996 = vpack.c.b16 %v7968, %v7964
    %v8997 = vpack.c.b16 %v7969, %v7965
    %v8998 = vpack.c.b16 %v7974, %v7970
    %v8999 = vpack.c.b16 %v7975, %v7971
    %v9000 = vpack.c.b16 %v7976, %v7972
    %v9001 = vpack.c.b16 %v7977, %v7973
    %v9002 = vpack.c.b16 %v7982, %v7978
    %v9003 = vpack.c.b16 %v7983, %v7979
    %v9004 = vpack.c.b16 %v7984, %v7980
    %v9005 = vpack.c.b16 %v7985, %v7981
    %v9006 = vpack.c.b16 %v7990, %v7986
    %v9007 = vpack.c.b16 %v7991, %v7987
    %v9008 = vpack.c.b16 %v7992, %v7988
    %v9009 = vpack.c.b16 %v7993, %v7989
    %v9010 = vpack.c.b16 %v7998, %v7994
    %v9011 = vpack.c.b16 %v7999, %v7995
    %v9012 = vpack.c.b16 %v8000, %v7996
    %v9013 = vpack.c.b16 %v8001, %v7997
    %v9014 = vpack.c.b16 %v8006, %v8002
    %v9015 = vpack.c.b16 %v8007, %v8003
    %v9016 = vpack.c.b16 %v8008, %v8004
    %v9017 = vpack.c.b16 %v8009, %v8005
    %v9018 = vpack.c.b16 %v8014, %v8010
    %v9019 = vpack.c.b16 %v8015, %v8011
    %v9020 = vpack.c.b16 %v8016, %v8012
    %v9021 = vpack.c.b16 %v8017, %v8013
    %v9022 = vpack.c.b16 %v8022, %v8018
    %v9023 = vpack.c.b16 %v8023, %v8019
    %v9024 = vpack.c.b16 %v8024, %v8020
    %v9025 = vpack.c.b16 %v8025, %v8021
    %v9026 = vpack.c.b16 %v8030, %v8026
    %v9027 = vpack.c.b16 %v8031, %v8027
    %v9028 = vpack.c.b16 %v8032, %v8028
    %v9029 = vpack.c.b16 %v8033, %v8029
    %v9030 = vpack.c.b16 %v8038, %v8034
    %v9031 = vpack.c.b16 %v8039, %v8035
    %v9032 = vpack.c.b16 %v8040, %v8036
    %v9033 = vpack.c.b16 %v8041, %v8037
    %v9034 = vpack.c.b16 %v8046, %v8042
    %v9035 = vpack.c.b16 %v8047, %v8043
    %v9036 = vpack.c.b16 %v8048, %v8044
    %v9037 = vpack.c.b16 %v8049, %v8045
    %v9038 = vpack.c.b16 %v8054, %v8050
    %v9039 = vpack.c.b16 %v8055, %v8051
    %v9040 = vpack.c.b16 %v8056, %v8052
    %v9041 = vpack.c.b16 %v8057, %v8053
    %v9042 = vpack.c.b16 %v8062, %v8058
    %v9043 = vpack.c.b16 %v8063, %v8059
    %v9044 = vpack.c.b16 %v8064, %v8060
    %v9045 = vpack.c.b16 %v8065, %v8061
    %v9046 = vpack.c.b16 %v8070, %v8066
    %v9047 = vpack.c.b16 %v8071, %v8067
    %v9048 = vpack.c.b16 %v8072, %v8068
    %v9049 = vpack.c.b16 %v8073, %v8069
    %v9050 = vpack.c.b16 %v8078, %v8074
    %v9051 = vpack.c.b16 %v8079, %v8075
    %v9052 = vpack.c.b16 %v8080, %v8076
    %v9053 = vpack.c.b16 %v8081, %v8077
    %v9054 = vpack.c.b16 %v8086, %v8082
    %v9055 = vpack.c.b16 %v8087, %v8083
    %v9056 = vpack.c.b16 %v8088, %v8084
    %v9057 = vpack.c.b16 %v8089, %v8085
    %v9058 = vpack.c.b16 %v8094, %v8090
    %v9059 = vpack.c.b16 %v8095, %v8091
    %v9060 = vpack.c.b16 %v8096, %v8092
    %v9061 = vpack.c.b16 %v8097, %v8093
    %v9062 = vpack.c.b16 %v8102, %v8098
    %v9063 = vpack.c.b16 %v8103, %v8099
    %v9064 = vpack.c.b16 %v8104, %v8100
    %v9065 = vpack.c.b16 %v8105, %v8101
    %v9066 = vpack.c.b16 %v8110, %v8106
    %v9067 = vpack.c.b16 %v8111, %v8107
    %v9068 = vpack.c.b16 %v8112, %v8108
    %v9069 = vpack.c.b16 %v8113, %v8109
    %v9070 = vpack.c.b16 %v8118, %v8114
    %v9071 = vpack.c.b16 %v8119, %v8115
    %v9072 = vpack.c.b16 %v8120, %v8116
    %v9073 = vpack.c.b16 %v8121, %v8117
    %v9074 = vpack.c.b16 %v8126, %v8122
    %v9075 = vpack.c.b16 %v8127, %v8123
    %v9076 = vpack.c.b16 %v8128, %v8124
    %v9077 = vpack.c.b16 %v8129, %v8125
    %v9078 = vpack.c.b16 %v8134, %v8130
    %v9079 = vpack.c.b16 %v8135, %v8131
    %v9080 = vpack.c.b16 %v8136, %v8132
    %v9081 = vpack.c.b16 %v8137, %v8133
    %v9082 = vpack.c.b16 %v8142, %v8138
    %v9083 = vpack.c.b16 %v8143, %v8139
    %v9084 = vpack.c.b16 %v8144, %v8140
    %v9085 = vpack.c.b16 %v8145, %v8141
    %v9086 = vpack.c.b16 %v8150, %v8146
    %v9087 = vpack.c.b16 %v8151, %v8147
    %v9088 = vpack.c.b16 %v8152, %v8148
    %v9089 = vpack.c.b16 %v8153, %v8149
    %v9090 = vpack.c.b16 %v8158, %v8154
    %v9091 = vpack.c.b16 %v8159, %v8155
    %v9092 = vpack.c.b16 %v8160, %v8156
    %v9093 = vpack.c.b16 %v8161, %v8157
    %v9094 = vpack.c.b16 %v8166, %v8162
    %v9095 = vpack.c.b16 %v8167, %v8163
    %v9096 = vpack.c.b16 %v8168, %v8164
    %v9097 = vpack.c.b16 %v8169, %v8165
    %v9098 = vpack.c.b16 %v8174, %v8170
    %v9099 = vpack.c.b16 %v8175, %v8171
    %v9100 = vpack.c.b16 %v8176, %v8172
    %v9101 = vpack.c.b16 %v8177, %v8173
    %v9102 = vpack.c.b16 %v8182, %v8178
    %v9103 = vpack.c.b16 %v8183, %v8179
    %v9104 = vpack.c.b16 %v8184, %v8180
    %v9105 = vpack.c.b16 %v8185, %v8181
    %v9106 = vpack.c.b16 %v8190, %v8186
    %v9107 = vpack.c.b16 %v8191, %v8187
    %v9108 = vpack.c.b16 %v8192, %v8188
    %v9109 = vpack.c.b16 %v8193, %v8189
    %v9110 = vpack.c.b16 %v8198, %v8194
    %v9111 = vpack.c.b16 %v8199, %v8195
    %v9112 = vpack.c.b16 %v8200, %v8196
    %v9113 = vpack.c.b16 %v8201, %v8197
    %v9114 = vpack.c.b16 %v8206, %v8202
    %v9115 = vpack.c.b16 %v8207, %v8203
    %v9116 = vpack.c.b16 %v8208, %v8204
    %v9117 = vpack.c.b16 %v8209, %v8205
    %v9118 = vpack.c.b16 %v8214, %v8210
    %v9119 = vpack.c.b16 %v8215, %v8211
    %v9120 = vpack.c.b16 %v8216, %v8212
    %v9121 = vpack.c.b16 %v8217, %v8213
    %v9122 = vpack.c.b16 %v8222, %v8218
    %v9123 = vpack.c.b16 %v8223, %v8219
    %v9124 = vpack.c.b16 %v8224, %v8220
    %v9125 = vpack.c.b16 %v8225, %v8221
    %v9126 = vpack.c.b16 %v8230, %v8226
    %v9127 = vpack.c.b16 %v8231, %v8227
    %v9128 = vpack.c.b16 %v8232, %v8228
    %v9129 = vpack.c.b16 %v8233, %v8229
    %v9130 = vpack.c.b16 %v8238, %v8234
    %v9131 = vpack.c.b16 %v8239, %v8235
    %v9132 = vpack.c.b16 %v8240, %v8236
    %v9133 = vpack.c.b16 %v8241, %v8237
    %v9134 = vpack.c.b16 %v8246, %v8242
    %v9135 = vpack.c.b16 %v8247, %v8243
    %v9136 = vpack.c.b16 %v8248, %v8244
    %v9137 = vpack.c.b16 %v8249, %v8245
    %v9138 = vpack.c.b16 %v8254, %v8250
    %v9139 = vpack.c.b16 %v8255, %v8251
    %v9140 = vpack.c.b16 %v8256, %v8252
    %v9141 = vpack.c.b16 %v8257, %v8253
    %v9142 = vpack.c.b16 %v8262, %v8258
    %v9143 = vpack.c.b16 %v8263, %v8259
    %v9144 = vpack.c.b16 %v8264, %v8260
    %v9145 = vpack.c.b16 %v8265, %v8261
    %v9146 = vpack.c.b16 %v8270, %v8266
    %v9147 = vpack.c.b16 %v8271, %v8267
    %v9148 = vpack.c.b16 %v8272, %v8268
    %v9149 = vpack.c.b16 %v8273, %v8269
    %v9150 = vpack.c.b16 %v8278, %v8274
    %v9151 = vpack.c.b16 %v8279, %v8275
    %v9152 = vpack.c.b16 %v8280, %v8276
    %v9153 = vpack.c.b16 %v8281, %v8277
    %v9154 = vpack.c.b16 %v8286, %v8282
    %v9155 = vpack.c.b16 %v8287, %v8283
    %v9156 = vpack.c.b16 %v8288, %v8284
    %v9157 = vpack.c.b16 %v8289, %v8285
    %v9158 = vpack.c.b16 %v8294, %v8290
    %v9159 = vpack.c.b16 %v8295, %v8291
    %v9160 = vpack.c.b16 %v8296, %v8292
    %v9161 = vpack.c.b16 %v8297, %v8293
    %v9162 = vpack.c.b16 %v8302, %v8298
    %v9163 = vpack.c.b16 %v8303, %v8299
    %v9164 = vpack.c.b16 %v8304, %v8300
    %v9165 = vpack.c.b16 %v8305, %v8301
    %v9166 = vpack.c.b16 %v8310, %v8306
    %v9167 = vpack.c.b16 %v8311, %v8307
    %v9168 = vpack.c.b16 %v8312, %v8308
    %v9169 = vpack.c.b16 %v8313, %v8309
    %v9170 = vpack.c.b16 %v8318, %v8314
    %v9171 = vpack.c.b16 %v8319, %v8315
    %v9172 = vpack.c.b16 %v8320, %v8316
    %v9173 = vpack.c.b16 %v8321, %v8317
    %v9174 = vpack.c.b16 %v8326, %v8322
    %v9175 = vpack.c.b16 %v8327, %v8323
    %v9176 = vpack.c.b16 %v8328, %v8324
    %v9177 = vpack.c.b16 %v8329, %v8325
    %v9178 = vpack.c.b16 %v8334, %v8330
    %v9179 = vpack.c.b16 %v8335, %v8331
    %v9180 = vpack.c.b16 %v8336, %v8332
    %v9181 = vpack.c.b16 %v8337, %v8333
    %v9182 = vpack.c.b16 %v8342, %v8338
    %v9183 = vpack.c.b16 %v8343, %v8339
    %v9184 = vpack.c.b16 %v8344, %v8340
    %v9185 = vpack.c.b16 %v8345, %v8341
    %v9186 = vpack.c.b16 %v8350, %v8346
    %v9187 = vpack.c.b16 %v8351, %v8347
    %v9188 = vpack.c.b16 %v8352, %v8348
    %v9189 = vpack.c.b16 %v8353, %v8349
    %v9190 = vpack.c.b16 %v8358, %v8354
    %v9191 = vpack.c.b16 %v8359, %v8355
    %v9192 = vpack.c.b16 %v8360, %v8356
    %v9193 = vpack.c.b16 %v8361, %v8357
    %v9194 = vpack.c.b16 %v8366, %v8362
    %v9195 = vpack.c.b16 %v8367, %v8363
    %v9196 = vpack.c.b16 %v8368, %v8364
    %v9197 = vpack.c.b16 %v8369, %v8365
    %v9198 = vpack.c.b16 %v8374, %v8370
    %v9199 = vpack.c.b16 %v8375, %v8371
    %v9200 = vpack.c.b16 %v8376, %v8372
    %v9201 = vpack.c.b16 %v8377, %v8373
    %v9202 = vpack.c.b16 %v8382, %v8378
    %v9203 = vpack.c.b16 %v8383, %v8379
    %v9204 = vpack.c.b16 %v8384, %v8380
    %v9205 = vpack.c.b16 %v8385, %v8381
    %v9206 = vpack.c.b16 %v8390, %v8386
    %v9207 = vpack.c.b16 %v8391, %v8387
    %v9208 = vpack.c.b16 %v8392, %v8388
    %v9209 = vpack.c.b16 %v8393, %v8389
    %v9210 = vpack.c.b16 %v8398, %v8394
    %v9211 = vpack.c.b16 %v8399, %v8395
    %v9212 = vpack.c.b16 %v8400, %v8396
    %v9213 = vpack.c.b16 %v8401, %v8397
    %v9214 = vpack.c.b16 %v8406, %v8402
    %v9215 = vpack.c.b16 %v8407, %v8403
    %v9216 = vpack.c.b16 %v8408, %v8404
    %v9217 = vpack.c.b16 %v8409, %v8405
    %v9218 = vpack.c.b16 %v8414, %v8410
    %v9219 = vpack.c.b16 %v8415, %v8411
    %v9220 = vpack.c.b16 %v8416, %v8412
    %v9221 = vpack.c.b16 %v8417, %v8413
    %v9222 = vpack.c.b16 %v8422, %v8418
    %v9223 = vpack.c.b16 %v8423, %v8419
    %v9224 = vpack.c.b16 %v8424, %v8420
    %v9225 = vpack.c.b16 %v8425, %v8421
    %v9226 = vpack.c.b16 %v8430, %v8426
    %v9227 = vpack.c.b16 %v8431, %v8427
    %v9228 = vpack.c.b16 %v8432, %v8428
    %v9229 = vpack.c.b16 %v8433, %v8429
    %v9230 = vpack.c.b16 %v8438, %v8434
    %v9231 = vpack.c.b16 %v8439, %v8435
    %v9232 = vpack.c.b16 %v8440, %v8436
    %v9233 = vpack.c.b16 %v8441, %v8437
    %v9234 = vpack.c.b16 %v8446, %v8442
    %v9235 = vpack.c.b16 %v8447, %v8443
    %v9236 = vpack.c.b16 %v8448, %v8444
    %v9237 = vpack.c.b16 %v8449, %v8445
    %v9238 = vpack.c.b16 %v8454, %v8450
    %v9239 = vpack.c.b16 %v8455, %v8451
    %v9240 = vpack.c.b16 %v8456, %v8452
    %v9241 = vpack.c.b16 %v8457, %v8453
    %v9242 = vpack.c.b16 %v8462, %v8458
    %v9243 = vpack.c.b16 %v8463, %v8459
    %v9244 = vpack.c.b16 %v8464, %v8460
    %v9245 = vpack.c.b16 %v8465, %v8461
    %v9246 = vpack.c.b16 %v8470, %v8466
    %v9247 = vpack.c.b16 %v8471, %v8467
    %v9248 = vpack.c.b16 %v8472, %v8468
    %v9249 = vpack.c.b16 %v8473, %v8469
    %v9250 = vpack.c.b16 %v8478, %v8474
    %v9251 = vpack.c.b16 %v8479, %v8475
    %v9252 = vpack.c.b16 %v8480, %v8476
    %v9253 = vpack.c.b16 %v8481, %v8477
    %v9254 = vpack.c.b16 %v8486, %v8482
    %v9255 = vpack.c.b16 %v8487, %v8483
    %v9256 = vpack.c.b16 %v8488, %v8484
    %v9257 = vpack.c.b16 %v8489, %v8485
    %v9258 = vpack.c.b16 %v8494, %v8490
    %v9259 = vpack.c.b16 %v8495, %v8491
    %v9260 = vpack.c.b16 %v8496, %v8492
    %v9261 = vpack.c.b16 %v8497, %v8493
    %v9262 = vpack.c.b16 %v8502, %v8498
    %v9263 = vpack.c.b16 %v8503, %v8499
    %v9264 = vpack.c.b16 %v8504, %v8500
    %v9265 = vpack.c.b16 %v8505, %v8501
    %v9266 = vpack.c.b16 %v8510, %v8506
    %v9267 = vpack.c.b16 %v8511, %v8507
    %v9268 = vpack.c.b16 %v8512, %v8508
    %v9269 = vpack.c.b16 %v8513, %v8509
    %v9270 = vpack.c.b16 %v8518, %v8514
    %v9271 = vpack.c.b16 %v8519, %v8515
    %v9272 = vpack.c.b16 %v8520, %v8516
    %v9273 = vpack.c.b16 %v8521, %v8517
    %v9274 = vpack.c.b16 %v8526, %v8522
    %v9275 = vpack.c.b16 %v8527, %v8523
    %v9276 = vpack.c.b16 %v8528, %v8524
    %v9277 = vpack.c.b16 %v8529, %v8525
    %v9278 = vpack.c.b16 %v8534, %v8530
    %v9279 = vpack.c.b16 %v8535, %v8531
    %v9280 = vpack.c.b16 %v8536, %v8532
    %v9281 = vpack.c.b16 %v8537, %v8533
    %v9282 = vpack.c.b16 %v8542, %v8538
    %v9283 = vpack.c.b16 %v8543, %v8539
    %v9284 = vpack.c.b16 %v8544, %v8540
    %v9285 = vpack.c.b16 %v8545, %v8541
    %v9286 = vpack.c.b16 %v8550, %v8546
    %v9287 = vpack.c.b16 %v8551, %v8547
    %v9288 = vpack.c.b16 %v8552, %v8548
    %v9289 = vpack.c.b16 %v8553, %v8549
    %v9290 = vpack.c.b16 %v8558, %v8554
    %v9291 = vpack.c.b16 %v8559, %v8555
    %v9292 = vpack.c.b16 %v8560, %v8556
    %v9293 = vpack.c.b16 %v8561, %v8557
    %v9294 = vpack.c.b16 %v8566, %v8562
    %v9295 = vpack.c.b16 %v8567, %v8563
    %v9296 = vpack.c.b16 %v8568, %v8564
    %v9297 = vpack.c.b16 %v8569, %v8565
    %v9298 = vpack.c.b16 %v8574, %v8570
    %v9299 = vpack.c.b16 %v8575, %v8571
    %v9300 = vpack.c.b16 %v8576, %v8572
    %v9301 = vpack.c.b16 %v8577, %v8573
    %v9302 = vpack.c.b16 %v8582, %v8578
    %v9303 = vpack.c.b16 %v8583, %v8579
    %v9304 = vpack.c.b16 %v8584, %v8580
    %v9305 = vpack.c.b16 %v8585, %v8581
    %v9306 = vpack.c.b16 %v8590, %v8586
    %v9307 = vpack.c.b16 %v8591, %v8587
    %v9308 = vpack.c.b16 %v8592, %v8588
    %v9309 = vpack.c.b16 %v8593, %v8589
    %v9310 = vpack.c.b16 %v8598, %v8594
    %v9311 = vpack.c.b16 %v8599, %v8595
    %v9312 = vpack.c.b16 %v8600, %v8596
    %v9313 = vpack.c.b16 %v8601, %v8597
    %v9314 = vpack.c.b16 %v8606, %v8602
    %v9315 = vpack.c.b16 %v8607, %v8603
    %v9316 = vpack.c.b16 %v8608, %v8604
    %v9317 = vpack.c.b16 %v8609, %v8605
    %v9318 = vpack.c.b16 %v8614, %v8610
    %v9319 = vpack.c.b16 %v8615, %v8611
    %v9320 = vpack.c.b16 %v8616, %v8612
    %v9321 = vpack.c.b16 %v8617, %v8613
    %v9322 = vpack.c.b16 %v8622, %v8618
    %v9323 = vpack.c.b16 %v8623, %v8619
    %v9324 = vpack.c.b16 %v8624, %v8620
    %v9325 = vpack.c.b16 %v8625, %v8621
    %v9326 = vpack.c.b16 %v8630, %v8626
    %v9327 = vpack.c.b16 %v8631, %v8627
    %v9328 = vpack.c.b16 %v8632, %v8628
    %v9329 = vpack.c.b16 %v8633, %v8629
    %v9330 = vpack.c.b16 %v8638, %v8634
    %v9331 = vpack.c.b16 %v8639, %v8635
    %v9332 = vpack.c.b16 %v8640, %v8636
    %v9333 = vpack.c.b16 %v8641, %v8637
    %v9334 = vpack.c.b16 %v8646, %v8642
    %v9335 = vpack.c.b16 %v8647, %v8643
    %v9336 = vpack.c.b16 %v8648, %v8644
    %v9337 = vpack.c.b16 %v8649, %v8645
    %v9338 = vpack.c.b16 %v8654, %v8650
    %v9339 = vpack.c.b16 %v8655, %v8651
    %v9340 = vpack.c.b16 %v8656, %v8652
    %v9341 = vpack.c.b16 %v8657, %v8653
    %v9342 = vpack.c.b16 %v8662, %v8658
    %v9343 = vpack.c.b16 %v8663, %v8659
    %v9344 = vpack.c.b16 %v8664, %v8660
    %v9345 = vpack.c.b16 %v8665, %v8661
    %v9346 = vpack.c.b16 %v8670, %v8666
    %v9347 = vpack.c.b16 %v8671, %v8667
    %v9348 = vpack.c.b16 %v8672, %v8668
    %v9349 = vpack.c.b16 %v8673, %v8669
    %v9350 = vpack.c.b16 %v8678, %v8674
    %v9351 = vpack.c.b16 %v8679, %v8675
    %v9352 = vpack.c.b16 %v8680, %v8676
    %v9353 = vpack.c.b16 %v8681, %v8677
    %v9354 = vpack.c.b16 %v8686, %v8682
    %v9355 = vpack.c.b16 %v8687, %v8683
    %v9356 = vpack.c.b16 %v8688, %v8684
    %v9357 = vpack.c.b16 %v8689, %v8685
    %v9358 = vpack.c.b16 %v8694, %v8690
    %v9359 = vpack.c.b16 %v8695, %v8691
    %v9360 = vpack.c.b16 %v8696, %v8692
    %v9361 = vpack.c.b16 %v8697, %v8693
    %v9362 = vpack.c.b16 %v8702, %v8698
    %v9363 = vpack.c.b16 %v8703, %v8699
    %v9364 = vpack.c.b16 %v8704, %v8700
    %v9365 = vpack.c.b16 %v8705, %v8701
    %v9366 = vpack.c.b16 %v8710, %v8706
    %v9367 = vpack.c.b16 %v8711, %v8707
    %v9368 = vpack.c.b16 %v8712, %v8708
    %v9369 = vpack.c.b16 %v8713, %v8709
    %v9370 = vpack.c.b16 %v8718, %v8714
    %v9371 = vpack.c.b16 %v8719, %v8715
    %v9372 = vpack.c.b16 %v8720, %v8716
    %v9373 = vpack.c.b16 %v8721, %v8717
    %v9374 = vpack.c.b16 %v8726, %v8722
    %v9375 = vpack.c.b16 %v8727, %v8723
    %v9376 = vpack.c.b16 %v8728, %v8724
    %v9377 = vpack.c.b16 %v8729, %v8725
    %v9378 = vpack.c.b16 %v8734, %v8730
    %v9379 = vpack.c.b16 %v8735, %v8731
    %v9380 = vpack.c.b16 %v8736, %v8732
    %v9381 = vpack.c.b16 %v8737, %v8733
    %v9382 = vpack.c.b16 %v8742, %v8738
    %v9383 = vpack.c.b16 %v8743, %v8739
    %v9384 = vpack.c.b16 %v8744, %v8740
    %v9385 = vpack.c.b16 %v8745, %v8741
    %v9386 = vpack.c.b16 %v8750, %v8746
    %v9387 = vpack.c.b16 %v8751, %v8747
    %v9388 = vpack.c.b16 %v8752, %v8748
    %v9389 = vpack.c.b16 %v8753, %v8749
    %v9390 = vpack.c.b16 %v8758, %v8754
    %v9391 = vpack.c.b16 %v8759, %v8755
    %v9392 = vpack.c.b16 %v8760, %v8756
    %v9393 = vpack.c.b16 %v8761, %v8757
    %v9394 = vpack.c.b16 %v8766, %v8762
    %v9395 = vpack.c.b16 %v8767, %v8763
    %v9396 = vpack.c.b16 %v8768, %v8764
    %v9397 = vpack.c.b16 %v8769, %v8765
    %v9398 = vpack.c.b16 %v8774, %v8770
    %v9399 = vpack.c.b16 %v8775, %v8771
    %v9400 = vpack.c.b16 %v8776, %v8772
    %v9401 = vpack.c.b16 %v8777, %v8773
    %v9402 = vpack.c.b16 %v8782, %v8778
    %v9403 = vpack.c.b16 %v8783, %v8779
    %v9404 = vpack.c.b16 %v8784, %v8780
    %v9405 = vpack.c.b16 %v8785, %v8781
    %v9406 = vpack.c.b16 %v8790, %v8786
    %v9407 = vpack.c.b16 %v8791, %v8787
    %v9408 = vpack.c.b16 %v8792, %v8788
    %v9409 = vpack.c.b16 %v8793, %v8789
    %v9410 = vpack.c.b16 %v8798, %v8794
    %v9411 = vpack.c.b16 %v8799, %v8795
    %v9412 = vpack.c.b16 %v8800, %v8796
    %v9413 = vpack.c.b16 %v8801, %v8797
    %v9414 = vpack.c.b16 %v8806, %v8802
    %v9415 = vpack.c.b16 %v8807, %v8803
    %v9416 = vpack.c.b16 %v8808, %v8804
    %v9417 = vpack.c.b16 %v8809, %v8805
    %v9418 = vpack.c.b16 %v8814, %v8810
    %v9419 = vpack.c.b16 %v8815, %v8811
    %v9420 = vpack.c.b16 %v8816, %v8812
    %v9421 = vpack.c.b16 %v8817, %v8813
    %v9422 = vpack.c.b16 %v8822, %v8818
    %v9423 = vpack.c.b16 %v8823, %v8819
    %v9424 = vpack.c.b16 %v8824, %v8820
    %v9425 = vpack.c.b16 %v8825, %v8821
    %v9426 = vpack.c.b16 %v8830, %v8826
    %v9427 = vpack.c.b16 %v8831, %v8827
    %v9428 = vpack.c.b16 %v8832, %v8828
    %v9429 = vpack.c.b16 %v8833, %v8829
    %v9430 = vpack.c.b16 %v8838, %v8834
    %v9431 = vpack.c.b16 %v8839, %v8835
    %v9432 = vpack.c.b16 %v8840, %v8836
    %v9433 = vpack.c.b16 %v8841, %v8837
    %v9434 = vpack.c.b16 %v8846, %v8842
    %v9435 = vpack.c.b16 %v8847, %v8843
    %v9436 = vpack.c.b16 %v8848, %v8844
    %v9437 = vpack.c.b16 %v8849, %v8845
    %v9438 = vpack.c.b16 %v8854, %v8850
    %v9439 = vpack.c.b16 %v8855, %v8851
    %v9440 = vpack.c.b16 %v8856, %v8852
    %v9441 = vpack.c.b16 %v8857, %v8853
    %v9442 = vpack.c.b16 %v8862, %v8858
    %v9443 = vpack.c.b16 %v8863, %v8859
    %v9444 = vpack.c.b16 %v8864, %v8860
    %v9445 = vpack.c.b16 %v8865, %v8861
    %v9446 = vpack.c.b16 %v8870, %v8866
    %v9447 = vpack.c.b16 %v8871, %v8867
    %v9448 = vpack.c.b16 %v8872, %v8868
    %v9449 = vpack.c.b16 %v8873, %v8869
    %10026 = vmatpush.bf16.msra.mxu0 %v8902
    %10027 = vmatpush.bf16.msra.mxu0 %v8898
    %10028 = vmatpush.bf16.msra.mxu0 %v8894
    %10029 = vmatpush.bf16.msra.mxu0 %v8890
    %10030 = vmatpush.bf16.msra.mxu0 %v8886
    %10031 = vmatpush.bf16.msra.mxu0 %v8882
    %10032 = vmatpush.bf16.msra.mxu0 %v8878
    %10033 = vmatpush.bf16.msra.mxu0 %v8874
    %10034 = vmatmul.bf16.gmra.mxu0 %v6534
    %v10035 = vpop.f32.mrf.mxu0
    %v10036 = vadd.f32 0.0, %v10035
    %v10037 = vpop.f32.mrf.mxu0
    %v10038 = vadd.f32 0.0, %v10037
    %10039 = vmatmul.bf16.gmra.mxu0 %v6552
    %v10040 = vpop.f32.mrf.mxu0
    %v10041 = vadd.f32 0.0, %v10040
    %v10042 = vpop.f32.mrf.mxu0
    %10043 = vdwg.mxu0
    %10044 = vmatpush.bf16.msra.mxu0 %v8934
    %10045 = vmatpush.bf16.msra.mxu0 %v8930
    %10046 = vmatpush.bf16.msra.mxu0 %v8926
    %10047 = vmatpush.bf16.msra.mxu0 %v8922
    %10048 = vmatpush.bf16.msra.mxu0 %v8918
    %10049 = vmatpush.bf16.msra.mxu0 %v8914
    %10050 = vmatpush.bf16.msra.mxu0 %v8910
    %10051 = vmatpush.bf16.msra.mxu0 %v8906
    %10052 = vmatmul.bf16.gmra.mxu0 %v6535
    %v10053 = vpop.f32.mrf.mxu0
    %v10054 = vadd.f32 %v10036, %v10053
    %v10055 = vpop.f32.mrf.mxu0
    %v10056 = vadd.f32 %v10038, %v10055
    %10057 = vmatmul.bf16.gmra.mxu0 %v6553
    %v10058 = vpop.f32.mrf.mxu0
    %v10059 = vadd.f32 %v10041, %v10058
    %v10060 = vpop.f32.mrf.mxu0
    %10061 = vdwg.mxu0
    %10062 = vmatpush.bf16.msra.mxu0 %v8966
    %10063 = vmatpush.bf16.msra.mxu0 %v8962
    %10064 = vmatpush.bf16.msra.mxu0 %v8958
    %10065 = vmatpush.bf16.msra.mxu0 %v8954
    %10066 = vmatpush.bf16.msra.mxu0 %v8950
    %10067 = vmatpush.bf16.msra.mxu0 %v8946
    %10068 = vmatpush.bf16.msra.mxu0 %v8942
    %10069 = vmatpush.bf16.msra.mxu0 %v8938
    %10070 = vmatmul.bf16.gmra.mxu0 %v6536
    %v10071 = vpop.f32.mrf.mxu0
    %v10072 = vadd.f32 %v10054, %v10071
    %v10073 = vpop.f32.mrf.mxu0
    %v10074 = vadd.f32 %v10056, %v10073
    %10075 = vmatmul.bf16.gmra.mxu0 %v6554
    %v10076 = vpop.f32.mrf.mxu0
    %v10077 = vadd.f32 %v10059, %v10076
    %v10078 = vpop.f32.mrf.mxu0
    %10079 = vdwg.mxu0
    %10080 = vmatpush.bf16.msra.mxu0 %v8998
    %10081 = vmatpush.bf16.msra.mxu0 %v8994
    %10082 = vmatpush.bf16.msra.mxu0 %v8990
    %10083 = vmatpush.bf16.msra.mxu0 %v8986
    %10084 = vmatpush.bf16.msra.mxu0 %v8982
    %10085 = vmatpush.bf16.msra.mxu0 %v8978
    %10086 = vmatpush.bf16.msra.mxu0 %v8974
    %10087 = vmatpush.bf16.msra.mxu0 %v8970
    %10088 = vmatmul.bf16.gmra.mxu0 %v6537
    %v10089 = vpop.f32.mrf.mxu0
    %v10090 = vadd.f32 %v10072, %v10089
    %v10091 = vpop.f32.mrf.mxu0
    %v10092 = vadd.f32 %v10074, %v10091
    %10093 = vmatmul.bf16.gmra.mxu0 %v6555
    %v10094 = vpop.f32.mrf.mxu0
    %v10095 = vadd.f32 %v10077, %v10094
    %v10096 = vpop.f32.mrf.mxu0
    %10097 = vdwg.mxu0
    %10098 = vmatpush.bf16.msra.mxu0 %v9030
    %10099 = vmatpush.bf16.msra.mxu0 %v9026
    %10100 = vmatpush.bf16.msra.mxu0 %v9022
    %10101 = vmatpush.bf16.msra.mxu0 %v9018
    %10102 = vmatpush.bf16.msra.mxu0 %v9014
    %10103 = vmatpush.bf16.msra.mxu0 %v9010
    %10104 = vmatpush.bf16.msra.mxu0 %v9006
    %10105 = vmatpush.bf16.msra.mxu0 %v9002
    %10106 = vmatmul.bf16.gmra.mxu0 %v6538
    %v10107 = vpop.f32.mrf.mxu0
    %v10108 = vadd.f32 %v10090, %v10107
    %v10109 = vpop.f32.mrf.mxu0
    %v10110 = vadd.f32 %v10092, %v10109
    %10111 = vmatmul.bf16.gmra.mxu0 %v6556
    %v10112 = vpop.f32.mrf.mxu0
    %v10113 = vadd.f32 %v10095, %v10112
    %v10114 = vpop.f32.mrf.mxu0
    %10115 = vdwg.mxu0
    %10116 = vmatpush.bf16.msra.mxu0 %v9062
    %10117 = vmatpush.bf16.msra.mxu0 %v9058
    %10118 = vmatpush.bf16.msra.mxu0 %v9054
    %10119 = vmatpush.bf16.msra.mxu0 %v9050
    %10120 = vmatpush.bf16.msra.mxu0 %v9046
    %10121 = vmatpush.bf16.msra.mxu0 %v9042
    %10122 = vmatpush.bf16.msra.mxu0 %v9038
    %10123 = vmatpush.bf16.msra.mxu0 %v9034
    %10124 = vmatmul.bf16.gmra.mxu0 %v6539
    %v10125 = vpop.f32.mrf.mxu0
    %v10126 = vadd.f32 %v10108, %v10125
    %v10127 = vpop.f32.mrf.mxu0
    %v10128 = vadd.f32 %v10110, %v10127
    %10129 = vmatmul.bf16.gmra.mxu0 %v6557
    %v10130 = vpop.f32.mrf.mxu0
    %v10131 = vadd.f32 %v10113, %v10130
    %v10132 = vpop.f32.mrf.mxu0
    %10133 = vdwg.mxu0
    %10134 = vmatpush.bf16.msra.mxu0 %v9094
    %10135 = vmatpush.bf16.msra.mxu0 %v9090
    %10136 = vmatpush.bf16.msra.mxu0 %v9086
    %10137 = vmatpush.bf16.msra.mxu0 %v9082
    %10138 = vmatpush.bf16.msra.mxu0 %v9078
    %10139 = vmatpush.bf16.msra.mxu0 %v9074
    %10140 = vmatpush.bf16.msra.mxu0 %v9070
    %10141 = vmatpush.bf16.msra.mxu0 %v9066
    %10142 = vmatmul.bf16.gmra.mxu0 %v6540
    %v10143 = vpop.f32.mrf.mxu0
    %v10144 = vadd.f32 %v10126, %v10143
    %v10145 = vpop.f32.mrf.mxu0
    %v10146 = vadd.f32 %v10128, %v10145
    %10147 = vmatmul.bf16.gmra.mxu0 %v6558
    %v10148 = vpop.f32.mrf.mxu0
    %v10149 = vadd.f32 %v10131, %v10148
    %v10150 = vpop.f32.mrf.mxu0
    %10151 = vdwg.mxu0
    %10152 = vmatpush.bf16.msra.mxu0 %v9126
    %10153 = vmatpush.bf16.msra.mxu0 %v9122
    %10154 = vmatpush.bf16.msra.mxu0 %v9118
    %10155 = vmatpush.bf16.msra.mxu0 %v9114
    %10156 = vmatpush.bf16.msra.mxu0 %v9110
    %10157 = vmatpush.bf16.msra.mxu0 %v9106
    %10158 = vmatpush.bf16.msra.mxu0 %v9102
    %10159 = vmatpush.bf16.msra.mxu0 %v9098
    %10160 = vmatmul.bf16.gmra.mxu0 %v6541
    %v10161 = vpop.f32.mrf.mxu0
    %v10162 = vadd.f32 %v10144, %v10161
    %v10163 = vpop.f32.mrf.mxu0
    %v10164 = vadd.f32 %v10146, %v10163
    %10165 = vmatmul.bf16.gmra.mxu0 %v6559
    %v10166 = vpop.f32.mrf.mxu0
    %v10167 = vadd.f32 %v10149, %v10166
    %v10168 = vpop.f32.mrf.mxu0
    %10169 = vdwg.mxu0
    %10170 = vmatpush.bf16.msra.mxu0 %v9158
    %10171 = vmatpush.bf16.msra.mxu0 %v9154
    %10172 = vmatpush.bf16.msra.mxu0 %v9150
    %10173 = vmatpush.bf16.msra.mxu0 %v9146
    %10174 = vmatpush.bf16.msra.mxu0 %v9142
    %10175 = vmatpush.bf16.msra.mxu0 %v9138
    %10176 = vmatpush.bf16.msra.mxu0 %v9134
    %10177 = vmatpush.bf16.msra.mxu0 %v9130
    %10178 = vmatmul.bf16.gmra.mxu0 %v6542
    %v10179 = vpop.f32.mrf.mxu0
    %v10180 = vadd.f32 %v10162, %v10179
    %v10181 = vpop.f32.mrf.mxu0
    %v10182 = vadd.f32 %v10164, %v10181
    %10183 = vmatmul.bf16.gmra.mxu0 %v6560
    %v10184 = vpop.f32.mrf.mxu0
    %v10185 = vadd.f32 %v10167, %v10184
    %v10186 = vpop.f32.mrf.mxu0
    %10187 = vdwg.mxu0
    %10188 = vmatpush.bf16.msra.mxu0 %v9190
    %10189 = vmatpush.bf16.msra.mxu0 %v9186
    %10190 = vmatpush.bf16.msra.mxu0 %v9182
    %10191 = vmatpush.bf16.msra.mxu0 %v9178
    %10192 = vmatpush.bf16.msra.mxu0 %v9174
    %10193 = vmatpush.bf16.msra.mxu0 %v9170
    %10194 = vmatpush.bf16.msra.mxu0 %v9166
    %10195 = vmatpush.bf16.msra.mxu0 %v9162
    %10196 = vmatmul.bf16.gmra.mxu0 %v6543
    %v10197 = vpop.f32.mrf.mxu0
    %v10198 = vadd.f32 %v10180, %v10197
    %v10199 = vpop.f32.mrf.mxu0
    %v10200 = vadd.f32 %v10182, %v10199
    %10201 = vmatmul.bf16.gmra.mxu0 %v6561
    %v10202 = vpop.f32.mrf.mxu0
    %v10203 = vadd.f32 %v10185, %v10202
    %v10204 = vpop.f32.mrf.mxu0
    %10205 = vdwg.mxu0
    %10206 = vmatpush.bf16.msra.mxu0 %v9222
    %10207 = vmatpush.bf16.msra.mxu0 %v9218
    %10208 = vmatpush.bf16.msra.mxu0 %v9214
    %10209 = vmatpush.bf16.msra.mxu0 %v9210
    %10210 = vmatpush.bf16.msra.mxu0 %v9206
    %10211 = vmatpush.bf16.msra.mxu0 %v9202
    %10212 = vmatpush.bf16.msra.mxu0 %v9198
    %10213 = vmatpush.bf16.msra.mxu0 %v9194
    %10214 = vmatmul.bf16.gmra.mxu0 %v6544
    %v10215 = vpop.f32.mrf.mxu0
    %v10216 = vadd.f32 %v10198, %v10215
    %v10217 = vpop.f32.mrf.mxu0
    %v10218 = vadd.f32 %v10200, %v10217
    %10219 = vmatmul.bf16.gmra.mxu0 %v6562
    %v10220 = vpop.f32.mrf.mxu0
    %v10221 = vadd.f32 %v10203, %v10220
    %v10222 = vpop.f32.mrf.mxu0
    %10223 = vdwg.mxu0
    %10224 = vmatpush.bf16.msra.mxu0 %v9254
    %10225 = vmatpush.bf16.msra.mxu0 %v9250
    %10226 = vmatpush.bf16.msra.mxu0 %v9246
    %10227 = vmatpush.bf16.msra.mxu0 %v9242
    %10228 = vmatpush.bf16.msra.mxu0 %v9238
    %10229 = vmatpush.bf16.msra.mxu0 %v9234
    %10230 = vmatpush.bf16.msra.mxu0 %v9230
    %10231 = vmatpush.bf16.msra.mxu0 %v9226
    %10232 = vmatmul.bf16.gmra.mxu0 %v6545
    %v10233 = vpop.f32.mrf.mxu0
    %v10234 = vadd.f32 %v10216, %v10233
    %v10235 = vpop.f32.mrf.mxu0
    %v10236 = vadd.f32 %v10218, %v10235
    %10237 = vmatmul.bf16.gmra.mxu0 %v6563
    %v10238 = vpop.f32.mrf.mxu0
    %v10239 = vadd.f32 %v10221, %v10238
    %v10240 = vpop.f32.mrf.mxu0
    %10241 = vdwg.mxu0
    %10242 = vmatpush.bf16.msra.mxu0 %v9286
    %10243 = vmatpush.bf16.msra.mxu0 %v9282
    %10244 = vmatpush.bf16.msra.mxu0 %v9278
    %10245 = vmatpush.bf16.msra.mxu0 %v9274
    %10246 = vmatpush.bf16.msra.mxu0 %v9270
    %10247 = vmatpush.bf16.msra.mxu0 %v9266
    %10248 = vmatpush.bf16.msra.mxu0 %v9262
    %10249 = vmatpush.bf16.msra.mxu0 %v9258
    %10250 = vmatmul.bf16.gmra.mxu0 %v6546
    %v10251 = vpop.f32.mrf.mxu0
    %v10252 = vadd.f32 %v10234, %v10251
    %v10253 = vpop.f32.mrf.mxu0
    %v10254 = vadd.f32 %v10236, %v10253
    %10255 = vmatmul.bf16.gmra.mxu0 %v6564
    %v10256 = vpop.f32.mrf.mxu0
    %v10257 = vadd.f32 %v10239, %v10256
    %v10258 = vpop.f32.mrf.mxu0
    %10259 = vdwg.mxu0
    %10260 = vmatpush.bf16.msra.mxu0 %v9318
    %10261 = vmatpush.bf16.msra.mxu0 %v9314
    %10262 = vmatpush.bf16.msra.mxu0 %v9310
    %10263 = vmatpush.bf16.msra.mxu0 %v9306
    %10264 = vmatpush.bf16.msra.mxu0 %v9302
    %10265 = vmatpush.bf16.msra.mxu0 %v9298
    %10266 = vmatpush.bf16.msra.mxu0 %v9294
    %10267 = vmatpush.bf16.msra.mxu0 %v9290
    %10268 = vmatmul.bf16.gmra.mxu0 %v6547
    %v10269 = vpop.f32.mrf.mxu0
    %v10270 = vadd.f32 %v10252, %v10269
    %v10271 = vpop.f32.mrf.mxu0
    %v10272 = vadd.f32 %v10254, %v10271
    %10273 = vmatmul.bf16.gmra.mxu0 %v6565
    %v10274 = vpop.f32.mrf.mxu0
    %v10275 = vadd.f32 %v10257, %v10274
    %v10276 = vpop.f32.mrf.mxu0
    %10277 = vdwg.mxu0
    %10278 = vmatpush.bf16.msra.mxu0 %v9350
    %10279 = vmatpush.bf16.msra.mxu0 %v9346
    %10280 = vmatpush.bf16.msra.mxu0 %v9342
    %10281 = vmatpush.bf16.msra.mxu0 %v9338
    %10282 = vmatpush.bf16.msra.mxu0 %v9334
    %10283 = vmatpush.bf16.msra.mxu0 %v9330
    %10284 = vmatpush.bf16.msra.mxu0 %v9326
    %10285 = vmatpush.bf16.msra.mxu0 %v9322
    %10286 = vmatmul.bf16.gmra.mxu0 %v6548
    %v10287 = vpop.f32.mrf.mxu0
    %v10288 = vadd.f32 %v10270, %v10287
    %v10289 = vpop.f32.mrf.mxu0
    %v10290 = vadd.f32 %v10272, %v10289
    %10291 = vmatmul.bf16.gmra.mxu0 %v6566
    %v10292 = vpop.f32.mrf.mxu0
    %v10293 = vadd.f32 %v10275, %v10292
    %v10294 = vpop.f32.mrf.mxu0
    %10295 = vdwg.mxu0
    %10296 = vmatpush.bf16.msra.mxu0 %v9382
    %10297 = vmatpush.bf16.msra.mxu0 %v9378
    %10298 = vmatpush.bf16.msra.mxu0 %v9374
    %10299 = vmatpush.bf16.msra.mxu0 %v9370
    %10300 = vmatpush.bf16.msra.mxu0 %v9366
    %10301 = vmatpush.bf16.msra.mxu0 %v9362
    %10302 = vmatpush.bf16.msra.mxu0 %v9358
    %10303 = vmatpush.bf16.msra.mxu0 %v9354
    %10304 = vmatmul.bf16.gmra.mxu0 %v6549
    %v10305 = vpop.f32.mrf.mxu0
    %v10306 = vadd.f32 %v10288, %v10305
    %v10307 = vpop.f32.mrf.mxu0
    %v10308 = vadd.f32 %v10290, %v10307
    %10309 = vmatmul.bf16.gmra.mxu0 %v6567
    %v10310 = vpop.f32.mrf.mxu0
    %v10311 = vadd.f32 %v10293, %v10310
    %v10312 = vpop.f32.mrf.mxu0
    %10313 = vdwg.mxu0
    %10314 = vmatpush.bf16.msra.mxu0 %v9414
    %10315 = vmatpush.bf16.msra.mxu0 %v9410
    %10316 = vmatpush.bf16.msra.mxu0 %v9406
    %10317 = vmatpush.bf16.msra.mxu0 %v9402
    %10318 = vmatpush.bf16.msra.mxu0 %v9398
    %10319 = vmatpush.bf16.msra.mxu0 %v9394
    %10320 = vmatpush.bf16.msra.mxu0 %v9390
    %10321 = vmatpush.bf16.msra.mxu0 %v9386
    %10322 = vmatmul.bf16.gmra.mxu0 %v6550
    %v10323 = vpop.f32.mrf.mxu0
    %v10324 = vadd.f32 %v10306, %v10323
    %v10325 = vpop.f32.mrf.mxu0
    %v10326 = vadd.f32 %v10308, %v10325
    %10327 = vmatmul.bf16.gmra.mxu0 %v6568
    %v10328 = vpop.f32.mrf.mxu0
    %v10329 = vadd.f32 %v10311, %v10328
    %v10330 = vpop.f32.mrf.mxu0
    %10331 = vdwg.mxu0
    %10332 = vmatpush.bf16.msra.mxu0 %v9446
    %10333 = vmatpush.bf16.msra.mxu0 %v9442
    %10334 = vmatpush.bf16.msra.mxu0 %v9438
    %10335 = vmatpush.bf16.msra.mxu0 %v9434
    %10336 = vmatpush.bf16.msra.mxu0 %v9430
    %10337 = vmatpush.bf16.msra.mxu0 %v9426
    %10338 = vmatpush.bf16.msra.mxu0 %v9422
    %10339 = vmatpush.bf16.msra.mxu0 %v9418
    %10340 = vmatmul.bf16.gmra.mxu0 %v6551
    %v10341 = vpop.f32.mrf.mxu0
    %v10342 = vadd.f32 %v10324, %v10341
    %v10343 = vpop.f32.mrf.mxu0
    %v10344 = vadd.f32 %v10326, %v10343
    %10345 = vmatmul.bf16.gmra.mxu0 %v6569
    %v10346 = vpop.f32.mrf.mxu0
    %v10347 = vadd.f32 %v10329, %v10346
    %v10348 = vpop.f32.mrf.mxu0
    %10349 = vdwg.mxu0
    %10350 = vmatpush.bf16.msra.mxu0 %v8903
    %10351 = vmatpush.bf16.msra.mxu0 %v8899
    %10352 = vmatpush.bf16.msra.mxu0 %v8895
    %10353 = vmatpush.bf16.msra.mxu0 %v8891
    %10354 = vmatpush.bf16.msra.mxu0 %v8887
    %10355 = vmatpush.bf16.msra.mxu0 %v8883
    %10356 = vmatpush.bf16.msra.mxu0 %v8879
    %10357 = vmatpush.bf16.msra.mxu0 %v8875
    %10358 = vmatmul.bf16.gmra.mxu0 %v6534
    %v10359 = vpop.f32.mrf.mxu0
    %v10360 = vadd.f32 0.0, %v10359
    %v10361 = vpop.f32.mrf.mxu0
    %v10362 = vadd.f32 0.0, %v10361
    %10363 = vmatmul.bf16.gmra.mxu0 %v6552
    %v10364 = vpop.f32.mrf.mxu0
    %v10365 = vadd.f32 0.0, %v10364
    %v10366 = vpop.f32.mrf.mxu0
    %10367 = vdwg.mxu0
    %10368 = vmatpush.bf16.msra.mxu0 %v8935
    %10369 = vmatpush.bf16.msra.mxu0 %v8931
    %10370 = vmatpush.bf16.msra.mxu0 %v8927
    %10371 = vmatpush.bf16.msra.mxu0 %v8923
    %10372 = vmatpush.bf16.msra.mxu0 %v8919
    %10373 = vmatpush.bf16.msra.mxu0 %v8915
    %10374 = vmatpush.bf16.msra.mxu0 %v8911
    %10375 = vmatpush.bf16.msra.mxu0 %v8907
    %10376 = vmatmul.bf16.gmra.mxu0 %v6535
    %v10377 = vpop.f32.mrf.mxu0
    %v10378 = vadd.f32 %v10360, %v10377
    %v10379 = vpop.f32.mrf.mxu0
    %v10380 = vadd.f32 %v10362, %v10379
    %10381 = vmatmul.bf16.gmra.mxu0 %v6553
    %v10382 = vpop.f32.mrf.mxu0
    %v10383 = vadd.f32 %v10365, %v10382
    %v10384 = vpop.f32.mrf.mxu0
    %10385 = vdwg.mxu0
    %10386 = vmatpush.bf16.msra.mxu0 %v8967
    %10387 = vmatpush.bf16.msra.mxu0 %v8963
    %10388 = vmatpush.bf16.msra.mxu0 %v8959
    %10389 = vmatpush.bf16.msra.mxu0 %v8955
    %10390 = vmatpush.bf16.msra.mxu0 %v8951
    %10391 = vmatpush.bf16.msra.mxu0 %v8947
    %10392 = vmatpush.bf16.msra.mxu0 %v8943
    %10393 = vmatpush.bf16.msra.mxu0 %v8939
    %10394 = vmatmul.bf16.gmra.mxu0 %v6536
    %v10395 = vpop.f32.mrf.mxu0
    %v10396 = vadd.f32 %v10378, %v10395
    %v10397 = vpop.f32.mrf.mxu0
    %v10398 = vadd.f32 %v10380, %v10397
    %10399 = vmatmul.bf16.gmra.mxu0 %v6554
    %v10400 = vpop.f32.mrf.mxu0
    %v10401 = vadd.f32 %v10383, %v10400
    %v10402 = vpop.f32.mrf.mxu0
    %10403 = vdwg.mxu0
    %10404 = vmatpush.bf16.msra.mxu0 %v8999
    %10405 = vmatpush.bf16.msra.mxu0 %v8995
    %10406 = vmatpush.bf16.msra.mxu0 %v8991
    %10407 = vmatpush.bf16.msra.mxu0 %v8987
    %10408 = vmatpush.bf16.msra.mxu0 %v8983
    %10409 = vmatpush.bf16.msra.mxu0 %v8979
    %10410 = vmatpush.bf16.msra.mxu0 %v8975
    %10411 = vmatpush.bf16.msra.mxu0 %v8971
    %10412 = vmatmul.bf16.gmra.mxu0 %v6537
    %v10413 = vpop.f32.mrf.mxu0
    %v10414 = vadd.f32 %v10396, %v10413
    %v10415 = vpop.f32.mrf.mxu0
    %v10416 = vadd.f32 %v10398, %v10415
    %10417 = vmatmul.bf16.gmra.mxu0 %v6555
    %v10418 = vpop.f32.mrf.mxu0
    %v10419 = vadd.f32 %v10401, %v10418
    %v10420 = vpop.f32.mrf.mxu0
    %10421 = vdwg.mxu0
    %10422 = vmatpush.bf16.msra.mxu0 %v9031
    %10423 = vmatpush.bf16.msra.mxu0 %v9027
    %10424 = vmatpush.bf16.msra.mxu0 %v9023
    %10425 = vmatpush.bf16.msra.mxu0 %v9019
    %10426 = vmatpush.bf16.msra.mxu0 %v9015
    %10427 = vmatpush.bf16.msra.mxu0 %v9011
    %10428 = vmatpush.bf16.msra.mxu0 %v9007
    %10429 = vmatpush.bf16.msra.mxu0 %v9003
    %10430 = vmatmul.bf16.gmra.mxu0 %v6538
    %v10431 = vpop.f32.mrf.mxu0
    %v10432 = vadd.f32 %v10414, %v10431
    %v10433 = vpop.f32.mrf.mxu0
    %v10434 = vadd.f32 %v10416, %v10433
    %10435 = vmatmul.bf16.gmra.mxu0 %v6556
    %v10436 = vpop.f32.mrf.mxu0
    %v10437 = vadd.f32 %v10419, %v10436
    %v10438 = vpop.f32.mrf.mxu0
    %10439 = vdwg.mxu0
    %10440 = vmatpush.bf16.msra.mxu0 %v9063
    %10441 = vmatpush.bf16.msra.mxu0 %v9059
    %10442 = vmatpush.bf16.msra.mxu0 %v9055
    %10443 = vmatpush.bf16.msra.mxu0 %v9051
    %10444 = vmatpush.bf16.msra.mxu0 %v9047
    %10445 = vmatpush.bf16.msra.mxu0 %v9043
    %10446 = vmatpush.bf16.msra.mxu0 %v9039
    %10447 = vmatpush.bf16.msra.mxu0 %v9035
    %10448 = vmatmul.bf16.gmra.mxu0 %v6539
    %v10449 = vpop.f32.mrf.mxu0
    %v10450 = vadd.f32 %v10432, %v10449
    %v10451 = vpop.f32.mrf.mxu0
    %v10452 = vadd.f32 %v10434, %v10451
    %10453 = vmatmul.bf16.gmra.mxu0 %v6557
    %v10454 = vpop.f32.mrf.mxu0
    %v10455 = vadd.f32 %v10437, %v10454
    %v10456 = vpop.f32.mrf.mxu0
    %10457 = vdwg.mxu0
    %10458 = vmatpush.bf16.msra.mxu0 %v9095
    %10459 = vmatpush.bf16.msra.mxu0 %v9091
    %10460 = vmatpush.bf16.msra.mxu0 %v9087
    %10461 = vmatpush.bf16.msra.mxu0 %v9083
    %10462 = vmatpush.bf16.msra.mxu0 %v9079
    %10463 = vmatpush.bf16.msra.mxu0 %v9075
    %10464 = vmatpush.bf16.msra.mxu0 %v9071
    %10465 = vmatpush.bf16.msra.mxu0 %v9067
    %10466 = vmatmul.bf16.gmra.mxu0 %v6540
    %v10467 = vpop.f32.mrf.mxu0
    %v10468 = vadd.f32 %v10450, %v10467
    %v10469 = vpop.f32.mrf.mxu0
    %v10470 = vadd.f32 %v10452, %v10469
    %10471 = vmatmul.bf16.gmra.mxu0 %v6558
    %v10472 = vpop.f32.mrf.mxu0
    %v10473 = vadd.f32 %v10455, %v10472
    %v10474 = vpop.f32.mrf.mxu0
    %10475 = vdwg.mxu0
    %10476 = vmatpush.bf16.msra.mxu0 %v9127
    %10477 = vmatpush.bf16.msra.mxu0 %v9123
    %10478 = vmatpush.bf16.msra.mxu0 %v9119
    %10479 = vmatpush.bf16.msra.mxu0 %v9115
    %10480 = vmatpush.bf16.msra.mxu0 %v9111
    %10481 = vmatpush.bf16.msra.mxu0 %v9107
    %10482 = vmatpush.bf16.msra.mxu0 %v9103
    %10483 = vmatpush.bf16.msra.mxu0 %v9099
    %10484 = vmatmul.bf16.gmra.mxu0 %v6541
    %v10485 = vpop.f32.mrf.mxu0
    %v10486 = vadd.f32 %v10468, %v10485
    %v10487 = vpop.f32.mrf.mxu0
    %v10488 = vadd.f32 %v10470, %v10487
    %10489 = vmatmul.bf16.gmra.mxu0 %v6559
    %v10490 = vpop.f32.mrf.mxu0
    %v10491 = vadd.f32 %v10473, %v10490
    %v10492 = vpop.f32.mrf.mxu0
    %10493 = vdwg.mxu0
    %10494 = vmatpush.bf16.msra.mxu0 %v9159
    %10495 = vmatpush.bf16.msra.mxu0 %v9155
    %10496 = vmatpush.bf16.msra.mxu0 %v9151
    %10497 = vmatpush.bf16.msra.mxu0 %v9147
    %10498 = vmatpush.bf16.msra.mxu0 %v9143
    %10499 = vmatpush.bf16.msra.mxu0 %v9139
    %10500 = vmatpush.bf16.msra.mxu0 %v9135
    %10501 = vmatpush.bf16.msra.mxu0 %v9131
    %10502 = vmatmul.bf16.gmra.mxu0 %v6542
    %v10503 = vpop.f32.mrf.mxu0
    %v10504 = vadd.f32 %v10486, %v10503
    %v10505 = vpop.f32.mrf.mxu0
    %v10506 = vadd.f32 %v10488, %v10505
    %10507 = vmatmul.bf16.gmra.mxu0 %v6560
    %v10508 = vpop.f32.mrf.mxu0
    %v10509 = vadd.f32 %v10491, %v10508
    %v10510 = vpop.f32.mrf.mxu0
    %10511 = vdwg.mxu0
    %10512 = vmatpush.bf16.msra.mxu0 %v9191
    %10513 = vmatpush.bf16.msra.mxu0 %v9187
    %10514 = vmatpush.bf16.msra.mxu0 %v9183
    %10515 = vmatpush.bf16.msra.mxu0 %v9179
    %10516 = vmatpush.bf16.msra.mxu0 %v9175
    %10517 = vmatpush.bf16.msra.mxu0 %v9171
    %10518 = vmatpush.bf16.msra.mxu0 %v9167
    %10519 = vmatpush.bf16.msra.mxu0 %v9163
    %10520 = vmatmul.bf16.gmra.mxu0 %v6543
    %v10521 = vpop.f32.mrf.mxu0
    %v10522 = vadd.f32 %v10504, %v10521
    %v10523 = vpop.f32.mrf.mxu0
    %v10524 = vadd.f32 %v10506, %v10523
    %10525 = vmatmul.bf16.gmra.mxu0 %v6561
    %v10526 = vpop.f32.mrf.mxu0
    %v10527 = vadd.f32 %v10509, %v10526
    %v10528 = vpop.f32.mrf.mxu0
    %10529 = vdwg.mxu0
    %10530 = vmatpush.bf16.msra.mxu0 %v9223
    %10531 = vmatpush.bf16.msra.mxu0 %v9219
    %10532 = vmatpush.bf16.msra.mxu0 %v9215
    %10533 = vmatpush.bf16.msra.mxu0 %v9211
    %10534 = vmatpush.bf16.msra.mxu0 %v9207
    %10535 = vmatpush.bf16.msra.mxu0 %v9203
    %10536 = vmatpush.bf16.msra.mxu0 %v9199
    %10537 = vmatpush.bf16.msra.mxu0 %v9195
    %10538 = vmatmul.bf16.gmra.mxu0 %v6544
    %v10539 = vpop.f32.mrf.mxu0
    %v10540 = vadd.f32 %v10522, %v10539
    %v10541 = vpop.f32.mrf.mxu0
    %v10542 = vadd.f32 %v10524, %v10541
    %10543 = vmatmul.bf16.gmra.mxu0 %v6562
    %v10544 = vpop.f32.mrf.mxu0
    %v10545 = vadd.f32 %v10527, %v10544
    %v10546 = vpop.f32.mrf.mxu0
    %10547 = vdwg.mxu0
    %10548 = vmatpush.bf16.msra.mxu0 %v9255
    %10549 = vmatpush.bf16.msra.mxu0 %v9251
    %10550 = vmatpush.bf16.msra.mxu0 %v9247
    %10551 = vmatpush.bf16.msra.mxu0 %v9243
    %10552 = vmatpush.bf16.msra.mxu0 %v9239
    %10553 = vmatpush.bf16.msra.mxu0 %v9235
    %10554 = vmatpush.bf16.msra.mxu0 %v9231
    %10555 = vmatpush.bf16.msra.mxu0 %v9227
    %10556 = vmatmul.bf16.gmra.mxu0 %v6545
    %v10557 = vpop.f32.mrf.mxu0
    %v10558 = vadd.f32 %v10540, %v10557
    %v10559 = vpop.f32.mrf.mxu0
    %v10560 = vadd.f32 %v10542, %v10559
    %10561 = vmatmul.bf16.gmra.mxu0 %v6563
    %v10562 = vpop.f32.mrf.mxu0
    %v10563 = vadd.f32 %v10545, %v10562
    %v10564 = vpop.f32.mrf.mxu0
    %10565 = vdwg.mxu0
    %10566 = vmatpush.bf16.msra.mxu0 %v9287
    %10567 = vmatpush.bf16.msra.mxu0 %v9283
    %10568 = vmatpush.bf16.msra.mxu0 %v9279
    %10569 = vmatpush.bf16.msra.mxu0 %v9275
    %10570 = vmatpush.bf16.msra.mxu0 %v9271
    %10571 = vmatpush.bf16.msra.mxu0 %v9267
    %10572 = vmatpush.bf16.msra.mxu0 %v9263
    %10573 = vmatpush.bf16.msra.mxu0 %v9259
    %10574 = vmatmul.bf16.gmra.mxu0 %v6546
    %v10575 = vpop.f32.mrf.mxu0
    %v10576 = vadd.f32 %v10558, %v10575
    %v10577 = vpop.f32.mrf.mxu0
    %v10578 = vadd.f32 %v10560, %v10577
    %10579 = vmatmul.bf16.gmra.mxu0 %v6564
    %v10580 = vpop.f32.mrf.mxu0
    %v10581 = vadd.f32 %v10563, %v10580
    %v10582 = vpop.f32.mrf.mxu0
    %10583 = vdwg.mxu0
    %10584 = vmatpush.bf16.msra.mxu0 %v9319
    %10585 = vmatpush.bf16.msra.mxu0 %v9315
    %10586 = vmatpush.bf16.msra.mxu0 %v9311
    %10587 = vmatpush.bf16.msra.mxu0 %v9307
    %10588 = vmatpush.bf16.msra.mxu0 %v9303
    %10589 = vmatpush.bf16.msra.mxu0 %v9299
    %10590 = vmatpush.bf16.msra.mxu0 %v9295
    %10591 = vmatpush.bf16.msra.mxu0 %v9291
    %10592 = vmatmul.bf16.gmra.mxu0 %v6547
    %v10593 = vpop.f32.mrf.mxu0
    %v10594 = vadd.f32 %v10576, %v10593
    %v10595 = vpop.f32.mrf.mxu0
    %v10596 = vadd.f32 %v10578, %v10595
    %10597 = vmatmul.bf16.gmra.mxu0 %v6565
    %v10598 = vpop.f32.mrf.mxu0
    %v10599 = vadd.f32 %v10581, %v10598
    %v10600 = vpop.f32.mrf.mxu0
    %10601 = vdwg.mxu0
    %10602 = vmatpush.bf16.msra.mxu0 %v9351
    %10603 = vmatpush.bf16.msra.mxu0 %v9347
    %10604 = vmatpush.bf16.msra.mxu0 %v9343
    %10605 = vmatpush.bf16.msra.mxu0 %v9339
    %10606 = vmatpush.bf16.msra.mxu0 %v9335
    %10607 = vmatpush.bf16.msra.mxu0 %v9331
    %10608 = vmatpush.bf16.msra.mxu0 %v9327
    %10609 = vmatpush.bf16.msra.mxu0 %v9323
    %10610 = vmatmul.bf16.gmra.mxu0 %v6548
    %v10611 = vpop.f32.mrf.mxu0
    %v10612 = vadd.f32 %v10594, %v10611
    %v10613 = vpop.f32.mrf.mxu0
    %v10614 = vadd.f32 %v10596, %v10613
    %10615 = vmatmul.bf16.gmra.mxu0 %v6566
    %v10616 = vpop.f32.mrf.mxu0
    %v10617 = vadd.f32 %v10599, %v10616
    %v10618 = vpop.f32.mrf.mxu0
    %10619 = vdwg.mxu0
    %10620 = vmatpush.bf16.msra.mxu0 %v9383
    %10621 = vmatpush.bf16.msra.mxu0 %v9379
    %10622 = vmatpush.bf16.msra.mxu0 %v9375
    %10623 = vmatpush.bf16.msra.mxu0 %v9371
    %10624 = vmatpush.bf16.msra.mxu0 %v9367
    %10625 = vmatpush.bf16.msra.mxu0 %v9363
    %10626 = vmatpush.bf16.msra.mxu0 %v9359
    %10627 = vmatpush.bf16.msra.mxu0 %v9355
    %10628 = vmatmul.bf16.gmra.mxu0 %v6549
    %v10629 = vpop.f32.mrf.mxu0
    %v10630 = vadd.f32 %v10612, %v10629
    %v10631 = vpop.f32.mrf.mxu0
    %v10632 = vadd.f32 %v10614, %v10631
    %10633 = vmatmul.bf16.gmra.mxu0 %v6567
    %v10634 = vpop.f32.mrf.mxu0
    %v10635 = vadd.f32 %v10617, %v10634
    %v10636 = vpop.f32.mrf.mxu0
    %10637 = vdwg.mxu0
    %10638 = vmatpush.bf16.msra.mxu0 %v9415
    %10639 = vmatpush.bf16.msra.mxu0 %v9411
    %10640 = vmatpush.bf16.msra.mxu0 %v9407
    %10641 = vmatpush.bf16.msra.mxu0 %v9403
    %10642 = vmatpush.bf16.msra.mxu0 %v9399
    %10643 = vmatpush.bf16.msra.mxu0 %v9395
    %10644 = vmatpush.bf16.msra.mxu0 %v9391
    %10645 = vmatpush.bf16.msra.mxu0 %v9387
    %10646 = vmatmul.bf16.gmra.mxu0 %v6550
    %v10647 = vpop.f32.mrf.mxu0
    %v10648 = vadd.f32 %v10630, %v10647
    %v10649 = vpop.f32.mrf.mxu0
    %v10650 = vadd.f32 %v10632, %v10649
    %10651 = vmatmul.bf16.gmra.mxu0 %v6568
    %v10652 = vpop.f32.mrf.mxu0
    %v10653 = vadd.f32 %v10635, %v10652
    %v10654 = vpop.f32.mrf.mxu0
    %10655 = vdwg.mxu0
    %10656 = vmatpush.bf16.msra.mxu0 %v9447
    %10657 = vmatpush.bf16.msra.mxu0 %v9443
    %10658 = vmatpush.bf16.msra.mxu0 %v9439
    %10659 = vmatpush.bf16.msra.mxu0 %v9435
    %10660 = vmatpush.bf16.msra.mxu0 %v9431
    %10661 = vmatpush.bf16.msra.mxu0 %v9427
    %10662 = vmatpush.bf16.msra.mxu0 %v9423
    %10663 = vmatpush.bf16.msra.mxu0 %v9419
    %10664 = vmatmul.bf16.gmra.mxu0 %v6551
    %v10665 = vpop.f32.mrf.mxu0
    %v10666 = vadd.f32 %v10648, %v10665
    %v10667 = vpop.f32.mrf.mxu0
    %v10668 = vadd.f32 %v10650, %v10667
    %10669 = vmatmul.bf16.gmra.mxu0 %v6569
    %v10670 = vpop.f32.mrf.mxu0
    %v10671 = vadd.f32 %v10653, %v10670
    %v10672 = vpop.f32.mrf.mxu0
    %10673 = vdwg.mxu0
    %10674 = vmatpush.bf16.msra.mxu0 %v8904
    %10675 = vmatpush.bf16.msra.mxu0 %v8900
    %10676 = vmatpush.bf16.msra.mxu0 %v8896
    %10677 = vmatpush.bf16.msra.mxu0 %v8892
    %10678 = vmatpush.bf16.msra.mxu0 %v8888
    %10679 = vmatpush.bf16.msra.mxu0 %v8884
    %10680 = vmatpush.bf16.msra.mxu0 %v8880
    %10681 = vmatpush.bf16.msra.mxu0 %v8876
    %10682 = vmatmul.bf16.gmra.mxu0 %v6534
    %v10683 = vpop.f32.mrf.mxu0
    %v10684 = vadd.f32 0.0, %v10683
    %v10685 = vpop.f32.mrf.mxu0
    %v10686 = vadd.f32 0.0, %v10685
    %10687 = vmatmul.bf16.gmra.mxu0 %v6552
    %v10688 = vpop.f32.mrf.mxu0
    %v10689 = vadd.f32 0.0, %v10688
    %v10690 = vpop.f32.mrf.mxu0
    %10691 = vdwg.mxu0
    %10692 = vmatpush.bf16.msra.mxu0 %v8936
    %10693 = vmatpush.bf16.msra.mxu0 %v8932
    %10694 = vmatpush.bf16.msra.mxu0 %v8928
    %10695 = vmatpush.bf16.msra.mxu0 %v8924
    %10696 = vmatpush.bf16.msra.mxu0 %v8920
    %10697 = vmatpush.bf16.msra.mxu0 %v8916
    %10698 = vmatpush.bf16.msra.mxu0 %v8912
    %10699 = vmatpush.bf16.msra.mxu0 %v8908
    %10700 = vmatmul.bf16.gmra.mxu0 %v6535
    %v10701 = vpop.f32.mrf.mxu0
    %v10702 = vadd.f32 %v10684, %v10701
    %v10703 = vpop.f32.mrf.mxu0
    %v10704 = vadd.f32 %v10686, %v10703
    %10705 = vmatmul.bf16.gmra.mxu0 %v6553
    %v10706 = vpop.f32.mrf.mxu0
    %v10707 = vadd.f32 %v10689, %v10706
    %v10708 = vpop.f32.mrf.mxu0
    %10709 = vdwg.mxu0
    %10710 = vmatpush.bf16.msra.mxu0 %v8968
    %10711 = vmatpush.bf16.msra.mxu0 %v8964
    %10712 = vmatpush.bf16.msra.mxu0 %v8960
    %10713 = vmatpush.bf16.msra.mxu0 %v8956
    %10714 = vmatpush.bf16.msra.mxu0 %v8952
    %10715 = vmatpush.bf16.msra.mxu0 %v8948
    %10716 = vmatpush.bf16.msra.mxu0 %v8944
    %10717 = vmatpush.bf16.msra.mxu0 %v8940
    %10718 = vmatmul.bf16.gmra.mxu0 %v6536
    %v10719 = vpop.f32.mrf.mxu0
    %v10720 = vadd.f32 %v10702, %v10719
    %v10721 = vpop.f32.mrf.mxu0
    %v10722 = vadd.f32 %v10704, %v10721
    %10723 = vmatmul.bf16.gmra.mxu0 %v6554
    %v10724 = vpop.f32.mrf.mxu0
    %v10725 = vadd.f32 %v10707, %v10724
    %v10726 = vpop.f32.mrf.mxu0
    %10727 = vdwg.mxu0
    %10728 = vmatpush.bf16.msra.mxu0 %v9000
    %10729 = vmatpush.bf16.msra.mxu0 %v8996
    %10730 = vmatpush.bf16.msra.mxu0 %v8992
    %10731 = vmatpush.bf16.msra.mxu0 %v8988
    %10732 = vmatpush.bf16.msra.mxu0 %v8984
    %10733 = vmatpush.bf16.msra.mxu0 %v8980
    %10734 = vmatpush.bf16.msra.mxu0 %v8976
    %10735 = vmatpush.bf16.msra.mxu0 %v8972
    %10736 = vmatmul.bf16.gmra.mxu0 %v6537
    %v10737 = vpop.f32.mrf.mxu0
    %v10738 = vadd.f32 %v10720, %v10737
    %v10739 = vpop.f32.mrf.mxu0
    %v10740 = vadd.f32 %v10722, %v10739
    %10741 = vmatmul.bf16.gmra.mxu0 %v6555
    %v10742 = vpop.f32.mrf.mxu0
    %v10743 = vadd.f32 %v10725, %v10742
    %v10744 = vpop.f32.mrf.mxu0
    %10745 = vdwg.mxu0
    %10746 = vmatpush.bf16.msra.mxu0 %v9032
    %10747 = vmatpush.bf16.msra.mxu0 %v9028
    %10748 = vmatpush.bf16.msra.mxu0 %v9024
    %10749 = vmatpush.bf16.msra.mxu0 %v9020
    %10750 = vmatpush.bf16.msra.mxu0 %v9016
    %10751 = vmatpush.bf16.msra.mxu0 %v9012
    %10752 = vmatpush.bf16.msra.mxu0 %v9008
    %10753 = vmatpush.bf16.msra.mxu0 %v9004
    %10754 = vmatmul.bf16.gmra.mxu0 %v6538
    %v10755 = vpop.f32.mrf.mxu0
    %v10756 = vadd.f32 %v10738, %v10755
    %v10757 = vpop.f32.mrf.mxu0
    %v10758 = vadd.f32 %v10740, %v10757
    %10759 = vmatmul.bf16.gmra.mxu0 %v6556
    %v10760 = vpop.f32.mrf.mxu0
    %v10761 = vadd.f32 %v10743, %v10760
    %v10762 = vpop.f32.mrf.mxu0
    %10763 = vdwg.mxu0
    %10764 = vmatpush.bf16.msra.mxu0 %v9064
    %10765 = vmatpush.bf16.msra.mxu0 %v9060
    %10766 = vmatpush.bf16.msra.mxu0 %v9056
    %10767 = vmatpush.bf16.msra.mxu0 %v9052
    %10768 = vmatpush.bf16.msra.mxu0 %v9048
    %10769 = vmatpush.bf16.msra.mxu0 %v9044
    %10770 = vmatpush.bf16.msra.mxu0 %v9040
    %10771 = vmatpush.bf16.msra.mxu0 %v9036
    %10772 = vmatmul.bf16.gmra.mxu0 %v6539
    %v10773 = vpop.f32.mrf.mxu0
    %v10774 = vadd.f32 %v10756, %v10773
    %v10775 = vpop.f32.mrf.mxu0
    %v10776 = vadd.f32 %v10758, %v10775
    %10777 = vmatmul.bf16.gmra.mxu0 %v6557
    %v10778 = vpop.f32.mrf.mxu0
    %v10779 = vadd.f32 %v10761, %v10778
    %v10780 = vpop.f32.mrf.mxu0
    %10781 = vdwg.mxu0
    %10782 = vmatpush.bf16.msra.mxu0 %v9096
    %10783 = vmatpush.bf16.msra.mxu0 %v9092
    %10784 = vmatpush.bf16.msra.mxu0 %v9088
    %10785 = vmatpush.bf16.msra.mxu0 %v9084
    %10786 = vmatpush.bf16.msra.mxu0 %v9080
    %10787 = vmatpush.bf16.msra.mxu0 %v9076
    %10788 = vmatpush.bf16.msra.mxu0 %v9072
    %10789 = vmatpush.bf16.msra.mxu0 %v9068
    %10790 = vmatmul.bf16.gmra.mxu0 %v6540
    %v10791 = vpop.f32.mrf.mxu0
    %v10792 = vadd.f32 %v10774, %v10791
    %v10793 = vpop.f32.mrf.mxu0
    %v10794 = vadd.f32 %v10776, %v10793
    %10795 = vmatmul.bf16.gmra.mxu0 %v6558
    %v10796 = vpop.f32.mrf.mxu0
    %v10797 = vadd.f32 %v10779, %v10796
    %v10798 = vpop.f32.mrf.mxu0
    %10799 = vdwg.mxu0
    %10800 = vmatpush.bf16.msra.mxu0 %v9128
    %10801 = vmatpush.bf16.msra.mxu0 %v9124
    %10802 = vmatpush.bf16.msra.mxu0 %v9120
    %10803 = vmatpush.bf16.msra.mxu0 %v9116
    %10804 = vmatpush.bf16.msra.mxu0 %v9112
    %10805 = vmatpush.bf16.msra.mxu0 %v9108
    %10806 = vmatpush.bf16.msra.mxu0 %v9104
    %10807 = vmatpush.bf16.msra.mxu0 %v9100
    %10808 = vmatmul.bf16.gmra.mxu0 %v6541
    %v10809 = vpop.f32.mrf.mxu0
    %v10810 = vadd.f32 %v10792, %v10809
    %v10811 = vpop.f32.mrf.mxu0
    %v10812 = vadd.f32 %v10794, %v10811
    %10813 = vmatmul.bf16.gmra.mxu0 %v6559
    %v10814 = vpop.f32.mrf.mxu0
    %v10815 = vadd.f32 %v10797, %v10814
    %v10816 = vpop.f32.mrf.mxu0
    %10817 = vdwg.mxu0
    %10818 = vmatpush.bf16.msra.mxu0 %v9160
    %10819 = vmatpush.bf16.msra.mxu0 %v9156
    %10820 = vmatpush.bf16.msra.mxu0 %v9152
    %10821 = vmatpush.bf16.msra.mxu0 %v9148
    %10822 = vmatpush.bf16.msra.mxu0 %v9144
    %10823 = vmatpush.bf16.msra.mxu0 %v9140
    %10824 = vmatpush.bf16.msra.mxu0 %v9136
    %10825 = vmatpush.bf16.msra.mxu0 %v9132
    %10826 = vmatmul.bf16.gmra.mxu0 %v6542
    %v10827 = vpop.f32.mrf.mxu0
    %v10828 = vadd.f32 %v10810, %v10827
    %v10829 = vpop.f32.mrf.mxu0
    %v10830 = vadd.f32 %v10812, %v10829
    %10831 = vmatmul.bf16.gmra.mxu0 %v6560
    %v10832 = vpop.f32.mrf.mxu0
    %v10833 = vadd.f32 %v10815, %v10832
    %v10834 = vpop.f32.mrf.mxu0
    %10835 = vdwg.mxu0
    %10836 = vmatpush.bf16.msra.mxu0 %v9192
    %10837 = vmatpush.bf16.msra.mxu0 %v9188
    %10838 = vmatpush.bf16.msra.mxu0 %v9184
    %10839 = vmatpush.bf16.msra.mxu0 %v9180
    %10840 = vmatpush.bf16.msra.mxu0 %v9176
    %10841 = vmatpush.bf16.msra.mxu0 %v9172
    %10842 = vmatpush.bf16.msra.mxu0 %v9168
    %10843 = vmatpush.bf16.msra.mxu0 %v9164
    %10844 = vmatmul.bf16.gmra.mxu0 %v6543
    %v10845 = vpop.f32.mrf.mxu0
    %v10846 = vadd.f32 %v10828, %v10845
    %v10847 = vpop.f32.mrf.mxu0
    %v10848 = vadd.f32 %v10830, %v10847
    %10849 = vmatmul.bf16.gmra.mxu0 %v6561
    %v10850 = vpop.f32.mrf.mxu0
    %v10851 = vadd.f32 %v10833, %v10850
    %v10852 = vpop.f32.mrf.mxu0
    %10853 = vdwg.mxu0
    %10854 = vmatpush.bf16.msra.mxu0 %v9224
    %10855 = vmatpush.bf16.msra.mxu0 %v9220
    %10856 = vmatpush.bf16.msra.mxu0 %v9216
    %10857 = vmatpush.bf16.msra.mxu0 %v9212
    %10858 = vmatpush.bf16.msra.mxu0 %v9208
    %10859 = vmatpush.bf16.msra.mxu0 %v9204
    %10860 = vmatpush.bf16.msra.mxu0 %v9200
    %10861 = vmatpush.bf16.msra.mxu0 %v9196
    %10862 = vmatmul.bf16.gmra.mxu0 %v6544
    %v10863 = vpop.f32.mrf.mxu0
    %v10864 = vadd.f32 %v10846, %v10863
    %v10865 = vpop.f32.mrf.mxu0
    %v10866 = vadd.f32 %v10848, %v10865
    %10867 = vmatmul.bf16.gmra.mxu0 %v6562
    %v10868 = vpop.f32.mrf.mxu0
    %v10869 = vadd.f32 %v10851, %v10868
    %v10870 = vpop.f32.mrf.mxu0
    %10871 = vdwg.mxu0
    %10872 = vmatpush.bf16.msra.mxu0 %v9256
    %10873 = vmatpush.bf16.msra.mxu0 %v9252
    %10874 = vmatpush.bf16.msra.mxu0 %v9248
    %10875 = vmatpush.bf16.msra.mxu0 %v9244
    %10876 = vmatpush.bf16.msra.mxu0 %v9240
    %10877 = vmatpush.bf16.msra.mxu0 %v9236
    %10878 = vmatpush.bf16.msra.mxu0 %v9232
    %10879 = vmatpush.bf16.msra.mxu0 %v9228
    %10880 = vmatmul.bf16.gmra.mxu0 %v6545
    %v10881 = vpop.f32.mrf.mxu0
    %v10882 = vadd.f32 %v10864, %v10881
    %v10883 = vpop.f32.mrf.mxu0
    %v10884 = vadd.f32 %v10866, %v10883
    %10885 = vmatmul.bf16.gmra.mxu0 %v6563
    %v10886 = vpop.f32.mrf.mxu0
    %v10887 = vadd.f32 %v10869, %v10886
    %v10888 = vpop.f32.mrf.mxu0
    %10889 = vdwg.mxu0
    %10890 = vmatpush.bf16.msra.mxu0 %v9288
    %10891 = vmatpush.bf16.msra.mxu0 %v9284
    %10892 = vmatpush.bf16.msra.mxu0 %v9280
    %10893 = vmatpush.bf16.msra.mxu0 %v9276
    %10894 = vmatpush.bf16.msra.mxu0 %v9272
    %10895 = vmatpush.bf16.msra.mxu0 %v9268
    %10896 = vmatpush.bf16.msra.mxu0 %v9264
    %10897 = vmatpush.bf16.msra.mxu0 %v9260
    %10898 = vmatmul.bf16.gmra.mxu0 %v6546
    %v10899 = vpop.f32.mrf.mxu0
    %v10900 = vadd.f32 %v10882, %v10899
    %v10901 = vpop.f32.mrf.mxu0
    %v10902 = vadd.f32 %v10884, %v10901
    %10903 = vmatmul.bf16.gmra.mxu0 %v6564
    %v10904 = vpop.f32.mrf.mxu0
    %v10905 = vadd.f32 %v10887, %v10904
    %v10906 = vpop.f32.mrf.mxu0
    %10907 = vdwg.mxu0
    %10908 = vmatpush.bf16.msra.mxu0 %v9320
    %10909 = vmatpush.bf16.msra.mxu0 %v9316
    %10910 = vmatpush.bf16.msra.mxu0 %v9312
    %10911 = vmatpush.bf16.msra.mxu0 %v9308
    %10912 = vmatpush.bf16.msra.mxu0 %v9304
    %10913 = vmatpush.bf16.msra.mxu0 %v9300
    %10914 = vmatpush.bf16.msra.mxu0 %v9296
    %10915 = vmatpush.bf16.msra.mxu0 %v9292
    %10916 = vmatmul.bf16.gmra.mxu0 %v6547
    %v10917 = vpop.f32.mrf.mxu0
    %v10918 = vadd.f32 %v10900, %v10917
    %v10919 = vpop.f32.mrf.mxu0
    %v10920 = vadd.f32 %v10902, %v10919
    %10921 = vmatmul.bf16.gmra.mxu0 %v6565
    %v10922 = vpop.f32.mrf.mxu0
    %v10923 = vadd.f32 %v10905, %v10922
    %v10924 = vpop.f32.mrf.mxu0
    %10925 = vdwg.mxu0
    %10926 = vmatpush.bf16.msra.mxu0 %v9352
    %10927 = vmatpush.bf16.msra.mxu0 %v9348
    %10928 = vmatpush.bf16.msra.mxu0 %v9344
    %10929 = vmatpush.bf16.msra.mxu0 %v9340
    %10930 = vmatpush.bf16.msra.mxu0 %v9336
    %10931 = vmatpush.bf16.msra.mxu0 %v9332
    %10932 = vmatpush.bf16.msra.mxu0 %v9328
    %10933 = vmatpush.bf16.msra.mxu0 %v9324
    %10934 = vmatmul.bf16.gmra.mxu0 %v6548
    %v10935 = vpop.f32.mrf.mxu0
    %v10936 = vadd.f32 %v10918, %v10935
    %v10937 = vpop.f32.mrf.mxu0
    %v10938 = vadd.f32 %v10920, %v10937
    %10939 = vmatmul.bf16.gmra.mxu0 %v6566
    %v10940 = vpop.f32.mrf.mxu0
    %v10941 = vadd.f32 %v10923, %v10940
    %v10942 = vpop.f32.mrf.mxu0
    %10943 = vdwg.mxu0
    %10944 = vmatpush.bf16.msra.mxu0 %v9384
    %10945 = vmatpush.bf16.msra.mxu0 %v9380
    %10946 = vmatpush.bf16.msra.mxu0 %v9376
    %10947 = vmatpush.bf16.msra.mxu0 %v9372
    %10948 = vmatpush.bf16.msra.mxu0 %v9368
    %10949 = vmatpush.bf16.msra.mxu0 %v9364
    %10950 = vmatpush.bf16.msra.mxu0 %v9360
    %10951 = vmatpush.bf16.msra.mxu0 %v9356
    %10952 = vmatmul.bf16.gmra.mxu0 %v6549
    %v10953 = vpop.f32.mrf.mxu0
    %v10954 = vadd.f32 %v10936, %v10953
    %v10955 = vpop.f32.mrf.mxu0
    %v10956 = vadd.f32 %v10938, %v10955
    %10957 = vmatmul.bf16.gmra.mxu0 %v6567
    %v10958 = vpop.f32.mrf.mxu0
    %v10959 = vadd.f32 %v10941, %v10958
    %v10960 = vpop.f32.mrf.mxu0
    %10961 = vdwg.mxu0
    %10962 = vmatpush.bf16.msra.mxu0 %v9416
    %10963 = vmatpush.bf16.msra.mxu0 %v9412
    %10964 = vmatpush.bf16.msra.mxu0 %v9408
    %10965 = vmatpush.bf16.msra.mxu0 %v9404
    %10966 = vmatpush.bf16.msra.mxu0 %v9400
    %10967 = vmatpush.bf16.msra.mxu0 %v9396
    %10968 = vmatpush.bf16.msra.mxu0 %v9392
    %10969 = vmatpush.bf16.msra.mxu0 %v9388
    %10970 = vmatmul.bf16.gmra.mxu0 %v6550
    %v10971 = vpop.f32.mrf.mxu0
    %v10972 = vadd.f32 %v10954, %v10971
    %v10973 = vpop.f32.mrf.mxu0
    %v10974 = vadd.f32 %v10956, %v10973
    %10975 = vmatmul.bf16.gmra.mxu0 %v6568
    %v10976 = vpop.f32.mrf.mxu0
    %v10977 = vadd.f32 %v10959, %v10976
    %v10978 = vpop.f32.mrf.mxu0
    %10979 = vdwg.mxu0
    %10980 = vmatpush.bf16.msra.mxu0 %v9448
    %10981 = vmatpush.bf16.msra.mxu0 %v9444
    %10982 = vmatpush.bf16.msra.mxu0 %v9440
    %10983 = vmatpush.bf16.msra.mxu0 %v9436
    %10984 = vmatpush.bf16.msra.mxu0 %v9432
    %10985 = vmatpush.bf16.msra.mxu0 %v9428
    %10986 = vmatpush.bf16.msra.mxu0 %v9424
    %10987 = vmatpush.bf16.msra.mxu0 %v9420
    %10988 = vmatmul.bf16.gmra.mxu0 %v6551
    %v10989 = vpop.f32.mrf.mxu0
    %v10990 = vadd.f32 %v10972, %v10989
    %v10991 = vpop.f32.mrf.mxu0
    %v10992 = vadd.f32 %v10974, %v10991
    %10993 = vmatmul.bf16.gmra.mxu0 %v6569
    %v10994 = vpop.f32.mrf.mxu0
    %v10995 = vadd.f32 %v10977, %v10994
    %v10996 = vpop.f32.mrf.mxu0
    %10997 = vdwg.mxu0
    %10998 = vmatpush.bf16.msra.mxu0 %v8905
    %10999 = vmatpush.bf16.msra.mxu0 %v8901
    %11000 = vmatpush.bf16.msra.mxu0 %v8897
    %11001 = vmatpush.bf16.msra.mxu0 %v8893
    %11002 = vmatpush.bf16.msra.mxu0 %v8889
    %11003 = vmatpush.bf16.msra.mxu0 %v8885
    %11004 = vmatpush.bf16.msra.mxu0 %v8881
    %11005 = vmatpush.bf16.msra.mxu0 %v8877
    %11006 = vmatmul.bf16.gmra.mxu0 %v6534
    %v11007 = vpop.f32.mrf.mxu0
    %v11008 = vadd.f32 0.0, %v11007
    %v11009 = vpop.f32.mrf.mxu0
    %v11010 = vadd.f32 0.0, %v11009
    %11011 = vmatmul.bf16.gmra.mxu0 %v6552
    %v11012 = vpop.f32.mrf.mxu0
    %v11013 = vadd.f32 0.0, %v11012
    %v11014 = vpop.f32.mrf.mxu0
    %11015 = vdwg.mxu0
    %11016 = vmatpush.bf16.msra.mxu0 %v8937
    %11017 = vmatpush.bf16.msra.mxu0 %v8933
    %11018 = vmatpush.bf16.msra.mxu0 %v8929
    %11019 = vmatpush.bf16.msra.mxu0 %v8925
    %11020 = vmatpush.bf16.msra.mxu0 %v8921
    %11021 = vmatpush.bf16.msra.mxu0 %v8917
    %11022 = vmatpush.bf16.msra.mxu0 %v8913
    %11023 = vmatpush.bf16.msra.mxu0 %v8909
    %11024 = vmatmul.bf16.gmra.mxu0 %v6535
    %v11025 = vpop.f32.mrf.mxu0
    %v11026 = vadd.f32 %v11008, %v11025
    %v11027 = vpop.f32.mrf.mxu0
    %v11028 = vadd.f32 %v11010, %v11027
    %11029 = vmatmul.bf16.gmra.mxu0 %v6553
    %v11030 = vpop.f32.mrf.mxu0
    %v11031 = vadd.f32 %v11013, %v11030
    %v11032 = vpop.f32.mrf.mxu0
    %11033 = vdwg.mxu0
    %11034 = vmatpush.bf16.msra.mxu0 %v8969
    %11035 = vmatpush.bf16.msra.mxu0 %v8965
    %11036 = vmatpush.bf16.msra.mxu0 %v8961
    %11037 = vmatpush.bf16.msra.mxu0 %v8957
    %11038 = vmatpush.bf16.msra.mxu0 %v8953
    %11039 = vmatpush.bf16.msra.mxu0 %v8949
    %11040 = vmatpush.bf16.msra.mxu0 %v8945
    %11041 = vmatpush.bf16.msra.mxu0 %v8941
    %11042 = vmatmul.bf16.gmra.mxu0 %v6536
    %v11043 = vpop.f32.mrf.mxu0
    %v11044 = vadd.f32 %v11026, %v11043
    %v11045 = vpop.f32.mrf.mxu0
    %v11046 = vadd.f32 %v11028, %v11045
    %11047 = vmatmul.bf16.gmra.mxu0 %v6554
    %v11048 = vpop.f32.mrf.mxu0
    %v11049 = vadd.f32 %v11031, %v11048
    %v11050 = vpop.f32.mrf.mxu0
    %11051 = vdwg.mxu0
    %11052 = vmatpush.bf16.msra.mxu0 %v9001
    %11053 = vmatpush.bf16.msra.mxu0 %v8997
    %11054 = vmatpush.bf16.msra.mxu0 %v8993
    %11055 = vmatpush.bf16.msra.mxu0 %v8989
    %11056 = vmatpush.bf16.msra.mxu0 %v8985
    %11057 = vmatpush.bf16.msra.mxu0 %v8981
    %11058 = vmatpush.bf16.msra.mxu0 %v8977
    %11059 = vmatpush.bf16.msra.mxu0 %v8973
    %11060 = vmatmul.bf16.gmra.mxu0 %v6537
    %v11061 = vpop.f32.mrf.mxu0
    %v11062 = vadd.f32 %v11044, %v11061
    %v11063 = vpop.f32.mrf.mxu0
    %v11064 = vadd.f32 %v11046, %v11063
    %11065 = vmatmul.bf16.gmra.mxu0 %v6555
    %v11066 = vpop.f32.mrf.mxu0
    %v11067 = vadd.f32 %v11049, %v11066
    %v11068 = vpop.f32.mrf.mxu0
    %11069 = vdwg.mxu0
    %11070 = vmatpush.bf16.msra.mxu0 %v9033
    %11071 = vmatpush.bf16.msra.mxu0 %v9029
    %11072 = vmatpush.bf16.msra.mxu0 %v9025
    %11073 = vmatpush.bf16.msra.mxu0 %v9021
    %11074 = vmatpush.bf16.msra.mxu0 %v9017
    %11075 = vmatpush.bf16.msra.mxu0 %v9013
    %11076 = vmatpush.bf16.msra.mxu0 %v9009
    %11077 = vmatpush.bf16.msra.mxu0 %v9005
    %11078 = vmatmul.bf16.gmra.mxu0 %v6538
    %v11079 = vpop.f32.mrf.mxu0
    %v11080 = vadd.f32 %v11062, %v11079
    %v11081 = vpop.f32.mrf.mxu0
    %v11082 = vadd.f32 %v11064, %v11081
    %11083 = vmatmul.bf16.gmra.mxu0 %v6556
    %v11084 = vpop.f32.mrf.mxu0
    %v11085 = vadd.f32 %v11067, %v11084
    %v11086 = vpop.f32.mrf.mxu0
    %11087 = vdwg.mxu0
    %11088 = vmatpush.bf16.msra.mxu0 %v9065
    %11089 = vmatpush.bf16.msra.mxu0 %v9061
    %11090 = vmatpush.bf16.msra.mxu0 %v9057
    %11091 = vmatpush.bf16.msra.mxu0 %v9053
    %11092 = vmatpush.bf16.msra.mxu0 %v9049
    %11093 = vmatpush.bf16.msra.mxu0 %v9045
    %11094 = vmatpush.bf16.msra.mxu0 %v9041
    %11095 = vmatpush.bf16.msra.mxu0 %v9037
    %11096 = vmatmul.bf16.gmra.mxu0 %v6539
    %v11097 = vpop.f32.mrf.mxu0
    %v11098 = vadd.f32 %v11080, %v11097
    %v11099 = vpop.f32.mrf.mxu0
    %v11100 = vadd.f32 %v11082, %v11099
    %11101 = vmatmul.bf16.gmra.mxu0 %v6557
    %v11102 = vpop.f32.mrf.mxu0
    %v11103 = vadd.f32 %v11085, %v11102
    %v11104 = vpop.f32.mrf.mxu0
    %11105 = vdwg.mxu0
    %11106 = vmatpush.bf16.msra.mxu0 %v9097
    %11107 = vmatpush.bf16.msra.mxu0 %v9093
    %11108 = vmatpush.bf16.msra.mxu0 %v9089
    %11109 = vmatpush.bf16.msra.mxu0 %v9085
    %11110 = vmatpush.bf16.msra.mxu0 %v9081
    %11111 = vmatpush.bf16.msra.mxu0 %v9077
    %11112 = vmatpush.bf16.msra.mxu0 %v9073
    %11113 = vmatpush.bf16.msra.mxu0 %v9069
    %11114 = vmatmul.bf16.gmra.mxu0 %v6540
    %v11115 = vpop.f32.mrf.mxu0
    %v11116 = vadd.f32 %v11098, %v11115
    %v11117 = vpop.f32.mrf.mxu0
    %v11118 = vadd.f32 %v11100, %v11117
    %11119 = vmatmul.bf16.gmra.mxu0 %v6558
    %v11120 = vpop.f32.mrf.mxu0
    %v11121 = vadd.f32 %v11103, %v11120
    %v11122 = vpop.f32.mrf.mxu0
    %11123 = vdwg.mxu0
    %11124 = vmatpush.bf16.msra.mxu0 %v9129
    %11125 = vmatpush.bf16.msra.mxu0 %v9125
    %11126 = vmatpush.bf16.msra.mxu0 %v9121
    %11127 = vmatpush.bf16.msra.mxu0 %v9117
    %11128 = vmatpush.bf16.msra.mxu0 %v9113
    %11129 = vmatpush.bf16.msra.mxu0 %v9109
    %11130 = vmatpush.bf16.msra.mxu0 %v9105
    %11131 = vmatpush.bf16.msra.mxu0 %v9101
    %11132 = vmatmul.bf16.gmra.mxu0 %v6541
    %v11133 = vpop.f32.mrf.mxu0
    %v11134 = vadd.f32 %v11116, %v11133
    %v11135 = vpop.f32.mrf.mxu0
    %v11136 = vadd.f32 %v11118, %v11135
    %11137 = vmatmul.bf16.gmra.mxu0 %v6559
    %v11138 = vpop.f32.mrf.mxu0
    %v11139 = vadd.f32 %v11121, %v11138
    %v11140 = vpop.f32.mrf.mxu0
    %11141 = vdwg.mxu0
    %11142 = vmatpush.bf16.msra.mxu0 %v9161
    %11143 = vmatpush.bf16.msra.mxu0 %v9157
    %11144 = vmatpush.bf16.msra.mxu0 %v9153
    %11145 = vmatpush.bf16.msra.mxu0 %v9149
    %11146 = vmatpush.bf16.msra.mxu0 %v9145
    %11147 = vmatpush.bf16.msra.mxu0 %v9141
    %11148 = vmatpush.bf16.msra.mxu0 %v9137
    %11149 = vmatpush.bf16.msra.mxu0 %v9133
    %11150 = vmatmul.bf16.gmra.mxu0 %v6542
    %v11151 = vpop.f32.mrf.mxu0
    %v11152 = vadd.f32 %v11134, %v11151
    %v11153 = vpop.f32.mrf.mxu0
    %v11154 = vadd.f32 %v11136, %v11153
    %11155 = vmatmul.bf16.gmra.mxu0 %v6560
    %v11156 = vpop.f32.mrf.mxu0
    %v11157 = vadd.f32 %v11139, %v11156
    %v11158 = vpop.f32.mrf.mxu0
    %11159 = vdwg.mxu0
    %11160 = vmatpush.bf16.msra.mxu0 %v9193
    %11161 = vmatpush.bf16.msra.mxu0 %v9189
    %11162 = vmatpush.bf16.msra.mxu0 %v9185
    %11163 = vmatpush.bf16.msra.mxu0 %v9181
    %11164 = vmatpush.bf16.msra.mxu0 %v9177
    %11165 = vmatpush.bf16.msra.mxu0 %v9173
    %11166 = vmatpush.bf16.msra.mxu0 %v9169
    %11167 = vmatpush.bf16.msra.mxu0 %v9165
    %11168 = vmatmul.bf16.gmra.mxu0 %v6543
    %v11169 = vpop.f32.mrf.mxu0
    %v11170 = vadd.f32 %v11152, %v11169
    %v11171 = vpop.f32.mrf.mxu0
    %v11172 = vadd.f32 %v11154, %v11171
    %11173 = vmatmul.bf16.gmra.mxu0 %v6561
    %v11174 = vpop.f32.mrf.mxu0
    %v11175 = vadd.f32 %v11157, %v11174
    %v11176 = vpop.f32.mrf.mxu0
    %11177 = vdwg.mxu0
    %11178 = vmatpush.bf16.msra.mxu0 %v9225
    %11179 = vmatpush.bf16.msra.mxu0 %v9221
    %11180 = vmatpush.bf16.msra.mxu0 %v9217
    %11181 = vmatpush.bf16.msra.mxu0 %v9213
    %11182 = vmatpush.bf16.msra.mxu0 %v9209
    %11183 = vmatpush.bf16.msra.mxu0 %v9205
    %11184 = vmatpush.bf16.msra.mxu0 %v9201
    %11185 = vmatpush.bf16.msra.mxu0 %v9197
    %11186 = vmatmul.bf16.gmra.mxu0 %v6544
    %v11187 = vpop.f32.mrf.mxu0
    %v11188 = vadd.f32 %v11170, %v11187
    %v11189 = vpop.f32.mrf.mxu0
    %v11190 = vadd.f32 %v11172, %v11189
    %11191 = vmatmul.bf16.gmra.mxu0 %v6562
    %v11192 = vpop.f32.mrf.mxu0
    %v11193 = vadd.f32 %v11175, %v11192
    %v11194 = vpop.f32.mrf.mxu0
    %11195 = vdwg.mxu0
    %11196 = vmatpush.bf16.msra.mxu0 %v9257
    %11197 = vmatpush.bf16.msra.mxu0 %v9253
    %11198 = vmatpush.bf16.msra.mxu0 %v9249
    %11199 = vmatpush.bf16.msra.mxu0 %v9245
    %11200 = vmatpush.bf16.msra.mxu0 %v9241
    %11201 = vmatpush.bf16.msra.mxu0 %v9237
    %11202 = vmatpush.bf16.msra.mxu0 %v9233
    %11203 = vmatpush.bf16.msra.mxu0 %v9229
    %11204 = vmatmul.bf16.gmra.mxu0 %v6545
    %v11205 = vpop.f32.mrf.mxu0
    %v11206 = vadd.f32 %v11188, %v11205
    %v11207 = vpop.f32.mrf.mxu0
    %v11208 = vadd.f32 %v11190, %v11207
    %11209 = vmatmul.bf16.gmra.mxu0 %v6563
    %v11210 = vpop.f32.mrf.mxu0
    %v11211 = vadd.f32 %v11193, %v11210
    %v11212 = vpop.f32.mrf.mxu0
    %11213 = vdwg.mxu0
    %11214 = vmatpush.bf16.msra.mxu0 %v9289
    %11215 = vmatpush.bf16.msra.mxu0 %v9285
    %11216 = vmatpush.bf16.msra.mxu0 %v9281
    %11217 = vmatpush.bf16.msra.mxu0 %v9277
    %11218 = vmatpush.bf16.msra.mxu0 %v9273
    %11219 = vmatpush.bf16.msra.mxu0 %v9269
    %11220 = vmatpush.bf16.msra.mxu0 %v9265
    %11221 = vmatpush.bf16.msra.mxu0 %v9261
    %11222 = vmatmul.bf16.gmra.mxu0 %v6546
    %v11223 = vpop.f32.mrf.mxu0
    %v11224 = vadd.f32 %v11206, %v11223
    %v11225 = vpop.f32.mrf.mxu0
    %v11226 = vadd.f32 %v11208, %v11225
    %11227 = vmatmul.bf16.gmra.mxu0 %v6564
    %v11228 = vpop.f32.mrf.mxu0
    %v11229 = vadd.f32 %v11211, %v11228
    %v11230 = vpop.f32.mrf.mxu0
    %11231 = vdwg.mxu0
    %11232 = vmatpush.bf16.msra.mxu0 %v9321
    %11233 = vmatpush.bf16.msra.mxu0 %v9317
    %11234 = vmatpush.bf16.msra.mxu0 %v9313
    %11235 = vmatpush.bf16.msra.mxu0 %v9309
    %11236 = vmatpush.bf16.msra.mxu0 %v9305
    %11237 = vmatpush.bf16.msra.mxu0 %v9301
    %11238 = vmatpush.bf16.msra.mxu0 %v9297
    %11239 = vmatpush.bf16.msra.mxu0 %v9293
    %11240 = vmatmul.bf16.gmra.mxu0 %v6547
    %v11241 = vpop.f32.mrf.mxu0
    %v11242 = vadd.f32 %v11224, %v11241
    %v11243 = vpop.f32.mrf.mxu0
    %v11244 = vadd.f32 %v11226, %v11243
    %11245 = vmatmul.bf16.gmra.mxu0 %v6565
    %v11246 = vpop.f32.mrf.mxu0
    %v11247 = vadd.f32 %v11229, %v11246
    %v11248 = vpop.f32.mrf.mxu0
    %11249 = vdwg.mxu0
    %11250 = vmatpush.bf16.msra.mxu0 %v9353
    %11251 = vmatpush.bf16.msra.mxu0 %v9349
    %11252 = vmatpush.bf16.msra.mxu0 %v9345
    %11253 = vmatpush.bf16.msra.mxu0 %v9341
    %11254 = vmatpush.bf16.msra.mxu0 %v9337
    %11255 = vmatpush.bf16.msra.mxu0 %v9333
    %11256 = vmatpush.bf16.msra.mxu0 %v9329
    %11257 = vmatpush.bf16.msra.mxu0 %v9325
    %11258 = vmatmul.bf16.gmra.mxu0 %v6548
    %v11259 = vpop.f32.mrf.mxu0
    %v11260 = vadd.f32 %v11242, %v11259
    %v11261 = vpop.f32.mrf.mxu0
    %v11262 = vadd.f32 %v11244, %v11261
    %11263 = vmatmul.bf16.gmra.mxu0 %v6566
    %v11264 = vpop.f32.mrf.mxu0
    %v11265 = vadd.f32 %v11247, %v11264
    %v11266 = vpop.f32.mrf.mxu0
    %11267 = vdwg.mxu0
    %11268 = vmatpush.bf16.msra.mxu0 %v9385
    %11269 = vmatpush.bf16.msra.mxu0 %v9381
    %11270 = vmatpush.bf16.msra.mxu0 %v9377
    %11271 = vmatpush.bf16.msra.mxu0 %v9373
    %11272 = vmatpush.bf16.msra.mxu0 %v9369
    %11273 = vmatpush.bf16.msra.mxu0 %v9365
    %11274 = vmatpush.bf16.msra.mxu0 %v9361
    %11275 = vmatpush.bf16.msra.mxu0 %v9357
    %11276 = vmatmul.bf16.gmra.mxu0 %v6549
    %v11277 = vpop.f32.mrf.mxu0
    %v11278 = vadd.f32 %v11260, %v11277
    %v11279 = vpop.f32.mrf.mxu0
    %v11280 = vadd.f32 %v11262, %v11279
    %11281 = vmatmul.bf16.gmra.mxu0 %v6567
    %v11282 = vpop.f32.mrf.mxu0
    %v11283 = vadd.f32 %v11265, %v11282
    %v11284 = vpop.f32.mrf.mxu0
    %11285 = vdwg.mxu0
    %11286 = vmatpush.bf16.msra.mxu0 %v9417
    %11287 = vmatpush.bf16.msra.mxu0 %v9413
    %11288 = vmatpush.bf16.msra.mxu0 %v9409
    %11289 = vmatpush.bf16.msra.mxu0 %v9405
    %11290 = vmatpush.bf16.msra.mxu0 %v9401
    %11291 = vmatpush.bf16.msra.mxu0 %v9397
    %11292 = vmatpush.bf16.msra.mxu0 %v9393
    %11293 = vmatpush.bf16.msra.mxu0 %v9389
    %11294 = vmatmul.bf16.gmra.mxu0 %v6550
    %v11295 = vpop.f32.mrf.mxu0
    %v11296 = vadd.f32 %v11278, %v11295
    %v11297 = vpop.f32.mrf.mxu0
    %v11298 = vadd.f32 %v11280, %v11297
    %11299 = vmatmul.bf16.gmra.mxu0 %v6568
    %v11300 = vpop.f32.mrf.mxu0
    %v11301 = vadd.f32 %v11283, %v11300
    %v11302 = vpop.f32.mrf.mxu0
    %11303 = vdwg.mxu0
    %11304 = vmatpush.bf16.msra.mxu0 %v9449
    %11305 = vmatpush.bf16.msra.mxu0 %v9445
    %11306 = vmatpush.bf16.msra.mxu0 %v9441
    %11307 = vmatpush.bf16.msra.mxu0 %v9437
    %11308 = vmatpush.bf16.msra.mxu0 %v9433
    %11309 = vmatpush.bf16.msra.mxu0 %v9429
    %11310 = vmatpush.bf16.msra.mxu0 %v9425
    %11311 = vmatpush.bf16.msra.mxu0 %v9421
    %11312 = vmatmul.bf16.gmra.mxu0 %v6551
    %v11313 = vpop.f32.mrf.mxu0
    %v11314 = vadd.f32 %v11296, %v11313
    %v11315 = vpop.f32.mrf.mxu0
    %v11316 = vadd.f32 %v11298, %v11315
    %11317 = vmatmul.bf16.gmra.mxu0 %v6569
    %v11318 = vpop.f32.mrf.mxu0
    %v11319 = vadd.f32 %v11301, %v11318
    %v11320 = vpop.f32.mrf.mxu0
    %11321 = vdwg.mxu0
    %v11334 = vrot.slane %v10342, 1
    %v11335 = vrot.slane %v10344, 1
    %v11336 = vsel %vm741, %v11334, %v11335
    %v11337 = vrot.slane %v10666, 1
    %v11338 = vrot.slane %v10668, 1
    %v11339 = vsel %vm741, %v11337, %v11338
    %v11340 = vrot.slane %v10990, 1
    %v11341 = vrot.slane %v10992, 1
    %v11342 = vsel %vm741, %v11340, %v11341
    %v11343 = vrot.slane %v11314, 1
    %v11344 = vrot.slane %v11316, 1
    %v11345 = vsel %vm741, %v11343, %v11344
    %v11346 = vrot.slane %v10347, 1
    %v11347 = vsel %vm741, %v11335, %v11346
    %v11348 = vrot.slane %v10671, 1
    %v11349 = vsel %vm741, %v11338, %v11348
    %v11350 = vrot.slane %v10995, 1
    %v11351 = vsel %vm741, %v11341, %v11350
    %v11352 = vrot.slane %v11319, 1
    %v11353 = vsel %vm741, %v11344, %v11352
    %v11366 = vmax.f32 %v10342, %v11336
    %v11367 = vmax.f32 %v10666, %v11339
    %v11368 = vmax.f32 %v10990, %v11342
    %v11369 = vmax.f32 %v11314, %v11345
    %v11370 = vmax.f32 %v10344, %v11347
    %v11371 = vmax.f32 %v10668, %v11349
    %v11372 = vmax.f32 %v10992, %v11351
    %v11373 = vmax.f32 %v11316, %v11353
    %v11374 = vmax.f32 %v10347, %v11346
    %v11375 = vmax.f32 %v10671, %v11348
    %v11376 = vmax.f32 %v10995, %v11350
    %v11377 = vmax.f32 %v11319, %v11352
    %v11390 = vrot.slane %v11366, 4
    %v11391 = vrot.slane %v11370, 4
    %v11392 = vsel %vm2652, %v11390, %v11391
    %v11393 = vrot.slane %v11367, 4
    %v11394 = vrot.slane %v11371, 4
    %v11395 = vsel %vm2652, %v11393, %v11394
    %v11396 = vrot.slane %v11368, 4
    %v11397 = vrot.slane %v11372, 4
    %v11398 = vsel %vm2652, %v11396, %v11397
    %v11399 = vrot.slane %v11369, 4
    %v11400 = vrot.slane %v11373, 4
    %v11401 = vsel %vm2652, %v11399, %v11400
    %v11402 = vrot.slane %v11374, 4
    %v11403 = vsel %vm2652, %v11391, %v11402
    %v11404 = vrot.slane %v11375, 4
    %v11405 = vsel %vm2652, %v11394, %v11404
    %v11406 = vrot.slane %v11376, 4
    %v11407 = vsel %vm2652, %v11397, %v11406
    %v11408 = vrot.slane %v11377, 4
    %v11409 = vsel %vm2652, %v11400, %v11408
    %v11422 = vmax.f32 %v11366, %v11392
    %v11423 = vmax.f32 %v11367, %v11395
    %v11424 = vmax.f32 %v11368, %v11398
    %v11425 = vmax.f32 %v11369, %v11401
    %v11426 = vmax.f32 %v11370, %v11403
    %v11427 = vmax.f32 %v11371, %v11405
    %v11428 = vmax.f32 %v11372, %v11407
    %v11429 = vmax.f32 %v11373, %v11409
    %v11430 = vmax.f32 %v11374, %v11402
    %v11431 = vmax.f32 %v11375, %v11404
    %v11432 = vmax.f32 %v11376, %v11406
    %v11433 = vmax.f32 %v11377, %v11408
    %v11434 = vld [vmem:[%s11] sm:$0xf]
    %v11436 = vperm.slane %v11434, 0
    %v11437 = vperm.slane %v11434, 1
    %v11438 = vperm.slane %v11434, 2
    %v11439 = vperm.slane %v11434, 3
    %v11444 = vadd.f32 %v11422, %v11436
    %v11445 = vadd.f32 %v11423, %v11437
    %v11446 = vadd.f32 %v11424, %v11438
    %v11447 = vadd.f32 %v11425, %v11439
    %v11448 = vadd.f32 %v11426, %v11436
    %v11449 = vadd.f32 %v11427, %v11437
    %v11450 = vadd.f32 %v11428, %v11438
    %v11451 = vadd.f32 %v11429, %v11439
    %v11452 = vadd.f32 %v11430, %v11436
    %v11453 = vadd.f32 %v11431, %v11437
    %v11454 = vadd.f32 %v11432, %v11438
    %v11455 = vadd.f32 %v11433, %v11439
    %v11456 = vmax.f32 %v11444, 0.0
    %v11457 = vmax.f32 %v11445, 0.0
    %v11458 = vmax.f32 %v11446, 0.0
    %v11459 = vmax.f32 %v11447, 0.0
    %v11460 = vmax.f32 %v11448, 0.0
    %v11461 = vmax.f32 %v11449, 0.0
    %v11462 = vmax.f32 %v11450, 0.0
    %v11463 = vmax.f32 %v11451, 0.0
    %v11464 = vmax.f32 %v11452, 0.0
    %v11465 = vmax.f32 %v11453, 0.0
    %v11466 = vmax.f32 %v11454, 0.0
    %v11467 = vmax.f32 %v11455, 0.0
    %v11468 = vld [vmem:[%s12] sm:$0x1]
    %v11469 = vpack.c.bf16 %v11460, %v11456
    %v11470 = vpack.c.bf16 %v11461, %v11457
    %v11471 = vpack.c.bf16 %v11462, %v11458
    %v11472 = vpack.c.bf16 %v11463, %v11459
    %v11473 = vpack.c.bf16 %v11464, %v11464
    %v11474 = vpack.c.bf16 %v11465, %v11465
    %v11475 = vpack.c.bf16 %v11466, %v11466
    %v11476 = vpack.c.bf16 %v11467, %v11467
    %vm11477 = vcmask 138240
    %v11479 = vsel %vm11477, %v11468, 0
    %v11481 = vsel 0, 4294967295, 65535
    %v11482 = vsel %vm4655, %v11481, 0
    %v11484 = vand.u32 %v11473, %v11482
    %v11487 = vand.u32 %v11474, %v11482
    %v11490 = vand.u32 %v11475, %v11482
    %v11493 = vand.u32 %v11476, %v11482
    %11495 = vmatpush.bf16.msra.mxu0 0
    %11496 = vmatpush.bf16.msra.mxu0 0
    %11497 = vmatpush.bf16.msra.mxu0 0
    %11498 = vmatpush.bf16.msra.mxu0 0
    %11499 = vmatpush.bf16.msra.mxu0 0
    %11500 = vmatpush.bf16.msra.mxu0 0
    %11501 = vmatpush.bf16.msra.mxu0 %v11484
    %11502 = vmatpush.bf16.msra.mxu0 %v11469
    %11503 = vmatmul.bf16.gmra.mxu0 %v11479
    %v11504 = vpop.f32.mrf.mxu0
    %v11505 = vadd.f32 0.0, %v11504
    %v11506 = vpop.f32.mrf.mxu0
    %11507 = vdwg.mxu0
    %11508 = vmatpush.bf16.msra.mxu0 0
    %11509 = vmatpush.bf16.msra.mxu0 0
    %11510 = vmatpush.bf16.msra.mxu0 0
    %11511 = vmatpush.bf16.msra.mxu0 0
    %11512 = vmatpush.bf16.msra.mxu0 0
    %11513 = vmatpush.bf16.msra.mxu0 0
    %11514 = vmatpush.bf16.msra.mxu0 %v11487
    %11515 = vmatpush.bf16.msra.mxu0 %v11470
    %11516 = vmatmul.bf16.gmra.mxu0 %v11479
    %v11517 = vpop.f32.mrf.mxu0
    %v11518 = vadd.f32 0.0, %v11517
    %v11519 = vpop.f32.mrf.mxu0
    %11520 = vdwg.mxu0
    %11521 = vmatpush.bf16.msra.mxu0 0
    %11522 = vmatpush.bf16.msra.mxu0 0
    %11523 = vmatpush.bf16.msra.mxu0 0
    %11524 = vmatpush.bf16.msra.mxu0 0
    %11525 = vmatpush.bf16.msra.mxu0 0
    %11526 = vmatpush.bf16.msra.mxu0 0
    %11527 = vmatpush.bf16.msra.mxu0 %v11490
    %11528 = vmatpush.bf16.msra.mxu0 %v11471
    %11529 = vmatmul.bf16.gmra.mxu0 %v11479
    %v11530 = vpop.f32.mrf.mxu0
    %v11531 = vadd.f32 0.0, %v11530
    %v11532 = vpop.f32.mrf.mxu0
    %11533 = vdwg.mxu0
    %11534 = vmatpush.bf16.msra.mxu0 0
    %11535 = vmatpush.bf16.msra.mxu0 0
    %11536 = vmatpush.bf16.msra.mxu0 0
    %11537 = vmatpush.bf16.msra.mxu0 0
    %11538 = vmatpush.bf16.msra.mxu0 0
    %11539 = vmatpush.bf16.msra.mxu0 0
    %11540 = vmatpush.bf16.msra.mxu0 %v11493
    %11541 = vmatpush.bf16.msra.mxu0 %v11472
    %11542 = vmatmul.bf16.gmra.mxu0 %v11479
    %v11543 = vpop.f32.mrf.mxu0
    %v11544 = vadd.f32 0.0, %v11543
    %v11545 = vpop.f32.mrf.mxu0
    %11546 = vdwg.mxu0
    %v11547 = vpack.c.bf16 %v11505, %v11505
    %v11548 = vpack.c.bf16 %v11518, %v11518
    %v11549 = vpack.c.bf16 %v11531, %v11531
    %v11550 = vpack.c.bf16 %v11544, %v11544
    %v11551 = vld [vmem:[%s13] sm:$0xf]
    %v11552 = vld [vmem:[%s13 + $0x4] sm:$0xf]
    %v11553 = vld [vmem:[%s13 + $0x8] sm:$0xf]
    %v11554 = vld [vmem:[%s13 + $0xc] sm:$0xf]
    %v11555 = vld [vmem:[%s13 + $0x10] sm:$0xf]
    %v11556 = vld [vmem:[%s13 + $0x14] sm:$0xf]
    %v11557 = vld [vmem:[%s13 + $0x18] sm:$0xf]
    %v11558 = vld [vmem:[%s13 + $0x1c] sm:$0xf]
    %v11559 = vld [vmem:[%s13 + $0x20] sm:$0xf]
    %v11560 = vld [vmem:[%s13 + $0x24] sm:$0xf]
    %v11561 = vld [vmem:[%s13 + $0x28] sm:$0xf]
    %v11562 = vld [vmem:[%s13 + $0x2c] sm:$0xf]
    %v11563 = vld [vmem:[%s13 + $0x30] sm:$0xf]
    %v11564 = vld [vmem:[%s13 + $0x34] sm:$0xf]
    %v11565 = vld [vmem:[%s13 + $0x38] sm:$0xf]
    %v11566 = vld [vmem:[%s13 + $0x3c] sm:$0xf]
    %v11567 = vld [vmem:[%s13 + $0x40] sm:$0xf]
    %v11568 = vld [vmem:[%s13 + $0x44] sm:$0xf]
    %v11569 = vld [vmem:[%s13 + $0x48] sm:$0xf]
    %v11570 = vld [vmem:[%s13 + $0x4c] sm:$0xf]
    %v11571 = vld [vmem:[%s13 + $0x50] sm:$0xf]
    %v11572 = vld [vmem:[%s13 + $0x54] sm:$0xf]
    %v11573 = vld [vmem:[%s13 + $0x58] sm:$0xf]
    %v11574 = vld [vmem:[%s13 + $0x5c] sm:$0xf]
    %v11575 = vld [vmem:[%s13 + $0x60] sm:$0xf]
    %v11576 = vld [vmem:[%s13 + $0x64] sm:$0xf]
    %v11577 = vld [vmem:[%s13 + $0x68] sm:$0xf]
    %v11578 = vld [vmem:[%s13 + $0x6c] sm:$0xf]
    %v11579 = vld [vmem:[%s13 + $0x70] sm:$0xf]
    %v11580 = vld [vmem:[%s13 + $0x74] sm:$0xf]
    %v11581 = vld [vmem:[%s13 + $0x78] sm:$0xf]
    %v11582 = vld [vmem:[%s13 + $0x7c] sm:$0xf]
    %v11583 = vld [vmem:[%s13 + $0x80] sm:$0xf]
    %v11584 = vld [vmem:[%s13 + $0x84] sm:$0xf]
    %v11585 = vld [vmem:[%s13 + $0x88] sm:$0xf]
    %v11586 = vld [vmem:[%s13 + $0x8c] sm:$0xf]
    %v11587 = vld [vmem:[%s13 + $0x90] sm:$0xf]
    %v11588 = vld [vmem:[%s13 + $0x94] sm:$0xf]
    %v11589 = vld [vmem:[%s13 + $0x98] sm:$0xf]
    %v11590 = vld [vmem:[%s13 + $0x9c] sm:$0xf]
    %v11591 = vld [vmem:[%s13 + $0xa0] sm:$0xf]
    %v11592 = vld [vmem:[%s13 + $0xa4] sm:$0xf]
    %v11593 = vld [vmem:[%s13 + $0xa8] sm:$0xf]
    %v11594 = vld [vmem:[%s13 + $0xac] sm:$0xf]
    %v11595 = vld [vmem:[%s13 + $0xb0] sm:$0xf]
    %v11596 = vld [vmem:[%s13 + $0xb4] sm:$0xf]
    %v11597 = vld [vmem:[%s13 + $0xb8] sm:$0xf]
    %v11598 = vld [vmem:[%s13 + $0xbc] sm:$0xf]
    %v11599 = vld [vmem:[%s13 + $0xc0] sm:$0xf]
    %v11600 = vld [vmem:[%s13 + $0xc4] sm:$0xf]
    %v11601 = vld [vmem:[%s13 + $0xc8] sm:$0xf]
    %v11602 = vld [vmem:[%s13 + $0xcc] sm:$0xf]
    %v11603 = vld [vmem:[%s13 + $0xd0] sm:$0xf]
    %v11604 = vld [vmem:[%s13 + $0xd4] sm:$0xf]
    %v11605 = vld [vmem:[%s13 + $0xd8] sm:$0xf]
    %v11606 = vld [vmem:[%s13 + $0xdc] sm:$0xf]
    %v11607 = vld [vmem:[%s13 + $0xe0] sm:$0xf]
    %v11608 = vld [vmem:[%s13 + $0xe4] sm:$0xf]
    %v11609 = vld [vmem:[%s13 + $0xe8] sm:$0xf]
    %v11610 = vld [vmem:[%s13 + $0xec] sm:$0xf]
    %v11611 = vld [vmem:[%s13 + $0xf0] sm:$0xf]
    %v11612 = vld [vmem:[%s13 + $0xf4] sm:$0xf]
    %v11613 = vld [vmem:[%s13 + $0xf8] sm:$0xf]
    %v11614 = vld [vmem:[%s13 + $0xfc] sm:$0xf]
    %v11615 = vld [vmem:[%s14] sm:$0x1]
    %v11617 = vperm.slane %v11615, 0
    %v11683 = vunpack.c.l.b16 %v11551
    %v11684 = vunpack.c.l.b16 %v11552
    %v11685 = vunpack.c.l.b16 %v11553
    %v11686 = vunpack.c.l.b16 %v11554
    %v11687 = vunpack.c.l.b16 %v11555
    %v11688 = vunpack.c.l.b16 %v11556
    %v11689 = vunpack.c.l.b16 %v11557
    %v11690 = vunpack.c.l.b16 %v11558
    %v11691 = vunpack.c.l.b16 %v11559
    %v11692 = vunpack.c.l.b16 %v11560
    %v11693 = vunpack.c.l.b16 %v11561
    %v11694 = vunpack.c.l.b16 %v11562
    %v11695 = vunpack.c.l.b16 %v11563
    %v11696 = vunpack.c.l.b16 %v11564
    %v11697 = vunpack.c.l.b16 %v11565
    %v11698 = vunpack.c.l.b16 %v11566
    %v11699 = vunpack.c.l.b16 %v11567
    %v11700 = vunpack.c.l.b16 %v11568
    %v11701 = vunpack.c.l.b16 %v11569
    %v11702 = vunpack.c.l.b16 %v11570
    %v11703 = vunpack.c.l.b16 %v11571
    %v11704 = vunpack.c.l.b16 %v11572
    %v11705 = vunpack.c.l.b16 %v11573
    %v11706 = vunpack.c.l.b16 %v11574
    %v11707 = vunpack.c.l.b16 %v11575
    %v11708 = vunpack.c.l.b16 %v11576
    %v11709 = vunpack.c.l.b16 %v11577
    %v11710 = vunpack.c.l.b16 %v11578
    %v11711 = vunpack.c.l.b16 %v11579
    %v11712 = vunpack.c.l.b16 %v11580
    %v11713 = vunpack.c.l.b16 %v11581
    %v11714 = vunpack.c.l.b16 %v11582
    %v11715 = vunpack.c.l.b16 %v11583
    %v11716 = vunpack.c.l.b16 %v11584
    %v11717 = vunpack.c.l.b16 %v11585
    %v11718 = vunpack.c.l.b16 %v11586
    %v11719 = vunpack.c.l.b16 %v11587
    %v11720 = vunpack.c.l.b16 %v11588
    %v11721 = vunpack.c.l.b16 %v11589
    %v11722 = vunpack.c.l.b16 %v11590
    %v11723 = vunpack.c.l.b16 %v11591
    %v11724 = vunpack.c.l.b16 %v11592
    %v11725 = vunpack.c.l.b16 %v11593
    %v11726 = vunpack.c.l.b16 %v11594
    %v11727 = vunpack.c.l.b16 %v11595
    %v11728 = vunpack.c.l.b16 %v11596
    %v11729 = vunpack.c.l.b16 %v11597
    %v11730 = vunpack.c.l.b16 %v11598
    %v11731 = vunpack.c.l.b16 %v11599
    %v11732 = vunpack.c.l.b16 %v11600
    %v11733 = vunpack.c.l.b16 %v11601
    %v11734 = vunpack.c.l.b16 %v11602
    %v11735 = vunpack.c.l.b16 %v11603
    %v11736 = vunpack.c.l.b16 %v11604
    %v11737 = vunpack.c.l.b16 %v11605
    %v11738 = vunpack.c.l.b16 %v11606
    %v11739 = vunpack.c.l.b16 %v11607
    %v11740 = vunpack.c.l.b16 %v11608
    %v11741 = vunpack.c.l.b16 %v11609
    %v11742 = vunpack.c.l.b16 %v11610
    %v11743 = vunpack.c.l.b16 %v11611
    %v11744 = vunpack.c.l.b16 %v11612
    %v11745 = vunpack.c.l.b16 %v11613
    %v11746 = vunpack.c.l.b16 %v11614
    %v11747 = vpack.c.b16 %v11684, %v11683
    %v11748 = vpack.c.b16 %v11686, %v11685
    %v11749 = vpack.c.b16 %v11688, %v11687
    %v11750 = vpack.c.b16 %v11690, %v11689
    %v11751 = vpack.c.b16 %v11692, %v11691
    %v11752 = vpack.c.b16 %v11694, %v11693
    %v11753 = vpack.c.b16 %v11696, %v11695
    %v11754 = vpack.c.b16 %v11698, %v11697
    %v11755 = vpack.c.b16 %v11700, %v11699
    %v11756 = vpack.c.b16 %v11702, %v11701
    %v11757 = vpack.c.b16 %v11704, %v11703
    %v11758 = vpack.c.b16 %v11706, %v11705
    %v11759 = vpack.c.b16 %v11708, %v11707
    %v11760 = vpack.c.b16 %v11710, %v11709
    %v11761 = vpack.c.b16 %v11712, %v11711
    %v11762 = vpack.c.b16 %v11714, %v11713
    %v11763 = vpack.c.b16 %v11716, %v11715
    %v11764 = vpack.c.b16 %v11718, %v11717
    %v11765 = vpack.c.b16 %v11720, %v11719
    %v11766 = vpack.c.b16 %v11722, %v11721
    %v11767 = vpack.c.b16 %v11724, %v11723
    %v11768 = vpack.c.b16 %v11726, %v11725
    %v11769 = vpack.c.b16 %v11728, %v11727
    %v11770 = vpack.c.b16 %v11730, %v11729
    %v11771 = vpack.c.b16 %v11732, %v11731
    %v11772 = vpack.c.b16 %v11734, %v11733
    %v11773 = vpack.c.b16 %v11736, %v11735
    %v11774 = vpack.c.b16 %v11738, %v11737
    %v11775 = vpack.c.b16 %v11740, %v11739
    %v11776 = vpack.c.b16 %v11742, %v11741
    %v11777 = vpack.c.b16 %v11744, %v11743
    %v11778 = vpack.c.b16 %v11746, %v11745
    %11811 = vmatpush.bf16.msra.mxu0 %v11754
    %11812 = vmatpush.bf16.msra.mxu0 %v11753
    %11813 = vmatpush.bf16.msra.mxu0 %v11752
    %11814 = vmatpush.bf16.msra.mxu0 %v11751
    %11815 = vmatpush.bf16.msra.mxu0 %v11750
    %11816 = vmatpush.bf16.msra.mxu0 %v11749
    %11817 = vmatpush.bf16.msra.mxu0 %v11748
    %11818 = vmatpush.bf16.msra.mxu0 %v11747
    %11819 = vmatmul.bf16.gmra.mxu0 %v11547
    %v11820 = vpop.f32.mrf.mxu0
    %v11821 = vadd.f32 %v11617, %v11820
    %v11822 = vpop.f32.mrf.mxu0
    %11823 = vdwg.mxu0
    %11824 = vmatpush.bf16.msra.mxu0 %v11762
    %11825 = vmatpush.bf16.msra.mxu0 %v11761
    %11826 = vmatpush.bf16.msra.mxu0 %v11760
    %11827 = vmatpush.bf16.msra.mxu0 %v11759
    %11828 = vmatpush.bf16.msra.mxu0 %v11758
    %11829 = vmatpush.bf16.msra.mxu0 %v11757
    %11830 = vmatpush.bf16.msra.mxu0 %v11756
    %11831 = vmatpush.bf16.msra.mxu0 %v11755
    %11832 = vmatmul.bf16.gmra.mxu0 %v11548
    %v11833 = vpop.f32.mrf.mxu0
    %v11834 = vadd.f32 %v11821, %v11833
    %v11835 = vpop.f32.mrf.mxu0
    %11836 = vdwg.mxu0
    %11837 = vmatpush.bf16.msra.mxu0 %v11770
    %11838 = vmatpush.bf16.msra.mxu0 %v11769
    %11839 = vmatpush.bf16.msra.mxu0 %v11768
    %11840 = vmatpush.bf16.msra.mxu0 %v11767
    %11841 = vmatpush.bf16.msra.mxu0 %v11766
    %11842 = vmatpush.bf16.msra.mxu0 %v11765
    %11843 = vmatpush.bf16.msra.mxu0 %v11764
    %11844 = vmatpush.bf16.msra.mxu0 %v11763
    %11845 = vmatmul.bf16.gmra.mxu0 %v11549
    %v11846 = vpop.f32.mrf.mxu0
    %v11847 = vadd.f32 %v11834, %v11846
    %v11848 = vpop.f32.mrf.mxu0
    %11849 = vdwg.mxu0
    %11850 = vmatpush.bf16.msra.mxu0 %v11778
    %11851 = vmatpush.bf16.msra.mxu0 %v11777
    %11852 = vmatpush.bf16.msra.mxu0 %v11776
    %11853 = vmatpush.bf16.msra.mxu0 %v11775
    %11854 = vmatpush.bf16.msra.mxu0 %v11774
    %11855 = vmatpush.bf16.msra.mxu0 %v11773
    %11856 = vmatpush.bf16.msra.mxu0 %v11772
    %11857 = vmatpush.bf16.msra.mxu0 %v11771
    %11858 = vmatmul.bf16.gmra.mxu0 %v11550
    %v11859 = vpop.f32.mrf.mxu0
    %v11860 = vadd.f32 %v11847, %v11859
    %v11861 = vpop.f32.mrf.mxu0
    %11862 = vdwg.mxu0
    %v11863 = vsub.f32 0.0, %v11860
    %v11864 = vmul.f32 %v11863, 1.442695
    %v11865 = vpow.pop %v11864
    %v11866 = vadd.f32 %v11865, 1.0
    %v11867 = vrcp.pop %v11866
    %vm11868 = vcmask 25600
    %11869 = vst.msk [vmem:[#allocation2] sm:$0x3] %vm11868, %v11867
    // Predicated region
    $region62: #{nn_downscale_forward.1} parent=1 // pred_check
      _
    $region63: #{nn_downscale_forward.1} parent=1 // pred_check_branch
      %11871 = sbr.rel (0) target = $region65
    $region64: #{nn_downscale_forward.1} parent=1 // pred_region
      %11873 = vsyncadd [#allocation3], 0
      %s11875 = sshll.u32 [#allocation2], 4
      %s11876 = int_to_ptr.vmem [resolvable:$true] %s11875
      %s11877 = sshll.u32 %s15, 4
      %s11878 = int_to_ptr.hbm [resolvable:$true] %s11877
      %11880 = dma.vmem_to_hbm [thread:$0]  %s11876, 32, %s11878, [#allocation3]
    $region65: #{nn_downscale_forward.1} parent=1 // pred_fallthru
      _
    // Predicated region
    $region66: #{nn_downscale_forward.1} parent=1 // pred_check
      _
    $region67: #{nn_downscale_forward.1} parent=1 // pred_check_branch
      %11882 = sbr.rel (0) target = $region69
    $region68: #{nn_downscale_forward.1} parent=1 // pred_region
      %11884 = dma.done [#allocation3], 32
    $region69: #{nn_downscale_forward.1} parent=1 // pred_fallthru
      _
    %11885 = vsyncpa [#allocation3], 1

</llo_original>
